<compile_context>
chip_gen: v7x
topology: tpu7x:2x2x1
jax: 0.10.0
libtpu: 0.0.40
codegen_flags: <defaults>
</compile_context>

<pallas_src>
import numpy as np
import jax
import jax.numpy as jnp
from jax import lax
from jax.experimental import pallas as pl
from jax.experimental.pallas import tpu as pltpu

# ----------------------------- configuration --------------------------------
N, C, H, W = 2, 4, 16, 16        # AttBlock(in_planes=C, planes=C, stride=1)
POOLS = (3, 5, 7)                # max-pool sizes of the three RestPoolBlocks
CONVK = 3                        # RestPoolBlock conv kernel size
SAK = 5                          # SpatialAttention conv kernel size
SAPAD = SAK // 2
WP = 32                          # padded W per channel block (lane block size)
PW = 3                           # intra-block left/right padding actually used
LANES = C * WP                   # 128 -> exactly one vreg of lanes
NH = N * H                       # 32 -> batch folded onto sublanes
NEG = -1e30                      # stand-in for -inf padding of max-pool
BN_EPS = 1e-5
NBR = len(POOLS)                 # 3 RestPool branches (+1 for the 1x1 branch)

# -------- parameter table layout: rows of 128-lane vectors (VMEM input) -----
ROW_W1 = 0                                   # 4 rows   (delta)         1x1 conv
ROW_WC = ROW_W1 + C                          # 108 rows (br, tap, delta) 3x3 convs
ROW_BIAS = ROW_WC + NBR * CONVK * CONVK * C  # 3 rows   conv bias
ROW_BNS = ROW_BIAS + NBR                     # 3 rows   folded BN scale
ROW_BNB = ROW_BNS + NBR                      # 3 rows   folded BN shift
ROW_SAA = ROW_BNB + NBR                      # 25 rows  SA weight (avg channel)
ROW_SAM = ROW_SAA + SAK * SAK                # 25 rows  SA weight (max channel)
ROW_NEG = ROW_SAM + SAK * SAK                # 1 row    additive -inf lane mask
ROW_BVM = ROW_NEG + 1                        # 4 rows   per-branch block masks
NROWS = ROW_BVM + (1 + NBR)                  # 176


# ----------------------- feature probes (import time) ------------------------
def _try_run(thunk):
    try:
        return jax.block_until_ready(thunk())
    except Exception:
        return None


def _detect_features():
    """Probe stride-0 broadcast loads and pltpu.roll direction on this backend."""
    stride0_ok = False
    roll_ok = False
    lane_sign = -1
    row_sign = -1

    # (a) stride-0 sublane-broadcast load
    def k_bcast(s_ref, o_ref):
        o_ref[...] = s_ref[pl.ds(1, 8, stride=0), :]

    src = jnp.tile(jnp.arange(16, dtype=jnp.float32)[:, None], (1, 128))
    out = _try_run(lambda: pl.pallas_call(
        k_bcast, out_shape=jax.ShapeDtypeStruct((8, 128), jnp.float32))(src))
    if out is not None and bool(jnp.all(out == 1.0)):
        stride0_ok = True

    # (b) pltpu.roll availability + direction on lane / sublane axes
    def k_roll(s_ref, o_lane, o_row):
        o_lane[...] = pltpu.roll(s_ref[...], 1, axis=1)
        o_row[...] = pltpu.roll(s_ref[...], 1, axis=0)

    src2 = (lax.broadcasted_iota(jnp.float32, (16, 128), 1)
            + 1000.0 * lax.broadcasted_iota(jnp.float32, (16, 128), 0))
    out2 = _try_run(lambda: pl.pallas_call(
        k_roll,
        out_shape=(jax.ShapeDtypeStruct((16, 128), jnp.float32),
                   jax.ShapeDtypeStruct((16, 128), jnp.float32)))(src2))
    if out2 is not None:
        roll_ok = True
        v_l = float(out2[0][0, 0])
        v_r = float(out2[1][0, 0])
        if v_l == 127.0:
            lane_sign = -1
        elif v_l == 1.0:
            lane_sign = +1
        else:
            roll_ok = False
        if v_r == 15000.0:
            row_sign = -1
        elif v_r == 1000.0:
            row_sign = +1
        else:
            roll_ok = False
    return stride0_ok, roll_ok, lane_sign, row_sign


_STRIDE0_OK, _ROLL_OK, _LANE_SIGN, _ROW_SIGN = _detect_features()


# --------------------------- in-kernel shift helpers -------------------------
def _lane_shift(t, dw):
    """out[:, l] = t[:, (l + dw) % LANES]  (circular lane rotate, XLU)."""
    d = dw % LANES
    if d == 0:
        return t
    if _ROLL_OK:
        return pltpu.roll(t, (_LANE_SIGN * dw) % LANES, axis=1)
    return jnp.concatenate([t[:, d:], t[:, :d]], axis=1)


def _row_shift(t, dh, pad_val, hmod):
    """out[r, :] = t[r + dh, :] if (r % H) + dh lands inside the same image,
    else pad_val.  hmod is the precomputed (rows, LANES) int32 array of r % H."""
    if dh == 0:
        return t
    nr = t.shape[0]
    if _ROLL_OK:
        shifted = pltpu.roll(t, (_ROW_SIGN * dh) % nr, axis=0)
    else:
        fill = jnp.full((abs(dh), t.shape[1]), pad_val, jnp.float32)
        if dh > 0:
            shifted = jnp.concatenate([t[dh:, :], fill], axis=0)
        else:
            shifted = jnp.concatenate([fill, t[:dh, :]], axis=0)
    if dh > 0:
        valid = hmod < (H - dh)
    else:
        valid = hmod >= (-dh)
    return jnp.where(valid, shifted, pad_val)


# --------------------------------- kernel ------------------------------------
def attblock_kernel(ptbl_ref, x_ref, out_ref):
    f32 = jnp.float32

    def prow(r):
        # parameter row r broadcast to all 32 sublanes
        if _STRIDE0_OK:
            return ptbl_ref[pl.ds(r, NH, stride=0), :]     # (32, 128), no bcast op
        return ptbl_ref[r:r + 1, :]                        # (1, 128), implicit bcast

    # per-image row index (r % H), hoisted once per row count
    hmod32 = lax.broadcasted_iota(jnp.int32, (NH, LANES), 0) & (H - 1)
    hmod64 = lax.broadcasted_iota(jnp.int32, (2 * NH, LANES), 0) & (H - 1)

    # ---------- pack NCHW -> lane-dense (N*H, C*WP): in-kernel, no host repack
    zpre = jnp.zeros((H, PW), f32)
    zpost = jnp.zeros((H, WP - PW - W), f32)
    xrows = []
    for n in range(N):
        pieces = []
        for c in range(C):
            pieces += [zpre, x_ref[n, c, :, :], zpost]
        xrows.append(jnp.concatenate(pieces, axis=1))      # (16, 128)
    x = jnp.concatenate(xrows, axis=0)                     # (32, 128)

    # ---------------- convolutions: 1x1 (branch 0) + three 3x3 ---------------
    y1 = jnp.zeros((NH, LANES), f32)
    yb = [jnp.zeros((NH, LANES), f32) for _ in range(NBR)]
    for kh in range(CONVK):
        xr = _row_shift(x, kh - 1, 0.0, hmod32)            # row shift once per kh
        for kw in range(CONVK):
            xrw = _lane_shift(xr, kw - 1)                  # kw roll once per (kh,kw)
            ti = kh * CONVK + kw
            for d in range(C):                             # circulant channel mixing
                xd = _lane_shift(xrw, d * WP)
                for br in range(NBR):
                    yb[br] = yb[br] + \
                        prow(ROW_WC + (br * CONVK * CONVK + ti) * C + d) * xd
                if kh == 1 and kw == 1:                    # 1x1 conv = centre tap
                    y1 = y1 + prow(ROW_W1 + d) * xd
    for br in range(NBR):
        yb[br] = yb[br] + prow(ROW_BIAS + br)

    # -------- RestPool branches: separable max-pool -> folded BN -> ReLU -----
    negm = prow(ROW_NEG)                                   # 0 valid, -1e30 on pads
    z = [y1]                                               # branch 0: raw 1x1 output
    for br, pool in enumerate(POOLS):
        pad = pool // 2
        yp = yb[br] + negm
        wmax = yp
        for dw in range(1, pad + 1):                       # W-direction pass
            wmax = jnp.maximum(wmax, _lane_shift(yp, dw))
            wmax = jnp.maximum(wmax, _lane_shift(yp, -dw))
        m = wmax
        for dh in range(1, pad + 1):                       # H-direction pass
            m = jnp.maximum(m, _row_shift(wmax, dh, NEG, hmod32))
            m = jnp.maximum(m, _row_shift(wmax, -dh, NEG, hmod32))
        zb = m * prow(ROW_BNS + br) + prow(ROW_BNB + br)
        z.append(jnp.maximum(zb, 0.0))

    # ------------- spatial attention: all 4 branches packed per block --------
    bvm = [prow(ROW_BVM + b) for b in range(1 + NBR)]      # loaded once, reused
    avg_all = jnp.zeros((NH, LANES), f32)
    max_all = jnp.zeros((NH, LANES), f32)
    for b in range(1 + NBR):
        s1 = _lane_shift(z[b], WP)
        s2 = _lane_shift(z[b], 2 * WP)
        s3 = _lane_shift(z[b], 3 * WP)
        csum = z[b] + s1 + s2 + s3                         # cross-channel sum
        cmax = jnp.maximum(jnp.maximum(z[b], s1), jnp.maximum(s2, s3))
        avg_all = avg_all + bvm[b] * (csum * 0.25)
        max_all = max_all + bvm[b] * cmax

    # one 5x5 SA conv for all 4 branches; avg / max maps stacked on sublanes
    am = jnp.concatenate([avg_all, max_all], axis=0)       # (64, 128)
    att_pre = jnp.zeros((NH, LANES), f32)
    for kh in range(SAK):
        amr = _row_shift(am, kh - SAPAD, 0.0, hmod64)      # shared by avg & max
        for kw in range(SAK):
            s = _lane_shift(amr, kw - SAPAD)
            ti = kh * SAK + kw
            att_pre = att_pre + prow(ROW_SAA + ti) * s[:NH] \
                              + prow(ROW_SAM + ti) * s[NH:]
    # exp -> EUP; exact divide kept (single op) for tight tolerance
    att = 1.0 / (1.0 + jnp.exp(-att_pre))

    # ------------------ out = identity + sum_b SA_b * branch_b ---------------
    acc = x
    for b in range(1 + NBR):
        ab = att * bvm[b]                                  # isolate branch b's map
        ab = ab + _lane_shift(ab, WP) + _lane_shift(ab, 2 * WP) \
                + _lane_shift(ab, 3 * WP)                  # replicate to all blocks
        acc = acc + ab * z[b]

    # ---------------- unpack lane-dense accumulator back to NCHW -------------
    for n in range(N):
        for c in range(C):
            out_ref[n, c, :, :] = \
                acc[n * H:(n + 1) * H, c * WP + PW: c * WP + PW + W]


# -------------------------------- wrapper -------------------------------------
@jax.jit
def attblock_pallas(ptbl, x):
    # no host-side layout plumbing: NCHW in, NCHW out, single kernel invocation
    return pl.pallas_call(
        attblock_kernel,
        out_shape=jax.ShapeDtypeStruct((N, C, H, W), jnp.float32),
    )(ptbl, x)


# -------------------- deterministic parameter construction --------------------
def init_params(key):
    ks = iter(jax.random.split(key, 64))
    P = {}
    P["w1"] = 0.3 * jax.random.normal(next(ks), (C, C), jnp.float32)
    P["sa1"] = 0.2 * jax.random.normal(next(ks), (2, SAK, SAK), jnp.float32)
    P["br"] = []
    for _ in POOLS:
        cw = 0.2 * jax.random.normal(next(ks), (C, C, CONVK, CONVK), jnp.float32)
        cb = 0.1 * jax.random.normal(next(ks), (C,), jnp.float32)
        gamma = 1.0 + 0.1 * jax.random.normal(next(ks), (C,), jnp.float32)
        beta = 0.1 * jax.random.normal(next(ks), (C,), jnp.float32)
        mean = 0.1 * jax.random.normal(next(ks), (C,), jnp.float32)
        var = jax.random.uniform(next(ks), (C,), jnp.float32, 0.5, 1.5)
        scale = gamma / jnp.sqrt(var + BN_EPS)          # eval-mode BN fold
        shift = beta - mean * scale
        saw = 0.2 * jax.random.normal(next(ks), (2, SAK, SAK), jnp.float32)
        P["br"].append(dict(w=cw, b=cb, scale=scale, shift=shift, sa=saw))
    return P


def build_param_table(P):
    rows = np.zeros((NROWS, LANES), np.float32)

    def bvec(vals):                     # per-channel-block value -> 128 lanes
        return np.repeat(np.asarray(vals, np.float32), WP)

    w1 = np.asarray(P["w1"])
    for d in range(C):
        rows[ROW_W1 + d] = bvec([w1[o, (o + d) % C] for o in range(C)])

    for br in range(NBR):
        w = np.asarray(P["br"][br]["w"])
        for ti in range(CONVK * CONVK):
            kh, kw = ti // CONVK, ti % CONVK
            for d in range(C):
                rows[ROW_WC + (br * CONVK * CONVK + ti) * C + d] = \
                    bvec([w[o, (o + d) % C, kh, kw] for o in range(C)])
        rows[ROW_BIAS + br] = bvec(np.asarray(P["br"][br]["b"]))
        rows[ROW_BNS + br] = bvec(np.asarray(P["br"][br]["scale"]))
        rows[ROW_BNB + br] = bvec(np.asarray(P["br"][br]["shift"]))

    sas = [np.asarray(P["sa1"])] + [np.asarray(P["br"][i]["sa"]) for i in range(NBR)]
    for ti in range(SAK * SAK):
        kh, kw = ti // SAK, ti % SAK
        rows[ROW_SAA + ti] = bvec([sas[b][0, kh, kw] for b in range(1 + NBR)])
        rows[ROW_SAM + ti] = bvec([sas[b][1, kh, kw] for b in range(1 + NBR)])

    lane = np.arange(LANES)
    wp = lane % WP
    blk = lane // WP
    wpvalid = (wp >= PW) & (wp < PW + W)
    rows[ROW_NEG] = np.where(wpvalid, 0.0, NEG).astype(np.float32)
    for b in range(1 + NBR):
        rows[ROW_BVM + b] = (wpvalid & (blk == b)).astype(np.float32)
    return jnp.asarray(rows)


# ----------------------------- pure-JAX reference -----------------------------
def _conv2d(x, w, b, pad):
    out = jax.lax.conv_general_dilated(
        x, w, window_strides=(1, 1), padding=[(pad, pad), (pad, pad)],
        dimension_numbers=("NCHW", "OIHW", "NCHW"),
        precision=jax.lax.Precision.HIGHEST)
    if b is not None:
        out = out + b[None, :, None, None]
    return out


def _maxpool(x, k):
    pad = k // 2
    return jax.lax.reduce_window(
        x, -jnp.inf, jax.lax.max,
        window_dimensions=(1, 1, k, k), window_strides=(1, 1, 1, 1),
        padding=((0, 0), (0, 0), (pad, pad), (pad, pad)))


def _spatial_attention_ref(x, saw):
    avg = jnp.mean(x, axis=1, keepdims=True)
    mx = jnp.max(x, axis=1, keepdims=True)
    cat = jnp.concatenate([avg, mx], axis=1)
    return jax.nn.sigmoid(_conv2d(cat, saw[None], None, SAPAD))


def attblock_reference(P, x):
    out1 = _conv2d(x, P["w1"][:, :, None, None], None, 0)
    out = x + _spatial_attention_ref(out1, P["sa1"]) * out1
    for d, pool in zip(P["br"], POOLS):
        y = _conv2d(x, d["w"], d["b"], 1)
        y = _maxpool(y, pool)
        y = jnp.maximum(y * d["scale"][None, :, None, None]
                        + d["shift"][None, :, None, None], 0.0)
        out = out + _spatial_attention_ref(y, d["sa"]) * y
    return out


# ----------------------------------- main --------------------------------------
if __name__ == "__main__":
    key = jax.random.PRNGKey(0)
    kp, kx = jax.random.split(key)
    P = init_params(kp)
    ptbl = build_param_table(P)
    x = jax.random.normal(kx, (N, C, H, W), jnp.float32)

    out = attblock_pallas(ptbl, x)
    out = jax.block_until_ready(out)

    ref = attblock_reference(P, x)
    err = float(jnp.max(jnp.abs(out - ref)))
    assert out.shape == (N, C, H, W)
    assert bool(jnp.all(jnp.isfinite(out)))
    assert err < 5e-3, f"max abs error vs reference too large: {err}"
    print("KERNEL_OK")
</pallas_src>

<mosaic_0001>
module attributes {stable_mosaic.version = 11 : i64} {
  func.func @k_bcast(%arg0: memref<16x128xf32, #tpu.memory_space<vmem>>, %arg1: memref<8x128xf32, #tpu.memory_space<vmem>>) attributes {dimension_semantics = [], scalar_prefetch = 0 : i64, scratch_operands = 0 : i64, tpu.core_type = #tpu.core_type<tc>} {
    %c1 = arith.constant 1 : index
    %c0 = arith.constant 0 : index
    %0 = tpu.strided_load %arg0[%c1, %c0] {strides = array<i32: 0, 1>} : memref<16x128xf32, #tpu.memory_space<vmem>>, vector<8x128xf32>
    %c0_0 = arith.constant 0 : index
    %c0_1 = arith.constant 0 : index
    %1 = vector.load %arg1[%c0_0, %c0_1] : memref<8x128xf32, #tpu.memory_space<vmem>>, vector<8x128xf32>
    tpu.vector_store %arg1[%c0_0, %c0_1], %0 {strides = array<i32>} : memref<8x128xf32, #tpu.memory_space<vmem>>, vector<8x128xf32>,
    return
  }
}

module attributes {stable_mosaic.version = 11 : i64} {
  func.func @k_roll(%arg0: memref<16x128xf32, #tpu.memory_space<vmem>>, %arg1: memref<16x128xf32, #tpu.memory_space<vmem>>, %arg2: memref<16x128xf32, #tpu.memory_space<vmem>>) attributes {dimension_semantics = [], scalar_prefetch = 0 : i64, scratch_operands = 0 : i64, tpu.core_type = #tpu.core_type<tc>} {
    %c0 = arith.constant 0 : index
    %c0_0 = arith.constant 0 : index
    %0 = vector.load %arg0[%c0, %c0_0] : memref<16x128xf32, #tpu.memory_space<vmem>>, vector<16x128xf32>
    %c1_i32 = arith.constant 1 : i32
    %1 = tpu.dynamic_rotate %0 by %c1_i32 dim 1 : vector<16x128xf32>, i32 -> vector<16x128xf32>
    %c0_1 = arith.constant 0 : index
    %c0_2 = arith.constant 0 : index
    %2 = vector.load %arg1[%c0_1, %c0_2] : memref<16x128xf32, #tpu.memory_space<vmem>>, vector<16x128xf32>
    tpu.vector_store %arg1[%c0_1, %c0_2], %1 {strides = array<i32>} : memref<16x128xf32, #tpu.memory_space<vmem>>, vector<16x128xf32>,
    %c0_3 = arith.constant 0 : index
    %c0_4 = arith.constant 0 : index
    %3 = vector.load %arg0[%c0_3, %c0_4] : memref<16x128xf32, #tpu.memory_space<vmem>>, vector<16x128xf32>
    %c1_i32_5 = arith.constant 1 : i32
    %4 = tpu.dynamic_rotate %3 by %c1_i32_5 dim 0 : vector<16x128xf32>, i32 -> vector<16x128xf32>
    %c0_6 = arith.constant 0 : index
    %c0_7 = arith.constant 0 : index
    %5 = vector.load %arg2[%c0_6, %c0_7] : memref<16x128xf32, #tpu.memory_space<vmem>>, vector<16x128xf32>
    tpu.vector_store %arg2[%c0_6, %c0_7], %4 {strides = array<i32>} : memref<16x128xf32, #tpu.memory_space<vmem>>, vector<16x128xf32>,
    return
  }
}

module attributes {stable_mosaic.version = 11 : i64} {
  func.func @attblock_kernel(%arg0: memref<176x128xf32, #tpu.memory_space<vmem>>, %arg1: memref<2x4x16x16xf32, #tpu.memory_space<vmem>>, %arg2: memref<2x4x16x16xf32, #tpu.memory_space<vmem>>) attributes {dimension_semantics = [], scalar_prefetch = 0 : i64, scratch_operands = 0 : i64, tpu.core_type = #tpu.core_type<tc>} {
    %0 = tpu.iota {dimensions = array<i32: 0>} : vector<32x128xi32>
    %c15_i32 = arith.constant 15 : i32
    %1 = vector.broadcast %c15_i32 : i32 to vector<32x128xi32>
    %2 = arith.andi %0, %1 : vector<32x128xi32>
    %3 = tpu.iota {dimensions = array<i32: 0>} : vector<64x128xi32>
    %c15_i32_0 = arith.constant 15 : i32
    %4 = vector.broadcast %c15_i32_0 : i32 to vector<64x128xi32>
    %5 = arith.andi %3, %4 : vector<64x128xi32>
    %cst = arith.constant 0.000000e+00 : f32
    %6 = vector.broadcast %cst : f32 to vector<16x3xf32>
    %cst_1 = arith.constant 0.000000e+00 : f32
    %7 = vector.broadcast %cst_1 : f32 to vector<16x13xf32>
    %c0 = arith.constant 0 : index
    %c0_2 = arith.constant 0 : index
    %c0_3 = arith.constant 0 : index
    %c0_4 = arith.constant 0 : index
    %8 = vector.load %arg1[%c0, %c0_2, %c0_3, %c0_4] : memref<2x4x16x16xf32, #tpu.memory_space<vmem>>, vector<1x1x16x16xf32>
    %9 = vector.shape_cast %8 : vector<1x1x16x16xf32> to vector<16x16xf32>
    %c0_5 = arith.constant 0 : index
    %c1 = arith.constant 1 : index
    %c0_6 = arith.constant 0 : index
    %c0_7 = arith.constant 0 : index
    %10 = vector.load %arg1[%c0_5, %c1, %c0_6, %c0_7] : memref<2x4x16x16xf32, #tpu.memory_space<vmem>>, vector<1x1x16x16xf32>
    %11 = vector.shape_cast %10 : vector<1x1x16x16xf32> to vector<16x16xf32>
    %c0_8 = arith.constant 0 : index
    %c2 = arith.constant 2 : index
    %c0_9 = arith.constant 0 : index
    %c0_10 = arith.constant 0 : index
    %12 = vector.load %arg1[%c0_8, %c2, %c0_9, %c0_10] : memref<2x4x16x16xf32, #tpu.memory_space<vmem>>, vector<1x1x16x16xf32>
    %13 = vector.shape_cast %12 : vector<1x1x16x16xf32> to vector<16x16xf32>
    %c0_11 = arith.constant 0 : index
    %c3 = arith.constant 3 : index
    %c0_12 = arith.constant 0 : index
    %c0_13 = arith.constant 0 : index
    %14 = vector.load %arg1[%c0_11, %c3, %c0_12, %c0_13] : memref<2x4x16x16xf32, #tpu.memory_space<vmem>>, vector<1x1x16x16xf32>
    %15 = vector.shape_cast %14 : vector<1x1x16x16xf32> to vector<16x16xf32>
    %16 = tpu.concatenate %6, %9, %7, %6, %11, %7, %6, %13, %7, %6, %15, %7 in 1 : vector<16x3xf32>, vector<16x16xf32>, vector<16x13xf32>, vector<16x3xf32>, vector<16x16xf32>, vector<16x13xf32>, vector<16x3xf32>, vector<16x16xf32>, vector<16x13xf32>, vector<16x3xf32>, vector<16x16xf32>, vector<16x13xf32> -> vector<16x128xf32>
    %c1_14 = arith.constant 1 : index
    %c0_15 = arith.constant 0 : index
    %c0_16 = arith.constant 0 : index
    %c0_17 = arith.constant 0 : index
    %17 = vector.load %arg1[%c1_14, %c0_15, %c0_16, %c0_17] : memref<2x4x16x16xf32, #tpu.memory_space<vmem>>, vector<1x1x16x16xf32>
    %18 = vector.shape_cast %17 : vector<1x1x16x16xf32> to vector<16x16xf32>
    %c1_18 = arith.constant 1 : index
    %c1_19 = arith.constant 1 : index
    %c0_20 = arith.constant 0 : index
    %c0_21 = arith.constant 0 : index
    %19 = vector.load %arg1[%c1_18, %c1_19, %c0_20, %c0_21] : memref<2x4x16x16xf32, #tpu.memory_space<vmem>>, vector<1x1x16x16xf32>
    %20 = vector.shape_cast %19 : vector<1x1x16x16xf32> to vector<16x16xf32>
    %c1_22 = arith.constant 1 : index
    %c2_23 = arith.constant 2 : index
    %c0_24 = arith.constant 0 : index
    %c0_25 = arith.constant 0 : index
    %21 = vector.load %arg1[%c1_22, %c2_23, %c0_24, %c0_25] : memref<2x4x16x16xf32, #tpu.memory_space<vmem>>, vector<1x1x16x16xf32>
    %22 = vector.shape_cast %21 : vector<1x1x16x16xf32> to vector<16x16xf32>
    %c1_26 = arith.constant 1 : index
    %c3_27 = arith.constant 3 : index
    %c0_28 = arith.constant 0 : index
    %c0_29 = arith.constant 0 : index
    %23 = vector.load %arg1[%c1_26, %c3_27, %c0_28, %c0_29] : memref<2x4x16x16xf32, #tpu.memory_space<vmem>>, vector<1x1x16x16xf32>
    %24 = vector.shape_cast %23 : vector<1x1x16x16xf32> to vector<16x16xf32>
    %25 = tpu.concatenate %6, %18, %7, %6, %20, %7, %6, %22, %7, %6, %24, %7 in 1 : vector<16x3xf32>, vector<16x16xf32>, vector<16x13xf32>, vector<16x3xf32>, vector<16x16xf32>, vector<16x13xf32>, vector<16x3xf32>, vector<16x16xf32>, vector<16x13xf32>, vector<16x3xf32>, vector<16x16xf32>, vector<16x13xf32> -> vector<16x128xf32>
    %26 = tpu.concatenate %16, %25 in 0 : vector<16x128xf32>, vector<16x128xf32> -> vector<32x128xf32>
    %cst_30 = arith.constant 0.000000e+00 : f32
    %27 = vector.broadcast %cst_30 : f32 to vector<32x128xf32>
    %cst_31 = arith.constant 0.000000e+00 : f32
    %28 = vector.broadcast %cst_31 : f32 to vector<32x128xf32>
    %cst_32 = arith.constant 0.000000e+00 : f32
    %29 = vector.broadcast %cst_32 : f32 to vector<32x128xf32>
    %cst_33 = arith.constant 0.000000e+00 : f32
    %30 = vector.broadcast %cst_33 : f32 to vector<32x128xf32>
    %cst_34 = arith.constant 0.000000e+00 : f32
    %31 = vector.broadcast %cst_34 : f32 to vector<1x128xf32>
    %32 = vector.extract_strided_slice %26 {offsets = [0, 0], sizes = [31, 128], strides = [1, 1]} : vector<32x128xf32> to vector<31x128xf32>
    %33 = tpu.concatenate %31, %32 in 0 : vector<1x128xf32>, vector<31x128xf32> -> vector<32x128xf32>
    %c1_i32 = arith.constant 1 : i32
    %34 = vector.broadcast %c1_i32 : i32 to vector<32x128xi32>
    %35 = arith.cmpi sge, %2, %34 : vector<32x128xi32>
    %cst_35 = arith.constant 0.000000e+00 : f32
    %36 = vector.broadcast %cst_35 : f32 to vector<32x128xf32>
    %37 = arith.select %35, %33, %36 : vector<32x128xi1>, vector<32x128xf32>
    %38 = vector.extract_strided_slice %37 {offsets = [0, 127], sizes = [32, 1], strides = [1, 1]} : vector<32x128xf32> to vector<32x1xf32>
    %39 = vector.extract_strided_slice %37 {offsets = [0, 0], sizes = [32, 127], strides = [1, 1]} : vector<32x128xf32> to vector<32x127xf32>
    %40 = tpu.concatenate %38, %39 in 1 : vector<32x1xf32>, vector<32x127xf32> -> vector<32x128xf32>
    %c4 = arith.constant 4 : index
    %c0_36 = arith.constant 0 : index
    %41 = vector.load %arg0[%c4, %c0_36] : memref<176x128xf32, #tpu.memory_space<vmem>>, vector<1x128xf32>
    %42 = vector.broadcast %41 : vector<1x128xf32> to vector<32x128xf32>
    %43 = arith.mulf %42, %40 : vector<32x128xf32>
    %44 = arith.addf %28, %43 : vector<32x128xf32>
    %c40 = arith.constant 40 : index
    %c0_37 = arith.constant 0 : index
    %45 = vector.load %arg0[%c40, %c0_37] : memref<176x128xf32, #tpu.memory_space<vmem>>, vector<1x128xf32>
    %46 = vector.broadcast %45 : vector<1x128xf32> to vector<32x128xf32>
    %47 = arith.mulf %46, %40 : vector<32x128xf32>
    %48 = arith.addf %29, %47 : vector<32x128xf32>
    %c76 = arith.constant 76 : index
    %c0_38 = arith.constant 0 : index
    %49 = vector.load %arg0[%c76, %c0_38] : memref<176x128xf32, #tpu.memory_space<vmem>>, vector<1x128xf32>
    %50 = vector.broadcast %49 : vector<1x128xf32> to vector<32x128xf32>
    %51 = arith.mulf %50, %40 : vector<32x128xf32>
    %52 = arith.addf %30, %51 : vector<32x128xf32>
    %53 = vector.extract_strided_slice %40 {offsets = [0, 32], sizes = [32, 96], strides = [1, 1]} : vector<32x128xf32> to vector<32x96xf32>
    %54 = vector.extract_strided_slice %40 {offsets = [0, 0], sizes = [32, 32], strides = [1, 1]} : vector<32x128xf32> to vector<32x32xf32>
    %55 = tpu.concatenate %53, %54 in 1 : vector<32x96xf32>, vector<32x32xf32> -> vector<32x128xf32>
    %c5 = arith.constant 5 : index
    %c0_39 = arith.constant 0 : index
    %56 = vector.load %arg0[%c5, %c0_39] : memref<176x128xf32, #tpu.memory_space<vmem>>, vector<1x128xf32>
    %57 = vector.broadcast %56 : vector<1x128xf32> to vector<32x128xf32>
    %58 = arith.mulf %57, %55 : vector<32x128xf32>
    %59 = arith.addf %44, %58 : vector<32x128xf32>
    %c41 = arith.constant 41 : index
    %c0_40 = arith.constant 0 : index
    %60 = vector.load %arg0[%c41, %c0_40] : memref<176x128xf32, #tpu.memory_space<vmem>>, vector<1x128xf32>
    %61 = vector.broadcast %60 : vector<1x128xf32> to vector<32x128xf32>
    %62 = arith.mulf %61, %55 : vector<32x128xf32>
    %63 = arith.addf %48, %62 : vector<32x128xf32>
    %c77 = arith.constant 77 : index
    %c0_41 = arith.constant 0 : index
    %64 = vector.load %arg0[%c77, %c0_41] : memref<176x128xf32, #tpu.memory_space<vmem>>, vector<1x128xf32>
    %65 = vector.broadcast %64 : vector<1x128xf32> to vector<32x128xf32>
    %66 = arith.mulf %65, %55 : vector<32x128xf32>
    %67 = arith.addf %52, %66 : vector<32x128xf32>
    %68 = vector.extract_strided_slice %40 {offsets = [0, 64], sizes = [32, 64], strides = [1, 1]} : vector<32x128xf32> to vector<32x64xf32>
    %69 = vector.extract_strided_slice %40 {offsets = [0, 0], sizes = [32, 64], strides = [1, 1]} : vector<32x128xf32> to vector<32x64xf32>
    %70 = tpu.concatenate %68, %69 in 1 : vector<32x64xf32>, vector<32x64xf32> -> vector<32x128xf32>
    %c6 = arith.constant 6 : index
    %c0_42 = arith.constant 0 : index
    %71 = vector.load %arg0[%c6, %c0_42] : memref<176x128xf32, #tpu.memory_space<vmem>>, vector<1x128xf32>
    %72 = vector.broadcast %71 : vector<1x128xf32> to vector<32x128xf32>
    %73 = arith.mulf %72, %70 : vector<32x128xf32>
    %74 = arith.addf %59, %73 : vector<32x128xf32>
    %c42 = arith.constant 42 : index
    %c0_43 = arith.constant 0 : index
    %75 = vector.load %arg0[%c42, %c0_43] : memref<176x128xf32, #tpu.memory_space<vmem>>, vector<1x128xf32>
    %76 = vector.broadcast %75 : vector<1x128xf32> to vector<32x128xf32>
    %77 = arith.mulf %76, %70 : vector<32x128xf32>
    %78 = arith.addf %63, %77 : vector<32x128xf32>
    %c78 = arith.constant 78 : index
    %c0_44 = arith.constant 0 : index
    %79 = vector.load %arg0[%c78, %c0_44] : memref<176x128xf32, #tpu.memory_space<vmem>>, vector<1x128xf32>
    %80 = vector.broadcast %79 : vector<1x128xf32> to vector<32x128xf32>
    %81 = arith.mulf %80, %70 : vector<32x128xf32>
    %82 = arith.addf %67, %81 : vector<32x128xf32>
    %83 = vector.extract_strided_slice %40 {offsets = [0, 96], sizes = [32, 32], strides = [1, 1]} : vector<32x128xf32> to vector<32x32xf32>
    %84 = vector.extract_strided_slice %40 {offsets = [0, 0], sizes = [32, 96], strides = [1, 1]} : vector<32x128xf32> to vector<32x96xf32>
    %85 = tpu.concatenate %83, %84 in 1 : vector<32x32xf32>, vector<32x96xf32> -> vector<32x128xf32>
    %c7 = arith.constant 7 : index
    %c0_45 = arith.constant 0 : index
    %86 = vector.load %arg0[%c7, %c0_45] : memref<176x128xf32, #tpu.memory_space<vmem>>, vector<1x128xf32>
    %87 = vector.broadcast %86 : vector<1x128xf32> to vector<32x128xf32>
    %88 = arith.mulf %87, %85 : vector<32x128xf32>
    %89 = arith.addf %74, %88 : vector<32x128xf32>
    %c43 = arith.constant 43 : index
    %c0_46 = arith.constant 0 : index
    %90 = vector.load %arg0[%c43, %c0_46] : memref<176x128xf32, #tpu.memory_space<vmem>>, vector<1x128xf32>
    %91 = vector.broadcast %90 : vector<1x128xf32> to vector<32x128xf32>
    %92 = arith.mulf %91, %85 : vector<32x128xf32>
    %93 = arith.addf %78, %92 : vector<32x128xf32>
    %c79 = arith.constant 79 : index
    %c0_47 = arith.constant 0 : index
    %94 = vector.load %arg0[%c79, %c0_47] : memref<176x128xf32, #tpu.memory_space<vmem>>, vector<1x128xf32>
    %95 = vector.broadcast %94 : vector<1x128xf32> to vector<32x128xf32>
    %96 = arith.mulf %95, %85 : vector<32x128xf32>
    %97 = arith.addf %82, %96 : vector<32x128xf32>
    %c8 = arith.constant 8 : index
    %c0_48 = arith.constant 0 : index
    %98 = vector.load %arg0[%c8, %c0_48] : memref<176x128xf32, #tpu.memory_space<vmem>>, vector<1x128xf32>
    %99 = vector.broadcast %98 : vector<1x128xf32> to vector<32x128xf32>
    %100 = arith.mulf %99, %37 : vector<32x128xf32>
    %101 = arith.addf %89, %100 : vector<32x128xf32>
    %c44 = arith.constant 44 : index
    %c0_49 = arith.constant 0 : index
    %102 = vector.load %arg0[%c44, %c0_49] : memref<176x128xf32, #tpu.memory_space<vmem>>, vector<1x128xf32>
    %103 = vector.broadcast %102 : vector<1x128xf32> to vector<32x128xf32>
    %104 = arith.mulf %103, %37 : vector<32x128xf32>
    %105 = arith.addf %93, %104 : vector<32x128xf32>
    %c80 = arith.constant 80 : index
    %c0_50 = arith.constant 0 : index
    %106 = vector.load %arg0[%c80, %c0_50] : memref<176x128xf32, #tpu.memory_space<vmem>>, vector<1x128xf32>
    %107 = vector.broadcast %106 : vector<1x128xf32> to vector<32x128xf32>
    %108 = arith.mulf %107, %37 : vector<32x128xf32>
    %109 = arith.addf %97, %108 : vector<32x128xf32>
    %110 = vector.extract_strided_slice %37 {offsets = [0, 32], sizes = [32, 96], strides = [1, 1]} : vector<32x128xf32> to vector<32x96xf32>
    %111 = vector.extract_strided_slice %37 {offsets = [0, 0], sizes = [32, 32], strides = [1, 1]} : vector<32x128xf32> to vector<32x32xf32>
    %112 = tpu.concatenate %110, %111 in 1 : vector<32x96xf32>, vector<32x32xf32> -> vector<32x128xf32>
    %c9 = arith.constant 9 : index
    %c0_51 = arith.constant 0 : index
    %113 = vector.load %arg0[%c9, %c0_51] : memref<176x128xf32, #tpu.memory_space<vmem>>, vector<1x128xf32>
    %114 = vector.broadcast %113 : vector<1x128xf32> to vector<32x128xf32>
    %115 = arith.mulf %114, %112 : vector<32x128xf32>
    %116 = arith.addf %101, %115 : vector<32x128xf32>
    %c45 = arith.constant 45 : index
    %c0_52 = arith.constant 0 : index
    %117 = vector.load %arg0[%c45, %c0_52] : memref<176x128xf32, #tpu.memory_space<vmem>>, vector<1x128xf32>
    %118 = vector.broadcast %117 : vector<1x128xf32> to vector<32x128xf32>
    %119 = arith.mulf %118, %112 : vector<32x128xf32>
    %120 = arith.addf %105, %119 : vector<32x128xf32>
    %c81 = arith.constant 81 : index
    %c0_53 = arith.constant 0 : index
    %121 = vector.load %arg0[%c81, %c0_53] : memref<176x128xf32, #tpu.memory_space<vmem>>, vector<1x128xf32>
    %122 = vector.broadcast %121 : vector<1x128xf32> to vector<32x128xf32>
    %123 = arith.mulf %122, %112 : vector<32x128xf32>
    %124 = arith.addf %109, %123 : vector<32x128xf32>
    %125 = vector.extract_strided_slice %37 {offsets = [0, 64], sizes = [32, 64], strides = [1, 1]} : vector<32x128xf32> to vector<32x64xf32>
    %126 = vector.extract_strided_slice %37 {offsets = [0, 0], sizes = [32, 64], strides = [1, 1]} : vector<32x128xf32> to vector<32x64xf32>
    %127 = tpu.concatenate %125, %126 in 1 : vector<32x64xf32>, vector<32x64xf32> -> vector<32x128xf32>
    %c10 = arith.constant 10 : index
    %c0_54 = arith.constant 0 : index
    %128 = vector.load %arg0[%c10, %c0_54] : memref<176x128xf32, #tpu.memory_space<vmem>>, vector<1x128xf32>
    %129 = vector.broadcast %128 : vector<1x128xf32> to vector<32x128xf32>
    %130 = arith.mulf %129, %127 : vector<32x128xf32>
    %131 = arith.addf %116, %130 : vector<32x128xf32>
    %c46 = arith.constant 46 : index
    %c0_55 = arith.constant 0 : index
    %132 = vector.load %arg0[%c46, %c0_55] : memref<176x128xf32, #tpu.memory_space<vmem>>, vector<1x128xf32>
    %133 = vector.broadcast %132 : vector<1x128xf32> to vector<32x128xf32>
    %134 = arith.mulf %133, %127 : vector<32x128xf32>
    %135 = arith.addf %120, %134 : vector<32x128xf32>
    %c82 = arith.constant 82 : index
    %c0_56 = arith.constant 0 : index
    %136 = vector.load %arg0[%c82, %c0_56] : memref<176x128xf32, #tpu.memory_space<vmem>>, vector<1x128xf32>
    %137 = vector.broadcast %136 : vector<1x128xf32> to vector<32x128xf32>
    %138 = arith.mulf %137, %127 : vector<32x128xf32>
    %139 = arith.addf %124, %138 : vector<32x128xf32>
    %140 = vector.extract_strided_slice %37 {offsets = [0, 96], sizes = [32, 32], strides = [1, 1]} : vector<32x128xf32> to vector<32x32xf32>
    %141 = vector.extract_strided_slice %37 {offsets = [0, 0], sizes = [32, 96], strides = [1, 1]} : vector<32x128xf32> to vector<32x96xf32>
    %142 = tpu.concatenate %140, %141 in 1 : vector<32x32xf32>, vector<32x96xf32> -> vector<32x128xf32>
    %c11 = arith.constant 11 : index
    %c0_57 = arith.constant 0 : index
    %143 = vector.load %arg0[%c11, %c0_57] : memref<176x128xf32, #tpu.memory_space<vmem>>, vector<1x128xf32>
    %144 = vector.broadcast %143 : vector<1x128xf32> to vector<32x128xf32>
    %145 = arith.mulf %144, %142 : vector<32x128xf32>
    %146 = arith.addf %131, %145 : vector<32x128xf32>
    %c47 = arith.constant 47 : index
    %c0_58 = arith.constant 0 : index
    %147 = vector.load %arg0[%c47, %c0_58] : memref<176x128xf32, #tpu.memory_space<vmem>>, vector<1x128xf32>
    %148 = vector.broadcast %147 : vector<1x128xf32> to vector<32x128xf32>
    %149 = arith.mulf %148, %142 : vector<32x128xf32>
    %150 = arith.addf %135, %149 : vector<32x128xf32>
    %c83 = arith.constant 83 : index
    %c0_59 = arith.constant 0 : index
    %151 = vector.load %arg0[%c83, %c0_59] : memref<176x128xf32, #tpu.memory_space<vmem>>, vector<1x128xf32>
    %152 = vector.broadcast %151 : vector<1x128xf32> to vector<32x128xf32>
    %153 = arith.mulf %152, %142 : vector<32x128xf32>
    %154 = arith.addf %139, %153 : vector<32x128xf32>
    %155 = vector.extract_strided_slice %37 {offsets = [0, 1], sizes = [32, 127], strides = [1, 1]} : vector<32x128xf32> to vector<32x127xf32>
    %156 = vector.extract_strided_slice %37 {offsets = [0, 0], sizes = [32, 1], strides = [1, 1]} : vector<32x128xf32> to vector<32x1xf32>
    %157 = tpu.concatenate %155, %156 in 1 : vector<32x127xf32>, vector<32x1xf32> -> vector<32x128xf32>
    %c12 = arith.constant 12 : index
    %c0_60 = arith.constant 0 : index
    %158 = vector.load %arg0[%c12, %c0_60] : memref<176x128xf32, #tpu.memory_space<vmem>>, vector<1x128xf32>
    %159 = vector.broadcast %158 : vector<1x128xf32> to vector<32x128xf32>
    %160 = arith.mulf %159, %157 : vector<32x128xf32>
    %161 = arith.addf %146, %160 : vector<32x128xf32>
    %c48 = arith.constant 48 : index
    %c0_61 = arith.constant 0 : index
    %162 = vector.load %arg0[%c48, %c0_61] : memref<176x128xf32, #tpu.memory_space<vmem>>, vector<1x128xf32>
    %163 = vector.broadcast %162 : vector<1x128xf32> to vector<32x128xf32>
    %164 = arith.mulf %163, %157 : vector<32x128xf32>
    %165 = arith.addf %150, %164 : vector<32x128xf32>
    %c84 = arith.constant 84 : index
    %c0_62 = arith.constant 0 : index
    %166 = vector.load %arg0[%c84, %c0_62] : memref<176x128xf32, #tpu.memory_space<vmem>>, vector<1x128xf32>
    %167 = vector.broadcast %166 : vector<1x128xf32> to vector<32x128xf32>
    %168 = arith.mulf %167, %157 : vector<32x128xf32>
    %169 = arith.addf %154, %168 : vector<32x128xf32>
    %170 = vector.extract_strided_slice %157 {offsets = [0, 32], sizes = [32, 96], strides = [1, 1]} : vector<32x128xf32> to vector<32x96xf32>
    %171 = vector.extract_strided_slice %157 {offsets = [0, 0], sizes = [32, 32], strides = [1, 1]} : vector<32x128xf32> to vector<32x32xf32>
    %172 = tpu.concatenate %170, %171 in 1 : vector<32x96xf32>, vector<32x32xf32> -> vector<32x128xf32>
    %c13 = arith.constant 13 : index
    %c0_63 = arith.constant 0 : index
    %173 = vector.load %arg0[%c13, %c0_63] : memref<176x128xf32, #tpu.memory_space<vmem>>, vector<1x128xf32>
    %174 = vector.broadcast %173 : vector<1x128xf32> to vector<32x128xf32>
    %175 = arith.mulf %174, %172 : vector<32x128xf32>
    %176 = arith.addf %161, %175 : vector<32x128xf32>
    %c49 = arith.constant 49 : index
    %c0_64 = arith.constant 0 : index
    %177 = vector.load %arg0[%c49, %c0_64] : memref<176x128xf32, #tpu.memory_space<vmem>>, vector<1x128xf32>
    %178 = vector.broadcast %177 : vector<1x128xf32> to vector<32x128xf32>
    %179 = arith.mulf %178, %172 : vector<32x128xf32>
    %180 = arith.addf %165, %179 : vector<32x128xf32>
    %c85 = arith.constant 85 : index
    %c0_65 = arith.constant 0 : index
    %181 = vector.load %arg0[%c85, %c0_65] : memref<176x128xf32, #tpu.memory_space<vmem>>, vector<1x128xf32>
    %182 = vector.broadcast %181 : vector<1x128xf32> to vector<32x128xf32>
    %183 = arith.mulf %182, %172 : vector<32x128xf32>
    %184 = arith.addf %169, %183 : vector<32x128xf32>
    %185 = vector.extract_strided_slice %157 {offsets = [0, 64], sizes = [32, 64], strides = [1, 1]} : vector<32x128xf32> to vector<32x64xf32>
    %186 = vector.extract_strided_slice %157 {offsets = [0, 0], sizes = [32, 64], strides = [1, 1]} : vector<32x128xf32> to vector<32x64xf32>
    %187 = tpu.concatenate %185, %186 in 1 : vector<32x64xf32>, vector<32x64xf32> -> vector<32x128xf32>
    %c14 = arith.constant 14 : index
    %c0_66 = arith.constant 0 : index
    %188 = vector.load %arg0[%c14, %c0_66] : memref<176x128xf32, #tpu.memory_space<vmem>>, vector<1x128xf32>
    %189 = vector.broadcast %188 : vector<1x128xf32> to vector<32x128xf32>
    %190 = arith.mulf %189, %187 : vector<32x128xf32>
    %191 = arith.addf %176, %190 : vector<32x128xf32>
    %c50 = arith.constant 50 : index
    %c0_67 = arith.constant 0 : index
    %192 = vector.load %arg0[%c50, %c0_67] : memref<176x128xf32, #tpu.memory_space<vmem>>, vector<1x128xf32>
    %193 = vector.broadcast %192 : vector<1x128xf32> to vector<32x128xf32>
    %194 = arith.mulf %193, %187 : vector<32x128xf32>
    %195 = arith.addf %180, %194 : vector<32x128xf32>
    %c86 = arith.constant 86 : index
    %c0_68 = arith.constant 0 : index
    %196 = vector.load %arg0[%c86, %c0_68] : memref<176x128xf32, #tpu.memory_space<vmem>>, vector<1x128xf32>
    %197 = vector.broadcast %196 : vector<1x128xf32> to vector<32x128xf32>
    %198 = arith.mulf %197, %187 : vector<32x128xf32>
    %199 = arith.addf %184, %198 : vector<32x128xf32>
    %200 = vector.extract_strided_slice %157 {offsets = [0, 96], sizes = [32, 32], strides = [1, 1]} : vector<32x128xf32> to vector<32x32xf32>
    %201 = vector.extract_strided_slice %157 {offsets = [0, 0], sizes = [32, 96], strides = [1, 1]} : vector<32x128xf32> to vector<32x96xf32>
    %202 = tpu.concatenate %200, %201 in 1 : vector<32x32xf32>, vector<32x96xf32> -> vector<32x128xf32>
    %c15 = arith.constant 15 : index
    %c0_69 = arith.constant 0 : index
    %203 = vector.load %arg0[%c15, %c0_69] : memref<176x128xf32, #tpu.memory_space<vmem>>, vector<1x128xf32>
    %204 = vector.broadcast %203 : vector<1x128xf32> to vector<32x128xf32>
    %205 = arith.mulf %204, %202 : vector<32x128xf32>
    %206 = arith.addf %191, %205 : vector<32x128xf32>
    %c51 = arith.constant 51 : index
    %c0_70 = arith.constant 0 : index
    %207 = vector.load %arg0[%c51, %c0_70] : memref<176x128xf32, #tpu.memory_space<vmem>>, vector<1x128xf32>
    %208 = vector.broadcast %207 : vector<1x128xf32> to vector<32x128xf32>
    %209 = arith.mulf %208, %202 : vector<32x128xf32>
    %210 = arith.addf %195, %209 : vector<32x128xf32>
    %c87 = arith.constant 87 : index
    %c0_71 = arith.constant 0 : index
    %211 = vector.load %arg0[%c87, %c0_71] : memref<176x128xf32, #tpu.memory_space<vmem>>, vector<1x128xf32>
    %212 = vector.broadcast %211 : vector<1x128xf32> to vector<32x128xf32>
    %213 = arith.mulf %212, %202 : vector<32x128xf32>
    %214 = arith.addf %199, %213 : vector<32x128xf32>
    %215 = vector.extract_strided_slice %26 {offsets = [0, 127], sizes = [32, 1], strides = [1, 1]} : vector<32x128xf32> to vector<32x1xf32>
    %216 = vector.extract_strided_slice %26 {offsets = [0, 0], sizes = [32, 127], strides = [1, 1]} : vector<32x128xf32> to vector<32x127xf32>
    %217 = tpu.concatenate %215, %216 in 1 : vector<32x1xf32>, vector<32x127xf32> -> vector<32x128xf32>
    %c16 = arith.constant 16 : index
    %c0_72 = arith.constant 0 : index
    %218 = vector.load %arg0[%c16, %c0_72] : memref<176x128xf32, #tpu.memory_space<vmem>>, vector<1x128xf32>
    %219 = vector.broadcast %218 : vector<1x128xf32> to vector<32x128xf32>
    %220 = arith.mulf %219, %217 : vector<32x128xf32>
    %221 = arith.addf %206, %220 : vector<32x128xf32>
    %c52 = arith.constant 52 : index
    %c0_73 = arith.constant 0 : index
    %222 = vector.load %arg0[%c52, %c0_73] : memref<176x128xf32, #tpu.memory_space<vmem>>, vector<1x128xf32>
    %223 = vector.broadcast %222 : vector<1x128xf32> to vector<32x128xf32>
    %224 = arith.mulf %223, %217 : vector<32x128xf32>
    %225 = arith.addf %210, %224 : vector<32x128xf32>
    %c88 = arith.constant 88 : index
    %c0_74 = arith.constant 0 : index
    %226 = vector.load %arg0[%c88, %c0_74] : memref<176x128xf32, #tpu.memory_space<vmem>>, vector<1x128xf32>
    %227 = vector.broadcast %226 : vector<1x128xf32> to vector<32x128xf32>
    %228 = arith.mulf %227, %217 : vector<32x128xf32>
    %229 = arith.addf %214, %228 : vector<32x128xf32>
    %230 = vector.extract_strided_slice %217 {offsets = [0, 32], sizes = [32, 96], strides = [1, 1]} : vector<32x128xf32> to vector<32x96xf32>
    %231 = vector.extract_strided_slice %217 {offsets = [0, 0], sizes = [32, 32], strides = [1, 1]} : vector<32x128xf32> to vector<32x32xf32>
    %232 = tpu.concatenate %230, %231 in 1 : vector<32x96xf32>, vector<32x32xf32> -> vector<32x128xf32>
    %c17 = arith.constant 17 : index
    %c0_75 = arith.constant 0 : index
    %233 = vector.load %arg0[%c17, %c0_75] : memref<176x128xf32, #tpu.memory_space<vmem>>, vector<1x128xf32>
    %234 = vector.broadcast %233 : vector<1x128xf32> to vector<32x128xf32>
    %235 = arith.mulf %234, %232 : vector<32x128xf32>
    %236 = arith.addf %221, %235 : vector<32x128xf32>
    %c53 = arith.constant 53 : index
    %c0_76 = arith.constant 0 : index
    %237 = vector.load %arg0[%c53, %c0_76] : memref<176x128xf32, #tpu.memory_space<vmem>>, vector<1x128xf32>
    %238 = vector.broadcast %237 : vector<1x128xf32> to vector<32x128xf32>
    %239 = arith.mulf %238, %232 : vector<32x128xf32>
    %240 = arith.addf %225, %239 : vector<32x128xf32>
    %c89 = arith.constant 89 : index
    %c0_77 = arith.constant 0 : index
    %241 = vector.load %arg0[%c89, %c0_77] : memref<176x128xf32, #tpu.memory_space<vmem>>, vector<1x128xf32>
    %242 = vector.broadcast %241 : vector<1x128xf32> to vector<32x128xf32>
    %243 = arith.mulf %242, %232 : vector<32x128xf32>
    %244 = arith.addf %229, %243 : vector<32x128xf32>
    %245 = vector.extract_strided_slice %217 {offsets = [0, 64], sizes = [32, 64], strides = [1, 1]} : vector<32x128xf32> to vector<32x64xf32>
    %246 = vector.extract_strided_slice %217 {offsets = [0, 0], sizes = [32, 64], strides = [1, 1]} : vector<32x128xf32> to vector<32x64xf32>
    %247 = tpu.concatenate %245, %246 in 1 : vector<32x64xf32>, vector<32x64xf32> -> vector<32x128xf32>
    %c18 = arith.constant 18 : index
    %c0_78 = arith.constant 0 : index
    %248 = vector.load %arg0[%c18, %c0_78] : memref<176x128xf32, #tpu.memory_space<vmem>>, vector<1x128xf32>
    %249 = vector.broadcast %248 : vector<1x128xf32> to vector<32x128xf32>
    %250 = arith.mulf %249, %247 : vector<32x128xf32>
    %251 = arith.addf %236, %250 : vector<32x128xf32>
    %c54 = arith.constant 54 : index
    %c0_79 = arith.constant 0 : index
    %252 = vector.load %arg0[%c54, %c0_79] : memref<176x128xf32, #tpu.memory_space<vmem>>, vector<1x128xf32>
    %253 = vector.broadcast %252 : vector<1x128xf32> to vector<32x128xf32>
    %254 = arith.mulf %253, %247 : vector<32x128xf32>
    %255 = arith.addf %240, %254 : vector<32x128xf32>
    %c90 = arith.constant 90 : index
    %c0_80 = arith.constant 0 : index
    %256 = vector.load %arg0[%c90, %c0_80] : memref<176x128xf32, #tpu.memory_space<vmem>>, vector<1x128xf32>
    %257 = vector.broadcast %256 : vector<1x128xf32> to vector<32x128xf32>
    %258 = arith.mulf %257, %247 : vector<32x128xf32>
    %259 = arith.addf %244, %258 : vector<32x128xf32>
    %260 = vector.extract_strided_slice %217 {offsets = [0, 96], sizes = [32, 32], strides = [1, 1]} : vector<32x128xf32> to vector<32x32xf32>
    %261 = vector.extract_strided_slice %217 {offsets = [0, 0], sizes = [32, 96], strides = [1, 1]} : vector<32x128xf32> to vector<32x96xf32>
    %262 = tpu.concatenate %260, %261 in 1 : vector<32x32xf32>, vector<32x96xf32> -> vector<32x128xf32>
    %c19 = arith.constant 19 : index
    %c0_81 = arith.constant 0 : index
    %263 = vector.load %arg0[%c19, %c0_81] : memref<176x128xf32, #tpu.memory_space<vmem>>, vector<1x128xf32>
    %264 = vector.broadcast %263 : vector<1x128xf32> to vector<32x128xf32>
    %265 = arith.mulf %264, %262 : vector<32x128xf32>
    %266 = arith.addf %251, %265 : vector<32x128xf32>
    %c55 = arith.constant 55 : index
    %c0_82 = arith.constant 0 : index
    %267 = vector.load %arg0[%c55, %c0_82] : memref<176x128xf32, #tpu.memory_space<vmem>>, vector<1x128xf32>
    %268 = vector.broadcast %267 : vector<1x128xf32> to vector<32x128xf32>
    %269 = arith.mulf %268, %262 : vector<32x128xf32>
    %270 = arith.addf %255, %269 : vector<32x128xf32>
    %c91 = arith.constant 91 : index
    %c0_83 = arith.constant 0 : index
    %271 = vector.load %arg0[%c91, %c0_83] : memref<176x128xf32, #tpu.memory_space<vmem>>, vector<1x128xf32>
    %272 = vector.broadcast %271 : vector<1x128xf32> to vector<32x128xf32>
    %273 = arith.mulf %272, %262 : vector<32x128xf32>
    %274 = arith.addf %259, %273 : vector<32x128xf32>
    %c20 = arith.constant 20 : index
    %c0_84 = arith.constant 0 : index
    %275 = vector.load %arg0[%c20, %c0_84] : memref<176x128xf32, #tpu.memory_space<vmem>>, vector<1x128xf32>
    %276 = vector.broadcast %275 : vector<1x128xf32> to vector<32x128xf32>
    %277 = arith.mulf %276, %26 : vector<32x128xf32>
    %278 = arith.addf %266, %277 : vector<32x128xf32>
    %c56 = arith.constant 56 : index
    %c0_85 = arith.constant 0 : index
    %279 = vector.load %arg0[%c56, %c0_85] : memref<176x128xf32, #tpu.memory_space<vmem>>, vector<1x128xf32>
    %280 = vector.broadcast %279 : vector<1x128xf32> to vector<32x128xf32>
    %281 = arith.mulf %280, %26 : vector<32x128xf32>
    %282 = arith.addf %270, %281 : vector<32x128xf32>
    %c92 = arith.constant 92 : index
    %c0_86 = arith.constant 0 : index
    %283 = vector.load %arg0[%c92, %c0_86] : memref<176x128xf32, #tpu.memory_space<vmem>>, vector<1x128xf32>
    %284 = vector.broadcast %283 : vector<1x128xf32> to vector<32x128xf32>
    %285 = arith.mulf %284, %26 : vector<32x128xf32>
    %286 = arith.addf %274, %285 : vector<32x128xf32>
    %c0_87 = arith.constant 0 : index
    %c0_88 = arith.constant 0 : index
    %287 = vector.load %arg0[%c0_87, %c0_88] : memref<176x128xf32, #tpu.memory_space<vmem>>, vector<1x128xf32>
    %288 = vector.broadcast %287 : vector<1x128xf32> to vector<32x128xf32>
    %289 = arith.mulf %288, %26 : vector<32x128xf32>
    %290 = arith.addf %27, %289 : vector<32x128xf32>
    %291 = vector.extract_strided_slice %26 {offsets = [0, 32], sizes = [32, 96], strides = [1, 1]} : vector<32x128xf32> to vector<32x96xf32>
    %292 = vector.extract_strided_slice %26 {offsets = [0, 0], sizes = [32, 32], strides = [1, 1]} : vector<32x128xf32> to vector<32x32xf32>
    %293 = tpu.concatenate %291, %292 in 1 : vector<32x96xf32>, vector<32x32xf32> -> vector<32x128xf32>
    %c21 = arith.constant 21 : index
    %c0_89 = arith.constant 0 : index
    %294 = vector.load %arg0[%c21, %c0_89] : memref<176x128xf32, #tpu.memory_space<vmem>>, vector<1x128xf32>
    %295 = vector.broadcast %294 : vector<1x128xf32> to vector<32x128xf32>
    %296 = arith.mulf %295, %293 : vector<32x128xf32>
    %297 = arith.addf %278, %296 : vector<32x128xf32>
    %c57 = arith.constant 57 : index
    %c0_90 = arith.constant 0 : index
    %298 = vector.load %arg0[%c57, %c0_90] : memref<176x128xf32, #tpu.memory_space<vmem>>, vector<1x128xf32>
    %299 = vector.broadcast %298 : vector<1x128xf32> to vector<32x128xf32>
    %300 = arith.mulf %299, %293 : vector<32x128xf32>
    %301 = arith.addf %282, %300 : vector<32x128xf32>
    %c93 = arith.constant 93 : index
    %c0_91 = arith.constant 0 : index
    %302 = vector.load %arg0[%c93, %c0_91] : memref<176x128xf32, #tpu.memory_space<vmem>>, vector<1x128xf32>
    %303 = vector.broadcast %302 : vector<1x128xf32> to vector<32x128xf32>
    %304 = arith.mulf %303, %293 : vector<32x128xf32>
    %305 = arith.addf %286, %304 : vector<32x128xf32>
    %c1_92 = arith.constant 1 : index
    %c0_93 = arith.constant 0 : index
    %306 = vector.load %arg0[%c1_92, %c0_93] : memref<176x128xf32, #tpu.memory_space<vmem>>, vector<1x128xf32>
    %307 = vector.broadcast %306 : vector<1x128xf32> to vector<32x128xf32>
    %308 = arith.mulf %307, %293 : vector<32x128xf32>
    %309 = arith.addf %290, %308 : vector<32x128xf32>
    %310 = vector.extract_strided_slice %26 {offsets = [0, 64], sizes = [32, 64], strides = [1, 1]} : vector<32x128xf32> to vector<32x64xf32>
    %311 = vector.extract_strided_slice %26 {offsets = [0, 0], sizes = [32, 64], strides = [1, 1]} : vector<32x128xf32> to vector<32x64xf32>
    %312 = tpu.concatenate %310, %311 in 1 : vector<32x64xf32>, vector<32x64xf32> -> vector<32x128xf32>
    %c22 = arith.constant 22 : index
    %c0_94 = arith.constant 0 : index
    %313 = vector.load %arg0[%c22, %c0_94] : memref<176x128xf32, #tpu.memory_space<vmem>>, vector<1x128xf32>
    %314 = vector.broadcast %313 : vector<1x128xf32> to vector<32x128xf32>
    %315 = arith.mulf %314, %312 : vector<32x128xf32>
    %316 = arith.addf %297, %315 : vector<32x128xf32>
    %c58 = arith.constant 58 : index
    %c0_95 = arith.constant 0 : index
    %317 = vector.load %arg0[%c58, %c0_95] : memref<176x128xf32, #tpu.memory_space<vmem>>, vector<1x128xf32>
    %318 = vector.broadcast %317 : vector<1x128xf32> to vector<32x128xf32>
    %319 = arith.mulf %318, %312 : vector<32x128xf32>
    %320 = arith.addf %301, %319 : vector<32x128xf32>
    %c94 = arith.constant 94 : index
    %c0_96 = arith.constant 0 : index
    %321 = vector.load %arg0[%c94, %c0_96] : memref<176x128xf32, #tpu.memory_space<vmem>>, vector<1x128xf32>
    %322 = vector.broadcast %321 : vector<1x128xf32> to vector<32x128xf32>
    %323 = arith.mulf %322, %312 : vector<32x128xf32>
    %324 = arith.addf %305, %323 : vector<32x128xf32>
    %c2_97 = arith.constant 2 : index
    %c0_98 = arith.constant 0 : index
    %325 = vector.load %arg0[%c2_97, %c0_98] : memref<176x128xf32, #tpu.memory_space<vmem>>, vector<1x128xf32>
    %326 = vector.broadcast %325 : vector<1x128xf32> to vector<32x128xf32>
    %327 = arith.mulf %326, %312 : vector<32x128xf32>
    %328 = arith.addf %309, %327 : vector<32x128xf32>
    %329 = vector.extract_strided_slice %26 {offsets = [0, 96], sizes = [32, 32], strides = [1, 1]} : vector<32x128xf32> to vector<32x32xf32>
    %330 = vector.extract_strided_slice %26 {offsets = [0, 0], sizes = [32, 96], strides = [1, 1]} : vector<32x128xf32> to vector<32x96xf32>
    %331 = tpu.concatenate %329, %330 in 1 : vector<32x32xf32>, vector<32x96xf32> -> vector<32x128xf32>
    %c23 = arith.constant 23 : index
    %c0_99 = arith.constant 0 : index
    %332 = vector.load %arg0[%c23, %c0_99] : memref<176x128xf32, #tpu.memory_space<vmem>>, vector<1x128xf32>
    %333 = vector.broadcast %332 : vector<1x128xf32> to vector<32x128xf32>
    %334 = arith.mulf %333, %331 : vector<32x128xf32>
    %335 = arith.addf %316, %334 : vector<32x128xf32>
    %c59 = arith.constant 59 : index
    %c0_100 = arith.constant 0 : index
    %336 = vector.load %arg0[%c59, %c0_100] : memref<176x128xf32, #tpu.memory_space<vmem>>, vector<1x128xf32>
    %337 = vector.broadcast %336 : vector<1x128xf32> to vector<32x128xf32>
    %338 = arith.mulf %337, %331 : vector<32x128xf32>
    %339 = arith.addf %320, %338 : vector<32x128xf32>
    %c95 = arith.constant 95 : index
    %c0_101 = arith.constant 0 : index
    %340 = vector.load %arg0[%c95, %c0_101] : memref<176x128xf32, #tpu.memory_space<vmem>>, vector<1x128xf32>
    %341 = vector.broadcast %340 : vector<1x128xf32> to vector<32x128xf32>
    %342 = arith.mulf %341, %331 : vector<32x128xf32>
    %343 = arith.addf %324, %342 : vector<32x128xf32>
    %c3_102 = arith.constant 3 : index
    %c0_103 = arith.constant 0 : index
    %344 = vector.load %arg0[%c3_102, %c0_103] : memref<176x128xf32, #tpu.memory_space<vmem>>, vector<1x128xf32>
    %345 = vector.broadcast %344 : vector<1x128xf32> to vector<32x128xf32>
    %346 = arith.mulf %345, %331 : vector<32x128xf32>
    %347 = arith.addf %328, %346 : vector<32x128xf32>
    %348 = vector.extract_strided_slice %26 {offsets = [0, 1], sizes = [32, 127], strides = [1, 1]} : vector<32x128xf32> to vector<32x127xf32>
    %349 = vector.extract_strided_slice %26 {offsets = [0, 0], sizes = [32, 1], strides = [1, 1]} : vector<32x128xf32> to vector<32x1xf32>
    %350 = tpu.concatenate %348, %349 in 1 : vector<32x127xf32>, vector<32x1xf32> -> vector<32x128xf32>
    %c24 = arith.constant 24 : index
    %c0_104 = arith.constant 0 : index
    %351 = vector.load %arg0[%c24, %c0_104] : memref<176x128xf32, #tpu.memory_space<vmem>>, vector<1x128xf32>
    %352 = vector.broadcast %351 : vector<1x128xf32> to vector<32x128xf32>
    %353 = arith.mulf %352, %350 : vector<32x128xf32>
    %354 = arith.addf %335, %353 : vector<32x128xf32>
    %c60 = arith.constant 60 : index
    %c0_105 = arith.constant 0 : index
    %355 = vector.load %arg0[%c60, %c0_105] : memref<176x128xf32, #tpu.memory_space<vmem>>, vector<1x128xf32>
    %356 = vector.broadcast %355 : vector<1x128xf32> to vector<32x128xf32>
    %357 = arith.mulf %356, %350 : vector<32x128xf32>
    %358 = arith.addf %339, %357 : vector<32x128xf32>
    %c96 = arith.constant 96 : index
    %c0_106 = arith.constant 0 : index
    %359 = vector.load %arg0[%c96, %c0_106] : memref<176x128xf32, #tpu.memory_space<vmem>>, vector<1x128xf32>
    %360 = vector.broadcast %359 : vector<1x128xf32> to vector<32x128xf32>
    %361 = arith.mulf %360, %350 : vector<32x128xf32>
    %362 = arith.addf %343, %361 : vector<32x128xf32>
    %363 = vector.extract_strided_slice %350 {offsets = [0, 32], sizes = [32, 96], strides = [1, 1]} : vector<32x128xf32> to vector<32x96xf32>
    %364 = vector.extract_strided_slice %350 {offsets = [0, 0], sizes = [32, 32], strides = [1, 1]} : vector<32x128xf32> to vector<32x32xf32>
    %365 = tpu.concatenate %363, %364 in 1 : vector<32x96xf32>, vector<32x32xf32> -> vector<32x128xf32>
    %c25 = arith.constant 25 : index
    %c0_107 = arith.constant 0 : index
    %366 = vector.load %arg0[%c25, %c0_107] : memref<176x128xf32, #tpu.memory_space<vmem>>, vector<1x128xf32>
    %367 = vector.broadcast %366 : vector<1x128xf32> to vector<32x128xf32>
    %368 = arith.mulf %367, %365 : vector<32x128xf32>
    %369 = arith.addf %354, %368 : vector<32x128xf32>
    %c61 = arith.constant 61 : index
    %c0_108 = arith.constant 0 : index
    %370 = vector.load %arg0[%c61, %c0_108] : memref<176x128xf32, #tpu.memory_space<vmem>>, vector<1x128xf32>
    %371 = vector.broadcast %370 : vector<1x128xf32> to vector<32x128xf32>
    %372 = arith.mulf %371, %365 : vector<32x128xf32>
    %373 = arith.addf %358, %372 : vector<32x128xf32>
    %c97 = arith.constant 97 : index
    %c0_109 = arith.constant 0 : index
    %374 = vector.load %arg0[%c97, %c0_109] : memref<176x128xf32, #tpu.memory_space<vmem>>, vector<1x128xf32>
    %375 = vector.broadcast %374 : vector<1x128xf32> to vector<32x128xf32>
    %376 = arith.mulf %375, %365 : vector<32x128xf32>
    %377 = arith.addf %362, %376 : vector<32x128xf32>
    %378 = vector.extract_strided_slice %350 {offsets = [0, 64], sizes = [32, 64], strides = [1, 1]} : vector<32x128xf32> to vector<32x64xf32>
    %379 = vector.extract_strided_slice %350 {offsets = [0, 0], sizes = [32, 64], strides = [1, 1]} : vector<32x128xf32> to vector<32x64xf32>
    %380 = tpu.concatenate %378, %379 in 1 : vector<32x64xf32>, vector<32x64xf32> -> vector<32x128xf32>
    %c26 = arith.constant 26 : index
    %c0_110 = arith.constant 0 : index
    %381 = vector.load %arg0[%c26, %c0_110] : memref<176x128xf32, #tpu.memory_space<vmem>>, vector<1x128xf32>
    %382 = vector.broadcast %381 : vector<1x128xf32> to vector<32x128xf32>
    %383 = arith.mulf %382, %380 : vector<32x128xf32>
    %384 = arith.addf %369, %383 : vector<32x128xf32>
    %c62 = arith.constant 62 : index
    %c0_111 = arith.constant 0 : index
    %385 = vector.load %arg0[%c62, %c0_111] : memref<176x128xf32, #tpu.memory_space<vmem>>, vector<1x128xf32>
    %386 = vector.broadcast %385 : vector<1x128xf32> to vector<32x128xf32>
    %387 = arith.mulf %386, %380 : vector<32x128xf32>
    %388 = arith.addf %373, %387 : vector<32x128xf32>
    %c98 = arith.constant 98 : index
    %c0_112 = arith.constant 0 : index
    %389 = vector.load %arg0[%c98, %c0_112] : memref<176x128xf32, #tpu.memory_space<vmem>>, vector<1x128xf32>
    %390 = vector.broadcast %389 : vector<1x128xf32> to vector<32x128xf32>
    %391 = arith.mulf %390, %380 : vector<32x128xf32>
    %392 = arith.addf %377, %391 : vector<32x128xf32>
    %393 = vector.extract_strided_slice %350 {offsets = [0, 96], sizes = [32, 32], strides = [1, 1]} : vector<32x128xf32> to vector<32x32xf32>
    %394 = vector.extract_strided_slice %350 {offsets = [0, 0], sizes = [32, 96], strides = [1, 1]} : vector<32x128xf32> to vector<32x96xf32>
    %395 = tpu.concatenate %393, %394 in 1 : vector<32x32xf32>, vector<32x96xf32> -> vector<32x128xf32>
    %c27 = arith.constant 27 : index
    %c0_113 = arith.constant 0 : index
    %396 = vector.load %arg0[%c27, %c0_113] : memref<176x128xf32, #tpu.memory_space<vmem>>, vector<1x128xf32>
    %397 = vector.broadcast %396 : vector<1x128xf32> to vector<32x128xf32>
    %398 = arith.mulf %397, %395 : vector<32x128xf32>
    %399 = arith.addf %384, %398 : vector<32x128xf32>
    %c63 = arith.constant 63 : index
    %c0_114 = arith.constant 0 : index
    %400 = vector.load %arg0[%c63, %c0_114] : memref<176x128xf32, #tpu.memory_space<vmem>>, vector<1x128xf32>
    %401 = vector.broadcast %400 : vector<1x128xf32> to vector<32x128xf32>
    %402 = arith.mulf %401, %395 : vector<32x128xf32>
    %403 = arith.addf %388, %402 : vector<32x128xf32>
    %c99 = arith.constant 99 : index
    %c0_115 = arith.constant 0 : index
    %404 = vector.load %arg0[%c99, %c0_115] : memref<176x128xf32, #tpu.memory_space<vmem>>, vector<1x128xf32>
    %405 = vector.broadcast %404 : vector<1x128xf32> to vector<32x128xf32>
    %406 = arith.mulf %405, %395 : vector<32x128xf32>
    %407 = arith.addf %392, %406 : vector<32x128xf32>
    %cst_116 = arith.constant 0.000000e+00 : f32
    %408 = vector.broadcast %cst_116 : f32 to vector<1x128xf32>
    %409 = vector.extract_strided_slice %26 {offsets = [1, 0], sizes = [31, 128], strides = [1, 1]} : vector<32x128xf32> to vector<31x128xf32>
    %410 = tpu.concatenate %409, %408 in 0 : vector<31x128xf32>, vector<1x128xf32> -> vector<32x128xf32>
    %c15_i32_117 = arith.constant 15 : i32
    %411 = vector.broadcast %c15_i32_117 : i32 to vector<32x128xi32>
    %412 = arith.cmpi slt, %2, %411 : vector<32x128xi32>
    %cst_118 = arith.constant 0.000000e+00 : f32
    %413 = vector.broadcast %cst_118 : f32 to vector<32x128xf32>
    %414 = arith.select %412, %410, %413 : vector<32x128xi1>, vector<32x128xf32>
    %415 = vector.extract_strided_slice %414 {offsets = [0, 127], sizes = [32, 1], strides = [1, 1]} : vector<32x128xf32> to vector<32x1xf32>
    %416 = vector.extract_strided_slice %414 {offsets = [0, 0], sizes = [32, 127], strides = [1, 1]} : vector<32x128xf32> to vector<32x127xf32>
    %417 = tpu.concatenate %415, %416 in 1 : vector<32x1xf32>, vector<32x127xf32> -> vector<32x128xf32>
    %c28 = arith.constant 28 : index
    %c0_119 = arith.constant 0 : index
    %418 = vector.load %arg0[%c28, %c0_119] : memref<176x128xf32, #tpu.memory_space<vmem>>, vector<1x128xf32>
    %419 = vector.broadcast %418 : vector<1x128xf32> to vector<32x128xf32>
    %420 = arith.mulf %419, %417 : vector<32x128xf32>
    %421 = arith.addf %399, %420 : vector<32x128xf32>
    %c64 = arith.constant 64 : index
    %c0_120 = arith.constant 0 : index
    %422 = vector.load %arg0[%c64, %c0_120] : memref<176x128xf32, #tpu.memory_space<vmem>>, vector<1x128xf32>
    %423 = vector.broadcast %422 : vector<1x128xf32> to vector<32x128xf32>
    %424 = arith.mulf %423, %417 : vector<32x128xf32>
    %425 = arith.addf %403, %424 : vector<32x128xf32>
    %c100 = arith.constant 100 : index
    %c0_121 = arith.constant 0 : index
    %426 = vector.load %arg0[%c100, %c0_121] : memref<176x128xf32, #tpu.memory_space<vmem>>, vector<1x128xf32>
    %427 = vector.broadcast %426 : vector<1x128xf32> to vector<32x128xf32>
    %428 = arith.mulf %427, %417 : vector<32x128xf32>
    %429 = arith.addf %407, %428 : vector<32x128xf32>
    %430 = vector.extract_strided_slice %417 {offsets = [0, 32], sizes = [32, 96], strides = [1, 1]} : vector<32x128xf32> to vector<32x96xf32>
    %431 = vector.extract_strided_slice %417 {offsets = [0, 0], sizes = [32, 32], strides = [1, 1]} : vector<32x128xf32> to vector<32x32xf32>
    %432 = tpu.concatenate %430, %431 in 1 : vector<32x96xf32>, vector<32x32xf32> -> vector<32x128xf32>
    %c29 = arith.constant 29 : index
    %c0_122 = arith.constant 0 : index
    %433 = vector.load %arg0[%c29, %c0_122] : memref<176x128xf32, #tpu.memory_space<vmem>>, vector<1x128xf32>
    %434 = vector.broadcast %433 : vector<1x128xf32> to vector<32x128xf32>
    %435 = arith.mulf %434, %432 : vector<32x128xf32>
    %436 = arith.addf %421, %435 : vector<32x128xf32>
    %c65 = arith.constant 65 : index
    %c0_123 = arith.constant 0 : index
    %437 = vector.load %arg0[%c65, %c0_123] : memref<176x128xf32, #tpu.memory_space<vmem>>, vector<1x128xf32>
    %438 = vector.broadcast %437 : vector<1x128xf32> to vector<32x128xf32>
    %439 = arith.mulf %438, %432 : vector<32x128xf32>
    %440 = arith.addf %425, %439 : vector<32x128xf32>
    %c101 = arith.constant 101 : index
    %c0_124 = arith.constant 0 : index
    %441 = vector.load %arg0[%c101, %c0_124] : memref<176x128xf32, #tpu.memory_space<vmem>>, vector<1x128xf32>
    %442 = vector.broadcast %441 : vector<1x128xf32> to vector<32x128xf32>
    %443 = arith.mulf %442, %432 : vector<32x128xf32>
    %444 = arith.addf %429, %443 : vector<32x128xf32>
    %445 = vector.extract_strided_slice %417 {offsets = [0, 64], sizes = [32, 64], strides = [1, 1]} : vector<32x128xf32> to vector<32x64xf32>
    %446 = vector.extract_strided_slice %417 {offsets = [0, 0], sizes = [32, 64], strides = [1, 1]} : vector<32x128xf32> to vector<32x64xf32>
    %447 = tpu.concatenate %445, %446 in 1 : vector<32x64xf32>, vector<32x64xf32> -> vector<32x128xf32>
    %c30 = arith.constant 30 : index
    %c0_125 = arith.constant 0 : index
    %448 = vector.load %arg0[%c30, %c0_125] : memref<176x128xf32, #tpu.memory_space<vmem>>, vector<1x128xf32>
    %449 = vector.broadcast %448 : vector<1x128xf32> to vector<32x128xf32>
    %450 = arith.mulf %449, %447 : vector<32x128xf32>
    %451 = arith.addf %436, %450 : vector<32x128xf32>
    %c66 = arith.constant 66 : index
    %c0_126 = arith.constant 0 : index
    %452 = vector.load %arg0[%c66, %c0_126] : memref<176x128xf32, #tpu.memory_space<vmem>>, vector<1x128xf32>
    %453 = vector.broadcast %452 : vector<1x128xf32> to vector<32x128xf32>
    %454 = arith.mulf %453, %447 : vector<32x128xf32>
    %455 = arith.addf %440, %454 : vector<32x128xf32>
    %c102 = arith.constant 102 : index
    %c0_127 = arith.constant 0 : index
    %456 = vector.load %arg0[%c102, %c0_127] : memref<176x128xf32, #tpu.memory_space<vmem>>, vector<1x128xf32>
    %457 = vector.broadcast %456 : vector<1x128xf32> to vector<32x128xf32>
    %458 = arith.mulf %457, %447 : vector<32x128xf32>
    %459 = arith.addf %444, %458 : vector<32x128xf32>
    %460 = vector.extract_strided_slice %417 {offsets = [0, 96], sizes = [32, 32], strides = [1, 1]} : vector<32x128xf32> to vector<32x32xf32>
    %461 = vector.extract_strided_slice %417 {offsets = [0, 0], sizes = [32, 96], strides = [1, 1]} : vector<32x128xf32> to vector<32x96xf32>
    %462 = tpu.concatenate %460, %461 in 1 : vector<32x32xf32>, vector<32x96xf32> -> vector<32x128xf32>
    %c31 = arith.constant 31 : index
    %c0_128 = arith.constant 0 : index
    %463 = vector.load %arg0[%c31, %c0_128] : memref<176x128xf32, #tpu.memory_space<vmem>>, vector<1x128xf32>
    %464 = vector.broadcast %463 : vector<1x128xf32> to vector<32x128xf32>
    %465 = arith.mulf %464, %462 : vector<32x128xf32>
    %466 = arith.addf %451, %465 : vector<32x128xf32>
    %c67 = arith.constant 67 : index
    %c0_129 = arith.constant 0 : index
    %467 = vector.load %arg0[%c67, %c0_129] : memref<176x128xf32, #tpu.memory_space<vmem>>, vector<1x128xf32>
    %468 = vector.broadcast %467 : vector<1x128xf32> to vector<32x128xf32>
    %469 = arith.mulf %468, %462 : vector<32x128xf32>
    %470 = arith.addf %455, %469 : vector<32x128xf32>
    %c103 = arith.constant 103 : index
    %c0_130 = arith.constant 0 : index
    %471 = vector.load %arg0[%c103, %c0_130] : memref<176x128xf32, #tpu.memory_space<vmem>>, vector<1x128xf32>
    %472 = vector.broadcast %471 : vector<1x128xf32> to vector<32x128xf32>
    %473 = arith.mulf %472, %462 : vector<32x128xf32>
    %474 = arith.addf %459, %473 : vector<32x128xf32>
    %c32 = arith.constant 32 : index
    %c0_131 = arith.constant 0 : index
    %475 = vector.load %arg0[%c32, %c0_131] : memref<176x128xf32, #tpu.memory_space<vmem>>, vector<1x128xf32>
    %476 = vector.broadcast %475 : vector<1x128xf32> to vector<32x128xf32>
    %477 = arith.mulf %476, %414 : vector<32x128xf32>
    %478 = arith.addf %466, %477 : vector<32x128xf32>
    %c68 = arith.constant 68 : index
    %c0_132 = arith.constant 0 : index
    %479 = vector.load %arg0[%c68, %c0_132] : memref<176x128xf32, #tpu.memory_space<vmem>>, vector<1x128xf32>
    %480 = vector.broadcast %479 : vector<1x128xf32> to vector<32x128xf32>
    %481 = arith.mulf %480, %414 : vector<32x128xf32>
    %482 = arith.addf %470, %481 : vector<32x128xf32>
    %c104 = arith.constant 104 : index
    %c0_133 = arith.constant 0 : index
    %483 = vector.load %arg0[%c104, %c0_133] : memref<176x128xf32, #tpu.memory_space<vmem>>, vector<1x128xf32>
    %484 = vector.broadcast %483 : vector<1x128xf32> to vector<32x128xf32>
    %485 = arith.mulf %484, %414 : vector<32x128xf32>
    %486 = arith.addf %474, %485 : vector<32x128xf32>
    %487 = vector.extract_strided_slice %414 {offsets = [0, 32], sizes = [32, 96], strides = [1, 1]} : vector<32x128xf32> to vector<32x96xf32>
    %488 = vector.extract_strided_slice %414 {offsets = [0, 0], sizes = [32, 32], strides = [1, 1]} : vector<32x128xf32> to vector<32x32xf32>
    %489 = tpu.concatenate %487, %488 in 1 : vector<32x96xf32>, vector<32x32xf32> -> vector<32x128xf32>
    %c33 = arith.constant 33 : index
    %c0_134 = arith.constant 0 : index
    %490 = vector.load %arg0[%c33, %c0_134] : memref<176x128xf32, #tpu.memory_space<vmem>>, vector<1x128xf32>
    %491 = vector.broadcast %490 : vector<1x128xf32> to vector<32x128xf32>
    %492 = arith.mulf %491, %489 : vector<32x128xf32>
    %493 = arith.addf %478, %492 : vector<32x128xf32>
    %c69 = arith.constant 69 : index
    %c0_135 = arith.constant 0 : index
    %494 = vector.load %arg0[%c69, %c0_135] : memref<176x128xf32, #tpu.memory_space<vmem>>, vector<1x128xf32>
    %495 = vector.broadcast %494 : vector<1x128xf32> to vector<32x128xf32>
    %496 = arith.mulf %495, %489 : vector<32x128xf32>
    %497 = arith.addf %482, %496 : vector<32x128xf32>
    %c105 = arith.constant 105 : index
    %c0_136 = arith.constant 0 : index
    %498 = vector.load %arg0[%c105, %c0_136] : memref<176x128xf32, #tpu.memory_space<vmem>>, vector<1x128xf32>
    %499 = vector.broadcast %498 : vector<1x128xf32> to vector<32x128xf32>
    %500 = arith.mulf %499, %489 : vector<32x128xf32>
    %501 = arith.addf %486, %500 : vector<32x128xf32>
    %502 = vector.extract_strided_slice %414 {offsets = [0, 64], sizes = [32, 64], strides = [1, 1]} : vector<32x128xf32> to vector<32x64xf32>
    %503 = vector.extract_strided_slice %414 {offsets = [0, 0], sizes = [32, 64], strides = [1, 1]} : vector<32x128xf32> to vector<32x64xf32>
    %504 = tpu.concatenate %502, %503 in 1 : vector<32x64xf32>, vector<32x64xf32> -> vector<32x128xf32>
    %c34 = arith.constant 34 : index
    %c0_137 = arith.constant 0 : index
    %505 = vector.load %arg0[%c34, %c0_137] : memref<176x128xf32, #tpu.memory_space<vmem>>, vector<1x128xf32>
    %506 = vector.broadcast %505 : vector<1x128xf32> to vector<32x128xf32>
    %507 = arith.mulf %506, %504 : vector<32x128xf32>
    %508 = arith.addf %493, %507 : vector<32x128xf32>
    %c70 = arith.constant 70 : index
    %c0_138 = arith.constant 0 : index
    %509 = vector.load %arg0[%c70, %c0_138] : memref<176x128xf32, #tpu.memory_space<vmem>>, vector<1x128xf32>
    %510 = vector.broadcast %509 : vector<1x128xf32> to vector<32x128xf32>
    %511 = arith.mulf %510, %504 : vector<32x128xf32>
    %512 = arith.addf %497, %511 : vector<32x128xf32>
    %c106 = arith.constant 106 : index
    %c0_139 = arith.constant 0 : index
    %513 = vector.load %arg0[%c106, %c0_139] : memref<176x128xf32, #tpu.memory_space<vmem>>, vector<1x128xf32>
    %514 = vector.broadcast %513 : vector<1x128xf32> to vector<32x128xf32>
    %515 = arith.mulf %514, %504 : vector<32x128xf32>
    %516 = arith.addf %501, %515 : vector<32x128xf32>
    %517 = vector.extract_strided_slice %414 {offsets = [0, 96], sizes = [32, 32], strides = [1, 1]} : vector<32x128xf32> to vector<32x32xf32>
    %518 = vector.extract_strided_slice %414 {offsets = [0, 0], sizes = [32, 96], strides = [1, 1]} : vector<32x128xf32> to vector<32x96xf32>
    %519 = tpu.concatenate %517, %518 in 1 : vector<32x32xf32>, vector<32x96xf32> -> vector<32x128xf32>
    %c35 = arith.constant 35 : index
    %c0_140 = arith.constant 0 : index
    %520 = vector.load %arg0[%c35, %c0_140] : memref<176x128xf32, #tpu.memory_space<vmem>>, vector<1x128xf32>
    %521 = vector.broadcast %520 : vector<1x128xf32> to vector<32x128xf32>
    %522 = arith.mulf %521, %519 : vector<32x128xf32>
    %523 = arith.addf %508, %522 : vector<32x128xf32>
    %c71 = arith.constant 71 : index
    %c0_141 = arith.constant 0 : index
    %524 = vector.load %arg0[%c71, %c0_141] : memref<176x128xf32, #tpu.memory_space<vmem>>, vector<1x128xf32>
    %525 = vector.broadcast %524 : vector<1x128xf32> to vector<32x128xf32>
    %526 = arith.mulf %525, %519 : vector<32x128xf32>
    %527 = arith.addf %512, %526 : vector<32x128xf32>
    %c107 = arith.constant 107 : index
    %c0_142 = arith.constant 0 : index
    %528 = vector.load %arg0[%c107, %c0_142] : memref<176x128xf32, #tpu.memory_space<vmem>>, vector<1x128xf32>
    %529 = vector.broadcast %528 : vector<1x128xf32> to vector<32x128xf32>
    %530 = arith.mulf %529, %519 : vector<32x128xf32>
    %531 = arith.addf %516, %530 : vector<32x128xf32>
    %532 = vector.extract_strided_slice %414 {offsets = [0, 1], sizes = [32, 127], strides = [1, 1]} : vector<32x128xf32> to vector<32x127xf32>
    %533 = vector.extract_strided_slice %414 {offsets = [0, 0], sizes = [32, 1], strides = [1, 1]} : vector<32x128xf32> to vector<32x1xf32>
    %534 = tpu.concatenate %532, %533 in 1 : vector<32x127xf32>, vector<32x1xf32> -> vector<32x128xf32>
    %c36 = arith.constant 36 : index
    %c0_143 = arith.constant 0 : index
    %535 = vector.load %arg0[%c36, %c0_143] : memref<176x128xf32, #tpu.memory_space<vmem>>, vector<1x128xf32>
    %536 = vector.broadcast %535 : vector<1x128xf32> to vector<32x128xf32>
    %537 = arith.mulf %536, %534 : vector<32x128xf32>
    %538 = arith.addf %523, %537 : vector<32x128xf32>
    %c72 = arith.constant 72 : index
    %c0_144 = arith.constant 0 : index
    %539 = vector.load %arg0[%c72, %c0_144] : memref<176x128xf32, #tpu.memory_space<vmem>>, vector<1x128xf32>
    %540 = vector.broadcast %539 : vector<1x128xf32> to vector<32x128xf32>
    %541 = arith.mulf %540, %534 : vector<32x128xf32>
    %542 = arith.addf %527, %541 : vector<32x128xf32>
    %c108 = arith.constant 108 : index
    %c0_145 = arith.constant 0 : index
    %543 = vector.load %arg0[%c108, %c0_145] : memref<176x128xf32, #tpu.memory_space<vmem>>, vector<1x128xf32>
    %544 = vector.broadcast %543 : vector<1x128xf32> to vector<32x128xf32>
    %545 = arith.mulf %544, %534 : vector<32x128xf32>
    %546 = arith.addf %531, %545 : vector<32x128xf32>
    %547 = vector.extract_strided_slice %534 {offsets = [0, 32], sizes = [32, 96], strides = [1, 1]} : vector<32x128xf32> to vector<32x96xf32>
    %548 = vector.extract_strided_slice %534 {offsets = [0, 0], sizes = [32, 32], strides = [1, 1]} : vector<32x128xf32> to vector<32x32xf32>
    %549 = tpu.concatenate %547, %548 in 1 : vector<32x96xf32>, vector<32x32xf32> -> vector<32x128xf32>
    %c37 = arith.constant 37 : index
    %c0_146 = arith.constant 0 : index
    %550 = vector.load %arg0[%c37, %c0_146] : memref<176x128xf32, #tpu.memory_space<vmem>>, vector<1x128xf32>
    %551 = vector.broadcast %550 : vector<1x128xf32> to vector<32x128xf32>
    %552 = arith.mulf %551, %549 : vector<32x128xf32>
    %553 = arith.addf %538, %552 : vector<32x128xf32>
    %c73 = arith.constant 73 : index
    %c0_147 = arith.constant 0 : index
    %554 = vector.load %arg0[%c73, %c0_147] : memref<176x128xf32, #tpu.memory_space<vmem>>, vector<1x128xf32>
    %555 = vector.broadcast %554 : vector<1x128xf32> to vector<32x128xf32>
    %556 = arith.mulf %555, %549 : vector<32x128xf32>
    %557 = arith.addf %542, %556 : vector<32x128xf32>
    %c109 = arith.constant 109 : index
    %c0_148 = arith.constant 0 : index
    %558 = vector.load %arg0[%c109, %c0_148] : memref<176x128xf32, #tpu.memory_space<vmem>>, vector<1x128xf32>
    %559 = vector.broadcast %558 : vector<1x128xf32> to vector<32x128xf32>
    %560 = arith.mulf %559, %549 : vector<32x128xf32>
    %561 = arith.addf %546, %560 : vector<32x128xf32>
    %562 = vector.extract_strided_slice %534 {offsets = [0, 64], sizes = [32, 64], strides = [1, 1]} : vector<32x128xf32> to vector<32x64xf32>
    %563 = vector.extract_strided_slice %534 {offsets = [0, 0], sizes = [32, 64], strides = [1, 1]} : vector<32x128xf32> to vector<32x64xf32>
    %564 = tpu.concatenate %562, %563 in 1 : vector<32x64xf32>, vector<32x64xf32> -> vector<32x128xf32>
    %c38 = arith.constant 38 : index
    %c0_149 = arith.constant 0 : index
    %565 = vector.load %arg0[%c38, %c0_149] : memref<176x128xf32, #tpu.memory_space<vmem>>, vector<1x128xf32>
    %566 = vector.broadcast %565 : vector<1x128xf32> to vector<32x128xf32>
    %567 = arith.mulf %566, %564 : vector<32x128xf32>
    %568 = arith.addf %553, %567 : vector<32x128xf32>
    %c74 = arith.constant 74 : index
    %c0_150 = arith.constant 0 : index
    %569 = vector.load %arg0[%c74, %c0_150] : memref<176x128xf32, #tpu.memory_space<vmem>>, vector<1x128xf32>
    %570 = vector.broadcast %569 : vector<1x128xf32> to vector<32x128xf32>
    %571 = arith.mulf %570, %564 : vector<32x128xf32>
    %572 = arith.addf %557, %571 : vector<32x128xf32>
    %c110 = arith.constant 110 : index
    %c0_151 = arith.constant 0 : index
    %573 = vector.load %arg0[%c110, %c0_151] : memref<176x128xf32, #tpu.memory_space<vmem>>, vector<1x128xf32>
    %574 = vector.broadcast %573 : vector<1x128xf32> to vector<32x128xf32>
    %575 = arith.mulf %574, %564 : vector<32x128xf32>
    %576 = arith.addf %561, %575 : vector<32x128xf32>
    %577 = vector.extract_strided_slice %534 {offsets = [0, 96], sizes = [32, 32], strides = [1, 1]} : vector<32x128xf32> to vector<32x32xf32>
    %578 = vector.extract_strided_slice %534 {offsets = [0, 0], sizes = [32, 96], strides = [1, 1]} : vector<32x128xf32> to vector<32x96xf32>
    %579 = tpu.concatenate %577, %578 in 1 : vector<32x32xf32>, vector<32x96xf32> -> vector<32x128xf32>
    %c39 = arith.constant 39 : index
    %c0_152 = arith.constant 0 : index
    %580 = vector.load %arg0[%c39, %c0_152] : memref<176x128xf32, #tpu.memory_space<vmem>>, vector<1x128xf32>
    %581 = vector.broadcast %580 : vector<1x128xf32> to vector<32x128xf32>
    %582 = arith.mulf %581, %579 : vector<32x128xf32>
    %583 = arith.addf %568, %582 : vector<32x128xf32>
    %c75 = arith.constant 75 : index
    %c0_153 = arith.constant 0 : index
    %584 = vector.load %arg0[%c75, %c0_153] : memref<176x128xf32, #tpu.memory_space<vmem>>, vector<1x128xf32>
    %585 = vector.broadcast %584 : vector<1x128xf32> to vector<32x128xf32>
    %586 = arith.mulf %585, %579 : vector<32x128xf32>
    %587 = arith.addf %572, %586 : vector<32x128xf32>
    %c111 = arith.constant 111 : index
    %c0_154 = arith.constant 0 : index
    %588 = vector.load %arg0[%c111, %c0_154] : memref<176x128xf32, #tpu.memory_space<vmem>>, vector<1x128xf32>
    %589 = vector.broadcast %588 : vector<1x128xf32> to vector<32x128xf32>
    %590 = arith.mulf %589, %579 : vector<32x128xf32>
    %591 = arith.addf %576, %590 : vector<32x128xf32>
    %c112 = arith.constant 112 : index
    %c0_155 = arith.constant 0 : index
    %592 = vector.load %arg0[%c112, %c0_155] : memref<176x128xf32, #tpu.memory_space<vmem>>, vector<1x128xf32>
    %593 = vector.broadcast %592 : vector<1x128xf32> to vector<32x128xf32>
    %594 = arith.addf %583, %593 : vector<32x128xf32>
    %c113 = arith.constant 113 : index
    %c0_156 = arith.constant 0 : index
    %595 = vector.load %arg0[%c113, %c0_156] : memref<176x128xf32, #tpu.memory_space<vmem>>, vector<1x128xf32>
    %596 = vector.broadcast %595 : vector<1x128xf32> to vector<32x128xf32>
    %597 = arith.addf %587, %596 : vector<32x128xf32>
    %c114 = arith.constant 114 : index
    %c0_157 = arith.constant 0 : index
    %598 = vector.load %arg0[%c114, %c0_157] : memref<176x128xf32, #tpu.memory_space<vmem>>, vector<1x128xf32>
    %599 = vector.broadcast %598 : vector<1x128xf32> to vector<32x128xf32>
    %600 = arith.addf %591, %599 : vector<32x128xf32>
    %c171 = arith.constant 171 : index
    %c0_158 = arith.constant 0 : index
    %601 = vector.load %arg0[%c171, %c0_158] : memref<176x128xf32, #tpu.memory_space<vmem>>, vector<1x128xf32>
    %602 = vector.broadcast %601 : vector<1x128xf32> to vector<32x128xf32>
    %603 = arith.addf %594, %602 : vector<32x128xf32>
    %604 = vector.extract_strided_slice %603 {offsets = [0, 1], sizes = [32, 127], strides = [1, 1]} : vector<32x128xf32> to vector<32x127xf32>
    %605 = vector.extract_strided_slice %603 {offsets = [0, 0], sizes = [32, 1], strides = [1, 1]} : vector<32x128xf32> to vector<32x1xf32>
    %606 = tpu.concatenate %604, %605 in 1 : vector<32x127xf32>, vector<32x1xf32> -> vector<32x128xf32>
    %607 = arith.maximumf %603, %606 : vector<32x128xf32>
    %608 = vector.extract_strided_slice %603 {offsets = [0, 127], sizes = [32, 1], strides = [1, 1]} : vector<32x128xf32> to vector<32x1xf32>
    %609 = vector.extract_strided_slice %603 {offsets = [0, 0], sizes = [32, 127], strides = [1, 1]} : vector<32x128xf32> to vector<32x127xf32>
    %610 = tpu.concatenate %608, %609 in 1 : vector<32x1xf32>, vector<32x127xf32> -> vector<32x128xf32>
    %611 = arith.maximumf %607, %610 : vector<32x128xf32>
    %cst_159 = arith.constant -1.000000e+30 : f32
    %612 = vector.broadcast %cst_159 : f32 to vector<1x128xf32>
    %613 = vector.extract_strided_slice %611 {offsets = [1, 0], sizes = [31, 128], strides = [1, 1]} : vector<32x128xf32> to vector<31x128xf32>
    %614 = tpu.concatenate %613, %612 in 0 : vector<31x128xf32>, vector<1x128xf32> -> vector<32x128xf32>
    %c15_i32_160 = arith.constant 15 : i32
    %615 = vector.broadcast %c15_i32_160 : i32 to vector<32x128xi32>
    %616 = arith.cmpi slt, %2, %615 : vector<32x128xi32>
    %cst_161 = arith.constant -1.000000e+30 : f32
    %617 = vector.broadcast %cst_161 : f32 to vector<32x128xf32>
    %618 = arith.select %616, %614, %617 : vector<32x128xi1>, vector<32x128xf32>
    %619 = arith.maximumf %611, %618 : vector<32x128xf32>
    %cst_162 = arith.constant -1.000000e+30 : f32
    %620 = vector.broadcast %cst_162 : f32 to vector<1x128xf32>
    %621 = vector.extract_strided_slice %611 {offsets = [0, 0], sizes = [31, 128], strides = [1, 1]} : vector<32x128xf32> to vector<31x128xf32>
    %622 = tpu.concatenate %620, %621 in 0 : vector<1x128xf32>, vector<31x128xf32> -> vector<32x128xf32>
    %c1_i32_163 = arith.constant 1 : i32
    %623 = vector.broadcast %c1_i32_163 : i32 to vector<32x128xi32>
    %624 = arith.cmpi sge, %2, %623 : vector<32x128xi32>
    %cst_164 = arith.constant -1.000000e+30 : f32
    %625 = vector.broadcast %cst_164 : f32 to vector<32x128xf32>
    %626 = arith.select %624, %622, %625 : vector<32x128xi1>, vector<32x128xf32>
    %627 = arith.maximumf %619, %626 : vector<32x128xf32>
    %c115 = arith.constant 115 : index
    %c0_165 = arith.constant 0 : index
    %628 = vector.load %arg0[%c115, %c0_165] : memref<176x128xf32, #tpu.memory_space<vmem>>, vector<1x128xf32>
    %629 = vector.broadcast %628 : vector<1x128xf32> to vector<32x128xf32>
    %630 = arith.mulf %627, %629 : vector<32x128xf32>
    %c118 = arith.constant 118 : index
    %c0_166 = arith.constant 0 : index
    %631 = vector.load %arg0[%c118, %c0_166] : memref<176x128xf32, #tpu.memory_space<vmem>>, vector<1x128xf32>
    %632 = vector.broadcast %631 : vector<1x128xf32> to vector<32x128xf32>
    %633 = arith.addf %630, %632 : vector<32x128xf32>
    %cst_167 = arith.constant 0.000000e+00 : f32
    %634 = vector.broadcast %cst_167 : f32 to vector<32x128xf32>
    %635 = arith.maximumf %633, %634 : vector<32x128xf32>
    %636 = vector.broadcast %601 : vector<1x128xf32> to vector<32x128xf32>
    %637 = arith.addf %597, %636 : vector<32x128xf32>
    %638 = vector.extract_strided_slice %637 {offsets = [0, 1], sizes = [32, 127], strides = [1, 1]} : vector<32x128xf32> to vector<32x127xf32>
    %639 = vector.extract_strided_slice %637 {offsets = [0, 0], sizes = [32, 1], strides = [1, 1]} : vector<32x128xf32> to vector<32x1xf32>
    %640 = tpu.concatenate %638, %639 in 1 : vector<32x127xf32>, vector<32x1xf32> -> vector<32x128xf32>
    %641 = arith.maximumf %637, %640 : vector<32x128xf32>
    %642 = vector.extract_strided_slice %637 {offsets = [0, 127], sizes = [32, 1], strides = [1, 1]} : vector<32x128xf32> to vector<32x1xf32>
    %643 = vector.extract_strided_slice %637 {offsets = [0, 0], sizes = [32, 127], strides = [1, 1]} : vector<32x128xf32> to vector<32x127xf32>
    %644 = tpu.concatenate %642, %643 in 1 : vector<32x1xf32>, vector<32x127xf32> -> vector<32x128xf32>
    %645 = arith.maximumf %641, %644 : vector<32x128xf32>
    %646 = vector.extract_strided_slice %637 {offsets = [0, 2], sizes = [32, 126], strides = [1, 1]} : vector<32x128xf32> to vector<32x126xf32>
    %647 = vector.extract_strided_slice %637 {offsets = [0, 0], sizes = [32, 2], strides = [1, 1]} : vector<32x128xf32> to vector<32x2xf32>
    %648 = tpu.concatenate %646, %647 in 1 : vector<32x126xf32>, vector<32x2xf32> -> vector<32x128xf32>
    %649 = arith.maximumf %645, %648 : vector<32x128xf32>
    %650 = vector.extract_strided_slice %637 {offsets = [0, 126], sizes = [32, 2], strides = [1, 1]} : vector<32x128xf32> to vector<32x2xf32>
    %651 = vector.extract_strided_slice %637 {offsets = [0, 0], sizes = [32, 126], strides = [1, 1]} : vector<32x128xf32> to vector<32x126xf32>
    %652 = tpu.concatenate %650, %651 in 1 : vector<32x2xf32>, vector<32x126xf32> -> vector<32x128xf32>
    %653 = arith.maximumf %649, %652 : vector<32x128xf32>
    %cst_168 = arith.constant -1.000000e+30 : f32
    %654 = vector.broadcast %cst_168 : f32 to vector<1x128xf32>
    %655 = vector.extract_strided_slice %653 {offsets = [1, 0], sizes = [31, 128], strides = [1, 1]} : vector<32x128xf32> to vector<31x128xf32>
    %656 = tpu.concatenate %655, %654 in 0 : vector<31x128xf32>, vector<1x128xf32> -> vector<32x128xf32>
    %c15_i32_169 = arith.constant 15 : i32
    %657 = vector.broadcast %c15_i32_169 : i32 to vector<32x128xi32>
    %658 = arith.cmpi slt, %2, %657 : vector<32x128xi32>
    %cst_170 = arith.constant -1.000000e+30 : f32
    %659 = vector.broadcast %cst_170 : f32 to vector<32x128xf32>
    %660 = arith.select %658, %656, %659 : vector<32x128xi1>, vector<32x128xf32>
    %661 = arith.maximumf %653, %660 : vector<32x128xf32>
    %cst_171 = arith.constant -1.000000e+30 : f32
    %662 = vector.broadcast %cst_171 : f32 to vector<1x128xf32>
    %663 = vector.extract_strided_slice %653 {offsets = [0, 0], sizes = [31, 128], strides = [1, 1]} : vector<32x128xf32> to vector<31x128xf32>
    %664 = tpu.concatenate %662, %663 in 0 : vector<1x128xf32>, vector<31x128xf32> -> vector<32x128xf32>
    %c1_i32_172 = arith.constant 1 : i32
    %665 = vector.broadcast %c1_i32_172 : i32 to vector<32x128xi32>
    %666 = arith.cmpi sge, %2, %665 : vector<32x128xi32>
    %cst_173 = arith.constant -1.000000e+30 : f32
    %667 = vector.broadcast %cst_173 : f32 to vector<32x128xf32>
    %668 = arith.select %666, %664, %667 : vector<32x128xi1>, vector<32x128xf32>
    %669 = arith.maximumf %661, %668 : vector<32x128xf32>
    %cst_174 = arith.constant -1.000000e+30 : f32
    %670 = vector.broadcast %cst_174 : f32 to vector<2x128xf32>
    %671 = vector.extract_strided_slice %653 {offsets = [2, 0], sizes = [30, 128], strides = [1, 1]} : vector<32x128xf32> to vector<30x128xf32>
    %672 = tpu.concatenate %671, %670 in 0 : vector<30x128xf32>, vector<2x128xf32> -> vector<32x128xf32>
    %c14_i32 = arith.constant 14 : i32
    %673 = vector.broadcast %c14_i32 : i32 to vector<32x128xi32>
    %674 = arith.cmpi slt, %2, %673 : vector<32x128xi32>
    %cst_175 = arith.constant -1.000000e+30 : f32
    %675 = vector.broadcast %cst_175 : f32 to vector<32x128xf32>
    %676 = arith.select %674, %672, %675 : vector<32x128xi1>, vector<32x128xf32>
    %677 = arith.maximumf %669, %676 : vector<32x128xf32>
    %cst_176 = arith.constant -1.000000e+30 : f32
    %678 = vector.broadcast %cst_176 : f32 to vector<2x128xf32>
    %679 = vector.extract_strided_slice %653 {offsets = [0, 0], sizes = [30, 128], strides = [1, 1]} : vector<32x128xf32> to vector<30x128xf32>
    %680 = tpu.concatenate %678, %679 in 0 : vector<2x128xf32>, vector<30x128xf32> -> vector<32x128xf32>
    %c2_i32 = arith.constant 2 : i32
    %681 = vector.broadcast %c2_i32 : i32 to vector<32x128xi32>
    %682 = arith.cmpi sge, %2, %681 : vector<32x128xi32>
    %cst_177 = arith.constant -1.000000e+30 : f32
    %683 = vector.broadcast %cst_177 : f32 to vector<32x128xf32>
    %684 = arith.select %682, %680, %683 : vector<32x128xi1>, vector<32x128xf32>
    %685 = arith.maximumf %677, %684 : vector<32x128xf32>
    %c116 = arith.constant 116 : index
    %c0_178 = arith.constant 0 : index
    %686 = vector.load %arg0[%c116, %c0_178] : memref<176x128xf32, #tpu.memory_space<vmem>>, vector<1x128xf32>
    %687 = vector.broadcast %686 : vector<1x128xf32> to vector<32x128xf32>
    %688 = arith.mulf %685, %687 : vector<32x128xf32>
    %c119 = arith.constant 119 : index
    %c0_179 = arith.constant 0 : index
    %689 = vector.load %arg0[%c119, %c0_179] : memref<176x128xf32, #tpu.memory_space<vmem>>, vector<1x128xf32>
    %690 = vector.broadcast %689 : vector<1x128xf32> to vector<32x128xf32>
    %691 = arith.addf %688, %690 : vector<32x128xf32>
    %cst_180 = arith.constant 0.000000e+00 : f32
    %692 = vector.broadcast %cst_180 : f32 to vector<32x128xf32>
    %693 = arith.maximumf %691, %692 : vector<32x128xf32>
    %694 = vector.broadcast %601 : vector<1x128xf32> to vector<32x128xf32>
    %695 = arith.addf %600, %694 : vector<32x128xf32>
    %696 = vector.extract_strided_slice %695 {offsets = [0, 1], sizes = [32, 127], strides = [1, 1]} : vector<32x128xf32> to vector<32x127xf32>
    %697 = vector.extract_strided_slice %695 {offsets = [0, 0], sizes = [32, 1], strides = [1, 1]} : vector<32x128xf32> to vector<32x1xf32>
    %698 = tpu.concatenate %696, %697 in 1 : vector<32x127xf32>, vector<32x1xf32> -> vector<32x128xf32>
    %699 = arith.maximumf %695, %698 : vector<32x128xf32>
    %700 = vector.extract_strided_slice %695 {offsets = [0, 127], sizes = [32, 1], strides = [1, 1]} : vector<32x128xf32> to vector<32x1xf32>
    %701 = vector.extract_strided_slice %695 {offsets = [0, 0], sizes = [32, 127], strides = [1, 1]} : vector<32x128xf32> to vector<32x127xf32>
    %702 = tpu.concatenate %700, %701 in 1 : vector<32x1xf32>, vector<32x127xf32> -> vector<32x128xf32>
    %703 = arith.maximumf %699, %702 : vector<32x128xf32>
    %704 = vector.extract_strided_slice %695 {offsets = [0, 2], sizes = [32, 126], strides = [1, 1]} : vector<32x128xf32> to vector<32x126xf32>
    %705 = vector.extract_strided_slice %695 {offsets = [0, 0], sizes = [32, 2], strides = [1, 1]} : vector<32x128xf32> to vector<32x2xf32>
    %706 = tpu.concatenate %704, %705 in 1 : vector<32x126xf32>, vector<32x2xf32> -> vector<32x128xf32>
    %707 = arith.maximumf %703, %706 : vector<32x128xf32>
    %708 = vector.extract_strided_slice %695 {offsets = [0, 126], sizes = [32, 2], strides = [1, 1]} : vector<32x128xf32> to vector<32x2xf32>
    %709 = vector.extract_strided_slice %695 {offsets = [0, 0], sizes = [32, 126], strides = [1, 1]} : vector<32x128xf32> to vector<32x126xf32>
    %710 = tpu.concatenate %708, %709 in 1 : vector<32x2xf32>, vector<32x126xf32> -> vector<32x128xf32>
    %711 = arith.maximumf %707, %710 : vector<32x128xf32>
    %712 = vector.extract_strided_slice %695 {offsets = [0, 3], sizes = [32, 125], strides = [1, 1]} : vector<32x128xf32> to vector<32x125xf32>
    %713 = vector.extract_strided_slice %695 {offsets = [0, 0], sizes = [32, 3], strides = [1, 1]} : vector<32x128xf32> to vector<32x3xf32>
    %714 = tpu.concatenate %712, %713 in 1 : vector<32x125xf32>, vector<32x3xf32> -> vector<32x128xf32>
    %715 = arith.maximumf %711, %714 : vector<32x128xf32>
    %716 = vector.extract_strided_slice %695 {offsets = [0, 125], sizes = [32, 3], strides = [1, 1]} : vector<32x128xf32> to vector<32x3xf32>
    %717 = vector.extract_strided_slice %695 {offsets = [0, 0], sizes = [32, 125], strides = [1, 1]} : vector<32x128xf32> to vector<32x125xf32>
    %718 = tpu.concatenate %716, %717 in 1 : vector<32x3xf32>, vector<32x125xf32> -> vector<32x128xf32>
    %719 = arith.maximumf %715, %718 : vector<32x128xf32>
    %cst_181 = arith.constant -1.000000e+30 : f32
    %720 = vector.broadcast %cst_181 : f32 to vector<1x128xf32>
    %721 = vector.extract_strided_slice %719 {offsets = [1, 0], sizes = [31, 128], strides = [1, 1]} : vector<32x128xf32> to vector<31x128xf32>
    %722 = tpu.concatenate %721, %720 in 0 : vector<31x128xf32>, vector<1x128xf32> -> vector<32x128xf32>
    %c15_i32_182 = arith.constant 15 : i32
    %723 = vector.broadcast %c15_i32_182 : i32 to vector<32x128xi32>
    %724 = arith.cmpi slt, %2, %723 : vector<32x128xi32>
    %cst_183 = arith.constant -1.000000e+30 : f32
    %725 = vector.broadcast %cst_183 : f32 to vector<32x128xf32>
    %726 = arith.select %724, %722, %725 : vector<32x128xi1>, vector<32x128xf32>
    %727 = arith.maximumf %719, %726 : vector<32x128xf32>
    %cst_184 = arith.constant -1.000000e+30 : f32
    %728 = vector.broadcast %cst_184 : f32 to vector<1x128xf32>
    %729 = vector.extract_strided_slice %719 {offsets = [0, 0], sizes = [31, 128], strides = [1, 1]} : vector<32x128xf32> to vector<31x128xf32>
    %730 = tpu.concatenate %728, %729 in 0 : vector<1x128xf32>, vector<31x128xf32> -> vector<32x128xf32>
    %c1_i32_185 = arith.constant 1 : i32
    %731 = vector.broadcast %c1_i32_185 : i32 to vector<32x128xi32>
    %732 = arith.cmpi sge, %2, %731 : vector<32x128xi32>
    %cst_186 = arith.constant -1.000000e+30 : f32
    %733 = vector.broadcast %cst_186 : f32 to vector<32x128xf32>
    %734 = arith.select %732, %730, %733 : vector<32x128xi1>, vector<32x128xf32>
    %735 = arith.maximumf %727, %734 : vector<32x128xf32>
    %cst_187 = arith.constant -1.000000e+30 : f32
    %736 = vector.broadcast %cst_187 : f32 to vector<2x128xf32>
    %737 = vector.extract_strided_slice %719 {offsets = [2, 0], sizes = [30, 128], strides = [1, 1]} : vector<32x128xf32> to vector<30x128xf32>
    %738 = tpu.concatenate %737, %736 in 0 : vector<30x128xf32>, vector<2x128xf32> -> vector<32x128xf32>
    %c14_i32_188 = arith.constant 14 : i32
    %739 = vector.broadcast %c14_i32_188 : i32 to vector<32x128xi32>
    %740 = arith.cmpi slt, %2, %739 : vector<32x128xi32>
    %cst_189 = arith.constant -1.000000e+30 : f32
    %741 = vector.broadcast %cst_189 : f32 to vector<32x128xf32>
    %742 = arith.select %740, %738, %741 : vector<32x128xi1>, vector<32x128xf32>
    %743 = arith.maximumf %735, %742 : vector<32x128xf32>
    %cst_190 = arith.constant -1.000000e+30 : f32
    %744 = vector.broadcast %cst_190 : f32 to vector<2x128xf32>
    %745 = vector.extract_strided_slice %719 {offsets = [0, 0], sizes = [30, 128], strides = [1, 1]} : vector<32x128xf32> to vector<30x128xf32>
    %746 = tpu.concatenate %744, %745 in 0 : vector<2x128xf32>, vector<30x128xf32> -> vector<32x128xf32>
    %c2_i32_191 = arith.constant 2 : i32
    %747 = vector.broadcast %c2_i32_191 : i32 to vector<32x128xi32>
    %748 = arith.cmpi sge, %2, %747 : vector<32x128xi32>
    %cst_192 = arith.constant -1.000000e+30 : f32
    %749 = vector.broadcast %cst_192 : f32 to vector<32x128xf32>
    %750 = arith.select %748, %746, %749 : vector<32x128xi1>, vector<32x128xf32>
    %751 = arith.maximumf %743, %750 : vector<32x128xf32>
    %cst_193 = arith.constant -1.000000e+30 : f32
    %752 = vector.broadcast %cst_193 : f32 to vector<3x128xf32>
    %753 = vector.extract_strided_slice %719 {offsets = [3, 0], sizes = [29, 128], strides = [1, 1]} : vector<32x128xf32> to vector<29x128xf32>
    %754 = tpu.concatenate %753, %752 in 0 : vector<29x128xf32>, vector<3x128xf32> -> vector<32x128xf32>
    %c13_i32 = arith.constant 13 : i32
    %755 = vector.broadcast %c13_i32 : i32 to vector<32x128xi32>
    %756 = arith.cmpi slt, %2, %755 : vector<32x128xi32>
    %cst_194 = arith.constant -1.000000e+30 : f32
    %757 = vector.broadcast %cst_194 : f32 to vector<32x128xf32>
    %758 = arith.select %756, %754, %757 : vector<32x128xi1>, vector<32x128xf32>
    %759 = arith.maximumf %751, %758 : vector<32x128xf32>
    %cst_195 = arith.constant -1.000000e+30 : f32
    %760 = vector.broadcast %cst_195 : f32 to vector<3x128xf32>
    %761 = vector.extract_strided_slice %719 {offsets = [0, 0], sizes = [29, 128], strides = [1, 1]} : vector<32x128xf32> to vector<29x128xf32>
    %762 = tpu.concatenate %760, %761 in 0 : vector<3x128xf32>, vector<29x128xf32> -> vector<32x128xf32>
    %c3_i32 = arith.constant 3 : i32
    %763 = vector.broadcast %c3_i32 : i32 to vector<32x128xi32>
    %764 = arith.cmpi sge, %2, %763 : vector<32x128xi32>
    %cst_196 = arith.constant -1.000000e+30 : f32
    %765 = vector.broadcast %cst_196 : f32 to vector<32x128xf32>
    %766 = arith.select %764, %762, %765 : vector<32x128xi1>, vector<32x128xf32>
    %767 = arith.maximumf %759, %766 : vector<32x128xf32>
    %c117 = arith.constant 117 : index
    %c0_197 = arith.constant 0 : index
    %768 = vector.load %arg0[%c117, %c0_197] : memref<176x128xf32, #tpu.memory_space<vmem>>, vector<1x128xf32>
    %769 = vector.broadcast %768 : vector<1x128xf32> to vector<32x128xf32>
    %770 = arith.mulf %767, %769 : vector<32x128xf32>
    %c120 = arith.constant 120 : index
    %c0_198 = arith.constant 0 : index
    %771 = vector.load %arg0[%c120, %c0_198] : memref<176x128xf32, #tpu.memory_space<vmem>>, vector<1x128xf32>
    %772 = vector.broadcast %771 : vector<1x128xf32> to vector<32x128xf32>
    %773 = arith.addf %770, %772 : vector<32x128xf32>
    %cst_199 = arith.constant 0.000000e+00 : f32
    %774 = vector.broadcast %cst_199 : f32 to vector<32x128xf32>
    %775 = arith.maximumf %773, %774 : vector<32x128xf32>
    %c172 = arith.constant 172 : index
    %c0_200 = arith.constant 0 : index
    %776 = vector.load %arg0[%c172, %c0_200] : memref<176x128xf32, #tpu.memory_space<vmem>>, vector<1x128xf32>
    %c173 = arith.constant 173 : index
    %c0_201 = arith.constant 0 : index
    %777 = vector.load %arg0[%c173, %c0_201] : memref<176x128xf32, #tpu.memory_space<vmem>>, vector<1x128xf32>
    %c174 = arith.constant 174 : index
    %c0_202 = arith.constant 0 : index
    %778 = vector.load %arg0[%c174, %c0_202] : memref<176x128xf32, #tpu.memory_space<vmem>>, vector<1x128xf32>
    %c175 = arith.constant 175 : index
    %c0_203 = arith.constant 0 : index
    %779 = vector.load %arg0[%c175, %c0_203] : memref<176x128xf32, #tpu.memory_space<vmem>>, vector<1x128xf32>
    %cst_204 = arith.constant 0.000000e+00 : f32
    %780 = vector.broadcast %cst_204 : f32 to vector<32x128xf32>
    %cst_205 = arith.constant 0.000000e+00 : f32
    %781 = vector.broadcast %cst_205 : f32 to vector<32x128xf32>
    %782 = vector.extract_strided_slice %347 {offsets = [0, 32], sizes = [32, 96], strides = [1, 1]} : vector<32x128xf32> to vector<32x96xf32>
    %783 = vector.extract_strided_slice %347 {offsets = [0, 0], sizes = [32, 32], strides = [1, 1]} : vector<32x128xf32> to vector<32x32xf32>
    %784 = tpu.concatenate %782, %783 in 1 : vector<32x96xf32>, vector<32x32xf32> -> vector<32x128xf32>
    %785 = vector.extract_strided_slice %347 {offsets = [0, 64], sizes = [32, 64], strides = [1, 1]} : vector<32x128xf32> to vector<32x64xf32>
    %786 = vector.extract_strided_slice %347 {offsets = [0, 0], sizes = [32, 64], strides = [1, 1]} : vector<32x128xf32> to vector<32x64xf32>
    %787 = tpu.concatenate %785, %786 in 1 : vector<32x64xf32>, vector<32x64xf32> -> vector<32x128xf32>
    %788 = vector.extract_strided_slice %347 {offsets = [0, 96], sizes = [32, 32], strides = [1, 1]} : vector<32x128xf32> to vector<32x32xf32>
    %789 = vector.extract_strided_slice %347 {offsets = [0, 0], sizes = [32, 96], strides = [1, 1]} : vector<32x128xf32> to vector<32x96xf32>
    %790 = tpu.concatenate %788, %789 in 1 : vector<32x32xf32>, vector<32x96xf32> -> vector<32x128xf32>
    %791 = arith.addf %347, %784 : vector<32x128xf32>
    %792 = arith.addf %791, %787 : vector<32x128xf32>
    %793 = arith.addf %792, %790 : vector<32x128xf32>
    %794 = arith.maximumf %347, %784 : vector<32x128xf32>
    %795 = arith.maximumf %787, %790 : vector<32x128xf32>
    %796 = arith.maximumf %794, %795 : vector<32x128xf32>
    %cst_206 = arith.constant 2.500000e-01 : f32
    %797 = vector.broadcast %cst_206 : f32 to vector<32x128xf32>
    %798 = arith.mulf %793, %797 : vector<32x128xf32>
    %799 = vector.broadcast %776 : vector<1x128xf32> to vector<32x128xf32>
    %800 = arith.mulf %799, %798 : vector<32x128xf32>
    %801 = arith.addf %780, %800 : vector<32x128xf32>
    %802 = vector.broadcast %776 : vector<1x128xf32> to vector<32x128xf32>
    %803 = arith.mulf %802, %796 : vector<32x128xf32>
    %804 = arith.addf %781, %803 : vector<32x128xf32>
    %805 = vector.extract_strided_slice %635 {offsets = [0, 32], sizes = [32, 96], strides = [1, 1]} : vector<32x128xf32> to vector<32x96xf32>
    %806 = vector.extract_strided_slice %635 {offsets = [0, 0], sizes = [32, 32], strides = [1, 1]} : vector<32x128xf32> to vector<32x32xf32>
    %807 = tpu.concatenate %805, %806 in 1 : vector<32x96xf32>, vector<32x32xf32> -> vector<32x128xf32>
    %808 = vector.extract_strided_slice %635 {offsets = [0, 64], sizes = [32, 64], strides = [1, 1]} : vector<32x128xf32> to vector<32x64xf32>
    %809 = vector.extract_strided_slice %635 {offsets = [0, 0], sizes = [32, 64], strides = [1, 1]} : vector<32x128xf32> to vector<32x64xf32>
    %810 = tpu.concatenate %808, %809 in 1 : vector<32x64xf32>, vector<32x64xf32> -> vector<32x128xf32>
    %811 = vector.extract_strided_slice %635 {offsets = [0, 96], sizes = [32, 32], strides = [1, 1]} : vector<32x128xf32> to vector<32x32xf32>
    %812 = vector.extract_strided_slice %635 {offsets = [0, 0], sizes = [32, 96], strides = [1, 1]} : vector<32x128xf32> to vector<32x96xf32>
    %813 = tpu.concatenate %811, %812 in 1 : vector<32x32xf32>, vector<32x96xf32> -> vector<32x128xf32>
    %814 = arith.addf %635, %807 : vector<32x128xf32>
    %815 = arith.addf %814, %810 : vector<32x128xf32>
    %816 = arith.addf %815, %813 : vector<32x128xf32>
    %817 = arith.maximumf %635, %807 : vector<32x128xf32>
    %818 = arith.maximumf %810, %813 : vector<32x128xf32>
    %819 = arith.maximumf %817, %818 : vector<32x128xf32>
    %cst_207 = arith.constant 2.500000e-01 : f32
    %820 = vector.broadcast %cst_207 : f32 to vector<32x128xf32>
    %821 = arith.mulf %816, %820 : vector<32x128xf32>
    %822 = vector.broadcast %777 : vector<1x128xf32> to vector<32x128xf32>
    %823 = arith.mulf %822, %821 : vector<32x128xf32>
    %824 = arith.addf %801, %823 : vector<32x128xf32>
    %825 = vector.broadcast %777 : vector<1x128xf32> to vector<32x128xf32>
    %826 = arith.mulf %825, %819 : vector<32x128xf32>
    %827 = arith.addf %804, %826 : vector<32x128xf32>
    %828 = vector.extract_strided_slice %693 {offsets = [0, 32], sizes = [32, 96], strides = [1, 1]} : vector<32x128xf32> to vector<32x96xf32>
    %829 = vector.extract_strided_slice %693 {offsets = [0, 0], sizes = [32, 32], strides = [1, 1]} : vector<32x128xf32> to vector<32x32xf32>
    %830 = tpu.concatenate %828, %829 in 1 : vector<32x96xf32>, vector<32x32xf32> -> vector<32x128xf32>
    %831 = vector.extract_strided_slice %693 {offsets = [0, 64], sizes = [32, 64], strides = [1, 1]} : vector<32x128xf32> to vector<32x64xf32>
    %832 = vector.extract_strided_slice %693 {offsets = [0, 0], sizes = [32, 64], strides = [1, 1]} : vector<32x128xf32> to vector<32x64xf32>
    %833 = tpu.concatenate %831, %832 in 1 : vector<32x64xf32>, vector<32x64xf32> -> vector<32x128xf32>
    %834 = vector.extract_strided_slice %693 {offsets = [0, 96], sizes = [32, 32], strides = [1, 1]} : vector<32x128xf32> to vector<32x32xf32>
    %835 = vector.extract_strided_slice %693 {offsets = [0, 0], sizes = [32, 96], strides = [1, 1]} : vector<32x128xf32> to vector<32x96xf32>
    %836 = tpu.concatenate %834, %835 in 1 : vector<32x32xf32>, vector<32x96xf32> -> vector<32x128xf32>
    %837 = arith.addf %693, %830 : vector<32x128xf32>
    %838 = arith.addf %837, %833 : vector<32x128xf32>
    %839 = arith.addf %838, %836 : vector<32x128xf32>
    %840 = arith.maximumf %693, %830 : vector<32x128xf32>
    %841 = arith.maximumf %833, %836 : vector<32x128xf32>
    %842 = arith.maximumf %840, %841 : vector<32x128xf32>
    %cst_208 = arith.constant 2.500000e-01 : f32
    %843 = vector.broadcast %cst_208 : f32 to vector<32x128xf32>
    %844 = arith.mulf %839, %843 : vector<32x128xf32>
    %845 = vector.broadcast %778 : vector<1x128xf32> to vector<32x128xf32>
    %846 = arith.mulf %845, %844 : vector<32x128xf32>
    %847 = arith.addf %824, %846 : vector<32x128xf32>
    %848 = vector.broadcast %778 : vector<1x128xf32> to vector<32x128xf32>
    %849 = arith.mulf %848, %842 : vector<32x128xf32>
    %850 = arith.addf %827, %849 : vector<32x128xf32>
    %851 = vector.extract_strided_slice %775 {offsets = [0, 32], sizes = [32, 96], strides = [1, 1]} : vector<32x128xf32> to vector<32x96xf32>
    %852 = vector.extract_strided_slice %775 {offsets = [0, 0], sizes = [32, 32], strides = [1, 1]} : vector<32x128xf32> to vector<32x32xf32>
    %853 = tpu.concatenate %851, %852 in 1 : vector<32x96xf32>, vector<32x32xf32> -> vector<32x128xf32>
    %854 = vector.extract_strided_slice %775 {offsets = [0, 64], sizes = [32, 64], strides = [1, 1]} : vector<32x128xf32> to vector<32x64xf32>
    %855 = vector.extract_strided_slice %775 {offsets = [0, 0], sizes = [32, 64], strides = [1, 1]} : vector<32x128xf32> to vector<32x64xf32>
    %856 = tpu.concatenate %854, %855 in 1 : vector<32x64xf32>, vector<32x64xf32> -> vector<32x128xf32>
    %857 = vector.extract_strided_slice %775 {offsets = [0, 96], sizes = [32, 32], strides = [1, 1]} : vector<32x128xf32> to vector<32x32xf32>
    %858 = vector.extract_strided_slice %775 {offsets = [0, 0], sizes = [32, 96], strides = [1, 1]} : vector<32x128xf32> to vector<32x96xf32>
    %859 = tpu.concatenate %857, %858 in 1 : vector<32x32xf32>, vector<32x96xf32> -> vector<32x128xf32>
    %860 = arith.addf %775, %853 : vector<32x128xf32>
    %861 = arith.addf %860, %856 : vector<32x128xf32>
    %862 = arith.addf %861, %859 : vector<32x128xf32>
    %863 = arith.maximumf %775, %853 : vector<32x128xf32>
    %864 = arith.maximumf %856, %859 : vector<32x128xf32>
    %865 = arith.maximumf %863, %864 : vector<32x128xf32>
    %cst_209 = arith.constant 2.500000e-01 : f32
    %866 = vector.broadcast %cst_209 : f32 to vector<32x128xf32>
    %867 = arith.mulf %862, %866 : vector<32x128xf32>
    %868 = vector.broadcast %779 : vector<1x128xf32> to vector<32x128xf32>
    %869 = arith.mulf %868, %867 : vector<32x128xf32>
    %870 = arith.addf %847, %869 : vector<32x128xf32>
    %871 = vector.broadcast %779 : vector<1x128xf32> to vector<32x128xf32>
    %872 = arith.mulf %871, %865 : vector<32x128xf32>
    %873 = arith.addf %850, %872 : vector<32x128xf32>
    %874 = tpu.concatenate %870, %873 in 0 : vector<32x128xf32>, vector<32x128xf32> -> vector<64x128xf32>
    %cst_210 = arith.constant 0.000000e+00 : f32
    %875 = vector.broadcast %cst_210 : f32 to vector<32x128xf32>
    %cst_211 = arith.constant 0.000000e+00 : f32
    %876 = vector.broadcast %cst_211 : f32 to vector<2x128xf32>
    %877 = vector.extract_strided_slice %874 {offsets = [0, 0], sizes = [62, 128], strides = [1, 1]} : vector<64x128xf32> to vector<62x128xf32>
    %878 = tpu.concatenate %876, %877 in 0 : vector<2x128xf32>, vector<62x128xf32> -> vector<64x128xf32>
    %c2_i32_212 = arith.constant 2 : i32
    %879 = vector.broadcast %c2_i32_212 : i32 to vector<64x128xi32>
    %880 = arith.cmpi sge, %5, %879 : vector<64x128xi32>
    %cst_213 = arith.constant 0.000000e+00 : f32
    %881 = vector.broadcast %cst_213 : f32 to vector<64x128xf32>
    %882 = arith.select %880, %878, %881 : vector<64x128xi1>, vector<64x128xf32>
    %883 = vector.extract_strided_slice %882 {offsets = [0, 126], sizes = [64, 2], strides = [1, 1]} : vector<64x128xf32> to vector<64x2xf32>
    %884 = vector.extract_strided_slice %882 {offsets = [0, 0], sizes = [64, 126], strides = [1, 1]} : vector<64x128xf32> to vector<64x126xf32>
    %885 = tpu.concatenate %883, %884 in 1 : vector<64x2xf32>, vector<64x126xf32> -> vector<64x128xf32>
    %c121 = arith.constant 121 : index
    %c0_214 = arith.constant 0 : index
    %886 = vector.load %arg0[%c121, %c0_214] : memref<176x128xf32, #tpu.memory_space<vmem>>, vector<1x128xf32>
    %887 = vector.extract_strided_slice %885 {offsets = [0, 0], sizes = [32, 128], strides = [1, 1]} : vector<64x128xf32> to vector<32x128xf32>
    %888 = vector.broadcast %886 : vector<1x128xf32> to vector<32x128xf32>
    %889 = arith.mulf %888, %887 : vector<32x128xf32>
    %890 = arith.addf %875, %889 : vector<32x128xf32>
    %c146 = arith.constant 146 : index
    %c0_215 = arith.constant 0 : index
    %891 = vector.load %arg0[%c146, %c0_215] : memref<176x128xf32, #tpu.memory_space<vmem>>, vector<1x128xf32>
    %892 = vector.extract_strided_slice %885 {offsets = [32, 0], sizes = [32, 128], strides = [1, 1]} : vector<64x128xf32> to vector<32x128xf32>
    %893 = vector.broadcast %891 : vector<1x128xf32> to vector<32x128xf32>
    %894 = arith.mulf %893, %892 : vector<32x128xf32>
    %895 = arith.addf %890, %894 : vector<32x128xf32>
    %896 = vector.extract_strided_slice %882 {offsets = [0, 127], sizes = [64, 1], strides = [1, 1]} : vector<64x128xf32> to vector<64x1xf32>
    %897 = vector.extract_strided_slice %882 {offsets = [0, 0], sizes = [64, 127], strides = [1, 1]} : vector<64x128xf32> to vector<64x127xf32>
    %898 = tpu.concatenate %896, %897 in 1 : vector<64x1xf32>, vector<64x127xf32> -> vector<64x128xf32>
    %c122 = arith.constant 122 : index
    %c0_216 = arith.constant 0 : index
    %899 = vector.load %arg0[%c122, %c0_216] : memref<176x128xf32, #tpu.memory_space<vmem>>, vector<1x128xf32>
    %900 = vector.extract_strided_slice %898 {offsets = [0, 0], sizes = [32, 128], strides = [1, 1]} : vector<64x128xf32> to vector<32x128xf32>
    %901 = vector.broadcast %899 : vector<1x128xf32> to vector<32x128xf32>
    %902 = arith.mulf %901, %900 : vector<32x128xf32>
    %903 = arith.addf %895, %902 : vector<32x128xf32>
    %c147 = arith.constant 147 : index
    %c0_217 = arith.constant 0 : index
    %904 = vector.load %arg0[%c147, %c0_217] : memref<176x128xf32, #tpu.memory_space<vmem>>, vector<1x128xf32>
    %905 = vector.extract_strided_slice %898 {offsets = [32, 0], sizes = [32, 128], strides = [1, 1]} : vector<64x128xf32> to vector<32x128xf32>
    %906 = vector.broadcast %904 : vector<1x128xf32> to vector<32x128xf32>
    %907 = arith.mulf %906, %905 : vector<32x128xf32>
    %908 = arith.addf %903, %907 : vector<32x128xf32>
    %c123 = arith.constant 123 : index
    %c0_218 = arith.constant 0 : index
    %909 = vector.load %arg0[%c123, %c0_218] : memref<176x128xf32, #tpu.memory_space<vmem>>, vector<1x128xf32>
    %910 = vector.extract_strided_slice %882 {offsets = [0, 0], sizes = [32, 128], strides = [1, 1]} : vector<64x128xf32> to vector<32x128xf32>
    %911 = vector.broadcast %909 : vector<1x128xf32> to vector<32x128xf32>
    %912 = arith.mulf %911, %910 : vector<32x128xf32>
    %913 = arith.addf %908, %912 : vector<32x128xf32>
    %c148 = arith.constant 148 : index
    %c0_219 = arith.constant 0 : index
    %914 = vector.load %arg0[%c148, %c0_219] : memref<176x128xf32, #tpu.memory_space<vmem>>, vector<1x128xf32>
    %915 = vector.extract_strided_slice %882 {offsets = [32, 0], sizes = [32, 128], strides = [1, 1]} : vector<64x128xf32> to vector<32x128xf32>
    %916 = vector.broadcast %914 : vector<1x128xf32> to vector<32x128xf32>
    %917 = arith.mulf %916, %915 : vector<32x128xf32>
    %918 = arith.addf %913, %917 : vector<32x128xf32>
    %919 = vector.extract_strided_slice %882 {offsets = [0, 1], sizes = [64, 127], strides = [1, 1]} : vector<64x128xf32> to vector<64x127xf32>
    %920 = vector.extract_strided_slice %882 {offsets = [0, 0], sizes = [64, 1], strides = [1, 1]} : vector<64x128xf32> to vector<64x1xf32>
    %921 = tpu.concatenate %919, %920 in 1 : vector<64x127xf32>, vector<64x1xf32> -> vector<64x128xf32>
    %c124 = arith.constant 124 : index
    %c0_220 = arith.constant 0 : index
    %922 = vector.load %arg0[%c124, %c0_220] : memref<176x128xf32, #tpu.memory_space<vmem>>, vector<1x128xf32>
    %923 = vector.extract_strided_slice %921 {offsets = [0, 0], sizes = [32, 128], strides = [1, 1]} : vector<64x128xf32> to vector<32x128xf32>
    %924 = vector.broadcast %922 : vector<1x128xf32> to vector<32x128xf32>
    %925 = arith.mulf %924, %923 : vector<32x128xf32>
    %926 = arith.addf %918, %925 : vector<32x128xf32>
    %c149 = arith.constant 149 : index
    %c0_221 = arith.constant 0 : index
    %927 = vector.load %arg0[%c149, %c0_221] : memref<176x128xf32, #tpu.memory_space<vmem>>, vector<1x128xf32>
    %928 = vector.extract_strided_slice %921 {offsets = [32, 0], sizes = [32, 128], strides = [1, 1]} : vector<64x128xf32> to vector<32x128xf32>
    %929 = vector.broadcast %927 : vector<1x128xf32> to vector<32x128xf32>
    %930 = arith.mulf %929, %928 : vector<32x128xf32>
    %931 = arith.addf %926, %930 : vector<32x128xf32>
    %932 = vector.extract_strided_slice %882 {offsets = [0, 2], sizes = [64, 126], strides = [1, 1]} : vector<64x128xf32> to vector<64x126xf32>
    %933 = vector.extract_strided_slice %882 {offsets = [0, 0], sizes = [64, 2], strides = [1, 1]} : vector<64x128xf32> to vector<64x2xf32>
    %934 = tpu.concatenate %932, %933 in 1 : vector<64x126xf32>, vector<64x2xf32> -> vector<64x128xf32>
    %c125 = arith.constant 125 : index
    %c0_222 = arith.constant 0 : index
    %935 = vector.load %arg0[%c125, %c0_222] : memref<176x128xf32, #tpu.memory_space<vmem>>, vector<1x128xf32>
    %936 = vector.extract_strided_slice %934 {offsets = [0, 0], sizes = [32, 128], strides = [1, 1]} : vector<64x128xf32> to vector<32x128xf32>
    %937 = vector.broadcast %935 : vector<1x128xf32> to vector<32x128xf32>
    %938 = arith.mulf %937, %936 : vector<32x128xf32>
    %939 = arith.addf %931, %938 : vector<32x128xf32>
    %c150 = arith.constant 150 : index
    %c0_223 = arith.constant 0 : index
    %940 = vector.load %arg0[%c150, %c0_223] : memref<176x128xf32, #tpu.memory_space<vmem>>, vector<1x128xf32>
    %941 = vector.extract_strided_slice %934 {offsets = [32, 0], sizes = [32, 128], strides = [1, 1]} : vector<64x128xf32> to vector<32x128xf32>
    %942 = vector.broadcast %940 : vector<1x128xf32> to vector<32x128xf32>
    %943 = arith.mulf %942, %941 : vector<32x128xf32>
    %944 = arith.addf %939, %943 : vector<32x128xf32>
    %cst_224 = arith.constant 0.000000e+00 : f32
    %945 = vector.broadcast %cst_224 : f32 to vector<1x128xf32>
    %946 = vector.extract_strided_slice %874 {offsets = [0, 0], sizes = [63, 128], strides = [1, 1]} : vector<64x128xf32> to vector<63x128xf32>
    %947 = tpu.concatenate %945, %946 in 0 : vector<1x128xf32>, vector<63x128xf32> -> vector<64x128xf32>
    %c1_i32_225 = arith.constant 1 : i32
    %948 = vector.broadcast %c1_i32_225 : i32 to vector<64x128xi32>
    %949 = arith.cmpi sge, %5, %948 : vector<64x128xi32>
    %cst_226 = arith.constant 0.000000e+00 : f32
    %950 = vector.broadcast %cst_226 : f32 to vector<64x128xf32>
    %951 = arith.select %949, %947, %950 : vector<64x128xi1>, vector<64x128xf32>
    %952 = vector.extract_strided_slice %951 {offsets = [0, 126], sizes = [64, 2], strides = [1, 1]} : vector<64x128xf32> to vector<64x2xf32>
    %953 = vector.extract_strided_slice %951 {offsets = [0, 0], sizes = [64, 126], strides = [1, 1]} : vector<64x128xf32> to vector<64x126xf32>
    %954 = tpu.concatenate %952, %953 in 1 : vector<64x2xf32>, vector<64x126xf32> -> vector<64x128xf32>
    %c126 = arith.constant 126 : index
    %c0_227 = arith.constant 0 : index
    %955 = vector.load %arg0[%c126, %c0_227] : memref<176x128xf32, #tpu.memory_space<vmem>>, vector<1x128xf32>
    %956 = vector.extract_strided_slice %954 {offsets = [0, 0], sizes = [32, 128], strides = [1, 1]} : vector<64x128xf32> to vector<32x128xf32>
    %957 = vector.broadcast %955 : vector<1x128xf32> to vector<32x128xf32>
    %958 = arith.mulf %957, %956 : vector<32x128xf32>
    %959 = arith.addf %944, %958 : vector<32x128xf32>
    %c151 = arith.constant 151 : index
    %c0_228 = arith.constant 0 : index
    %960 = vector.load %arg0[%c151, %c0_228] : memref<176x128xf32, #tpu.memory_space<vmem>>, vector<1x128xf32>
    %961 = vector.extract_strided_slice %954 {offsets = [32, 0], sizes = [32, 128], strides = [1, 1]} : vector<64x128xf32> to vector<32x128xf32>
    %962 = vector.broadcast %960 : vector<1x128xf32> to vector<32x128xf32>
    %963 = arith.mulf %962, %961 : vector<32x128xf32>
    %964 = arith.addf %959, %963 : vector<32x128xf32>
    %965 = vector.extract_strided_slice %951 {offsets = [0, 127], sizes = [64, 1], strides = [1, 1]} : vector<64x128xf32> to vector<64x1xf32>
    %966 = vector.extract_strided_slice %951 {offsets = [0, 0], sizes = [64, 127], strides = [1, 1]} : vector<64x128xf32> to vector<64x127xf32>
    %967 = tpu.concatenate %965, %966 in 1 : vector<64x1xf32>, vector<64x127xf32> -> vector<64x128xf32>
    %c127 = arith.constant 127 : index
    %c0_229 = arith.constant 0 : index
    %968 = vector.load %arg0[%c127, %c0_229] : memref<176x128xf32, #tpu.memory_space<vmem>>, vector<1x128xf32>
    %969 = vector.extract_strided_slice %967 {offsets = [0, 0], sizes = [32, 128], strides = [1, 1]} : vector<64x128xf32> to vector<32x128xf32>
    %970 = vector.broadcast %968 : vector<1x128xf32> to vector<32x128xf32>
    %971 = arith.mulf %970, %969 : vector<32x128xf32>
    %972 = arith.addf %964, %971 : vector<32x128xf32>
    %c152 = arith.constant 152 : index
    %c0_230 = arith.constant 0 : index
    %973 = vector.load %arg0[%c152, %c0_230] : memref<176x128xf32, #tpu.memory_space<vmem>>, vector<1x128xf32>
    %974 = vector.extract_strided_slice %967 {offsets = [32, 0], sizes = [32, 128], strides = [1, 1]} : vector<64x128xf32> to vector<32x128xf32>
    %975 = vector.broadcast %973 : vector<1x128xf32> to vector<32x128xf32>
    %976 = arith.mulf %975, %974 : vector<32x128xf32>
    %977 = arith.addf %972, %976 : vector<32x128xf32>
    %c128 = arith.constant 128 : index
    %c0_231 = arith.constant 0 : index
    %978 = vector.load %arg0[%c128, %c0_231] : memref<176x128xf32, #tpu.memory_space<vmem>>, vector<1x128xf32>
    %979 = vector.extract_strided_slice %951 {offsets = [0, 0], sizes = [32, 128], strides = [1, 1]} : vector<64x128xf32> to vector<32x128xf32>
    %980 = vector.broadcast %978 : vector<1x128xf32> to vector<32x128xf32>
    %981 = arith.mulf %980, %979 : vector<32x128xf32>
    %982 = arith.addf %977, %981 : vector<32x128xf32>
    %c153 = arith.constant 153 : index
    %c0_232 = arith.constant 0 : index
    %983 = vector.load %arg0[%c153, %c0_232] : memref<176x128xf32, #tpu.memory_space<vmem>>, vector<1x128xf32>
    %984 = vector.extract_strided_slice %951 {offsets = [32, 0], sizes = [32, 128], strides = [1, 1]} : vector<64x128xf32> to vector<32x128xf32>
    %985 = vector.broadcast %983 : vector<1x128xf32> to vector<32x128xf32>
    %986 = arith.mulf %985, %984 : vector<32x128xf32>
    %987 = arith.addf %982, %986 : vector<32x128xf32>
    %988 = vector.extract_strided_slice %951 {offsets = [0, 1], sizes = [64, 127], strides = [1, 1]} : vector<64x128xf32> to vector<64x127xf32>
    %989 = vector.extract_strided_slice %951 {offsets = [0, 0], sizes = [64, 1], strides = [1, 1]} : vector<64x128xf32> to vector<64x1xf32>
    %990 = tpu.concatenate %988, %989 in 1 : vector<64x127xf32>, vector<64x1xf32> -> vector<64x128xf32>
    %c129 = arith.constant 129 : index
    %c0_233 = arith.constant 0 : index
    %991 = vector.load %arg0[%c129, %c0_233] : memref<176x128xf32, #tpu.memory_space<vmem>>, vector<1x128xf32>
    %992 = vector.extract_strided_slice %990 {offsets = [0, 0], sizes = [32, 128], strides = [1, 1]} : vector<64x128xf32> to vector<32x128xf32>
    %993 = vector.broadcast %991 : vector<1x128xf32> to vector<32x128xf32>
    %994 = arith.mulf %993, %992 : vector<32x128xf32>
    %995 = arith.addf %987, %994 : vector<32x128xf32>
    %c154 = arith.constant 154 : index
    %c0_234 = arith.constant 0 : index
    %996 = vector.load %arg0[%c154, %c0_234] : memref<176x128xf32, #tpu.memory_space<vmem>>, vector<1x128xf32>
    %997 = vector.extract_strided_slice %990 {offsets = [32, 0], sizes = [32, 128], strides = [1, 1]} : vector<64x128xf32> to vector<32x128xf32>
    %998 = vector.broadcast %996 : vector<1x128xf32> to vector<32x128xf32>
    %999 = arith.mulf %998, %997 : vector<32x128xf32>
    %1000 = arith.addf %995, %999 : vector<32x128xf32>
    %1001 = vector.extract_strided_slice %951 {offsets = [0, 2], sizes = [64, 126], strides = [1, 1]} : vector<64x128xf32> to vector<64x126xf32>
    %1002 = vector.extract_strided_slice %951 {offsets = [0, 0], sizes = [64, 2], strides = [1, 1]} : vector<64x128xf32> to vector<64x2xf32>
    %1003 = tpu.concatenate %1001, %1002 in 1 : vector<64x126xf32>, vector<64x2xf32> -> vector<64x128xf32>
    %c130 = arith.constant 130 : index
    %c0_235 = arith.constant 0 : index
    %1004 = vector.load %arg0[%c130, %c0_235] : memref<176x128xf32, #tpu.memory_space<vmem>>, vector<1x128xf32>
    %1005 = vector.extract_strided_slice %1003 {offsets = [0, 0], sizes = [32, 128], strides = [1, 1]} : vector<64x128xf32> to vector<32x128xf32>
    %1006 = vector.broadcast %1004 : vector<1x128xf32> to vector<32x128xf32>
    %1007 = arith.mulf %1006, %1005 : vector<32x128xf32>
    %1008 = arith.addf %1000, %1007 : vector<32x128xf32>
    %c155 = arith.constant 155 : index
    %c0_236 = arith.constant 0 : index
    %1009 = vector.load %arg0[%c155, %c0_236] : memref<176x128xf32, #tpu.memory_space<vmem>>, vector<1x128xf32>
    %1010 = vector.extract_strided_slice %1003 {offsets = [32, 0], sizes = [32, 128], strides = [1, 1]} : vector<64x128xf32> to vector<32x128xf32>
    %1011 = vector.broadcast %1009 : vector<1x128xf32> to vector<32x128xf32>
    %1012 = arith.mulf %1011, %1010 : vector<32x128xf32>
    %1013 = arith.addf %1008, %1012 : vector<32x128xf32>
    %1014 = vector.extract_strided_slice %874 {offsets = [0, 126], sizes = [64, 2], strides = [1, 1]} : vector<64x128xf32> to vector<64x2xf32>
    %1015 = vector.extract_strided_slice %874 {offsets = [0, 0], sizes = [64, 126], strides = [1, 1]} : vector<64x128xf32> to vector<64x126xf32>
    %1016 = tpu.concatenate %1014, %1015 in 1 : vector<64x2xf32>, vector<64x126xf32> -> vector<64x128xf32>
    %c131 = arith.constant 131 : index
    %c0_237 = arith.constant 0 : index
    %1017 = vector.load %arg0[%c131, %c0_237] : memref<176x128xf32, #tpu.memory_space<vmem>>, vector<1x128xf32>
    %1018 = vector.extract_strided_slice %1016 {offsets = [0, 0], sizes = [32, 128], strides = [1, 1]} : vector<64x128xf32> to vector<32x128xf32>
    %1019 = vector.broadcast %1017 : vector<1x128xf32> to vector<32x128xf32>
    %1020 = arith.mulf %1019, %1018 : vector<32x128xf32>
    %1021 = arith.addf %1013, %1020 : vector<32x128xf32>
    %c156 = arith.constant 156 : index
    %c0_238 = arith.constant 0 : index
    %1022 = vector.load %arg0[%c156, %c0_238] : memref<176x128xf32, #tpu.memory_space<vmem>>, vector<1x128xf32>
    %1023 = vector.extract_strided_slice %1016 {offsets = [32, 0], sizes = [32, 128], strides = [1, 1]} : vector<64x128xf32> to vector<32x128xf32>
    %1024 = vector.broadcast %1022 : vector<1x128xf32> to vector<32x128xf32>
    %1025 = arith.mulf %1024, %1023 : vector<32x128xf32>
    %1026 = arith.addf %1021, %1025 : vector<32x128xf32>
    %1027 = vector.extract_strided_slice %874 {offsets = [0, 127], sizes = [64, 1], strides = [1, 1]} : vector<64x128xf32> to vector<64x1xf32>
    %1028 = vector.extract_strided_slice %874 {offsets = [0, 0], sizes = [64, 127], strides = [1, 1]} : vector<64x128xf32> to vector<64x127xf32>
    %1029 = tpu.concatenate %1027, %1028 in 1 : vector<64x1xf32>, vector<64x127xf32> -> vector<64x128xf32>
    %c132 = arith.constant 132 : index
    %c0_239 = arith.constant 0 : index
    %1030 = vector.load %arg0[%c132, %c0_239] : memref<176x128xf32, #tpu.memory_space<vmem>>, vector<1x128xf32>
    %1031 = vector.extract_strided_slice %1029 {offsets = [0, 0], sizes = [32, 128], strides = [1, 1]} : vector<64x128xf32> to vector<32x128xf32>
    %1032 = vector.broadcast %1030 : vector<1x128xf32> to vector<32x128xf32>
    %1033 = arith.mulf %1032, %1031 : vector<32x128xf32>
    %1034 = arith.addf %1026, %1033 : vector<32x128xf32>
    %c157 = arith.constant 157 : index
    %c0_240 = arith.constant 0 : index
    %1035 = vector.load %arg0[%c157, %c0_240] : memref<176x128xf32, #tpu.memory_space<vmem>>, vector<1x128xf32>
    %1036 = vector.extract_strided_slice %1029 {offsets = [32, 0], sizes = [32, 128], strides = [1, 1]} : vector<64x128xf32> to vector<32x128xf32>
    %1037 = vector.broadcast %1035 : vector<1x128xf32> to vector<32x128xf32>
    %1038 = arith.mulf %1037, %1036 : vector<32x128xf32>
    %1039 = arith.addf %1034, %1038 : vector<32x128xf32>
    %c133 = arith.constant 133 : index
    %c0_241 = arith.constant 0 : index
    %1040 = vector.load %arg0[%c133, %c0_241] : memref<176x128xf32, #tpu.memory_space<vmem>>, vector<1x128xf32>
    %1041 = vector.extract_strided_slice %874 {offsets = [0, 0], sizes = [32, 128], strides = [1, 1]} : vector<64x128xf32> to vector<32x128xf32>
    %1042 = vector.broadcast %1040 : vector<1x128xf32> to vector<32x128xf32>
    %1043 = arith.mulf %1042, %1041 : vector<32x128xf32>
    %1044 = arith.addf %1039, %1043 : vector<32x128xf32>
    %c158 = arith.constant 158 : index
    %c0_242 = arith.constant 0 : index
    %1045 = vector.load %arg0[%c158, %c0_242] : memref<176x128xf32, #tpu.memory_space<vmem>>, vector<1x128xf32>
    %1046 = vector.extract_strided_slice %874 {offsets = [32, 0], sizes = [32, 128], strides = [1, 1]} : vector<64x128xf32> to vector<32x128xf32>
    %1047 = vector.broadcast %1045 : vector<1x128xf32> to vector<32x128xf32>
    %1048 = arith.mulf %1047, %1046 : vector<32x128xf32>
    %1049 = arith.addf %1044, %1048 : vector<32x128xf32>
    %1050 = vector.extract_strided_slice %874 {offsets = [0, 1], sizes = [64, 127], strides = [1, 1]} : vector<64x128xf32> to vector<64x127xf32>
    %1051 = vector.extract_strided_slice %874 {offsets = [0, 0], sizes = [64, 1], strides = [1, 1]} : vector<64x128xf32> to vector<64x1xf32>
    %1052 = tpu.concatenate %1050, %1051 in 1 : vector<64x127xf32>, vector<64x1xf32> -> vector<64x128xf32>
    %c134 = arith.constant 134 : index
    %c0_243 = arith.constant 0 : index
    %1053 = vector.load %arg0[%c134, %c0_243] : memref<176x128xf32, #tpu.memory_space<vmem>>, vector<1x128xf32>
    %1054 = vector.extract_strided_slice %1052 {offsets = [0, 0], sizes = [32, 128], strides = [1, 1]} : vector<64x128xf32> to vector<32x128xf32>
    %1055 = vector.broadcast %1053 : vector<1x128xf32> to vector<32x128xf32>
    %1056 = arith.mulf %1055, %1054 : vector<32x128xf32>
    %1057 = arith.addf %1049, %1056 : vector<32x128xf32>
    %c159 = arith.constant 159 : index
    %c0_244 = arith.constant 0 : index
    %1058 = vector.load %arg0[%c159, %c0_244] : memref<176x128xf32, #tpu.memory_space<vmem>>, vector<1x128xf32>
    %1059 = vector.extract_strided_slice %1052 {offsets = [32, 0], sizes = [32, 128], strides = [1, 1]} : vector<64x128xf32> to vector<32x128xf32>
    %1060 = vector.broadcast %1058 : vector<1x128xf32> to vector<32x128xf32>
    %1061 = arith.mulf %1060, %1059 : vector<32x128xf32>
    %1062 = arith.addf %1057, %1061 : vector<32x128xf32>
    %1063 = vector.extract_strided_slice %874 {offsets = [0, 2], sizes = [64, 126], strides = [1, 1]} : vector<64x128xf32> to vector<64x126xf32>
    %1064 = vector.extract_strided_slice %874 {offsets = [0, 0], sizes = [64, 2], strides = [1, 1]} : vector<64x128xf32> to vector<64x2xf32>
    %1065 = tpu.concatenate %1063, %1064 in 1 : vector<64x126xf32>, vector<64x2xf32> -> vector<64x128xf32>
    %c135 = arith.constant 135 : index
    %c0_245 = arith.constant 0 : index
    %1066 = vector.load %arg0[%c135, %c0_245] : memref<176x128xf32, #tpu.memory_space<vmem>>, vector<1x128xf32>
    %1067 = vector.extract_strided_slice %1065 {offsets = [0, 0], sizes = [32, 128], strides = [1, 1]} : vector<64x128xf32> to vector<32x128xf32>
    %1068 = vector.broadcast %1066 : vector<1x128xf32> to vector<32x128xf32>
    %1069 = arith.mulf %1068, %1067 : vector<32x128xf32>
    %1070 = arith.addf %1062, %1069 : vector<32x128xf32>
    %c160 = arith.constant 160 : index
    %c0_246 = arith.constant 0 : index
    %1071 = vector.load %arg0[%c160, %c0_246] : memref<176x128xf32, #tpu.memory_space<vmem>>, vector<1x128xf32>
    %1072 = vector.extract_strided_slice %1065 {offsets = [32, 0], sizes = [32, 128], strides = [1, 1]} : vector<64x128xf32> to vector<32x128xf32>
    %1073 = vector.broadcast %1071 : vector<1x128xf32> to vector<32x128xf32>
    %1074 = arith.mulf %1073, %1072 : vector<32x128xf32>
    %1075 = arith.addf %1070, %1074 : vector<32x128xf32>
    %cst_247 = arith.constant 0.000000e+00 : f32
    %1076 = vector.broadcast %cst_247 : f32 to vector<1x128xf32>
    %1077 = vector.extract_strided_slice %874 {offsets = [1, 0], sizes = [63, 128], strides = [1, 1]} : vector<64x128xf32> to vector<63x128xf32>
    %1078 = tpu.concatenate %1077, %1076 in 0 : vector<63x128xf32>, vector<1x128xf32> -> vector<64x128xf32>
    %c15_i32_248 = arith.constant 15 : i32
    %1079 = vector.broadcast %c15_i32_248 : i32 to vector<64x128xi32>
    %1080 = arith.cmpi slt, %5, %1079 : vector<64x128xi32>
    %cst_249 = arith.constant 0.000000e+00 : f32
    %1081 = vector.broadcast %cst_249 : f32 to vector<64x128xf32>
    %1082 = arith.select %1080, %1078, %1081 : vector<64x128xi1>, vector<64x128xf32>
    %1083 = vector.extract_strided_slice %1082 {offsets = [0, 126], sizes = [64, 2], strides = [1, 1]} : vector<64x128xf32> to vector<64x2xf32>
    %1084 = vector.extract_strided_slice %1082 {offsets = [0, 0], sizes = [64, 126], strides = [1, 1]} : vector<64x128xf32> to vector<64x126xf32>
    %1085 = tpu.concatenate %1083, %1084 in 1 : vector<64x2xf32>, vector<64x126xf32> -> vector<64x128xf32>
    %c136 = arith.constant 136 : index
    %c0_250 = arith.constant 0 : index
    %1086 = vector.load %arg0[%c136, %c0_250] : memref<176x128xf32, #tpu.memory_space<vmem>>, vector<1x128xf32>
    %1087 = vector.extract_strided_slice %1085 {offsets = [0, 0], sizes = [32, 128], strides = [1, 1]} : vector<64x128xf32> to vector<32x128xf32>
    %1088 = vector.broadcast %1086 : vector<1x128xf32> to vector<32x128xf32>
    %1089 = arith.mulf %1088, %1087 : vector<32x128xf32>
    %1090 = arith.addf %1075, %1089 : vector<32x128xf32>
    %c161 = arith.constant 161 : index
    %c0_251 = arith.constant 0 : index
    %1091 = vector.load %arg0[%c161, %c0_251] : memref<176x128xf32, #tpu.memory_space<vmem>>, vector<1x128xf32>
    %1092 = vector.extract_strided_slice %1085 {offsets = [32, 0], sizes = [32, 128], strides = [1, 1]} : vector<64x128xf32> to vector<32x128xf32>
    %1093 = vector.broadcast %1091 : vector<1x128xf32> to vector<32x128xf32>
    %1094 = arith.mulf %1093, %1092 : vector<32x128xf32>
    %1095 = arith.addf %1090, %1094 : vector<32x128xf32>
    %1096 = vector.extract_strided_slice %1082 {offsets = [0, 127], sizes = [64, 1], strides = [1, 1]} : vector<64x128xf32> to vector<64x1xf32>
    %1097 = vector.extract_strided_slice %1082 {offsets = [0, 0], sizes = [64, 127], strides = [1, 1]} : vector<64x128xf32> to vector<64x127xf32>
    %1098 = tpu.concatenate %1096, %1097 in 1 : vector<64x1xf32>, vector<64x127xf32> -> vector<64x128xf32>
    %c137 = arith.constant 137 : index
    %c0_252 = arith.constant 0 : index
    %1099 = vector.load %arg0[%c137, %c0_252] : memref<176x128xf32, #tpu.memory_space<vmem>>, vector<1x128xf32>
    %1100 = vector.extract_strided_slice %1098 {offsets = [0, 0], sizes = [32, 128], strides = [1, 1]} : vector<64x128xf32> to vector<32x128xf32>
    %1101 = vector.broadcast %1099 : vector<1x128xf32> to vector<32x128xf32>
    %1102 = arith.mulf %1101, %1100 : vector<32x128xf32>
    %1103 = arith.addf %1095, %1102 : vector<32x128xf32>
    %c162 = arith.constant 162 : index
    %c0_253 = arith.constant 0 : index
    %1104 = vector.load %arg0[%c162, %c0_253] : memref<176x128xf32, #tpu.memory_space<vmem>>, vector<1x128xf32>
    %1105 = vector.extract_strided_slice %1098 {offsets = [32, 0], sizes = [32, 128], strides = [1, 1]} : vector<64x128xf32> to vector<32x128xf32>
    %1106 = vector.broadcast %1104 : vector<1x128xf32> to vector<32x128xf32>
    %1107 = arith.mulf %1106, %1105 : vector<32x128xf32>
    %1108 = arith.addf %1103, %1107 : vector<32x128xf32>
    %c138 = arith.constant 138 : index
    %c0_254 = arith.constant 0 : index
    %1109 = vector.load %arg0[%c138, %c0_254] : memref<176x128xf32, #tpu.memory_space<vmem>>, vector<1x128xf32>
    %1110 = vector.extract_strided_slice %1082 {offsets = [0, 0], sizes = [32, 128], strides = [1, 1]} : vector<64x128xf32> to vector<32x128xf32>
    %1111 = vector.broadcast %1109 : vector<1x128xf32> to vector<32x128xf32>
    %1112 = arith.mulf %1111, %1110 : vector<32x128xf32>
    %1113 = arith.addf %1108, %1112 : vector<32x128xf32>
    %c163 = arith.constant 163 : index
    %c0_255 = arith.constant 0 : index
    %1114 = vector.load %arg0[%c163, %c0_255] : memref<176x128xf32, #tpu.memory_space<vmem>>, vector<1x128xf32>
    %1115 = vector.extract_strided_slice %1082 {offsets = [32, 0], sizes = [32, 128], strides = [1, 1]} : vector<64x128xf32> to vector<32x128xf32>
    %1116 = vector.broadcast %1114 : vector<1x128xf32> to vector<32x128xf32>
    %1117 = arith.mulf %1116, %1115 : vector<32x128xf32>
    %1118 = arith.addf %1113, %1117 : vector<32x128xf32>
    %1119 = vector.extract_strided_slice %1082 {offsets = [0, 1], sizes = [64, 127], strides = [1, 1]} : vector<64x128xf32> to vector<64x127xf32>
    %1120 = vector.extract_strided_slice %1082 {offsets = [0, 0], sizes = [64, 1], strides = [1, 1]} : vector<64x128xf32> to vector<64x1xf32>
    %1121 = tpu.concatenate %1119, %1120 in 1 : vector<64x127xf32>, vector<64x1xf32> -> vector<64x128xf32>
    %c139 = arith.constant 139 : index
    %c0_256 = arith.constant 0 : index
    %1122 = vector.load %arg0[%c139, %c0_256] : memref<176x128xf32, #tpu.memory_space<vmem>>, vector<1x128xf32>
    %1123 = vector.extract_strided_slice %1121 {offsets = [0, 0], sizes = [32, 128], strides = [1, 1]} : vector<64x128xf32> to vector<32x128xf32>
    %1124 = vector.broadcast %1122 : vector<1x128xf32> to vector<32x128xf32>
    %1125 = arith.mulf %1124, %1123 : vector<32x128xf32>
    %1126 = arith.addf %1118, %1125 : vector<32x128xf32>
    %c164 = arith.constant 164 : index
    %c0_257 = arith.constant 0 : index
    %1127 = vector.load %arg0[%c164, %c0_257] : memref<176x128xf32, #tpu.memory_space<vmem>>, vector<1x128xf32>
    %1128 = vector.extract_strided_slice %1121 {offsets = [32, 0], sizes = [32, 128], strides = [1, 1]} : vector<64x128xf32> to vector<32x128xf32>
    %1129 = vector.broadcast %1127 : vector<1x128xf32> to vector<32x128xf32>
    %1130 = arith.mulf %1129, %1128 : vector<32x128xf32>
    %1131 = arith.addf %1126, %1130 : vector<32x128xf32>
    %1132 = vector.extract_strided_slice %1082 {offsets = [0, 2], sizes = [64, 126], strides = [1, 1]} : vector<64x128xf32> to vector<64x126xf32>
    %1133 = vector.extract_strided_slice %1082 {offsets = [0, 0], sizes = [64, 2], strides = [1, 1]} : vector<64x128xf32> to vector<64x2xf32>
    %1134 = tpu.concatenate %1132, %1133 in 1 : vector<64x126xf32>, vector<64x2xf32> -> vector<64x128xf32>
    %c140 = arith.constant 140 : index
    %c0_258 = arith.constant 0 : index
    %1135 = vector.load %arg0[%c140, %c0_258] : memref<176x128xf32, #tpu.memory_space<vmem>>, vector<1x128xf32>
    %1136 = vector.extract_strided_slice %1134 {offsets = [0, 0], sizes = [32, 128], strides = [1, 1]} : vector<64x128xf32> to vector<32x128xf32>
    %1137 = vector.broadcast %1135 : vector<1x128xf32> to vector<32x128xf32>
    %1138 = arith.mulf %1137, %1136 : vector<32x128xf32>
    %1139 = arith.addf %1131, %1138 : vector<32x128xf32>
    %c165 = arith.constant 165 : index
    %c0_259 = arith.constant 0 : index
    %1140 = vector.load %arg0[%c165, %c0_259] : memref<176x128xf32, #tpu.memory_space<vmem>>, vector<1x128xf32>
    %1141 = vector.extract_strided_slice %1134 {offsets = [32, 0], sizes = [32, 128], strides = [1, 1]} : vector<64x128xf32> to vector<32x128xf32>
    %1142 = vector.broadcast %1140 : vector<1x128xf32> to vector<32x128xf32>
    %1143 = arith.mulf %1142, %1141 : vector<32x128xf32>
    %1144 = arith.addf %1139, %1143 : vector<32x128xf32>
    %cst_260 = arith.constant 0.000000e+00 : f32
    %1145 = vector.broadcast %cst_260 : f32 to vector<2x128xf32>
    %1146 = vector.extract_strided_slice %874 {offsets = [2, 0], sizes = [62, 128], strides = [1, 1]} : vector<64x128xf32> to vector<62x128xf32>
    %1147 = tpu.concatenate %1146, %1145 in 0 : vector<62x128xf32>, vector<2x128xf32> -> vector<64x128xf32>
    %c14_i32_261 = arith.constant 14 : i32
    %1148 = vector.broadcast %c14_i32_261 : i32 to vector<64x128xi32>
    %1149 = arith.cmpi slt, %5, %1148 : vector<64x128xi32>
    %cst_262 = arith.constant 0.000000e+00 : f32
    %1150 = vector.broadcast %cst_262 : f32 to vector<64x128xf32>
    %1151 = arith.select %1149, %1147, %1150 : vector<64x128xi1>, vector<64x128xf32>
    %1152 = vector.extract_strided_slice %1151 {offsets = [0, 126], sizes = [64, 2], strides = [1, 1]} : vector<64x128xf32> to vector<64x2xf32>
    %1153 = vector.extract_strided_slice %1151 {offsets = [0, 0], sizes = [64, 126], strides = [1, 1]} : vector<64x128xf32> to vector<64x126xf32>
    %1154 = tpu.concatenate %1152, %1153 in 1 : vector<64x2xf32>, vector<64x126xf32> -> vector<64x128xf32>
    %c141 = arith.constant 141 : index
    %c0_263 = arith.constant 0 : index
    %1155 = vector.load %arg0[%c141, %c0_263] : memref<176x128xf32, #tpu.memory_space<vmem>>, vector<1x128xf32>
    %1156 = vector.extract_strided_slice %1154 {offsets = [0, 0], sizes = [32, 128], strides = [1, 1]} : vector<64x128xf32> to vector<32x128xf32>
    %1157 = vector.broadcast %1155 : vector<1x128xf32> to vector<32x128xf32>
    %1158 = arith.mulf %1157, %1156 : vector<32x128xf32>
    %1159 = arith.addf %1144, %1158 : vector<32x128xf32>
    %c166 = arith.constant 166 : index
    %c0_264 = arith.constant 0 : index
    %1160 = vector.load %arg0[%c166, %c0_264] : memref<176x128xf32, #tpu.memory_space<vmem>>, vector<1x128xf32>
    %1161 = vector.extract_strided_slice %1154 {offsets = [32, 0], sizes = [32, 128], strides = [1, 1]} : vector<64x128xf32> to vector<32x128xf32>
    %1162 = vector.broadcast %1160 : vector<1x128xf32> to vector<32x128xf32>
    %1163 = arith.mulf %1162, %1161 : vector<32x128xf32>
    %1164 = arith.addf %1159, %1163 : vector<32x128xf32>
    %1165 = vector.extract_strided_slice %1151 {offsets = [0, 127], sizes = [64, 1], strides = [1, 1]} : vector<64x128xf32> to vector<64x1xf32>
    %1166 = vector.extract_strided_slice %1151 {offsets = [0, 0], sizes = [64, 127], strides = [1, 1]} : vector<64x128xf32> to vector<64x127xf32>
    %1167 = tpu.concatenate %1165, %1166 in 1 : vector<64x1xf32>, vector<64x127xf32> -> vector<64x128xf32>
    %c142 = arith.constant 142 : index
    %c0_265 = arith.constant 0 : index
    %1168 = vector.load %arg0[%c142, %c0_265] : memref<176x128xf32, #tpu.memory_space<vmem>>, vector<1x128xf32>
    %1169 = vector.extract_strided_slice %1167 {offsets = [0, 0], sizes = [32, 128], strides = [1, 1]} : vector<64x128xf32> to vector<32x128xf32>
    %1170 = vector.broadcast %1168 : vector<1x128xf32> to vector<32x128xf32>
    %1171 = arith.mulf %1170, %1169 : vector<32x128xf32>
    %1172 = arith.addf %1164, %1171 : vector<32x128xf32>
    %c167 = arith.constant 167 : index
    %c0_266 = arith.constant 0 : index
    %1173 = vector.load %arg0[%c167, %c0_266] : memref<176x128xf32, #tpu.memory_space<vmem>>, vector<1x128xf32>
    %1174 = vector.extract_strided_slice %1167 {offsets = [32, 0], sizes = [32, 128], strides = [1, 1]} : vector<64x128xf32> to vector<32x128xf32>
    %1175 = vector.broadcast %1173 : vector<1x128xf32> to vector<32x128xf32>
    %1176 = arith.mulf %1175, %1174 : vector<32x128xf32>
    %1177 = arith.addf %1172, %1176 : vector<32x128xf32>
    %c143 = arith.constant 143 : index
    %c0_267 = arith.constant 0 : index
    %1178 = vector.load %arg0[%c143, %c0_267] : memref<176x128xf32, #tpu.memory_space<vmem>>, vector<1x128xf32>
    %1179 = vector.extract_strided_slice %1151 {offsets = [0, 0], sizes = [32, 128], strides = [1, 1]} : vector<64x128xf32> to vector<32x128xf32>
    %1180 = vector.broadcast %1178 : vector<1x128xf32> to vector<32x128xf32>
    %1181 = arith.mulf %1180, %1179 : vector<32x128xf32>
    %1182 = arith.addf %1177, %1181 : vector<32x128xf32>
    %c168 = arith.constant 168 : index
    %c0_268 = arith.constant 0 : index
    %1183 = vector.load %arg0[%c168, %c0_268] : memref<176x128xf32, #tpu.memory_space<vmem>>, vector<1x128xf32>
    %1184 = vector.extract_strided_slice %1151 {offsets = [32, 0], sizes = [32, 128], strides = [1, 1]} : vector<64x128xf32> to vector<32x128xf32>
    %1185 = vector.broadcast %1183 : vector<1x128xf32> to vector<32x128xf32>
    %1186 = arith.mulf %1185, %1184 : vector<32x128xf32>
    %1187 = arith.addf %1182, %1186 : vector<32x128xf32>
    %1188 = vector.extract_strided_slice %1151 {offsets = [0, 1], sizes = [64, 127], strides = [1, 1]} : vector<64x128xf32> to vector<64x127xf32>
    %1189 = vector.extract_strided_slice %1151 {offsets = [0, 0], sizes = [64, 1], strides = [1, 1]} : vector<64x128xf32> to vector<64x1xf32>
    %1190 = tpu.concatenate %1188, %1189 in 1 : vector<64x127xf32>, vector<64x1xf32> -> vector<64x128xf32>
    %c144 = arith.constant 144 : index
    %c0_269 = arith.constant 0 : index
    %1191 = vector.load %arg0[%c144, %c0_269] : memref<176x128xf32, #tpu.memory_space<vmem>>, vector<1x128xf32>
    %1192 = vector.extract_strided_slice %1190 {offsets = [0, 0], sizes = [32, 128], strides = [1, 1]} : vector<64x128xf32> to vector<32x128xf32>
    %1193 = vector.broadcast %1191 : vector<1x128xf32> to vector<32x128xf32>
    %1194 = arith.mulf %1193, %1192 : vector<32x128xf32>
    %1195 = arith.addf %1187, %1194 : vector<32x128xf32>
    %c169 = arith.constant 169 : index
    %c0_270 = arith.constant 0 : index
    %1196 = vector.load %arg0[%c169, %c0_270] : memref<176x128xf32, #tpu.memory_space<vmem>>, vector<1x128xf32>
    %1197 = vector.extract_strided_slice %1190 {offsets = [32, 0], sizes = [32, 128], strides = [1, 1]} : vector<64x128xf32> to vector<32x128xf32>
    %1198 = vector.broadcast %1196 : vector<1x128xf32> to vector<32x128xf32>
    %1199 = arith.mulf %1198, %1197 : vector<32x128xf32>
    %1200 = arith.addf %1195, %1199 : vector<32x128xf32>
    %1201 = vector.extract_strided_slice %1151 {offsets = [0, 2], sizes = [64, 126], strides = [1, 1]} : vector<64x128xf32> to vector<64x126xf32>
    %1202 = vector.extract_strided_slice %1151 {offsets = [0, 0], sizes = [64, 2], strides = [1, 1]} : vector<64x128xf32> to vector<64x2xf32>
    %1203 = tpu.concatenate %1201, %1202 in 1 : vector<64x126xf32>, vector<64x2xf32> -> vector<64x128xf32>
    %c145 = arith.constant 145 : index
    %c0_271 = arith.constant 0 : index
    %1204 = vector.load %arg0[%c145, %c0_271] : memref<176x128xf32, #tpu.memory_space<vmem>>, vector<1x128xf32>
    %1205 = vector.extract_strided_slice %1203 {offsets = [0, 0], sizes = [32, 128], strides = [1, 1]} : vector<64x128xf32> to vector<32x128xf32>
    %1206 = vector.broadcast %1204 : vector<1x128xf32> to vector<32x128xf32>
    %1207 = arith.mulf %1206, %1205 : vector<32x128xf32>
    %1208 = arith.addf %1200, %1207 : vector<32x128xf32>
    %c170 = arith.constant 170 : index
    %c0_272 = arith.constant 0 : index
    %1209 = vector.load %arg0[%c170, %c0_272] : memref<176x128xf32, #tpu.memory_space<vmem>>, vector<1x128xf32>
    %1210 = vector.extract_strided_slice %1203 {offsets = [32, 0], sizes = [32, 128], strides = [1, 1]} : vector<64x128xf32> to vector<32x128xf32>
    %1211 = vector.broadcast %1209 : vector<1x128xf32> to vector<32x128xf32>
    %1212 = arith.mulf %1211, %1210 : vector<32x128xf32>
    %1213 = arith.addf %1208, %1212 : vector<32x128xf32>
    %cst_273 = arith.constant 0.000000e+00 : f32
    %1214 = vector.broadcast %cst_273 : f32 to vector<32x128xf32>
    %1215 = arith.subf %1214, %1213 : vector<32x128xf32>
    %1216 = math.exp %1215 : vector<32x128xf32>
    %cst_274 = arith.constant 1.000000e+00 : f32
    %1217 = vector.broadcast %cst_274 : f32 to vector<32x128xf32>
    %1218 = arith.addf %1217, %1216 : vector<32x128xf32>
    %cst_275 = arith.constant 1.000000e+00 : f32
    %1219 = vector.broadcast %cst_275 : f32 to vector<32x128xf32>
    %1220 = arith.divf %1219, %1218 : vector<32x128xf32>
    %1221 = vector.broadcast %776 : vector<1x128xf32> to vector<32x128xf32>
    %1222 = arith.mulf %1220, %1221 : vector<32x128xf32>
    %1223 = vector.extract_strided_slice %1222 {offsets = [0, 32], sizes = [32, 96], strides = [1, 1]} : vector<32x128xf32> to vector<32x96xf32>
    %1224 = vector.extract_strided_slice %1222 {offsets = [0, 0], sizes = [32, 32], strides = [1, 1]} : vector<32x128xf32> to vector<32x32xf32>
    %1225 = tpu.concatenate %1223, %1224 in 1 : vector<32x96xf32>, vector<32x32xf32> -> vector<32x128xf32>
    %1226 = arith.addf %1222, %1225 : vector<32x128xf32>
    %1227 = vector.extract_strided_slice %1222 {offsets = [0, 64], sizes = [32, 64], strides = [1, 1]} : vector<32x128xf32> to vector<32x64xf32>
    %1228 = vector.extract_strided_slice %1222 {offsets = [0, 0], sizes = [32, 64], strides = [1, 1]} : vector<32x128xf32> to vector<32x64xf32>
    %1229 = tpu.concatenate %1227, %1228 in 1 : vector<32x64xf32>, vector<32x64xf32> -> vector<32x128xf32>
    %1230 = arith.addf %1226, %1229 : vector<32x128xf32>
    %1231 = vector.extract_strided_slice %1222 {offsets = [0, 96], sizes = [32, 32], strides = [1, 1]} : vector<32x128xf32> to vector<32x32xf32>
    %1232 = vector.extract_strided_slice %1222 {offsets = [0, 0], sizes = [32, 96], strides = [1, 1]} : vector<32x128xf32> to vector<32x96xf32>
    %1233 = tpu.concatenate %1231, %1232 in 1 : vector<32x32xf32>, vector<32x96xf32> -> vector<32x128xf32>
    %1234 = arith.addf %1230, %1233 : vector<32x128xf32>
    %1235 = arith.mulf %1234, %347 : vector<32x128xf32>
    %1236 = arith.addf %26, %1235 : vector<32x128xf32>
    %1237 = vector.broadcast %777 : vector<1x128xf32> to vector<32x128xf32>
    %1238 = arith.mulf %1220, %1237 : vector<32x128xf32>
    %1239 = vector.extract_strided_slice %1238 {offsets = [0, 32], sizes = [32, 96], strides = [1, 1]} : vector<32x128xf32> to vector<32x96xf32>
    %1240 = vector.extract_strided_slice %1238 {offsets = [0, 0], sizes = [32, 32], strides = [1, 1]} : vector<32x128xf32> to vector<32x32xf32>
    %1241 = tpu.concatenate %1239, %1240 in 1 : vector<32x96xf32>, vector<32x32xf32> -> vector<32x128xf32>
    %1242 = arith.addf %1238, %1241 : vector<32x128xf32>
    %1243 = vector.extract_strided_slice %1238 {offsets = [0, 64], sizes = [32, 64], strides = [1, 1]} : vector<32x128xf32> to vector<32x64xf32>
    %1244 = vector.extract_strided_slice %1238 {offsets = [0, 0], sizes = [32, 64], strides = [1, 1]} : vector<32x128xf32> to vector<32x64xf32>
    %1245 = tpu.concatenate %1243, %1244 in 1 : vector<32x64xf32>, vector<32x64xf32> -> vector<32x128xf32>
    %1246 = arith.addf %1242, %1245 : vector<32x128xf32>
    %1247 = vector.extract_strided_slice %1238 {offsets = [0, 96], sizes = [32, 32], strides = [1, 1]} : vector<32x128xf32> to vector<32x32xf32>
    %1248 = vector.extract_strided_slice %1238 {offsets = [0, 0], sizes = [32, 96], strides = [1, 1]} : vector<32x128xf32> to vector<32x96xf32>
    %1249 = tpu.concatenate %1247, %1248 in 1 : vector<32x32xf32>, vector<32x96xf32> -> vector<32x128xf32>
    %1250 = arith.addf %1246, %1249 : vector<32x128xf32>
    %1251 = arith.mulf %1250, %635 : vector<32x128xf32>
    %1252 = arith.addf %1236, %1251 : vector<32x128xf32>
    %1253 = vector.broadcast %778 : vector<1x128xf32> to vector<32x128xf32>
    %1254 = arith.mulf %1220, %1253 : vector<32x128xf32>
    %1255 = vector.extract_strided_slice %1254 {offsets = [0, 32], sizes = [32, 96], strides = [1, 1]} : vector<32x128xf32> to vector<32x96xf32>
    %1256 = vector.extract_strided_slice %1254 {offsets = [0, 0], sizes = [32, 32], strides = [1, 1]} : vector<32x128xf32> to vector<32x32xf32>
    %1257 = tpu.concatenate %1255, %1256 in 1 : vector<32x96xf32>, vector<32x32xf32> -> vector<32x128xf32>
    %1258 = arith.addf %1254, %1257 : vector<32x128xf32>
    %1259 = vector.extract_strided_slice %1254 {offsets = [0, 64], sizes = [32, 64], strides = [1, 1]} : vector<32x128xf32> to vector<32x64xf32>
    %1260 = vector.extract_strided_slice %1254 {offsets = [0, 0], sizes = [32, 64], strides = [1, 1]} : vector<32x128xf32> to vector<32x64xf32>
    %1261 = tpu.concatenate %1259, %1260 in 1 : vector<32x64xf32>, vector<32x64xf32> -> vector<32x128xf32>
    %1262 = arith.addf %1258, %1261 : vector<32x128xf32>
    %1263 = vector.extract_strided_slice %1254 {offsets = [0, 96], sizes = [32, 32], strides = [1, 1]} : vector<32x128xf32> to vector<32x32xf32>
    %1264 = vector.extract_strided_slice %1254 {offsets = [0, 0], sizes = [32, 96], strides = [1, 1]} : vector<32x128xf32> to vector<32x96xf32>
    %1265 = tpu.concatenate %1263, %1264 in 1 : vector<32x32xf32>, vector<32x96xf32> -> vector<32x128xf32>
    %1266 = arith.addf %1262, %1265 : vector<32x128xf32>
    %1267 = arith.mulf %1266, %693 : vector<32x128xf32>
    %1268 = arith.addf %1252, %1267 : vector<32x128xf32>
    %1269 = vector.broadcast %779 : vector<1x128xf32> to vector<32x128xf32>
    %1270 = arith.mulf %1220, %1269 : vector<32x128xf32>
    %1271 = vector.extract_strided_slice %1270 {offsets = [0, 32], sizes = [32, 96], strides = [1, 1]} : vector<32x128xf32> to vector<32x96xf32>
    %1272 = vector.extract_strided_slice %1270 {offsets = [0, 0], sizes = [32, 32], strides = [1, 1]} : vector<32x128xf32> to vector<32x32xf32>
    %1273 = tpu.concatenate %1271, %1272 in 1 : vector<32x96xf32>, vector<32x32xf32> -> vector<32x128xf32>
    %1274 = arith.addf %1270, %1273 : vector<32x128xf32>
    %1275 = vector.extract_strided_slice %1270 {offsets = [0, 64], sizes = [32, 64], strides = [1, 1]} : vector<32x128xf32> to vector<32x64xf32>
    %1276 = vector.extract_strided_slice %1270 {offsets = [0, 0], sizes = [32, 64], strides = [1, 1]} : vector<32x128xf32> to vector<32x64xf32>
    %1277 = tpu.concatenate %1275, %1276 in 1 : vector<32x64xf32>, vector<32x64xf32> -> vector<32x128xf32>
    %1278 = arith.addf %1274, %1277 : vector<32x128xf32>
    %1279 = vector.extract_strided_slice %1270 {offsets = [0, 96], sizes = [32, 32], strides = [1, 1]} : vector<32x128xf32> to vector<32x32xf32>
    %1280 = vector.extract_strided_slice %1270 {offsets = [0, 0], sizes = [32, 96], strides = [1, 1]} : vector<32x128xf32> to vector<32x96xf32>
    %1281 = tpu.concatenate %1279, %1280 in 1 : vector<32x32xf32>, vector<32x96xf32> -> vector<32x128xf32>
    %1282 = arith.addf %1278, %1281 : vector<32x128xf32>
    %1283 = arith.mulf %1282, %775 : vector<32x128xf32>
    %1284 = arith.addf %1268, %1283 : vector<32x128xf32>
    %1285 = vector.extract_strided_slice %1284 {offsets = [0, 3], sizes = [16, 16], strides = [1, 1]} : vector<32x128xf32> to vector<16x16xf32>
    %c0_276 = arith.constant 0 : index
    %c0_277 = arith.constant 0 : index
    %c0_278 = arith.constant 0 : index
    %c0_279 = arith.constant 0 : index
    %1286 = vector.load %arg2[%c0_276, %c0_277, %c0_278, %c0_279] : memref<2x4x16x16xf32, #tpu.memory_space<vmem>>, vector<1x1x16x16xf32>
    %1287 = vector.shape_cast %1286 : vector<1x1x16x16xf32> to vector<16x16xf32>
    %1288 = vector.shape_cast %1285 : vector<16x16xf32> to vector<1x1x16x16xf32>
    tpu.vector_store %arg2[%c0_276, %c0_277, %c0_278, %c0_279], %1288 {strides = array<i32>} : memref<2x4x16x16xf32, #tpu.memory_space<vmem>>, vector<1x1x16x16xf32>,
    %1289 = vector.extract_strided_slice %1284 {offsets = [0, 35], sizes = [16, 16], strides = [1, 1]} : vector<32x128xf32> to vector<16x16xf32>
    %c0_280 = arith.constant 0 : index
    %c1_281 = arith.constant 1 : index
    %c0_282 = arith.constant 0 : index
    %c0_283 = arith.constant 0 : index
    %1290 = vector.load %arg2[%c0_280, %c1_281, %c0_282, %c0_283] : memref<2x4x16x16xf32, #tpu.memory_space<vmem>>, vector<1x1x16x16xf32>
    %1291 = vector.shape_cast %1290 : vector<1x1x16x16xf32> to vector<16x16xf32>
    %1292 = vector.shape_cast %1289 : vector<16x16xf32> to vector<1x1x16x16xf32>
    tpu.vector_store %arg2[%c0_280, %c1_281, %c0_282, %c0_283], %1292 {strides = array<i32>} : memref<2x4x16x16xf32, #tpu.memory_space<vmem>>, vector<1x1x16x16xf32>,
    %1293 = vector.extract_strided_slice %1284 {offsets = [0, 67], sizes = [16, 16], strides = [1, 1]} : vector<32x128xf32> to vector<16x16xf32>
    %c0_284 = arith.constant 0 : index
    %c2_285 = arith.constant 2 : index
    %c0_286 = arith.constant 0 : index
    %c0_287 = arith.constant 0 : index
    %1294 = vector.load %arg2[%c0_284, %c2_285, %c0_286, %c0_287] : memref<2x4x16x16xf32, #tpu.memory_space<vmem>>, vector<1x1x16x16xf32>
    %1295 = vector.shape_cast %1294 : vector<1x1x16x16xf32> to vector<16x16xf32>
    %1296 = vector.shape_cast %1293 : vector<16x16xf32> to vector<1x1x16x16xf32>
    tpu.vector_store %arg2[%c0_284, %c2_285, %c0_286, %c0_287], %1296 {strides = array<i32>} : memref<2x4x16x16xf32, #tpu.memory_space<vmem>>, vector<1x1x16x16xf32>,
    %1297 = vector.extract_strided_slice %1284 {offsets = [0, 99], sizes = [16, 16], strides = [1, 1]} : vector<32x128xf32> to vector<16x16xf32>
    %c0_288 = arith.constant 0 : index
    %c3_289 = arith.constant 3 : index
    %c0_290 = arith.constant 0 : index
    %c0_291 = arith.constant 0 : index
    %1298 = vector.load %arg2[%c0_288, %c3_289, %c0_290, %c0_291] : memref<2x4x16x16xf32, #tpu.memory_space<vmem>>, vector<1x1x16x16xf32>
    %1299 = vector.shape_cast %1298 : vector<1x1x16x16xf32> to vector<16x16xf32>
    %1300 = vector.shape_cast %1297 : vector<16x16xf32> to vector<1x1x16x16xf32>
    tpu.vector_store %arg2[%c0_288, %c3_289, %c0_290, %c0_291], %1300 {strides = array<i32>} : memref<2x4x16x16xf32, #tpu.memory_space<vmem>>, vector<1x1x16x16xf32>,
    %1301 = vector.extract_strided_slice %1284 {offsets = [16, 3], sizes = [16, 16], strides = [1, 1]} : vector<32x128xf32> to vector<16x16xf32>
    %c1_292 = arith.constant 1 : index
    %c0_293 = arith.constant 0 : index
    %c0_294 = arith.constant 0 : index
    %c0_295 = arith.constant 0 : index
    %1302 = vector.load %arg2[%c1_292, %c0_293, %c0_294, %c0_295] : memref<2x4x16x16xf32, #tpu.memory_space<vmem>>, vector<1x1x16x16xf32>
    %1303 = vector.shape_cast %1302 : vector<1x1x16x16xf32> to vector<16x16xf32>
    %1304 = vector.shape_cast %1301 : vector<16x16xf32> to vector<1x1x16x16xf32>
    tpu.vector_store %arg2[%c1_292, %c0_293, %c0_294, %c0_295], %1304 {strides = array<i32>} : memref<2x4x16x16xf32, #tpu.memory_space<vmem>>, vector<1x1x16x16xf32>,
    %1305 = vector.extract_strided_slice %1284 {offsets = [16, 35], sizes = [16, 16], strides = [1, 1]} : vector<32x128xf32> to vector<16x16xf32>
    %c1_296 = arith.constant 1 : index
    %c1_297 = arith.constant 1 : index
    %c0_298 = arith.constant 0 : index
    %c0_299 = arith.constant 0 : index
    %1306 = vector.load %arg2[%c1_296, %c1_297, %c0_298, %c0_299] : memref<2x4x16x16xf32, #tpu.memory_space<vmem>>, vector<1x1x16x16xf32>
    %1307 = vector.shape_cast %1306 : vector<1x1x16x16xf32> to vector<16x16xf32>
    %1308 = vector.shape_cast %1305 : vector<16x16xf32> to vector<1x1x16x16xf32>
    tpu.vector_store %arg2[%c1_296, %c1_297, %c0_298, %c0_299], %1308 {strides = array<i32>} : memref<2x4x16x16xf32, #tpu.memory_space<vmem>>, vector<1x1x16x16xf32>,
    %1309 = vector.extract_strided_slice %1284 {offsets = [16, 67], sizes = [16, 16], strides = [1, 1]} : vector<32x128xf32> to vector<16x16xf32>
    %c1_300 = arith.constant 1 : index
    %c2_301 = arith.constant 2 : index
    %c0_302 = arith.constant 0 : index
    %c0_303 = arith.constant 0 : index
    %1310 = vector.load %arg2[%c1_300, %c2_301, %c0_302, %c0_303] : memref<2x4x16x16xf32, #tpu.memory_space<vmem>>, vector<1x1x16x16xf32>
    %1311 = vector.shape_cast %1310 : vector<1x1x16x16xf32> to vector<16x16xf32>
    %1312 = vector.shape_cast %1309 : vector<16x16xf32> to vector<1x1x16x16xf32>
    tpu.vector_store %arg2[%c1_300, %c2_301, %c0_302, %c0_303], %1312 {strides = array<i32>} : memref<2x4x16x16xf32, #tpu.memory_space<vmem>>, vector<1x1x16x16xf32>,
    %1313 = vector.extract_strided_slice %1284 {offsets = [16, 99], sizes = [16, 16], strides = [1, 1]} : vector<32x128xf32> to vector<16x16xf32>
    %c1_304 = arith.constant 1 : index
    %c3_305 = arith.constant 3 : index
    %c0_306 = arith.constant 0 : index
    %c0_307 = arith.constant 0 : index
    %1314 = vector.load %arg2[%c1_304, %c3_305, %c0_306, %c0_307] : memref<2x4x16x16xf32, #tpu.memory_space<vmem>>, vector<1x1x16x16xf32>
    %1315 = vector.shape_cast %1314 : vector<1x1x16x16xf32> to vector<16x16xf32>
    %1316 = vector.shape_cast %1313 : vector<16x16xf32> to vector<1x1x16x16xf32>
    tpu.vector_store %arg2[%c1_304, %c3_305, %c0_306, %c0_307], %1316 {strides = array<i32>} : memref<2x4x16x16xf32, #tpu.memory_space<vmem>>, vector<1x1x16x16xf32>,
    return
  }
}

</mosaic_0001>

<llo_original>
// kernel: tpu_custom_call.1
$region0: #{tpu_custom_call.1}
  #allocation0 [shape = 'u32[]', space=smem, size = 0x4, offset = 0x4, fixed_abs, tag = 'smem constant byte address 0x4 - core index']
  #allocation1 [shape = 'u32[144,128]{1,0:T(1,128)}', space=vmem, size = 0x12000, scoped, tag = 'internal scratch']
  %s0 = inlined_call_operand.hbm [shape: f32[16,128], index: 0, kind: input, shape index: {}]
  %s1 = inlined_call_operand.hbm [shape: f32[8,128], index: 1, kind: output, shape index: {}]
  %s2 = sld [smem:[#allocation0]]
  $region18: #{tpu_custom_call.1} parent=0
    _
  %s4 = ssub.s32 1, %s2
  %s5 = scalar_select 0, %s4, %s2
  $region1: #{tpu_custom_call.1} parent=0
    #allocation2 [shape = 'u8[8192]{0}', space=vmem, size = 0x2000, scoped, tag = 'input window, operand 0, single buffered']
    #allocation3 [shape = 's32[1]{0}', space=sflag, size = 0x4, scoped, tag = 'scoped memory for tpu_custom_call.1']
    #allocation4 [shape = 's32[1]{0}', space=sflag, size = 0x4, scoped, tag = 'scoped memory for tpu_custom_call.1']
    #allocation5 [shape = 'u8[4096]{0}', space=vmem, size = 0x1000, scoped, tag = 'output window, operand 0, single buffered']
    %6 = vsyncpa [#allocation3], 0
    %7 = vsyncpa [#allocation4], 0
    // Predicated region
    $region2: #{tpu_custom_call.1} parent=1 // pred_check
      _
    $region3: #{tpu_custom_call.1} parent=1 // pred_check_branch
      %9 = sbr.rel (0) target = $region5
    $region4: #{tpu_custom_call.1} parent=1 // pred_region
      %s11 = ssub.s32 256, 256
      %12 = vsyncadd [#allocation3], %s11
      %s13 = sshll.u32 [#allocation2], 4
      %s14 = int_to_ptr.vmem [resolvable:$true] %s13
      %19 = dma.hbm_to_vmem [thread:$0]  %s0, 256, %s14, [#allocation3], 128, 128, 8
    $region5: #{tpu_custom_call.1} parent=1 // pred_fallthru
      _
    // Predicated region
    $region6: #{tpu_custom_call.1} parent=1 // pred_check
      _
    $region7: #{tpu_custom_call.1} parent=1 // pred_check_branch
      %21 = sbr.rel (0) target = $region9
    $region8: #{tpu_custom_call.1} parent=1 // pred_region
      %22 = dma.done [#allocation3], 256
    $region9: #{tpu_custom_call.1} parent=1 // pred_fallthru
      _
    %v23 = vld [vmem:[#allocation2 + $0x1] ss:$0 sm:$0xff]
    %24 = vst [vmem:[#allocation5] sm:$0xff] %v23
    // Predicated region
    $region10: #{tpu_custom_call.1} parent=1 // pred_check
      _
    $region11: #{tpu_custom_call.1} parent=1 // pred_check_branch
      %26 = sbr.rel (0) target = $region13
    $region12: #{tpu_custom_call.1} parent=1 // pred_region
      %s28 = ssub.s32 128, 128
      %29 = vsyncadd [#allocation4], %s28
      %s31 = sshll.u32 [#allocation5], 4
      %s32 = int_to_ptr.vmem [resolvable:$true] %s31
      %34 = dma.vmem_to_hbm [thread:$0]  %s32, 128, %s1, [#allocation4]
    $region13: #{tpu_custom_call.1} parent=1 // pred_fallthru
      _
    // Predicated region
    $region14: #{tpu_custom_call.1} parent=1 // pred_check
      _
    $region15: #{tpu_custom_call.1} parent=1 // pred_check_branch
      %36 = sbr.rel (0) target = $region17
    $region16: #{tpu_custom_call.1} parent=1 // pred_region
      %37 = dma.done [#allocation4], 128
    $region17: #{tpu_custom_call.1} parent=1 // pred_fallthru
      _
    %38 = vsyncpa [#allocation3], 1
    %39 = vsyncpa [#allocation4], 1

// kernel: tpu_custom_call.1
$region0: #{tpu_custom_call.1}
  #allocation0 [shape = 'u32[]', space=smem, size = 0x4, offset = 0x4, fixed_abs, tag = 'smem constant byte address 0x4 - core index']
  #allocation1 [shape = 'u32[144,128]{1,0:T(1,128)}', space=vmem, size = 0x12000, scoped, tag = 'internal scratch']
  %s0 = inlined_call_operand.hbm [shape: f32[16,128], index: 0, kind: input, shape index: {}]
  %s1 = inlined_call_operand.hbm [shape: f32[16,128], index: 1, kind: output, shape index: {0}]
  %s2 = inlined_call_operand.hbm [shape: f32[16,128], index: 2, kind: output, shape index: {1}]
  %3 = xla_tuple %s1, %s2
  %s4 = sld [smem:[#allocation0]]
  $region26: #{tpu_custom_call.1} parent=0
    _
  %s6 = ssub.s32 1, %s4
  %s7 = scalar_select 0, %s6, %s4
  $region1: #{tpu_custom_call.1} parent=0
    #allocation2 [shape = 'u8[8192]{0}', space=vmem, size = 0x2000, scoped, tag = 'input window, operand 0, single buffered']
    #allocation3 [shape = 's32[1]{0}', space=sflag, size = 0x4, scoped, tag = 'scoped memory for tpu_custom_call.1']
    #allocation4 [shape = 's32[1]{0}', space=sflag, size = 0x4, scoped, tag = 'scoped memory for tpu_custom_call.1']
    #allocation5 [shape = 'u8[8192]{0}', space=vmem, size = 0x2000, scoped, tag = 'output window, operand 0, single buffered']
    #allocation6 [shape = 'u8[8192]{0}', space=vmem, size = 0x2000, scoped, tag = 'output window, operand 1, single buffered']
    #allocation7 [shape = 's32[1]{0}', space=sflag, size = 0x4, scoped, tag = 'scoped memory for tpu_custom_call.1']
    %8 = vsyncpa [#allocation3], 0
    %9 = vsyncpa [#allocation4], 0
    %10 = vsyncpa [#allocation7], 0
    // Predicated region
    $region2: #{tpu_custom_call.1} parent=1 // pred_check
      _
    $region3: #{tpu_custom_call.1} parent=1 // pred_check_branch
      %12 = sbr.rel (0) target = $region5
    $region4: #{tpu_custom_call.1} parent=1 // pred_region
      %s14 = ssub.s32 256, 256
      %15 = vsyncadd [#allocation3], %s14
      %s16 = sshll.u32 [#allocation2], 4
      %s17 = int_to_ptr.vmem [resolvable:$true] %s16
      %22 = dma.hbm_to_vmem [thread:$0]  %s0, 256, %s17, [#allocation3], 128, 128, 8
    $region5: #{tpu_custom_call.1} parent=1 // pred_fallthru
      _
    // Predicated region
    $region6: #{tpu_custom_call.1} parent=1 // pred_check
      _
    $region7: #{tpu_custom_call.1} parent=1 // pred_check_branch
      %24 = sbr.rel (0) target = $region9
    $region8: #{tpu_custom_call.1} parent=1 // pred_region
      %25 = dma.done [#allocation3], 256
    $region9: #{tpu_custom_call.1} parent=1 // pred_fallthru
      _
    %v26 = vld [vmem:[#allocation2] sm:$0xff]
    %v27 = vld [vmem:[#allocation2 + $0x8] sm:$0xff]
    %28 = vrot.lane.b32.xlu0 %v26, 1
    %v29 = vpop.permute.xlu0 %28
    %30 = vrot.lane.b32.xlu0 %v27, 1
    %v31 = vpop.permute.xlu0 %30
    %32 = vst [vmem:[#allocation5] sm:$0xff] %v29
    %33 = vst [vmem:[#allocation5 + $0x8] sm:$0xff] %v31
    %v34 = vld [vmem:[#allocation2] sm:$0xff]
    %v35 = vld [vmem:[#allocation2 + $0x8] sm:$0xff]
    %v36 = vrot.slane %v34, 7
    %v37 = vrot.slane %v35, 7
    %v38 = vlaneseq
    %v39 = vshrl.u32 %v38, 7
    %vm40 = vcmp.lt.s32.totalorder %v39, 1
    %v41 = vsel %vm40, %v36, %v37
    %v42 = vsel %vm40, %v37, %v36
    %43 = vst [vmem:[#allocation6] sm:$0xff] %v42
    %44 = vst [vmem:[#allocation6 + $0x8] sm:$0xff] %v41
    // Predicated region
    $region10: #{tpu_custom_call.1} parent=1 // pred_check
      _
    $region11: #{tpu_custom_call.1} parent=1 // pred_check_branch
      %46 = sbr.rel (0) target = $region13
    $region12: #{tpu_custom_call.1} parent=1 // pred_region
      %s48 = ssub.s32 256, 256
      %49 = vsyncadd [#allocation4], %s48
      %s50 = sshll.u32 [#allocation5], 4
      %s51 = int_to_ptr.vmem [resolvable:$true] %s50
      %56 = dma.vmem_to_hbm [thread:$0]  %s51, 256, %s1, [#allocation4], 128, 128, 8
    $region13: #{tpu_custom_call.1} parent=1 // pred_fallthru
      _
    // Predicated region
    $region14: #{tpu_custom_call.1} parent=1 // pred_check
      _
    $region15: #{tpu_custom_call.1} parent=1 // pred_check_branch
      %58 = sbr.rel (0) target = $region17
    $region16: #{tpu_custom_call.1} parent=1 // pred_region
      %s60 = ssub.s32 256, 256
      %61 = vsyncadd [#allocation7], %s60
      %s62 = sshll.u32 [#allocation6], 4
      %s63 = int_to_ptr.vmem [resolvable:$true] %s62
      %68 = dma.vmem_to_hbm [thread:$0]  %s63, 256, %s2, [#allocation7], 128, 128, 8
    $region17: #{tpu_custom_call.1} parent=1 // pred_fallthru
      _
    // Predicated region
    $region18: #{tpu_custom_call.1} parent=1 // pred_check
      _
    $region19: #{tpu_custom_call.1} parent=1 // pred_check_branch
      %70 = sbr.rel (0) target = $region21
    $region20: #{tpu_custom_call.1} parent=1 // pred_region
      %71 = dma.done [#allocation4], 256
    $region21: #{tpu_custom_call.1} parent=1 // pred_fallthru
      _
    // Predicated region
    $region22: #{tpu_custom_call.1} parent=1 // pred_check
      _
    $region23: #{tpu_custom_call.1} parent=1 // pred_check_branch
      %73 = sbr.rel (0) target = $region25
    $region24: #{tpu_custom_call.1} parent=1 // pred_region
      %74 = dma.done [#allocation7], 256
    $region25: #{tpu_custom_call.1} parent=1 // pred_fallthru
      _
    %75 = vsyncpa [#allocation3], 1
    %76 = vsyncpa [#allocation4], 1
    %77 = vsyncpa [#allocation7], 1

// kernel: attblock_pallas.1
$region0: #{attblock_pallas.1}
  #allocation0 [shape = 'u32[]', space=smem, size = 0x4, offset = 0x4, fixed_abs, tag = 'smem constant byte address 0x4 - core index']
  #allocation1 [shape = 'u32[144,128]{1,0:T(1,128)}', space=vmem, size = 0x12000, scoped, tag = 'internal scratch']
  %s0 = inlined_call_operand.hbm [shape: f32[176,128], index: 0, kind: input, shape index: {}]
  %s1 = inlined_call_operand.hbm [shape: f32[2,4,16,16], index: 1, kind: input, shape index: {}]
  %s2 = inlined_call_operand.hbm [shape: f32[2,4,16,16], index: 2, kind: output, shape index: {}]
  %s3 = sld [smem:[#allocation0]]
  $region26: #{attblock_pallas.1} parent=0
    _
  %s5 = ssub.s32 1, %s3
  %s6 = scalar_select 0, %s5, %s3
  $region1: #{attblock_pallas.1} parent=0
    #allocation2 [shape = 'u8[90112]{0}', space=vmem, size = 0x16000, scoped, tag = 'input window, operand 0, single buffered']
    #allocation3 [shape = 's32[1]{0}', space=sflag, size = 0x4, scoped, tag = 'scoped memory for attblock_pallas.1']
    #allocation4 [shape = 's32[1]{0}', space=sflag, size = 0x4, scoped, tag = 'scoped memory for attblock_pallas.1']
    #allocation5 [shape = 'u8[65536]{0}', space=vmem, size = 0x10000, scoped, tag = 'input window, operand 1, single buffered']
    #allocation6 [shape = 's32[1]{0}', space=sflag, size = 0x4, scoped, tag = 'scoped memory for attblock_pallas.1']
    #allocation7 [shape = 'u8[65536]{0}', space=vmem, size = 0x10000, scoped, tag = 'output window, operand 0, single buffered']
    %7 = vsyncpa [#allocation3], 0
    %8 = vsyncpa [#allocation6], 0
    %9 = vsyncpa [#allocation4], 0
    // Predicated region
    $region2: #{attblock_pallas.1} parent=1 // pred_check
      _
    $region3: #{attblock_pallas.1} parent=1 // pred_check_branch
      %11 = sbr.rel (0) target = $region5
    $region4: #{attblock_pallas.1} parent=1 // pred_region
      %s13 = ssub.s32 2816, 2816
      %14 = vsyncadd [#allocation3], %s13
      %s15 = sshll.u32 [#allocation2], 4
      %s16 = int_to_ptr.vmem [resolvable:$true] %s15
      %21 = dma.hbm_to_vmem [thread:$0]  %s0, 2816, %s16, [#allocation3], 128, 128, 8
    $region5: #{attblock_pallas.1} parent=1 // pred_fallthru
      _
    // Predicated region
    $region6: #{attblock_pallas.1} parent=1 // pred_check
      _
    $region7: #{attblock_pallas.1} parent=1 // pred_check_branch
      %23 = sbr.rel (0) target = $region9
    $region8: #{attblock_pallas.1} parent=1 // pred_region
      %s25 = ssub.s32 2048, 2048
      %26 = vsyncadd [#allocation6], %s25
      %s27 = sshll.u32 [#allocation5], 4
      %s28 = int_to_ptr.vmem [resolvable:$true] %s27
      %33 = dma.hbm_to_vmem [thread:$0]  %s1, 2048, %s28, [#allocation6], 128, 128, 8
    $region9: #{attblock_pallas.1} parent=1 // pred_fallthru
      _
    // Predicated region
    $region10: #{attblock_pallas.1} parent=1 // pred_check
      _
    $region11: #{attblock_pallas.1} parent=1 // pred_check_branch
      %35 = sbr.rel (0) target = $region13
    $region12: #{attblock_pallas.1} parent=1 // pred_region
      %36 = dma.done [#allocation3], 2816
    $region13: #{attblock_pallas.1} parent=1 // pred_fallthru
      _
    // Predicated region
    $region14: #{attblock_pallas.1} parent=1 // pred_check
      _
    $region15: #{attblock_pallas.1} parent=1 // pred_check_branch
      %38 = sbr.rel (0) target = $region17
    $region16: #{attblock_pallas.1} parent=1 // pred_region
      %39 = dma.done [#allocation6], 2048
    $region17: #{attblock_pallas.1} parent=1 // pred_fallthru
      _
    %v40 = vlaneseq
    %v41 = vshrl.u32 %v40, 7
    %v42 = vadd.s32 %v41, 8
    %v43 = vadd.s32 %v41, 16
    %v44 = vadd.s32 %v41, 24
    %v45 = vand.u32 %v41, 15
    %v46 = vand.u32 %v42, 15
    %v47 = vand.u32 %v43, 15
    %v48 = vand.u32 %v44, 15
    %v49 = vadd.s32 %v41, 32
    %v50 = vadd.s32 %v41, 40
    %v51 = vadd.s32 %v41, 48
    %v52 = vadd.s32 %v41, 56
    %v53 = vand.u32 %v49, 15
    %v54 = vand.u32 %v50, 15
    %v55 = vand.u32 %v51, 15
    %v56 = vand.u32 %v52, 15
    %v57 = vld [vmem:[#allocation5] sm:$0xff]
    %v58 = vld [vmem:[#allocation5 + $0x8] sm:$0xff]
    %s59 = scalar_lea.vmem [#allocation5], 16
    %v60 = vld [vmem:[%s59] sm:$0xff]
    %v61 = vld [vmem:[%s59 + $0x8] sm:$0xff]
    %s62 = scalar_lea.vmem [#allocation5], 32
    %v63 = vld [vmem:[%s62] sm:$0xff]
    %v64 = vld [vmem:[%s62 + $0x8] sm:$0xff]
    %s65 = scalar_lea.vmem [#allocation5], 48
    %v66 = vld [vmem:[%s65] sm:$0xff]
    %v67 = vld [vmem:[%s65 + $0x8] sm:$0xff]
    %70 = vrot.lane.b32.xlu0 %v57, 3
    %v71 = vpop.permute.xlu0 %70
    %72 = vrot.lane.b32.xlu0 %v58, 3
    %v73 = vpop.permute.xlu0 %72
    %78 = vrot.lane.b32.xlu0 %v60, 35
    %v79 = vpop.permute.xlu0 %78
    %80 = vrot.lane.b32.xlu0 %v61, 35
    %v81 = vpop.permute.xlu0 %80
    %86 = vrot.lane.b32.xlu0 %v63, 67
    %v87 = vpop.permute.xlu0 %86
    %88 = vrot.lane.b32.xlu0 %v64, 67
    %v89 = vpop.permute.xlu0 %88
    %94 = vrot.lane.b32.xlu0 %v66, 99
    %v95 = vpop.permute.xlu0 %94
    %96 = vrot.lane.b32.xlu0 %v67, 99
    %v97 = vpop.permute.xlu0 %96
    %vm100 = vcmask 23552
    %v101 = vsel %vm100, 0.0, %v71
    %v102 = vsel %vm100, 0.0, %v73
    %vm103 = vcmask 154624
    %v104 = vsel %vm103, %v101, 0.0
    %v105 = vsel %vm103, %v102, 0.0
    %vm106 = vcmask 261120
    %v107 = vsel %vm106, %v104, 0.0
    %v108 = vsel %vm106, %v105, 0.0
    %vm109 = vcmask 285696
    %v110 = vsel %vm109, %v107, %v79
    %v111 = vsel %vm109, %v108, %v81
    %vm112 = vcmask 416768
    %v113 = vsel %vm112, %v110, 0.0
    %v114 = vsel %vm112, %v111, 0.0
    %vm115 = vcmask 523264
    %v116 = vsel %vm115, %v113, 0.0
    %v117 = vsel %vm115, %v114, 0.0
    %vm118 = vcmask 547840
    %v119 = vsel %vm118, %v116, %v87
    %v120 = vsel %vm118, %v117, %v89
    %vm121 = vcmask 678912
    %v122 = vsel %vm121, %v119, 0.0
    %v123 = vsel %vm121, %v120, 0.0
    %vm124 = vcmask 785408
    %v125 = vsel %vm124, %v122, 0.0
    %v126 = vsel %vm124, %v123, 0.0
    %vm127 = vcmask 809984
    %v128 = vsel %vm127, %v125, %v95
    %v129 = vsel %vm127, %v126, %v97
    %vm130 = vcmask 941056
    %v131 = vsel %vm130, %v128, 0.0
    %v132 = vsel %vm130, %v129, 0.0
    %s133 = scalar_lea.vmem [#allocation5], 64
    %v134 = vld [vmem:[%s133] sm:$0xff]
    %v135 = vld [vmem:[%s133 + $0x8] sm:$0xff]
    %s136 = scalar_lea.vmem [#allocation5], 80
    %v137 = vld [vmem:[%s136] sm:$0xff]
    %v138 = vld [vmem:[%s136 + $0x8] sm:$0xff]
    %s139 = scalar_lea.vmem [#allocation5], 96
    %v140 = vld [vmem:[%s139] sm:$0xff]
    %v141 = vld [vmem:[%s139 + $0x8] sm:$0xff]
    %s142 = scalar_lea.vmem [#allocation5], 112
    %v143 = vld [vmem:[%s142] sm:$0xff]
    %v144 = vld [vmem:[%s142 + $0x8] sm:$0xff]
    %147 = vrot.lane.b32.xlu0 %v134, 3
    %v148 = vpop.permute.xlu0 %147
    %149 = vrot.lane.b32.xlu0 %v135, 3
    %v150 = vpop.permute.xlu0 %149
    %155 = vrot.lane.b32.xlu0 %v137, 35
    %v156 = vpop.permute.xlu0 %155
    %157 = vrot.lane.b32.xlu0 %v138, 35
    %v158 = vpop.permute.xlu0 %157
    %163 = vrot.lane.b32.xlu0 %v140, 67
    %v164 = vpop.permute.xlu0 %163
    %165 = vrot.lane.b32.xlu0 %v141, 67
    %v166 = vpop.permute.xlu0 %165
    %171 = vrot.lane.b32.xlu0 %v143, 99
    %v172 = vpop.permute.xlu0 %171
    %173 = vrot.lane.b32.xlu0 %v144, 99
    %v174 = vpop.permute.xlu0 %173
    %v177 = vsel %vm100, 0.0, %v148
    %v178 = vsel %vm100, 0.0, %v150
    %v179 = vsel %vm103, %v177, 0.0
    %v180 = vsel %vm103, %v178, 0.0
    %v181 = vsel %vm106, %v179, 0.0
    %v182 = vsel %vm106, %v180, 0.0
    %v183 = vsel %vm109, %v181, %v156
    %v184 = vsel %vm109, %v182, %v158
    %v185 = vsel %vm112, %v183, 0.0
    %v186 = vsel %vm112, %v184, 0.0
    %v187 = vsel %vm115, %v185, 0.0
    %v188 = vsel %vm115, %v186, 0.0
    %v189 = vsel %vm118, %v187, %v164
    %v190 = vsel %vm118, %v188, %v166
    %v191 = vsel %vm121, %v189, 0.0
    %v192 = vsel %vm121, %v190, 0.0
    %v193 = vsel %vm124, %v191, 0.0
    %v194 = vsel %vm124, %v192, 0.0
    %v195 = vsel %vm127, %v193, %v172
    %v196 = vsel %vm127, %v194, %v174
    %v197 = vsel %vm130, %v195, 0.0
    %v198 = vsel %vm130, %v196, 0.0
    %vm203 = vcmask 1040384
    %v204 = vrot.slane %v131, 7
    %v205 = vrot.slane %v132, 7
    %v206 = vsel %vm203, %v204, %v205
    %v207 = vrot.slane %v197, 7
    %v208 = vsel %vm203, %v205, %v207
    %v209 = vrot.slane %v198, 7
    %v210 = vsel %vm203, %v207, %v209
    %v215 = vsel %vm203, 0.0, %v204
    %vm216 = vcmp.ge.s32.totalorder %v45, 1
    %vm217 = vcmp.ge.s32.totalorder %v46, 1
    %vm218 = vcmp.ge.s32.totalorder %v47, 1
    %vm219 = vcmp.ge.s32.totalorder %v48, 1
    %v220 = vsel %vm216, %v215, 0.0
    %v221 = vsel %vm217, %v206, 0.0
    %v222 = vsel %vm218, %v208, 0.0
    %v223 = vsel %vm219, %v210, 0.0
    %228 = vrot.lane.b32.xlu0 %v220, 1
    %v229 = vpop.permute.xlu0 %228
    %230 = vrot.lane.b32.xlu0 %v221, 1
    %v231 = vpop.permute.xlu0 %230
    %232 = vrot.lane.b32.xlu0 %v222, 1
    %v233 = vpop.permute.xlu0 %232
    %234 = vrot.lane.b32.xlu0 %v223, 1
    %v235 = vpop.permute.xlu0 %234
    %v240 = vld [vmem:[#allocation2 + $0x4] sm:$0x1]
    %v241 = vlaneseq
    %v242 = vshrl.u32 %v241, 7
    %v243 = vsub.s32 0, %v242
    %v244 = vrot.slane %v240, %v243
    %v245 = vmul.f32 %v244, %v229
    %v246 = vmul.f32 %v244, %v231
    %v247 = vmul.f32 %v244, %v233
    %v248 = vmul.f32 %v244, %v235
    %v249 = vadd.f32 %v245, 0.0
    %v250 = vadd.f32 %v246, 0.0
    %v251 = vadd.f32 %v247, 0.0
    %v252 = vadd.f32 %v248, 0.0
    %v253 = vld [vmem:[#allocation2 + $0x28] sm:$0x1]
    %v254 = vlaneseq
    %v255 = vshrl.u32 %v254, 7
    %v256 = vsub.s32 0, %v255
    %v257 = vrot.slane %v253, %v256
    %v258 = vmul.f32 %v257, %v229
    %v259 = vmul.f32 %v257, %v231
    %v260 = vmul.f32 %v257, %v233
    %v261 = vmul.f32 %v257, %v235
    %v262 = vadd.f32 %v258, 0.0
    %v263 = vadd.f32 %v259, 0.0
    %v264 = vadd.f32 %v260, 0.0
    %v265 = vadd.f32 %v261, 0.0
    %v266 = vld [vmem:[#allocation2 + $0x4c] sm:$0x1]
    %v267 = vlaneseq
    %v268 = vshrl.u32 %v267, 7
    %v269 = vsub.s32 0, %v268
    %v270 = vrot.slane %v266, %v269
    %v271 = vmul.f32 %v270, %v229
    %v272 = vmul.f32 %v270, %v231
    %v273 = vmul.f32 %v270, %v233
    %v274 = vmul.f32 %v270, %v235
    %v275 = vadd.f32 %v271, 0.0
    %v276 = vadd.f32 %v272, 0.0
    %v277 = vadd.f32 %v273, 0.0
    %v278 = vadd.f32 %v274, 0.0
    %283 = vrot.lane.b32.xlu0 %v229, 96
    %v284 = vpop.permute.xlu0 %283
    %285 = vrot.lane.b32.xlu0 %v231, 96
    %v286 = vpop.permute.xlu0 %285
    %287 = vrot.lane.b32.xlu0 %v233, 96
    %v288 = vpop.permute.xlu0 %287
    %289 = vrot.lane.b32.xlu0 %v235, 96
    %v290 = vpop.permute.xlu0 %289
    %v295 = vld [vmem:[#allocation2 + $0x5] sm:$0x1]
    %v296 = vlaneseq
    %v297 = vshrl.u32 %v296, 7
    %v298 = vsub.s32 0, %v297
    %v299 = vrot.slane %v295, %v298
    %v300 = vmul.f32 %v299, %v284
    %v301 = vmul.f32 %v299, %v286
    %v302 = vmul.f32 %v299, %v288
    %v303 = vmul.f32 %v299, %v290
    %v304 = vadd.f32 %v249, %v300
    %v305 = vadd.f32 %v250, %v301
    %v306 = vadd.f32 %v251, %v302
    %v307 = vadd.f32 %v252, %v303
    %v308 = vld [vmem:[#allocation2 + $0x29] sm:$0x1]
    %v309 = vlaneseq
    %v310 = vshrl.u32 %v309, 7
    %v311 = vsub.s32 0, %v310
    %v312 = vrot.slane %v308, %v311
    %v313 = vmul.f32 %v312, %v284
    %v314 = vmul.f32 %v312, %v286
    %v315 = vmul.f32 %v312, %v288
    %v316 = vmul.f32 %v312, %v290
    %v317 = vadd.f32 %v262, %v313
    %v318 = vadd.f32 %v263, %v314
    %v319 = vadd.f32 %v264, %v315
    %v320 = vadd.f32 %v265, %v316
    %v321 = vld [vmem:[#allocation2 + $0x4d] sm:$0x1]
    %v322 = vlaneseq
    %v323 = vshrl.u32 %v322, 7
    %v324 = vsub.s32 0, %v323
    %v325 = vrot.slane %v321, %v324
    %v326 = vmul.f32 %v325, %v284
    %v327 = vmul.f32 %v325, %v286
    %v328 = vmul.f32 %v325, %v288
    %v329 = vmul.f32 %v325, %v290
    %v330 = vadd.f32 %v275, %v326
    %v331 = vadd.f32 %v276, %v327
    %v332 = vadd.f32 %v277, %v328
    %v333 = vadd.f32 %v278, %v329
    %334 = vrot.lane.b32.xlu0 %v229, 64
    %v335 = vpop.permute.xlu0 %334
    %336 = vrot.lane.b32.xlu0 %v231, 64
    %v337 = vpop.permute.xlu0 %336
    %338 = vrot.lane.b32.xlu0 %v233, 64
    %v339 = vpop.permute.xlu0 %338
    %340 = vrot.lane.b32.xlu0 %v235, 64
    %v341 = vpop.permute.xlu0 %340
    %v346 = vld [vmem:[#allocation2 + $0x6] sm:$0x1]
    %v347 = vlaneseq
    %v348 = vshrl.u32 %v347, 7
    %v349 = vsub.s32 0, %v348
    %v350 = vrot.slane %v346, %v349
    %v351 = vmul.f32 %v350, %v335
    %v352 = vmul.f32 %v350, %v337
    %v353 = vmul.f32 %v350, %v339
    %v354 = vmul.f32 %v350, %v341
    %v355 = vadd.f32 %v304, %v351
    %v356 = vadd.f32 %v305, %v352
    %v357 = vadd.f32 %v306, %v353
    %v358 = vadd.f32 %v307, %v354
    %v359 = vld [vmem:[#allocation2 + $0x2a] sm:$0x1]
    %v360 = vlaneseq
    %v361 = vshrl.u32 %v360, 7
    %v362 = vsub.s32 0, %v361
    %v363 = vrot.slane %v359, %v362
    %v364 = vmul.f32 %v363, %v335
    %v365 = vmul.f32 %v363, %v337
    %v366 = vmul.f32 %v363, %v339
    %v367 = vmul.f32 %v363, %v341
    %v368 = vadd.f32 %v317, %v364
    %v369 = vadd.f32 %v318, %v365
    %v370 = vadd.f32 %v319, %v366
    %v371 = vadd.f32 %v320, %v367
    %v372 = vld [vmem:[#allocation2 + $0x4e] sm:$0x1]
    %v373 = vlaneseq
    %v374 = vshrl.u32 %v373, 7
    %v375 = vsub.s32 0, %v374
    %v376 = vrot.slane %v372, %v375
    %v377 = vmul.f32 %v376, %v335
    %v378 = vmul.f32 %v376, %v337
    %v379 = vmul.f32 %v376, %v339
    %v380 = vmul.f32 %v376, %v341
    %v381 = vadd.f32 %v330, %v377
    %v382 = vadd.f32 %v331, %v378
    %v383 = vadd.f32 %v332, %v379
    %v384 = vadd.f32 %v333, %v380
    %385 = vrot.lane.b32.xlu0 %v229, 32
    %v386 = vpop.permute.xlu0 %385
    %387 = vrot.lane.b32.xlu0 %v231, 32
    %v388 = vpop.permute.xlu0 %387
    %389 = vrot.lane.b32.xlu0 %v233, 32
    %v390 = vpop.permute.xlu0 %389
    %391 = vrot.lane.b32.xlu0 %v235, 32
    %v392 = vpop.permute.xlu0 %391
    %v397 = vld [vmem:[#allocation2 + $0x7] sm:$0x1]
    %v398 = vlaneseq
    %v399 = vshrl.u32 %v398, 7
    %v400 = vsub.s32 0, %v399
    %v401 = vrot.slane %v397, %v400
    %v402 = vmul.f32 %v401, %v386
    %v403 = vmul.f32 %v401, %v388
    %v404 = vmul.f32 %v401, %v390
    %v405 = vmul.f32 %v401, %v392
    %v406 = vadd.f32 %v355, %v402
    %v407 = vadd.f32 %v356, %v403
    %v408 = vadd.f32 %v357, %v404
    %v409 = vadd.f32 %v358, %v405
    %v410 = vld [vmem:[#allocation2 + $0x2b] sm:$0x1]
    %v411 = vlaneseq
    %v412 = vshrl.u32 %v411, 7
    %v413 = vsub.s32 0, %v412
    %v414 = vrot.slane %v410, %v413
    %v415 = vmul.f32 %v414, %v386
    %v416 = vmul.f32 %v414, %v388
    %v417 = vmul.f32 %v414, %v390
    %v418 = vmul.f32 %v414, %v392
    %v419 = vadd.f32 %v368, %v415
    %v420 = vadd.f32 %v369, %v416
    %v421 = vadd.f32 %v370, %v417
    %v422 = vadd.f32 %v371, %v418
    %v423 = vld [vmem:[#allocation2 + $0x4f] sm:$0x1]
    %v424 = vlaneseq
    %v425 = vshrl.u32 %v424, 7
    %v426 = vsub.s32 0, %v425
    %v427 = vrot.slane %v423, %v426
    %v428 = vmul.f32 %v427, %v386
    %v429 = vmul.f32 %v427, %v388
    %v430 = vmul.f32 %v427, %v390
    %v431 = vmul.f32 %v427, %v392
    %v432 = vadd.f32 %v381, %v428
    %v433 = vadd.f32 %v382, %v429
    %v434 = vadd.f32 %v383, %v430
    %v435 = vadd.f32 %v384, %v431
    %v436 = vld [vmem:[#allocation2 + $0x8] sm:$0x1]
    %v437 = vlaneseq
    %v438 = vshrl.u32 %v437, 7
    %v439 = vsub.s32 0, %v438
    %v440 = vrot.slane %v436, %v439
    %v441 = vmul.f32 %v440, %v220
    %v442 = vmul.f32 %v440, %v221
    %v443 = vmul.f32 %v440, %v222
    %v444 = vmul.f32 %v440, %v223
    %v445 = vadd.f32 %v406, %v441
    %v446 = vadd.f32 %v407, %v442
    %v447 = vadd.f32 %v408, %v443
    %v448 = vadd.f32 %v409, %v444
    %v449 = vld [vmem:[#allocation2 + $0x2c] sm:$0x1]
    %v450 = vlaneseq
    %v451 = vshrl.u32 %v450, 7
    %v452 = vsub.s32 0, %v451
    %v453 = vrot.slane %v449, %v452
    %v454 = vmul.f32 %v453, %v220
    %v455 = vmul.f32 %v453, %v221
    %v456 = vmul.f32 %v453, %v222
    %v457 = vmul.f32 %v453, %v223
    %v458 = vadd.f32 %v419, %v454
    %v459 = vadd.f32 %v420, %v455
    %v460 = vadd.f32 %v421, %v456
    %v461 = vadd.f32 %v422, %v457
    %v462 = vld [vmem:[#allocation2 + $0x50] sm:$0x1]
    %v463 = vlaneseq
    %v464 = vshrl.u32 %v463, 7
    %v465 = vsub.s32 0, %v464
    %v466 = vrot.slane %v462, %v465
    %v467 = vmul.f32 %v466, %v220
    %v468 = vmul.f32 %v466, %v221
    %v469 = vmul.f32 %v466, %v222
    %v470 = vmul.f32 %v466, %v223
    %v471 = vadd.f32 %v432, %v467
    %v472 = vadd.f32 %v433, %v468
    %v473 = vadd.f32 %v434, %v469
    %v474 = vadd.f32 %v435, %v470
    %475 = vrot.lane.b32.xlu0 %v220, 96
    %v476 = vpop.permute.xlu0 %475
    %477 = vrot.lane.b32.xlu0 %v221, 96
    %v478 = vpop.permute.xlu0 %477
    %479 = vrot.lane.b32.xlu0 %v222, 96
    %v480 = vpop.permute.xlu0 %479
    %481 = vrot.lane.b32.xlu0 %v223, 96
    %v482 = vpop.permute.xlu0 %481
    %v487 = vld [vmem:[#allocation2 + $0x9] sm:$0x1]
    %v488 = vlaneseq
    %v489 = vshrl.u32 %v488, 7
    %v490 = vsub.s32 0, %v489
    %v491 = vrot.slane %v487, %v490
    %v492 = vmul.f32 %v491, %v476
    %v493 = vmul.f32 %v491, %v478
    %v494 = vmul.f32 %v491, %v480
    %v495 = vmul.f32 %v491, %v482
    %v496 = vadd.f32 %v445, %v492
    %v497 = vadd.f32 %v446, %v493
    %v498 = vadd.f32 %v447, %v494
    %v499 = vadd.f32 %v448, %v495
    %v500 = vld [vmem:[#allocation2 + $0x2d] sm:$0x1]
    %v501 = vlaneseq
    %v502 = vshrl.u32 %v501, 7
    %v503 = vsub.s32 0, %v502
    %v504 = vrot.slane %v500, %v503
    %v505 = vmul.f32 %v504, %v476
    %v506 = vmul.f32 %v504, %v478
    %v507 = vmul.f32 %v504, %v480
    %v508 = vmul.f32 %v504, %v482
    %v509 = vadd.f32 %v458, %v505
    %v510 = vadd.f32 %v459, %v506
    %v511 = vadd.f32 %v460, %v507
    %v512 = vadd.f32 %v461, %v508
    %v513 = vld [vmem:[#allocation2 + $0x51] sm:$0x1]
    %v514 = vlaneseq
    %v515 = vshrl.u32 %v514, 7
    %v516 = vsub.s32 0, %v515
    %v517 = vrot.slane %v513, %v516
    %v518 = vmul.f32 %v517, %v476
    %v519 = vmul.f32 %v517, %v478
    %v520 = vmul.f32 %v517, %v480
    %v521 = vmul.f32 %v517, %v482
    %v522 = vadd.f32 %v471, %v518
    %v523 = vadd.f32 %v472, %v519
    %v524 = vadd.f32 %v473, %v520
    %v525 = vadd.f32 %v474, %v521
    %526 = vrot.lane.b32.xlu0 %v220, 64
    %v527 = vpop.permute.xlu0 %526
    %528 = vrot.lane.b32.xlu0 %v221, 64
    %v529 = vpop.permute.xlu0 %528
    %530 = vrot.lane.b32.xlu0 %v222, 64
    %v531 = vpop.permute.xlu0 %530
    %532 = vrot.lane.b32.xlu0 %v223, 64
    %v533 = vpop.permute.xlu0 %532
    %v538 = vld [vmem:[#allocation2 + $0xa] sm:$0x1]
    %v539 = vlaneseq
    %v540 = vshrl.u32 %v539, 7
    %v541 = vsub.s32 0, %v540
    %v542 = vrot.slane %v538, %v541
    %v543 = vmul.f32 %v542, %v527
    %v544 = vmul.f32 %v542, %v529
    %v545 = vmul.f32 %v542, %v531
    %v546 = vmul.f32 %v542, %v533
    %v547 = vadd.f32 %v496, %v543
    %v548 = vadd.f32 %v497, %v544
    %v549 = vadd.f32 %v498, %v545
    %v550 = vadd.f32 %v499, %v546
    %v551 = vld [vmem:[#allocation2 + $0x2e] sm:$0x1]
    %v552 = vlaneseq
    %v553 = vshrl.u32 %v552, 7
    %v554 = vsub.s32 0, %v553
    %v555 = vrot.slane %v551, %v554
    %v556 = vmul.f32 %v555, %v527
    %v557 = vmul.f32 %v555, %v529
    %v558 = vmul.f32 %v555, %v531
    %v559 = vmul.f32 %v555, %v533
    %v560 = vadd.f32 %v509, %v556
    %v561 = vadd.f32 %v510, %v557
    %v562 = vadd.f32 %v511, %v558
    %v563 = vadd.f32 %v512, %v559
    %v564 = vld [vmem:[#allocation2 + $0x52] sm:$0x1]
    %v565 = vlaneseq
    %v566 = vshrl.u32 %v565, 7
    %v567 = vsub.s32 0, %v566
    %v568 = vrot.slane %v564, %v567
    %v569 = vmul.f32 %v568, %v527
    %v570 = vmul.f32 %v568, %v529
    %v571 = vmul.f32 %v568, %v531
    %v572 = vmul.f32 %v568, %v533
    %v573 = vadd.f32 %v522, %v569
    %v574 = vadd.f32 %v523, %v570
    %v575 = vadd.f32 %v524, %v571
    %v576 = vadd.f32 %v525, %v572
    %577 = vrot.lane.b32.xlu0 %v220, 32
    %v578 = vpop.permute.xlu0 %577
    %579 = vrot.lane.b32.xlu0 %v221, 32
    %v580 = vpop.permute.xlu0 %579
    %581 = vrot.lane.b32.xlu0 %v222, 32
    %v582 = vpop.permute.xlu0 %581
    %583 = vrot.lane.b32.xlu0 %v223, 32
    %v584 = vpop.permute.xlu0 %583
    %v589 = vld [vmem:[#allocation2 + $0xb] sm:$0x1]
    %v590 = vlaneseq
    %v591 = vshrl.u32 %v590, 7
    %v592 = vsub.s32 0, %v591
    %v593 = vrot.slane %v589, %v592
    %v594 = vmul.f32 %v593, %v578
    %v595 = vmul.f32 %v593, %v580
    %v596 = vmul.f32 %v593, %v582
    %v597 = vmul.f32 %v593, %v584
    %v598 = vadd.f32 %v547, %v594
    %v599 = vadd.f32 %v548, %v595
    %v600 = vadd.f32 %v549, %v596
    %v601 = vadd.f32 %v550, %v597
    %v602 = vld [vmem:[#allocation2 + $0x2f] sm:$0x1]
    %v603 = vlaneseq
    %v604 = vshrl.u32 %v603, 7
    %v605 = vsub.s32 0, %v604
    %v606 = vrot.slane %v602, %v605
    %v607 = vmul.f32 %v606, %v578
    %v608 = vmul.f32 %v606, %v580
    %v609 = vmul.f32 %v606, %v582
    %v610 = vmul.f32 %v606, %v584
    %v611 = vadd.f32 %v560, %v607
    %v612 = vadd.f32 %v561, %v608
    %v613 = vadd.f32 %v562, %v609
    %v614 = vadd.f32 %v563, %v610
    %v615 = vld [vmem:[#allocation2 + $0x53] sm:$0x1]
    %v616 = vlaneseq
    %v617 = vshrl.u32 %v616, 7
    %v618 = vsub.s32 0, %v617
    %v619 = vrot.slane %v615, %v618
    %v620 = vmul.f32 %v619, %v578
    %v621 = vmul.f32 %v619, %v580
    %v622 = vmul.f32 %v619, %v582
    %v623 = vmul.f32 %v619, %v584
    %v624 = vadd.f32 %v573, %v620
    %v625 = vadd.f32 %v574, %v621
    %v626 = vadd.f32 %v575, %v622
    %v627 = vadd.f32 %v576, %v623
    %628 = vrot.lane.b32.xlu0 %v220, 127
    %v629 = vpop.permute.xlu0 %628
    %630 = vrot.lane.b32.xlu0 %v221, 127
    %v631 = vpop.permute.xlu0 %630
    %632 = vrot.lane.b32.xlu0 %v222, 127
    %v633 = vpop.permute.xlu0 %632
    %634 = vrot.lane.b32.xlu0 %v223, 127
    %v635 = vpop.permute.xlu0 %634
    %v640 = vld [vmem:[#allocation2 + $0xc] sm:$0x1]
    %v641 = vlaneseq
    %v642 = vshrl.u32 %v641, 7
    %v643 = vsub.s32 0, %v642
    %v644 = vrot.slane %v640, %v643
    %v645 = vmul.f32 %v644, %v629
    %v646 = vmul.f32 %v644, %v631
    %v647 = vmul.f32 %v644, %v633
    %v648 = vmul.f32 %v644, %v635
    %v649 = vadd.f32 %v598, %v645
    %v650 = vadd.f32 %v599, %v646
    %v651 = vadd.f32 %v600, %v647
    %v652 = vadd.f32 %v601, %v648
    %v653 = vld [vmem:[#allocation2 + $0x30] sm:$0x1]
    %v654 = vlaneseq
    %v655 = vshrl.u32 %v654, 7
    %v656 = vsub.s32 0, %v655
    %v657 = vrot.slane %v653, %v656
    %v658 = vmul.f32 %v657, %v629
    %v659 = vmul.f32 %v657, %v631
    %v660 = vmul.f32 %v657, %v633
    %v661 = vmul.f32 %v657, %v635
    %v662 = vadd.f32 %v611, %v658
    %v663 = vadd.f32 %v612, %v659
    %v664 = vadd.f32 %v613, %v660
    %v665 = vadd.f32 %v614, %v661
    %v666 = vld [vmem:[#allocation2 + $0x54] sm:$0x1]
    %v667 = vlaneseq
    %v668 = vshrl.u32 %v667, 7
    %v669 = vsub.s32 0, %v668
    %v670 = vrot.slane %v666, %v669
    %v671 = vmul.f32 %v670, %v629
    %v672 = vmul.f32 %v670, %v631
    %v673 = vmul.f32 %v670, %v633
    %v674 = vmul.f32 %v670, %v635
    %v675 = vadd.f32 %v624, %v671
    %v676 = vadd.f32 %v625, %v672
    %v677 = vadd.f32 %v626, %v673
    %v678 = vadd.f32 %v627, %v674
    %683 = vrot.lane.b32.xlu0 %v629, 96
    %v684 = vpop.permute.xlu0 %683
    %685 = vrot.lane.b32.xlu0 %v631, 96
    %v686 = vpop.permute.xlu0 %685
    %687 = vrot.lane.b32.xlu0 %v633, 96
    %v688 = vpop.permute.xlu0 %687
    %689 = vrot.lane.b32.xlu0 %v635, 96
    %v690 = vpop.permute.xlu0 %689
    %v695 = vld [vmem:[#allocation2 + $0xd] sm:$0x1]
    %v696 = vlaneseq
    %v697 = vshrl.u32 %v696, 7
    %v698 = vsub.s32 0, %v697
    %v699 = vrot.slane %v695, %v698
    %v700 = vmul.f32 %v699, %v684
    %v701 = vmul.f32 %v699, %v686
    %v702 = vmul.f32 %v699, %v688
    %v703 = vmul.f32 %v699, %v690
    %v704 = vadd.f32 %v649, %v700
    %v705 = vadd.f32 %v650, %v701
    %v706 = vadd.f32 %v651, %v702
    %v707 = vadd.f32 %v652, %v703
    %v708 = vld [vmem:[#allocation2 + $0x31] sm:$0x1]
    %v709 = vlaneseq
    %v710 = vshrl.u32 %v709, 7
    %v711 = vsub.s32 0, %v710
    %v712 = vrot.slane %v708, %v711
    %v713 = vmul.f32 %v712, %v684
    %v714 = vmul.f32 %v712, %v686
    %v715 = vmul.f32 %v712, %v688
    %v716 = vmul.f32 %v712, %v690
    %v717 = vadd.f32 %v662, %v713
    %v718 = vadd.f32 %v663, %v714
    %v719 = vadd.f32 %v664, %v715
    %v720 = vadd.f32 %v665, %v716
    %v721 = vld [vmem:[#allocation2 + $0x55] sm:$0x1]
    %v722 = vlaneseq
    %v723 = vshrl.u32 %v722, 7
    %v724 = vsub.s32 0, %v723
    %v725 = vrot.slane %v721, %v724
    %v726 = vmul.f32 %v725, %v684
    %v727 = vmul.f32 %v725, %v686
    %v728 = vmul.f32 %v725, %v688
    %v729 = vmul.f32 %v725, %v690
    %v730 = vadd.f32 %v675, %v726
    %v731 = vadd.f32 %v676, %v727
    %v732 = vadd.f32 %v677, %v728
    %v733 = vadd.f32 %v678, %v729
    %734 = vrot.lane.b32.xlu0 %v629, 64
    %v735 = vpop.permute.xlu0 %734
    %736 = vrot.lane.b32.xlu0 %v631, 64
    %v737 = vpop.permute.xlu0 %736
    %738 = vrot.lane.b32.xlu0 %v633, 64
    %v739 = vpop.permute.xlu0 %738
    %740 = vrot.lane.b32.xlu0 %v635, 64
    %v741 = vpop.permute.xlu0 %740
    %v746 = vld [vmem:[#allocation2 + $0xe] sm:$0x1]
    %v747 = vlaneseq
    %v748 = vshrl.u32 %v747, 7
    %v749 = vsub.s32 0, %v748
    %v750 = vrot.slane %v746, %v749
    %v751 = vmul.f32 %v750, %v735
    %v752 = vmul.f32 %v750, %v737
    %v753 = vmul.f32 %v750, %v739
    %v754 = vmul.f32 %v750, %v741
    %v755 = vadd.f32 %v704, %v751
    %v756 = vadd.f32 %v705, %v752
    %v757 = vadd.f32 %v706, %v753
    %v758 = vadd.f32 %v707, %v754
    %v759 = vld [vmem:[#allocation2 + $0x32] sm:$0x1]
    %v760 = vlaneseq
    %v761 = vshrl.u32 %v760, 7
    %v762 = vsub.s32 0, %v761
    %v763 = vrot.slane %v759, %v762
    %v764 = vmul.f32 %v763, %v735
    %v765 = vmul.f32 %v763, %v737
    %v766 = vmul.f32 %v763, %v739
    %v767 = vmul.f32 %v763, %v741
    %v768 = vadd.f32 %v717, %v764
    %v769 = vadd.f32 %v718, %v765
    %v770 = vadd.f32 %v719, %v766
    %v771 = vadd.f32 %v720, %v767
    %v772 = vld [vmem:[#allocation2 + $0x56] sm:$0x1]
    %v773 = vlaneseq
    %v774 = vshrl.u32 %v773, 7
    %v775 = vsub.s32 0, %v774
    %v776 = vrot.slane %v772, %v775
    %v777 = vmul.f32 %v776, %v735
    %v778 = vmul.f32 %v776, %v737
    %v779 = vmul.f32 %v776, %v739
    %v780 = vmul.f32 %v776, %v741
    %v781 = vadd.f32 %v730, %v777
    %v782 = vadd.f32 %v731, %v778
    %v783 = vadd.f32 %v732, %v779
    %v784 = vadd.f32 %v733, %v780
    %785 = vrot.lane.b32.xlu0 %v629, 32
    %v786 = vpop.permute.xlu0 %785
    %787 = vrot.lane.b32.xlu0 %v631, 32
    %v788 = vpop.permute.xlu0 %787
    %789 = vrot.lane.b32.xlu0 %v633, 32
    %v790 = vpop.permute.xlu0 %789
    %791 = vrot.lane.b32.xlu0 %v635, 32
    %v792 = vpop.permute.xlu0 %791
    %v797 = vld [vmem:[#allocation2 + $0xf] sm:$0x1]
    %v798 = vlaneseq
    %v799 = vshrl.u32 %v798, 7
    %v800 = vsub.s32 0, %v799
    %v801 = vrot.slane %v797, %v800
    %v802 = vmul.f32 %v801, %v786
    %v803 = vmul.f32 %v801, %v788
    %v804 = vmul.f32 %v801, %v790
    %v805 = vmul.f32 %v801, %v792
    %v806 = vadd.f32 %v755, %v802
    %v807 = vadd.f32 %v756, %v803
    %v808 = vadd.f32 %v757, %v804
    %v809 = vadd.f32 %v758, %v805
    %v810 = vld [vmem:[#allocation2 + $0x33] sm:$0x1]
    %v811 = vlaneseq
    %v812 = vshrl.u32 %v811, 7
    %v813 = vsub.s32 0, %v812
    %v814 = vrot.slane %v810, %v813
    %v815 = vmul.f32 %v814, %v786
    %v816 = vmul.f32 %v814, %v788
    %v817 = vmul.f32 %v814, %v790
    %v818 = vmul.f32 %v814, %v792
    %v819 = vadd.f32 %v768, %v815
    %v820 = vadd.f32 %v769, %v816
    %v821 = vadd.f32 %v770, %v817
    %v822 = vadd.f32 %v771, %v818
    %v823 = vld [vmem:[#allocation2 + $0x57] sm:$0x1]
    %v824 = vlaneseq
    %v825 = vshrl.u32 %v824, 7
    %v826 = vsub.s32 0, %v825
    %v827 = vrot.slane %v823, %v826
    %v828 = vmul.f32 %v827, %v786
    %v829 = vmul.f32 %v827, %v788
    %v830 = vmul.f32 %v827, %v790
    %v831 = vmul.f32 %v827, %v792
    %v832 = vadd.f32 %v781, %v828
    %v833 = vadd.f32 %v782, %v829
    %v834 = vadd.f32 %v783, %v830
    %v835 = vadd.f32 %v784, %v831
    %836 = vrot.lane.b32.xlu0 %v131, 1
    %v837 = vpop.permute.xlu0 %836
    %838 = vrot.lane.b32.xlu0 %v132, 1
    %v839 = vpop.permute.xlu0 %838
    %840 = vrot.lane.b32.xlu0 %v197, 1
    %v841 = vpop.permute.xlu0 %840
    %842 = vrot.lane.b32.xlu0 %v198, 1
    %v843 = vpop.permute.xlu0 %842
    %v848 = vld [vmem:[#allocation2 + $0x10] sm:$0x1]
    %v849 = vlaneseq
    %v850 = vshrl.u32 %v849, 7
    %v851 = vsub.s32 0, %v850
    %v852 = vrot.slane %v848, %v851
    %v853 = vmul.f32 %v852, %v837
    %v854 = vmul.f32 %v852, %v839
    %v855 = vmul.f32 %v852, %v841
    %v856 = vmul.f32 %v852, %v843
    %v857 = vadd.f32 %v806, %v853
    %v858 = vadd.f32 %v807, %v854
    %v859 = vadd.f32 %v808, %v855
    %v860 = vadd.f32 %v809, %v856
    %v861 = vld [vmem:[#allocation2 + $0x34] sm:$0x1]
    %v862 = vlaneseq
    %v863 = vshrl.u32 %v862, 7
    %v864 = vsub.s32 0, %v863
    %v865 = vrot.slane %v861, %v864
    %v866 = vmul.f32 %v865, %v837
    %v867 = vmul.f32 %v865, %v839
    %v868 = vmul.f32 %v865, %v841
    %v869 = vmul.f32 %v865, %v843
    %v870 = vadd.f32 %v819, %v866
    %v871 = vadd.f32 %v820, %v867
    %v872 = vadd.f32 %v821, %v868
    %v873 = vadd.f32 %v822, %v869
    %v874 = vld [vmem:[#allocation2 + $0x58] sm:$0x1]
    %v875 = vlaneseq
    %v876 = vshrl.u32 %v875, 7
    %v877 = vsub.s32 0, %v876
    %v878 = vrot.slane %v874, %v877
    %v879 = vmul.f32 %v878, %v837
    %v880 = vmul.f32 %v878, %v839
    %v881 = vmul.f32 %v878, %v841
    %v882 = vmul.f32 %v878, %v843
    %v883 = vadd.f32 %v832, %v879
    %v884 = vadd.f32 %v833, %v880
    %v885 = vadd.f32 %v834, %v881
    %v886 = vadd.f32 %v835, %v882
    %891 = vrot.lane.b32.xlu0 %v837, 96
    %v892 = vpop.permute.xlu0 %891
    %893 = vrot.lane.b32.xlu0 %v839, 96
    %v894 = vpop.permute.xlu0 %893
    %895 = vrot.lane.b32.xlu0 %v841, 96
    %v896 = vpop.permute.xlu0 %895
    %897 = vrot.lane.b32.xlu0 %v843, 96
    %v898 = vpop.permute.xlu0 %897
    %v903 = vld [vmem:[#allocation2 + $0x11] sm:$0x1]
    %v904 = vlaneseq
    %v905 = vshrl.u32 %v904, 7
    %v906 = vsub.s32 0, %v905
    %v907 = vrot.slane %v903, %v906
    %v908 = vmul.f32 %v907, %v892
    %v909 = vmul.f32 %v907, %v894
    %v910 = vmul.f32 %v907, %v896
    %v911 = vmul.f32 %v907, %v898
    %v912 = vadd.f32 %v857, %v908
    %v913 = vadd.f32 %v858, %v909
    %v914 = vadd.f32 %v859, %v910
    %v915 = vadd.f32 %v860, %v911
    %v916 = vld [vmem:[#allocation2 + $0x35] sm:$0x1]
    %v917 = vlaneseq
    %v918 = vshrl.u32 %v917, 7
    %v919 = vsub.s32 0, %v918
    %v920 = vrot.slane %v916, %v919
    %v921 = vmul.f32 %v920, %v892
    %v922 = vmul.f32 %v920, %v894
    %v923 = vmul.f32 %v920, %v896
    %v924 = vmul.f32 %v920, %v898
    %v925 = vadd.f32 %v870, %v921
    %v926 = vadd.f32 %v871, %v922
    %v927 = vadd.f32 %v872, %v923
    %v928 = vadd.f32 %v873, %v924
    %v929 = vld [vmem:[#allocation2 + $0x59] sm:$0x1]
    %v930 = vlaneseq
    %v931 = vshrl.u32 %v930, 7
    %v932 = vsub.s32 0, %v931
    %v933 = vrot.slane %v929, %v932
    %v934 = vmul.f32 %v933, %v892
    %v935 = vmul.f32 %v933, %v894
    %v936 = vmul.f32 %v933, %v896
    %v937 = vmul.f32 %v933, %v898
    %v938 = vadd.f32 %v883, %v934
    %v939 = vadd.f32 %v884, %v935
    %v940 = vadd.f32 %v885, %v936
    %v941 = vadd.f32 %v886, %v937
    %942 = vrot.lane.b32.xlu0 %v837, 64
    %v943 = vpop.permute.xlu0 %942
    %944 = vrot.lane.b32.xlu0 %v839, 64
    %v945 = vpop.permute.xlu0 %944
    %946 = vrot.lane.b32.xlu0 %v841, 64
    %v947 = vpop.permute.xlu0 %946
    %948 = vrot.lane.b32.xlu0 %v843, 64
    %v949 = vpop.permute.xlu0 %948
    %v954 = vld [vmem:[#allocation2 + $0x12] sm:$0x1]
    %v955 = vlaneseq
    %v956 = vshrl.u32 %v955, 7
    %v957 = vsub.s32 0, %v956
    %v958 = vrot.slane %v954, %v957
    %v959 = vmul.f32 %v958, %v943
    %v960 = vmul.f32 %v958, %v945
    %v961 = vmul.f32 %v958, %v947
    %v962 = vmul.f32 %v958, %v949
    %v963 = vadd.f32 %v912, %v959
    %v964 = vadd.f32 %v913, %v960
    %v965 = vadd.f32 %v914, %v961
    %v966 = vadd.f32 %v915, %v962
    %v967 = vld [vmem:[#allocation2 + $0x36] sm:$0x1]
    %v968 = vlaneseq
    %v969 = vshrl.u32 %v968, 7
    %v970 = vsub.s32 0, %v969
    %v971 = vrot.slane %v967, %v970
    %v972 = vmul.f32 %v971, %v943
    %v973 = vmul.f32 %v971, %v945
    %v974 = vmul.f32 %v971, %v947
    %v975 = vmul.f32 %v971, %v949
    %v976 = vadd.f32 %v925, %v972
    %v977 = vadd.f32 %v926, %v973
    %v978 = vadd.f32 %v927, %v974
    %v979 = vadd.f32 %v928, %v975
    %v980 = vld [vmem:[#allocation2 + $0x5a] sm:$0x1]
    %v981 = vlaneseq
    %v982 = vshrl.u32 %v981, 7
    %v983 = vsub.s32 0, %v982
    %v984 = vrot.slane %v980, %v983
    %v985 = vmul.f32 %v984, %v943
    %v986 = vmul.f32 %v984, %v945
    %v987 = vmul.f32 %v984, %v947
    %v988 = vmul.f32 %v984, %v949
    %v989 = vadd.f32 %v938, %v985
    %v990 = vadd.f32 %v939, %v986
    %v991 = vadd.f32 %v940, %v987
    %v992 = vadd.f32 %v941, %v988
    %993 = vrot.lane.b32.xlu0 %v837, 32
    %v994 = vpop.permute.xlu0 %993
    %995 = vrot.lane.b32.xlu0 %v839, 32
    %v996 = vpop.permute.xlu0 %995
    %997 = vrot.lane.b32.xlu0 %v841, 32
    %v998 = vpop.permute.xlu0 %997
    %999 = vrot.lane.b32.xlu0 %v843, 32
    %v1000 = vpop.permute.xlu0 %999
    %v1005 = vld [vmem:[#allocation2 + $0x13] sm:$0x1]
    %v1006 = vlaneseq
    %v1007 = vshrl.u32 %v1006, 7
    %v1008 = vsub.s32 0, %v1007
    %v1009 = vrot.slane %v1005, %v1008
    %v1010 = vmul.f32 %v1009, %v994
    %v1011 = vmul.f32 %v1009, %v996
    %v1012 = vmul.f32 %v1009, %v998
    %v1013 = vmul.f32 %v1009, %v1000
    %v1014 = vadd.f32 %v963, %v1010
    %v1015 = vadd.f32 %v964, %v1011
    %v1016 = vadd.f32 %v965, %v1012
    %v1017 = vadd.f32 %v966, %v1013
    %v1018 = vld [vmem:[#allocation2 + $0x37] sm:$0x1]
    %v1019 = vlaneseq
    %v1020 = vshrl.u32 %v1019, 7
    %v1021 = vsub.s32 0, %v1020
    %v1022 = vrot.slane %v1018, %v1021
    %v1023 = vmul.f32 %v1022, %v994
    %v1024 = vmul.f32 %v1022, %v996
    %v1025 = vmul.f32 %v1022, %v998
    %v1026 = vmul.f32 %v1022, %v1000
    %v1027 = vadd.f32 %v976, %v1023
    %v1028 = vadd.f32 %v977, %v1024
    %v1029 = vadd.f32 %v978, %v1025
    %v1030 = vadd.f32 %v979, %v1026
    %v1031 = vld [vmem:[#allocation2 + $0x5b] sm:$0x1]
    %v1032 = vlaneseq
    %v1033 = vshrl.u32 %v1032, 7
    %v1034 = vsub.s32 0, %v1033
    %v1035 = vrot.slane %v1031, %v1034
    %v1036 = vmul.f32 %v1035, %v994
    %v1037 = vmul.f32 %v1035, %v996
    %v1038 = vmul.f32 %v1035, %v998
    %v1039 = vmul.f32 %v1035, %v1000
    %v1040 = vadd.f32 %v989, %v1036
    %v1041 = vadd.f32 %v990, %v1037
    %v1042 = vadd.f32 %v991, %v1038
    %v1043 = vadd.f32 %v992, %v1039
    %v1044 = vld [vmem:[#allocation2 + $0x14] sm:$0x1]
    %v1045 = vlaneseq
    %v1046 = vshrl.u32 %v1045, 7
    %v1047 = vsub.s32 0, %v1046
    %v1048 = vrot.slane %v1044, %v1047
    %v1049 = vmul.f32 %v1048, %v131
    %v1050 = vmul.f32 %v1048, %v132
    %v1051 = vmul.f32 %v1048, %v197
    %v1052 = vmul.f32 %v1048, %v198
    %v1053 = vadd.f32 %v1014, %v1049
    %v1054 = vadd.f32 %v1015, %v1050
    %v1055 = vadd.f32 %v1016, %v1051
    %v1056 = vadd.f32 %v1017, %v1052
    %v1057 = vld [vmem:[#allocation2 + $0x38] sm:$0x1]
    %v1058 = vlaneseq
    %v1059 = vshrl.u32 %v1058, 7
    %v1060 = vsub.s32 0, %v1059
    %v1061 = vrot.slane %v1057, %v1060
    %v1062 = vmul.f32 %v1061, %v131
    %v1063 = vmul.f32 %v1061, %v132
    %v1064 = vmul.f32 %v1061, %v197
    %v1065 = vmul.f32 %v1061, %v198
    %v1066 = vadd.f32 %v1027, %v1062
    %v1067 = vadd.f32 %v1028, %v1063
    %v1068 = vadd.f32 %v1029, %v1064
    %v1069 = vadd.f32 %v1030, %v1065
    %v1070 = vld [vmem:[#allocation2 + $0x5c] sm:$0x1]
    %v1071 = vlaneseq
    %v1072 = vshrl.u32 %v1071, 7
    %v1073 = vsub.s32 0, %v1072
    %v1074 = vrot.slane %v1070, %v1073
    %v1075 = vmul.f32 %v1074, %v131
    %v1076 = vmul.f32 %v1074, %v132
    %v1077 = vmul.f32 %v1074, %v197
    %v1078 = vmul.f32 %v1074, %v198
    %v1079 = vadd.f32 %v1040, %v1075
    %v1080 = vadd.f32 %v1041, %v1076
    %v1081 = vadd.f32 %v1042, %v1077
    %v1082 = vadd.f32 %v1043, %v1078
    %v1083 = vld [vmem:[#allocation2] sm:$0x1]
    %v1084 = vlaneseq
    %v1085 = vshrl.u32 %v1084, 7
    %v1086 = vsub.s32 0, %v1085
    %v1087 = vrot.slane %v1083, %v1086
    %v1088 = vmul.f32 %v1087, %v131
    %v1089 = vmul.f32 %v1087, %v132
    %v1090 = vmul.f32 %v1087, %v197
    %v1091 = vmul.f32 %v1087, %v198
    %v1092 = vadd.f32 %v1088, 0.0
    %v1093 = vadd.f32 %v1089, 0.0
    %v1094 = vadd.f32 %v1090, 0.0
    %v1095 = vadd.f32 %v1091, 0.0
    %1096 = vrot.lane.b32.xlu0 %v131, 96
    %v1097 = vpop.permute.xlu0 %1096
    %1098 = vrot.lane.b32.xlu0 %v132, 96
    %v1099 = vpop.permute.xlu0 %1098
    %1100 = vrot.lane.b32.xlu0 %v197, 96
    %v1101 = vpop.permute.xlu0 %1100
    %1102 = vrot.lane.b32.xlu0 %v198, 96
    %v1103 = vpop.permute.xlu0 %1102
    %v1108 = vld [vmem:[#allocation2 + $0x15] sm:$0x1]
    %v1109 = vlaneseq
    %v1110 = vshrl.u32 %v1109, 7
    %v1111 = vsub.s32 0, %v1110
    %v1112 = vrot.slane %v1108, %v1111
    %v1113 = vmul.f32 %v1112, %v1097
    %v1114 = vmul.f32 %v1112, %v1099
    %v1115 = vmul.f32 %v1112, %v1101
    %v1116 = vmul.f32 %v1112, %v1103
    %v1117 = vadd.f32 %v1053, %v1113
    %v1118 = vadd.f32 %v1054, %v1114
    %v1119 = vadd.f32 %v1055, %v1115
    %v1120 = vadd.f32 %v1056, %v1116
    %v1121 = vld [vmem:[#allocation2 + $0x39] sm:$0x1]
    %v1122 = vlaneseq
    %v1123 = vshrl.u32 %v1122, 7
    %v1124 = vsub.s32 0, %v1123
    %v1125 = vrot.slane %v1121, %v1124
    %v1126 = vmul.f32 %v1125, %v1097
    %v1127 = vmul.f32 %v1125, %v1099
    %v1128 = vmul.f32 %v1125, %v1101
    %v1129 = vmul.f32 %v1125, %v1103
    %v1130 = vadd.f32 %v1066, %v1126
    %v1131 = vadd.f32 %v1067, %v1127
    %v1132 = vadd.f32 %v1068, %v1128
    %v1133 = vadd.f32 %v1069, %v1129
    %v1134 = vld [vmem:[#allocation2 + $0x5d] sm:$0x1]
    %v1135 = vlaneseq
    %v1136 = vshrl.u32 %v1135, 7
    %v1137 = vsub.s32 0, %v1136
    %v1138 = vrot.slane %v1134, %v1137
    %v1139 = vmul.f32 %v1138, %v1097
    %v1140 = vmul.f32 %v1138, %v1099
    %v1141 = vmul.f32 %v1138, %v1101
    %v1142 = vmul.f32 %v1138, %v1103
    %v1143 = vadd.f32 %v1079, %v1139
    %v1144 = vadd.f32 %v1080, %v1140
    %v1145 = vadd.f32 %v1081, %v1141
    %v1146 = vadd.f32 %v1082, %v1142
    %v1147 = vld [vmem:[#allocation2 + $0x1] sm:$0x1]
    %v1148 = vlaneseq
    %v1149 = vshrl.u32 %v1148, 7
    %v1150 = vsub.s32 0, %v1149
    %v1151 = vrot.slane %v1147, %v1150
    %v1152 = vmul.f32 %v1151, %v1097
    %v1153 = vmul.f32 %v1151, %v1099
    %v1154 = vmul.f32 %v1151, %v1101
    %v1155 = vmul.f32 %v1151, %v1103
    %v1156 = vadd.f32 %v1092, %v1152
    %v1157 = vadd.f32 %v1093, %v1153
    %v1158 = vadd.f32 %v1094, %v1154
    %v1159 = vadd.f32 %v1095, %v1155
    %1160 = vrot.lane.b32.xlu0 %v131, 64
    %v1161 = vpop.permute.xlu0 %1160
    %1162 = vrot.lane.b32.xlu0 %v132, 64
    %v1163 = vpop.permute.xlu0 %1162
    %1164 = vrot.lane.b32.xlu0 %v197, 64
    %v1165 = vpop.permute.xlu0 %1164
    %1166 = vrot.lane.b32.xlu0 %v198, 64
    %v1167 = vpop.permute.xlu0 %1166
    %v1172 = vld [vmem:[#allocation2 + $0x16] sm:$0x1]
    %v1173 = vlaneseq
    %v1174 = vshrl.u32 %v1173, 7
    %v1175 = vsub.s32 0, %v1174
    %v1176 = vrot.slane %v1172, %v1175
    %v1177 = vmul.f32 %v1176, %v1161
    %v1178 = vmul.f32 %v1176, %v1163
    %v1179 = vmul.f32 %v1176, %v1165
    %v1180 = vmul.f32 %v1176, %v1167
    %v1181 = vadd.f32 %v1117, %v1177
    %v1182 = vadd.f32 %v1118, %v1178
    %v1183 = vadd.f32 %v1119, %v1179
    %v1184 = vadd.f32 %v1120, %v1180
    %v1185 = vld [vmem:[#allocation2 + $0x3a] sm:$0x1]
    %v1186 = vlaneseq
    %v1187 = vshrl.u32 %v1186, 7
    %v1188 = vsub.s32 0, %v1187
    %v1189 = vrot.slane %v1185, %v1188
    %v1190 = vmul.f32 %v1189, %v1161
    %v1191 = vmul.f32 %v1189, %v1163
    %v1192 = vmul.f32 %v1189, %v1165
    %v1193 = vmul.f32 %v1189, %v1167
    %v1194 = vadd.f32 %v1130, %v1190
    %v1195 = vadd.f32 %v1131, %v1191
    %v1196 = vadd.f32 %v1132, %v1192
    %v1197 = vadd.f32 %v1133, %v1193
    %v1198 = vld [vmem:[#allocation2 + $0x5e] sm:$0x1]
    %v1199 = vlaneseq
    %v1200 = vshrl.u32 %v1199, 7
    %v1201 = vsub.s32 0, %v1200
    %v1202 = vrot.slane %v1198, %v1201
    %v1203 = vmul.f32 %v1202, %v1161
    %v1204 = vmul.f32 %v1202, %v1163
    %v1205 = vmul.f32 %v1202, %v1165
    %v1206 = vmul.f32 %v1202, %v1167
    %v1207 = vadd.f32 %v1143, %v1203
    %v1208 = vadd.f32 %v1144, %v1204
    %v1209 = vadd.f32 %v1145, %v1205
    %v1210 = vadd.f32 %v1146, %v1206
    %v1211 = vld [vmem:[#allocation2 + $0x2] sm:$0x1]
    %v1212 = vlaneseq
    %v1213 = vshrl.u32 %v1212, 7
    %v1214 = vsub.s32 0, %v1213
    %v1215 = vrot.slane %v1211, %v1214
    %v1216 = vmul.f32 %v1215, %v1161
    %v1217 = vmul.f32 %v1215, %v1163
    %v1218 = vmul.f32 %v1215, %v1165
    %v1219 = vmul.f32 %v1215, %v1167
    %v1220 = vadd.f32 %v1156, %v1216
    %v1221 = vadd.f32 %v1157, %v1217
    %v1222 = vadd.f32 %v1158, %v1218
    %v1223 = vadd.f32 %v1159, %v1219
    %1224 = vrot.lane.b32.xlu0 %v131, 32
    %v1225 = vpop.permute.xlu0 %1224
    %1226 = vrot.lane.b32.xlu0 %v132, 32
    %v1227 = vpop.permute.xlu0 %1226
    %1228 = vrot.lane.b32.xlu0 %v197, 32
    %v1229 = vpop.permute.xlu0 %1228
    %1230 = vrot.lane.b32.xlu0 %v198, 32
    %v1231 = vpop.permute.xlu0 %1230
    %v1236 = vld [vmem:[#allocation2 + $0x17] sm:$0x1]
    %v1237 = vlaneseq
    %v1238 = vshrl.u32 %v1237, 7
    %v1239 = vsub.s32 0, %v1238
    %v1240 = vrot.slane %v1236, %v1239
    %v1241 = vmul.f32 %v1240, %v1225
    %v1242 = vmul.f32 %v1240, %v1227
    %v1243 = vmul.f32 %v1240, %v1229
    %v1244 = vmul.f32 %v1240, %v1231
    %v1245 = vadd.f32 %v1181, %v1241
    %v1246 = vadd.f32 %v1182, %v1242
    %v1247 = vadd.f32 %v1183, %v1243
    %v1248 = vadd.f32 %v1184, %v1244
    %v1249 = vld [vmem:[#allocation2 + $0x3b] sm:$0x1]
    %v1250 = vlaneseq
    %v1251 = vshrl.u32 %v1250, 7
    %v1252 = vsub.s32 0, %v1251
    %v1253 = vrot.slane %v1249, %v1252
    %v1254 = vmul.f32 %v1253, %v1225
    %v1255 = vmul.f32 %v1253, %v1227
    %v1256 = vmul.f32 %v1253, %v1229
    %v1257 = vmul.f32 %v1253, %v1231
    %v1258 = vadd.f32 %v1194, %v1254
    %v1259 = vadd.f32 %v1195, %v1255
    %v1260 = vadd.f32 %v1196, %v1256
    %v1261 = vadd.f32 %v1197, %v1257
    %v1262 = vld [vmem:[#allocation2 + $0x5f] sm:$0x1]
    %v1263 = vlaneseq
    %v1264 = vshrl.u32 %v1263, 7
    %v1265 = vsub.s32 0, %v1264
    %v1266 = vrot.slane %v1262, %v1265
    %v1267 = vmul.f32 %v1266, %v1225
    %v1268 = vmul.f32 %v1266, %v1227
    %v1269 = vmul.f32 %v1266, %v1229
    %v1270 = vmul.f32 %v1266, %v1231
    %v1271 = vadd.f32 %v1207, %v1267
    %v1272 = vadd.f32 %v1208, %v1268
    %v1273 = vadd.f32 %v1209, %v1269
    %v1274 = vadd.f32 %v1210, %v1270
    %v1275 = vld [vmem:[#allocation2 + $0x3] sm:$0x1]
    %v1276 = vlaneseq
    %v1277 = vshrl.u32 %v1276, 7
    %v1278 = vsub.s32 0, %v1277
    %v1279 = vrot.slane %v1275, %v1278
    %v1280 = vmul.f32 %v1279, %v1225
    %v1281 = vmul.f32 %v1279, %v1227
    %v1282 = vmul.f32 %v1279, %v1229
    %v1283 = vmul.f32 %v1279, %v1231
    %v1284 = vadd.f32 %v1220, %v1280
    %v1285 = vadd.f32 %v1221, %v1281
    %v1286 = vadd.f32 %v1222, %v1282
    %v1287 = vadd.f32 %v1223, %v1283
    %1288 = vrot.lane.b32.xlu0 %v131, 127
    %v1289 = vpop.permute.xlu0 %1288
    %1290 = vrot.lane.b32.xlu0 %v132, 127
    %v1291 = vpop.permute.xlu0 %1290
    %1292 = vrot.lane.b32.xlu0 %v197, 127
    %v1293 = vpop.permute.xlu0 %1292
    %1294 = vrot.lane.b32.xlu0 %v198, 127
    %v1295 = vpop.permute.xlu0 %1294
    %v1300 = vld [vmem:[#allocation2 + $0x18] sm:$0x1]
    %v1301 = vlaneseq
    %v1302 = vshrl.u32 %v1301, 7
    %v1303 = vsub.s32 0, %v1302
    %v1304 = vrot.slane %v1300, %v1303
    %v1305 = vmul.f32 %v1304, %v1289
    %v1306 = vmul.f32 %v1304, %v1291
    %v1307 = vmul.f32 %v1304, %v1293
    %v1308 = vmul.f32 %v1304, %v1295
    %v1309 = vadd.f32 %v1245, %v1305
    %v1310 = vadd.f32 %v1246, %v1306
    %v1311 = vadd.f32 %v1247, %v1307
    %v1312 = vadd.f32 %v1248, %v1308
    %v1313 = vld [vmem:[#allocation2 + $0x3c] sm:$0x1]
    %v1314 = vlaneseq
    %v1315 = vshrl.u32 %v1314, 7
    %v1316 = vsub.s32 0, %v1315
    %v1317 = vrot.slane %v1313, %v1316
    %v1318 = vmul.f32 %v1317, %v1289
    %v1319 = vmul.f32 %v1317, %v1291
    %v1320 = vmul.f32 %v1317, %v1293
    %v1321 = vmul.f32 %v1317, %v1295
    %v1322 = vadd.f32 %v1258, %v1318
    %v1323 = vadd.f32 %v1259, %v1319
    %v1324 = vadd.f32 %v1260, %v1320
    %v1325 = vadd.f32 %v1261, %v1321
    %v1326 = vld [vmem:[#allocation2 + $0x60] sm:$0x1]
    %v1327 = vlaneseq
    %v1328 = vshrl.u32 %v1327, 7
    %v1329 = vsub.s32 0, %v1328
    %v1330 = vrot.slane %v1326, %v1329
    %v1331 = vmul.f32 %v1330, %v1289
    %v1332 = vmul.f32 %v1330, %v1291
    %v1333 = vmul.f32 %v1330, %v1293
    %v1334 = vmul.f32 %v1330, %v1295
    %v1335 = vadd.f32 %v1271, %v1331
    %v1336 = vadd.f32 %v1272, %v1332
    %v1337 = vadd.f32 %v1273, %v1333
    %v1338 = vadd.f32 %v1274, %v1334
    %1343 = vrot.lane.b32.xlu0 %v1289, 96
    %v1344 = vpop.permute.xlu0 %1343
    %1345 = vrot.lane.b32.xlu0 %v1291, 96
    %v1346 = vpop.permute.xlu0 %1345
    %1347 = vrot.lane.b32.xlu0 %v1293, 96
    %v1348 = vpop.permute.xlu0 %1347
    %1349 = vrot.lane.b32.xlu0 %v1295, 96
    %v1350 = vpop.permute.xlu0 %1349
    %v1355 = vld [vmem:[#allocation2 + $0x19] sm:$0x1]
    %v1356 = vlaneseq
    %v1357 = vshrl.u32 %v1356, 7
    %v1358 = vsub.s32 0, %v1357
    %v1359 = vrot.slane %v1355, %v1358
    %v1360 = vmul.f32 %v1359, %v1344
    %v1361 = vmul.f32 %v1359, %v1346
    %v1362 = vmul.f32 %v1359, %v1348
    %v1363 = vmul.f32 %v1359, %v1350
    %v1364 = vadd.f32 %v1309, %v1360
    %v1365 = vadd.f32 %v1310, %v1361
    %v1366 = vadd.f32 %v1311, %v1362
    %v1367 = vadd.f32 %v1312, %v1363
    %v1368 = vld [vmem:[#allocation2 + $0x3d] sm:$0x1]
    %v1369 = vlaneseq
    %v1370 = vshrl.u32 %v1369, 7
    %v1371 = vsub.s32 0, %v1370
    %v1372 = vrot.slane %v1368, %v1371
    %v1373 = vmul.f32 %v1372, %v1344
    %v1374 = vmul.f32 %v1372, %v1346
    %v1375 = vmul.f32 %v1372, %v1348
    %v1376 = vmul.f32 %v1372, %v1350
    %v1377 = vadd.f32 %v1322, %v1373
    %v1378 = vadd.f32 %v1323, %v1374
    %v1379 = vadd.f32 %v1324, %v1375
    %v1380 = vadd.f32 %v1325, %v1376
    %v1381 = vld [vmem:[#allocation2 + $0x61] sm:$0x1]
    %v1382 = vlaneseq
    %v1383 = vshrl.u32 %v1382, 7
    %v1384 = vsub.s32 0, %v1383
    %v1385 = vrot.slane %v1381, %v1384
    %v1386 = vmul.f32 %v1385, %v1344
    %v1387 = vmul.f32 %v1385, %v1346
    %v1388 = vmul.f32 %v1385, %v1348
    %v1389 = vmul.f32 %v1385, %v1350
    %v1390 = vadd.f32 %v1335, %v1386
    %v1391 = vadd.f32 %v1336, %v1387
    %v1392 = vadd.f32 %v1337, %v1388
    %v1393 = vadd.f32 %v1338, %v1389
    %1394 = vrot.lane.b32.xlu0 %v1289, 64
    %v1395 = vpop.permute.xlu0 %1394
    %1396 = vrot.lane.b32.xlu0 %v1291, 64
    %v1397 = vpop.permute.xlu0 %1396
    %1398 = vrot.lane.b32.xlu0 %v1293, 64
    %v1399 = vpop.permute.xlu0 %1398
    %1400 = vrot.lane.b32.xlu0 %v1295, 64
    %v1401 = vpop.permute.xlu0 %1400
    %v1406 = vld [vmem:[#allocation2 + $0x1a] sm:$0x1]
    %v1407 = vlaneseq
    %v1408 = vshrl.u32 %v1407, 7
    %v1409 = vsub.s32 0, %v1408
    %v1410 = vrot.slane %v1406, %v1409
    %v1411 = vmul.f32 %v1410, %v1395
    %v1412 = vmul.f32 %v1410, %v1397
    %v1413 = vmul.f32 %v1410, %v1399
    %v1414 = vmul.f32 %v1410, %v1401
    %v1415 = vadd.f32 %v1364, %v1411
    %v1416 = vadd.f32 %v1365, %v1412
    %v1417 = vadd.f32 %v1366, %v1413
    %v1418 = vadd.f32 %v1367, %v1414
    %v1419 = vld [vmem:[#allocation2 + $0x3e] sm:$0x1]
    %v1420 = vlaneseq
    %v1421 = vshrl.u32 %v1420, 7
    %v1422 = vsub.s32 0, %v1421
    %v1423 = vrot.slane %v1419, %v1422
    %v1424 = vmul.f32 %v1423, %v1395
    %v1425 = vmul.f32 %v1423, %v1397
    %v1426 = vmul.f32 %v1423, %v1399
    %v1427 = vmul.f32 %v1423, %v1401
    %v1428 = vadd.f32 %v1377, %v1424
    %v1429 = vadd.f32 %v1378, %v1425
    %v1430 = vadd.f32 %v1379, %v1426
    %v1431 = vadd.f32 %v1380, %v1427
    %v1432 = vld [vmem:[#allocation2 + $0x62] sm:$0x1]
    %v1433 = vlaneseq
    %v1434 = vshrl.u32 %v1433, 7
    %v1435 = vsub.s32 0, %v1434
    %v1436 = vrot.slane %v1432, %v1435
    %v1437 = vmul.f32 %v1436, %v1395
    %v1438 = vmul.f32 %v1436, %v1397
    %v1439 = vmul.f32 %v1436, %v1399
    %v1440 = vmul.f32 %v1436, %v1401
    %v1441 = vadd.f32 %v1390, %v1437
    %v1442 = vadd.f32 %v1391, %v1438
    %v1443 = vadd.f32 %v1392, %v1439
    %v1444 = vadd.f32 %v1393, %v1440
    %1445 = vrot.lane.b32.xlu0 %v1289, 32
    %v1446 = vpop.permute.xlu0 %1445
    %1447 = vrot.lane.b32.xlu0 %v1291, 32
    %v1448 = vpop.permute.xlu0 %1447
    %1449 = vrot.lane.b32.xlu0 %v1293, 32
    %v1450 = vpop.permute.xlu0 %1449
    %1451 = vrot.lane.b32.xlu0 %v1295, 32
    %v1452 = vpop.permute.xlu0 %1451
    %v1457 = vld [vmem:[#allocation2 + $0x1b] sm:$0x1]
    %v1458 = vlaneseq
    %v1459 = vshrl.u32 %v1458, 7
    %v1460 = vsub.s32 0, %v1459
    %v1461 = vrot.slane %v1457, %v1460
    %v1462 = vmul.f32 %v1461, %v1446
    %v1463 = vmul.f32 %v1461, %v1448
    %v1464 = vmul.f32 %v1461, %v1450
    %v1465 = vmul.f32 %v1461, %v1452
    %v1466 = vadd.f32 %v1415, %v1462
    %v1467 = vadd.f32 %v1416, %v1463
    %v1468 = vadd.f32 %v1417, %v1464
    %v1469 = vadd.f32 %v1418, %v1465
    %v1470 = vld [vmem:[#allocation2 + $0x3f] sm:$0x1]
    %v1471 = vlaneseq
    %v1472 = vshrl.u32 %v1471, 7
    %v1473 = vsub.s32 0, %v1472
    %v1474 = vrot.slane %v1470, %v1473
    %v1475 = vmul.f32 %v1474, %v1446
    %v1476 = vmul.f32 %v1474, %v1448
    %v1477 = vmul.f32 %v1474, %v1450
    %v1478 = vmul.f32 %v1474, %v1452
    %v1479 = vadd.f32 %v1428, %v1475
    %v1480 = vadd.f32 %v1429, %v1476
    %v1481 = vadd.f32 %v1430, %v1477
    %v1482 = vadd.f32 %v1431, %v1478
    %v1483 = vld [vmem:[#allocation2 + $0x63] sm:$0x1]
    %v1484 = vlaneseq
    %v1485 = vshrl.u32 %v1484, 7
    %v1486 = vsub.s32 0, %v1485
    %v1487 = vrot.slane %v1483, %v1486
    %v1488 = vmul.f32 %v1487, %v1446
    %v1489 = vmul.f32 %v1487, %v1448
    %v1490 = vmul.f32 %v1487, %v1450
    %v1491 = vmul.f32 %v1487, %v1452
    %v1492 = vadd.f32 %v1441, %v1488
    %v1493 = vadd.f32 %v1442, %v1489
    %v1494 = vadd.f32 %v1443, %v1490
    %v1495 = vadd.f32 %v1444, %v1491
    %vm1496 = vcmask 1046528
    %v1497 = vrot.slane %v131, 1
    %v1498 = vrot.slane %v132, 1
    %v1499 = vsel %vm1496, %v1497, %v1498
    %v1500 = vrot.slane %v197, 1
    %v1501 = vsel %vm1496, %v1498, %v1500
    %v1502 = vrot.slane %v198, 1
    %v1503 = vsel %vm1496, %v1500, %v1502
    %v1508 = vsel %vm1496, %v1502, 0.0
    %vm1509 = vcmp.lt.s32.totalorder %v45, 15
    %vm1510 = vcmp.lt.s32.totalorder %v46, 15
    %vm1511 = vcmp.lt.s32.totalorder %v47, 15
    %vm1512 = vcmp.lt.s32.totalorder %v48, 15
    %v1513 = vsel %vm1509, %v1499, 0.0
    %v1514 = vsel %vm1510, %v1501, 0.0
    %v1515 = vsel %vm1511, %v1503, 0.0
    %v1516 = vsel %vm1512, %v1508, 0.0
    %1521 = vrot.lane.b32.xlu0 %v1513, 1
    %v1522 = vpop.permute.xlu0 %1521
    %1523 = vrot.lane.b32.xlu0 %v1514, 1
    %v1524 = vpop.permute.xlu0 %1523
    %1525 = vrot.lane.b32.xlu0 %v1515, 1
    %v1526 = vpop.permute.xlu0 %1525
    %1527 = vrot.lane.b32.xlu0 %v1516, 1
    %v1528 = vpop.permute.xlu0 %1527
    %v1533 = vld [vmem:[#allocation2 + $0x1c] sm:$0x1]
    %v1534 = vlaneseq
    %v1535 = vshrl.u32 %v1534, 7
    %v1536 = vsub.s32 0, %v1535
    %v1537 = vrot.slane %v1533, %v1536
    %v1538 = vmul.f32 %v1537, %v1522
    %v1539 = vmul.f32 %v1537, %v1524
    %v1540 = vmul.f32 %v1537, %v1526
    %v1541 = vmul.f32 %v1537, %v1528
    %v1542 = vadd.f32 %v1466, %v1538
    %v1543 = vadd.f32 %v1467, %v1539
    %v1544 = vadd.f32 %v1468, %v1540
    %v1545 = vadd.f32 %v1469, %v1541
    %v1546 = vld [vmem:[#allocation2 + $0x40] sm:$0x1]
    %v1547 = vlaneseq
    %v1548 = vshrl.u32 %v1547, 7
    %v1549 = vsub.s32 0, %v1548
    %v1550 = vrot.slane %v1546, %v1549
    %v1551 = vmul.f32 %v1550, %v1522
    %v1552 = vmul.f32 %v1550, %v1524
    %v1553 = vmul.f32 %v1550, %v1526
    %v1554 = vmul.f32 %v1550, %v1528
    %v1555 = vadd.f32 %v1479, %v1551
    %v1556 = vadd.f32 %v1480, %v1552
    %v1557 = vadd.f32 %v1481, %v1553
    %v1558 = vadd.f32 %v1482, %v1554
    %v1559 = vld [vmem:[#allocation2 + $0x64] sm:$0x1]
    %v1560 = vlaneseq
    %v1561 = vshrl.u32 %v1560, 7
    %v1562 = vsub.s32 0, %v1561
    %v1563 = vrot.slane %v1559, %v1562
    %v1564 = vmul.f32 %v1563, %v1522
    %v1565 = vmul.f32 %v1563, %v1524
    %v1566 = vmul.f32 %v1563, %v1526
    %v1567 = vmul.f32 %v1563, %v1528
    %v1568 = vadd.f32 %v1492, %v1564
    %v1569 = vadd.f32 %v1493, %v1565
    %v1570 = vadd.f32 %v1494, %v1566
    %v1571 = vadd.f32 %v1495, %v1567
    %1576 = vrot.lane.b32.xlu0 %v1522, 96
    %v1577 = vpop.permute.xlu0 %1576
    %1578 = vrot.lane.b32.xlu0 %v1524, 96
    %v1579 = vpop.permute.xlu0 %1578
    %1580 = vrot.lane.b32.xlu0 %v1526, 96
    %v1581 = vpop.permute.xlu0 %1580
    %1582 = vrot.lane.b32.xlu0 %v1528, 96
    %v1583 = vpop.permute.xlu0 %1582
    %v1588 = vld [vmem:[#allocation2 + $0x1d] sm:$0x1]
    %v1589 = vlaneseq
    %v1590 = vshrl.u32 %v1589, 7
    %v1591 = vsub.s32 0, %v1590
    %v1592 = vrot.slane %v1588, %v1591
    %v1593 = vmul.f32 %v1592, %v1577
    %v1594 = vmul.f32 %v1592, %v1579
    %v1595 = vmul.f32 %v1592, %v1581
    %v1596 = vmul.f32 %v1592, %v1583
    %v1597 = vadd.f32 %v1542, %v1593
    %v1598 = vadd.f32 %v1543, %v1594
    %v1599 = vadd.f32 %v1544, %v1595
    %v1600 = vadd.f32 %v1545, %v1596
    %v1601 = vld [vmem:[#allocation2 + $0x41] sm:$0x1]
    %v1602 = vlaneseq
    %v1603 = vshrl.u32 %v1602, 7
    %v1604 = vsub.s32 0, %v1603
    %v1605 = vrot.slane %v1601, %v1604
    %v1606 = vmul.f32 %v1605, %v1577
    %v1607 = vmul.f32 %v1605, %v1579
    %v1608 = vmul.f32 %v1605, %v1581
    %v1609 = vmul.f32 %v1605, %v1583
    %v1610 = vadd.f32 %v1555, %v1606
    %v1611 = vadd.f32 %v1556, %v1607
    %v1612 = vadd.f32 %v1557, %v1608
    %v1613 = vadd.f32 %v1558, %v1609
    %v1614 = vld [vmem:[#allocation2 + $0x65] sm:$0x1]
    %v1615 = vlaneseq
    %v1616 = vshrl.u32 %v1615, 7
    %v1617 = vsub.s32 0, %v1616
    %v1618 = vrot.slane %v1614, %v1617
    %v1619 = vmul.f32 %v1618, %v1577
    %v1620 = vmul.f32 %v1618, %v1579
    %v1621 = vmul.f32 %v1618, %v1581
    %v1622 = vmul.f32 %v1618, %v1583
    %v1623 = vadd.f32 %v1568, %v1619
    %v1624 = vadd.f32 %v1569, %v1620
    %v1625 = vadd.f32 %v1570, %v1621
    %v1626 = vadd.f32 %v1571, %v1622
    %1627 = vrot.lane.b32.xlu0 %v1522, 64
    %v1628 = vpop.permute.xlu0 %1627
    %1629 = vrot.lane.b32.xlu0 %v1524, 64
    %v1630 = vpop.permute.xlu0 %1629
    %1631 = vrot.lane.b32.xlu0 %v1526, 64
    %v1632 = vpop.permute.xlu0 %1631
    %1633 = vrot.lane.b32.xlu0 %v1528, 64
    %v1634 = vpop.permute.xlu0 %1633
    %v1639 = vld [vmem:[#allocation2 + $0x1e] sm:$0x1]
    %v1640 = vlaneseq
    %v1641 = vshrl.u32 %v1640, 7
    %v1642 = vsub.s32 0, %v1641
    %v1643 = vrot.slane %v1639, %v1642
    %v1644 = vmul.f32 %v1643, %v1628
    %v1645 = vmul.f32 %v1643, %v1630
    %v1646 = vmul.f32 %v1643, %v1632
    %v1647 = vmul.f32 %v1643, %v1634
    %v1648 = vadd.f32 %v1597, %v1644
    %v1649 = vadd.f32 %v1598, %v1645
    %v1650 = vadd.f32 %v1599, %v1646
    %v1651 = vadd.f32 %v1600, %v1647
    %v1652 = vld [vmem:[#allocation2 + $0x42] sm:$0x1]
    %v1653 = vlaneseq
    %v1654 = vshrl.u32 %v1653, 7
    %v1655 = vsub.s32 0, %v1654
    %v1656 = vrot.slane %v1652, %v1655
    %v1657 = vmul.f32 %v1656, %v1628
    %v1658 = vmul.f32 %v1656, %v1630
    %v1659 = vmul.f32 %v1656, %v1632
    %v1660 = vmul.f32 %v1656, %v1634
    %v1661 = vadd.f32 %v1610, %v1657
    %v1662 = vadd.f32 %v1611, %v1658
    %v1663 = vadd.f32 %v1612, %v1659
    %v1664 = vadd.f32 %v1613, %v1660
    %v1665 = vld [vmem:[#allocation2 + $0x66] sm:$0x1]
    %v1666 = vlaneseq
    %v1667 = vshrl.u32 %v1666, 7
    %v1668 = vsub.s32 0, %v1667
    %v1669 = vrot.slane %v1665, %v1668
    %v1670 = vmul.f32 %v1669, %v1628
    %v1671 = vmul.f32 %v1669, %v1630
    %v1672 = vmul.f32 %v1669, %v1632
    %v1673 = vmul.f32 %v1669, %v1634
    %v1674 = vadd.f32 %v1623, %v1670
    %v1675 = vadd.f32 %v1624, %v1671
    %v1676 = vadd.f32 %v1625, %v1672
    %v1677 = vadd.f32 %v1626, %v1673
    %1678 = vrot.lane.b32.xlu0 %v1522, 32
    %v1679 = vpop.permute.xlu0 %1678
    %1680 = vrot.lane.b32.xlu0 %v1524, 32
    %v1681 = vpop.permute.xlu0 %1680
    %1682 = vrot.lane.b32.xlu0 %v1526, 32
    %v1683 = vpop.permute.xlu0 %1682
    %1684 = vrot.lane.b32.xlu0 %v1528, 32
    %v1685 = vpop.permute.xlu0 %1684
    %v1690 = vld [vmem:[#allocation2 + $0x1f] sm:$0x1]
    %v1691 = vlaneseq
    %v1692 = vshrl.u32 %v1691, 7
    %v1693 = vsub.s32 0, %v1692
    %v1694 = vrot.slane %v1690, %v1693
    %v1695 = vmul.f32 %v1694, %v1679
    %v1696 = vmul.f32 %v1694, %v1681
    %v1697 = vmul.f32 %v1694, %v1683
    %v1698 = vmul.f32 %v1694, %v1685
    %v1699 = vadd.f32 %v1648, %v1695
    %v1700 = vadd.f32 %v1649, %v1696
    %v1701 = vadd.f32 %v1650, %v1697
    %v1702 = vadd.f32 %v1651, %v1698
    %v1703 = vld [vmem:[#allocation2 + $0x43] sm:$0x1]
    %v1704 = vlaneseq
    %v1705 = vshrl.u32 %v1704, 7
    %v1706 = vsub.s32 0, %v1705
    %v1707 = vrot.slane %v1703, %v1706
    %v1708 = vmul.f32 %v1707, %v1679
    %v1709 = vmul.f32 %v1707, %v1681
    %v1710 = vmul.f32 %v1707, %v1683
    %v1711 = vmul.f32 %v1707, %v1685
    %v1712 = vadd.f32 %v1661, %v1708
    %v1713 = vadd.f32 %v1662, %v1709
    %v1714 = vadd.f32 %v1663, %v1710
    %v1715 = vadd.f32 %v1664, %v1711
    %v1716 = vld [vmem:[#allocation2 + $0x67] sm:$0x1]
    %v1717 = vlaneseq
    %v1718 = vshrl.u32 %v1717, 7
    %v1719 = vsub.s32 0, %v1718
    %v1720 = vrot.slane %v1716, %v1719
    %v1721 = vmul.f32 %v1720, %v1679
    %v1722 = vmul.f32 %v1720, %v1681
    %v1723 = vmul.f32 %v1720, %v1683
    %v1724 = vmul.f32 %v1720, %v1685
    %v1725 = vadd.f32 %v1674, %v1721
    %v1726 = vadd.f32 %v1675, %v1722
    %v1727 = vadd.f32 %v1676, %v1723
    %v1728 = vadd.f32 %v1677, %v1724
    %v1729 = vld [vmem:[#allocation2 + $0x20] sm:$0x1]
    %v1730 = vlaneseq
    %v1731 = vshrl.u32 %v1730, 7
    %v1732 = vsub.s32 0, %v1731
    %v1733 = vrot.slane %v1729, %v1732
    %v1734 = vmul.f32 %v1733, %v1513
    %v1735 = vmul.f32 %v1733, %v1514
    %v1736 = vmul.f32 %v1733, %v1515
    %v1737 = vmul.f32 %v1733, %v1516
    %v1738 = vadd.f32 %v1699, %v1734
    %v1739 = vadd.f32 %v1700, %v1735
    %v1740 = vadd.f32 %v1701, %v1736
    %v1741 = vadd.f32 %v1702, %v1737
    %v1742 = vld [vmem:[#allocation2 + $0x44] sm:$0x1]
    %v1743 = vlaneseq
    %v1744 = vshrl.u32 %v1743, 7
    %v1745 = vsub.s32 0, %v1744
    %v1746 = vrot.slane %v1742, %v1745
    %v1747 = vmul.f32 %v1746, %v1513
    %v1748 = vmul.f32 %v1746, %v1514
    %v1749 = vmul.f32 %v1746, %v1515
    %v1750 = vmul.f32 %v1746, %v1516
    %v1751 = vadd.f32 %v1712, %v1747
    %v1752 = vadd.f32 %v1713, %v1748
    %v1753 = vadd.f32 %v1714, %v1749
    %v1754 = vadd.f32 %v1715, %v1750
    %v1755 = vld [vmem:[#allocation2 + $0x68] sm:$0x1]
    %v1756 = vlaneseq
    %v1757 = vshrl.u32 %v1756, 7
    %v1758 = vsub.s32 0, %v1757
    %v1759 = vrot.slane %v1755, %v1758
    %v1760 = vmul.f32 %v1759, %v1513
    %v1761 = vmul.f32 %v1759, %v1514
    %v1762 = vmul.f32 %v1759, %v1515
    %v1763 = vmul.f32 %v1759, %v1516
    %v1764 = vadd.f32 %v1725, %v1760
    %v1765 = vadd.f32 %v1726, %v1761
    %v1766 = vadd.f32 %v1727, %v1762
    %v1767 = vadd.f32 %v1728, %v1763
    %1768 = vrot.lane.b32.xlu0 %v1513, 96
    %v1769 = vpop.permute.xlu0 %1768
    %1770 = vrot.lane.b32.xlu0 %v1514, 96
    %v1771 = vpop.permute.xlu0 %1770
    %1772 = vrot.lane.b32.xlu0 %v1515, 96
    %v1773 = vpop.permute.xlu0 %1772
    %1774 = vrot.lane.b32.xlu0 %v1516, 96
    %v1775 = vpop.permute.xlu0 %1774
    %v1780 = vld [vmem:[#allocation2 + $0x21] sm:$0x1]
    %v1781 = vlaneseq
    %v1782 = vshrl.u32 %v1781, 7
    %v1783 = vsub.s32 0, %v1782
    %v1784 = vrot.slane %v1780, %v1783
    %v1785 = vmul.f32 %v1784, %v1769
    %v1786 = vmul.f32 %v1784, %v1771
    %v1787 = vmul.f32 %v1784, %v1773
    %v1788 = vmul.f32 %v1784, %v1775
    %v1789 = vadd.f32 %v1738, %v1785
    %v1790 = vadd.f32 %v1739, %v1786
    %v1791 = vadd.f32 %v1740, %v1787
    %v1792 = vadd.f32 %v1741, %v1788
    %v1793 = vld [vmem:[#allocation2 + $0x45] sm:$0x1]
    %v1794 = vlaneseq
    %v1795 = vshrl.u32 %v1794, 7
    %v1796 = vsub.s32 0, %v1795
    %v1797 = vrot.slane %v1793, %v1796
    %v1798 = vmul.f32 %v1797, %v1769
    %v1799 = vmul.f32 %v1797, %v1771
    %v1800 = vmul.f32 %v1797, %v1773
    %v1801 = vmul.f32 %v1797, %v1775
    %v1802 = vadd.f32 %v1751, %v1798
    %v1803 = vadd.f32 %v1752, %v1799
    %v1804 = vadd.f32 %v1753, %v1800
    %v1805 = vadd.f32 %v1754, %v1801
    %v1806 = vld [vmem:[#allocation2 + $0x69] sm:$0x1]
    %v1807 = vlaneseq
    %v1808 = vshrl.u32 %v1807, 7
    %v1809 = vsub.s32 0, %v1808
    %v1810 = vrot.slane %v1806, %v1809
    %v1811 = vmul.f32 %v1810, %v1769
    %v1812 = vmul.f32 %v1810, %v1771
    %v1813 = vmul.f32 %v1810, %v1773
    %v1814 = vmul.f32 %v1810, %v1775
    %v1815 = vadd.f32 %v1764, %v1811
    %v1816 = vadd.f32 %v1765, %v1812
    %v1817 = vadd.f32 %v1766, %v1813
    %v1818 = vadd.f32 %v1767, %v1814
    %1819 = vrot.lane.b32.xlu0 %v1513, 64
    %v1820 = vpop.permute.xlu0 %1819
    %1821 = vrot.lane.b32.xlu0 %v1514, 64
    %v1822 = vpop.permute.xlu0 %1821
    %1823 = vrot.lane.b32.xlu0 %v1515, 64
    %v1824 = vpop.permute.xlu0 %1823
    %1825 = vrot.lane.b32.xlu0 %v1516, 64
    %v1826 = vpop.permute.xlu0 %1825
    %v1831 = vld [vmem:[#allocation2 + $0x22] sm:$0x1]
    %v1832 = vlaneseq
    %v1833 = vshrl.u32 %v1832, 7
    %v1834 = vsub.s32 0, %v1833
    %v1835 = vrot.slane %v1831, %v1834
    %v1836 = vmul.f32 %v1835, %v1820
    %v1837 = vmul.f32 %v1835, %v1822
    %v1838 = vmul.f32 %v1835, %v1824
    %v1839 = vmul.f32 %v1835, %v1826
    %v1840 = vadd.f32 %v1789, %v1836
    %v1841 = vadd.f32 %v1790, %v1837
    %v1842 = vadd.f32 %v1791, %v1838
    %v1843 = vadd.f32 %v1792, %v1839
    %v1844 = vld [vmem:[#allocation2 + $0x46] sm:$0x1]
    %v1845 = vlaneseq
    %v1846 = vshrl.u32 %v1845, 7
    %v1847 = vsub.s32 0, %v1846
    %v1848 = vrot.slane %v1844, %v1847
    %v1849 = vmul.f32 %v1848, %v1820
    %v1850 = vmul.f32 %v1848, %v1822
    %v1851 = vmul.f32 %v1848, %v1824
    %v1852 = vmul.f32 %v1848, %v1826
    %v1853 = vadd.f32 %v1802, %v1849
    %v1854 = vadd.f32 %v1803, %v1850
    %v1855 = vadd.f32 %v1804, %v1851
    %v1856 = vadd.f32 %v1805, %v1852
    %v1857 = vld [vmem:[#allocation2 + $0x6a] sm:$0x1]
    %v1858 = vlaneseq
    %v1859 = vshrl.u32 %v1858, 7
    %v1860 = vsub.s32 0, %v1859
    %v1861 = vrot.slane %v1857, %v1860
    %v1862 = vmul.f32 %v1861, %v1820
    %v1863 = vmul.f32 %v1861, %v1822
    %v1864 = vmul.f32 %v1861, %v1824
    %v1865 = vmul.f32 %v1861, %v1826
    %v1866 = vadd.f32 %v1815, %v1862
    %v1867 = vadd.f32 %v1816, %v1863
    %v1868 = vadd.f32 %v1817, %v1864
    %v1869 = vadd.f32 %v1818, %v1865
    %1870 = vrot.lane.b32.xlu0 %v1513, 32
    %v1871 = vpop.permute.xlu0 %1870
    %1872 = vrot.lane.b32.xlu0 %v1514, 32
    %v1873 = vpop.permute.xlu0 %1872
    %1874 = vrot.lane.b32.xlu0 %v1515, 32
    %v1875 = vpop.permute.xlu0 %1874
    %1876 = vrot.lane.b32.xlu0 %v1516, 32
    %v1877 = vpop.permute.xlu0 %1876
    %v1882 = vld [vmem:[#allocation2 + $0x23] sm:$0x1]
    %v1883 = vlaneseq
    %v1884 = vshrl.u32 %v1883, 7
    %v1885 = vsub.s32 0, %v1884
    %v1886 = vrot.slane %v1882, %v1885
    %v1887 = vmul.f32 %v1886, %v1871
    %v1888 = vmul.f32 %v1886, %v1873
    %v1889 = vmul.f32 %v1886, %v1875
    %v1890 = vmul.f32 %v1886, %v1877
    %v1891 = vadd.f32 %v1840, %v1887
    %v1892 = vadd.f32 %v1841, %v1888
    %v1893 = vadd.f32 %v1842, %v1889
    %v1894 = vadd.f32 %v1843, %v1890
    %v1895 = vld [vmem:[#allocation2 + $0x47] sm:$0x1]
    %v1896 = vlaneseq
    %v1897 = vshrl.u32 %v1896, 7
    %v1898 = vsub.s32 0, %v1897
    %v1899 = vrot.slane %v1895, %v1898
    %v1900 = vmul.f32 %v1899, %v1871
    %v1901 = vmul.f32 %v1899, %v1873
    %v1902 = vmul.f32 %v1899, %v1875
    %v1903 = vmul.f32 %v1899, %v1877
    %v1904 = vadd.f32 %v1853, %v1900
    %v1905 = vadd.f32 %v1854, %v1901
    %v1906 = vadd.f32 %v1855, %v1902
    %v1907 = vadd.f32 %v1856, %v1903
    %v1908 = vld [vmem:[#allocation2 + $0x6b] sm:$0x1]
    %v1909 = vlaneseq
    %v1910 = vshrl.u32 %v1909, 7
    %v1911 = vsub.s32 0, %v1910
    %v1912 = vrot.slane %v1908, %v1911
    %v1913 = vmul.f32 %v1912, %v1871
    %v1914 = vmul.f32 %v1912, %v1873
    %v1915 = vmul.f32 %v1912, %v1875
    %v1916 = vmul.f32 %v1912, %v1877
    %v1917 = vadd.f32 %v1866, %v1913
    %v1918 = vadd.f32 %v1867, %v1914
    %v1919 = vadd.f32 %v1868, %v1915
    %v1920 = vadd.f32 %v1869, %v1916
    %1921 = vrot.lane.b32.xlu0 %v1513, 127
    %v1922 = vpop.permute.xlu0 %1921
    %1923 = vrot.lane.b32.xlu0 %v1514, 127
    %v1924 = vpop.permute.xlu0 %1923
    %1925 = vrot.lane.b32.xlu0 %v1515, 127
    %v1926 = vpop.permute.xlu0 %1925
    %1927 = vrot.lane.b32.xlu0 %v1516, 127
    %v1928 = vpop.permute.xlu0 %1927
    %v1933 = vld [vmem:[#allocation2 + $0x24] sm:$0x1]
    %v1934 = vlaneseq
    %v1935 = vshrl.u32 %v1934, 7
    %v1936 = vsub.s32 0, %v1935
    %v1937 = vrot.slane %v1933, %v1936
    %v1938 = vmul.f32 %v1937, %v1922
    %v1939 = vmul.f32 %v1937, %v1924
    %v1940 = vmul.f32 %v1937, %v1926
    %v1941 = vmul.f32 %v1937, %v1928
    %v1942 = vadd.f32 %v1891, %v1938
    %v1943 = vadd.f32 %v1892, %v1939
    %v1944 = vadd.f32 %v1893, %v1940
    %v1945 = vadd.f32 %v1894, %v1941
    %v1946 = vld [vmem:[#allocation2 + $0x48] sm:$0x1]
    %v1947 = vlaneseq
    %v1948 = vshrl.u32 %v1947, 7
    %v1949 = vsub.s32 0, %v1948
    %v1950 = vrot.slane %v1946, %v1949
    %v1951 = vmul.f32 %v1950, %v1922
    %v1952 = vmul.f32 %v1950, %v1924
    %v1953 = vmul.f32 %v1950, %v1926
    %v1954 = vmul.f32 %v1950, %v1928
    %v1955 = vadd.f32 %v1904, %v1951
    %v1956 = vadd.f32 %v1905, %v1952
    %v1957 = vadd.f32 %v1906, %v1953
    %v1958 = vadd.f32 %v1907, %v1954
    %v1959 = vld [vmem:[#allocation2 + $0x6c] sm:$0x1]
    %v1960 = vlaneseq
    %v1961 = vshrl.u32 %v1960, 7
    %v1962 = vsub.s32 0, %v1961
    %v1963 = vrot.slane %v1959, %v1962
    %v1964 = vmul.f32 %v1963, %v1922
    %v1965 = vmul.f32 %v1963, %v1924
    %v1966 = vmul.f32 %v1963, %v1926
    %v1967 = vmul.f32 %v1963, %v1928
    %v1968 = vadd.f32 %v1917, %v1964
    %v1969 = vadd.f32 %v1918, %v1965
    %v1970 = vadd.f32 %v1919, %v1966
    %v1971 = vadd.f32 %v1920, %v1967
    %1976 = vrot.lane.b32.xlu0 %v1922, 96
    %v1977 = vpop.permute.xlu0 %1976
    %1978 = vrot.lane.b32.xlu0 %v1924, 96
    %v1979 = vpop.permute.xlu0 %1978
    %1980 = vrot.lane.b32.xlu0 %v1926, 96
    %v1981 = vpop.permute.xlu0 %1980
    %1982 = vrot.lane.b32.xlu0 %v1928, 96
    %v1983 = vpop.permute.xlu0 %1982
    %v1988 = vld [vmem:[#allocation2 + $0x25] sm:$0x1]
    %v1989 = vlaneseq
    %v1990 = vshrl.u32 %v1989, 7
    %v1991 = vsub.s32 0, %v1990
    %v1992 = vrot.slane %v1988, %v1991
    %v1993 = vmul.f32 %v1992, %v1977
    %v1994 = vmul.f32 %v1992, %v1979
    %v1995 = vmul.f32 %v1992, %v1981
    %v1996 = vmul.f32 %v1992, %v1983
    %v1997 = vadd.f32 %v1942, %v1993
    %v1998 = vadd.f32 %v1943, %v1994
    %v1999 = vadd.f32 %v1944, %v1995
    %v2000 = vadd.f32 %v1945, %v1996
    %v2001 = vld [vmem:[#allocation2 + $0x49] sm:$0x1]
    %v2002 = vlaneseq
    %v2003 = vshrl.u32 %v2002, 7
    %v2004 = vsub.s32 0, %v2003
    %v2005 = vrot.slane %v2001, %v2004
    %v2006 = vmul.f32 %v2005, %v1977
    %v2007 = vmul.f32 %v2005, %v1979
    %v2008 = vmul.f32 %v2005, %v1981
    %v2009 = vmul.f32 %v2005, %v1983
    %v2010 = vadd.f32 %v1955, %v2006
    %v2011 = vadd.f32 %v1956, %v2007
    %v2012 = vadd.f32 %v1957, %v2008
    %v2013 = vadd.f32 %v1958, %v2009
    %v2014 = vld [vmem:[#allocation2 + $0x6d] sm:$0x1]
    %v2015 = vlaneseq
    %v2016 = vshrl.u32 %v2015, 7
    %v2017 = vsub.s32 0, %v2016
    %v2018 = vrot.slane %v2014, %v2017
    %v2019 = vmul.f32 %v2018, %v1977
    %v2020 = vmul.f32 %v2018, %v1979
    %v2021 = vmul.f32 %v2018, %v1981
    %v2022 = vmul.f32 %v2018, %v1983
    %v2023 = vadd.f32 %v1968, %v2019
    %v2024 = vadd.f32 %v1969, %v2020
    %v2025 = vadd.f32 %v1970, %v2021
    %v2026 = vadd.f32 %v1971, %v2022
    %2027 = vrot.lane.b32.xlu0 %v1922, 64
    %v2028 = vpop.permute.xlu0 %2027
    %2029 = vrot.lane.b32.xlu0 %v1924, 64
    %v2030 = vpop.permute.xlu0 %2029
    %2031 = vrot.lane.b32.xlu0 %v1926, 64
    %v2032 = vpop.permute.xlu0 %2031
    %2033 = vrot.lane.b32.xlu0 %v1928, 64
    %v2034 = vpop.permute.xlu0 %2033
    %v2039 = vld [vmem:[#allocation2 + $0x26] sm:$0x1]
    %v2040 = vlaneseq
    %v2041 = vshrl.u32 %v2040, 7
    %v2042 = vsub.s32 0, %v2041
    %v2043 = vrot.slane %v2039, %v2042
    %v2044 = vmul.f32 %v2043, %v2028
    %v2045 = vmul.f32 %v2043, %v2030
    %v2046 = vmul.f32 %v2043, %v2032
    %v2047 = vmul.f32 %v2043, %v2034
    %v2048 = vadd.f32 %v1997, %v2044
    %v2049 = vadd.f32 %v1998, %v2045
    %v2050 = vadd.f32 %v1999, %v2046
    %v2051 = vadd.f32 %v2000, %v2047
    %v2052 = vld [vmem:[#allocation2 + $0x4a] sm:$0x1]
    %v2053 = vlaneseq
    %v2054 = vshrl.u32 %v2053, 7
    %v2055 = vsub.s32 0, %v2054
    %v2056 = vrot.slane %v2052, %v2055
    %v2057 = vmul.f32 %v2056, %v2028
    %v2058 = vmul.f32 %v2056, %v2030
    %v2059 = vmul.f32 %v2056, %v2032
    %v2060 = vmul.f32 %v2056, %v2034
    %v2061 = vadd.f32 %v2010, %v2057
    %v2062 = vadd.f32 %v2011, %v2058
    %v2063 = vadd.f32 %v2012, %v2059
    %v2064 = vadd.f32 %v2013, %v2060
    %v2065 = vld [vmem:[#allocation2 + $0x6e] sm:$0x1]
    %v2066 = vlaneseq
    %v2067 = vshrl.u32 %v2066, 7
    %v2068 = vsub.s32 0, %v2067
    %v2069 = vrot.slane %v2065, %v2068
    %v2070 = vmul.f32 %v2069, %v2028
    %v2071 = vmul.f32 %v2069, %v2030
    %v2072 = vmul.f32 %v2069, %v2032
    %v2073 = vmul.f32 %v2069, %v2034
    %v2074 = vadd.f32 %v2023, %v2070
    %v2075 = vadd.f32 %v2024, %v2071
    %v2076 = vadd.f32 %v2025, %v2072
    %v2077 = vadd.f32 %v2026, %v2073
    %2078 = vrot.lane.b32.xlu0 %v1922, 32
    %v2079 = vpop.permute.xlu0 %2078
    %2080 = vrot.lane.b32.xlu0 %v1924, 32
    %v2081 = vpop.permute.xlu0 %2080
    %2082 = vrot.lane.b32.xlu0 %v1926, 32
    %v2083 = vpop.permute.xlu0 %2082
    %2084 = vrot.lane.b32.xlu0 %v1928, 32
    %v2085 = vpop.permute.xlu0 %2084
    %v2090 = vld [vmem:[#allocation2 + $0x27] sm:$0x1]
    %v2091 = vlaneseq
    %v2092 = vshrl.u32 %v2091, 7
    %v2093 = vsub.s32 0, %v2092
    %v2094 = vrot.slane %v2090, %v2093
    %v2095 = vmul.f32 %v2094, %v2079
    %v2096 = vmul.f32 %v2094, %v2081
    %v2097 = vmul.f32 %v2094, %v2083
    %v2098 = vmul.f32 %v2094, %v2085
    %v2099 = vadd.f32 %v2048, %v2095
    %v2100 = vadd.f32 %v2049, %v2096
    %v2101 = vadd.f32 %v2050, %v2097
    %v2102 = vadd.f32 %v2051, %v2098
    %v2103 = vld [vmem:[#allocation2 + $0x4b] sm:$0x1]
    %v2104 = vlaneseq
    %v2105 = vshrl.u32 %v2104, 7
    %v2106 = vsub.s32 0, %v2105
    %v2107 = vrot.slane %v2103, %v2106
    %v2108 = vmul.f32 %v2107, %v2079
    %v2109 = vmul.f32 %v2107, %v2081
    %v2110 = vmul.f32 %v2107, %v2083
    %v2111 = vmul.f32 %v2107, %v2085
    %v2112 = vadd.f32 %v2061, %v2108
    %v2113 = vadd.f32 %v2062, %v2109
    %v2114 = vadd.f32 %v2063, %v2110
    %v2115 = vadd.f32 %v2064, %v2111
    %v2116 = vld [vmem:[#allocation2 + $0x6f] sm:$0x1]
    %v2117 = vlaneseq
    %v2118 = vshrl.u32 %v2117, 7
    %v2119 = vsub.s32 0, %v2118
    %v2120 = vrot.slane %v2116, %v2119
    %v2121 = vmul.f32 %v2120, %v2079
    %v2122 = vmul.f32 %v2120, %v2081
    %v2123 = vmul.f32 %v2120, %v2083
    %v2124 = vmul.f32 %v2120, %v2085
    %v2125 = vadd.f32 %v2074, %v2121
    %v2126 = vadd.f32 %v2075, %v2122
    %v2127 = vadd.f32 %v2076, %v2123
    %v2128 = vadd.f32 %v2077, %v2124
    %v2129 = vld [vmem:[#allocation2 + $0x70] sm:$0x1]
    %v2130 = vlaneseq
    %v2131 = vshrl.u32 %v2130, 7
    %v2132 = vsub.s32 0, %v2131
    %v2133 = vrot.slane %v2129, %v2132
    %v2134 = vadd.f32 %v2099, %v2133
    %v2135 = vadd.f32 %v2100, %v2133
    %v2136 = vadd.f32 %v2101, %v2133
    %v2137 = vadd.f32 %v2102, %v2133
    %v2138 = vld [vmem:[#allocation2 + $0x71] sm:$0x1]
    %v2139 = vlaneseq
    %v2140 = vshrl.u32 %v2139, 7
    %v2141 = vsub.s32 0, %v2140
    %v2142 = vrot.slane %v2138, %v2141
    %v2143 = vadd.f32 %v2112, %v2142
    %v2144 = vadd.f32 %v2113, %v2142
    %v2145 = vadd.f32 %v2114, %v2142
    %v2146 = vadd.f32 %v2115, %v2142
    %v2147 = vld [vmem:[#allocation2 + $0x72] sm:$0x1]
    %v2148 = vlaneseq
    %v2149 = vshrl.u32 %v2148, 7
    %v2150 = vsub.s32 0, %v2149
    %v2151 = vrot.slane %v2147, %v2150
    %v2152 = vadd.f32 %v2125, %v2151
    %v2153 = vadd.f32 %v2126, %v2151
    %v2154 = vadd.f32 %v2127, %v2151
    %v2155 = vadd.f32 %v2128, %v2151
    %v2156 = vld [vmem:[#allocation2 + $0xab] sm:$0x1]
    %v2157 = vlaneseq
    %v2158 = vshrl.u32 %v2157, 7
    %v2159 = vsub.s32 0, %v2158
    %v2160 = vrot.slane %v2156, %v2159
    %v2161 = vadd.f32 %v2134, %v2160
    %v2162 = vadd.f32 %v2135, %v2160
    %v2163 = vadd.f32 %v2136, %v2160
    %v2164 = vadd.f32 %v2137, %v2160
    %2169 = vrot.lane.b32.xlu0 %v2161, 127
    %v2170 = vpop.permute.xlu0 %2169
    %2171 = vrot.lane.b32.xlu0 %v2162, 127
    %v2172 = vpop.permute.xlu0 %2171
    %2173 = vrot.lane.b32.xlu0 %v2163, 127
    %v2174 = vpop.permute.xlu0 %2173
    %2175 = vrot.lane.b32.xlu0 %v2164, 127
    %v2176 = vpop.permute.xlu0 %2175
    %v2181 = vmax.f32 %v2161, %v2170
    %v2182 = vmax.f32 %v2162, %v2172
    %v2183 = vmax.f32 %v2163, %v2174
    %v2184 = vmax.f32 %v2164, %v2176
    %2185 = vrot.lane.b32.xlu0 %v2161, 1
    %v2186 = vpop.permute.xlu0 %2185
    %2187 = vrot.lane.b32.xlu0 %v2162, 1
    %v2188 = vpop.permute.xlu0 %2187
    %2189 = vrot.lane.b32.xlu0 %v2163, 1
    %v2190 = vpop.permute.xlu0 %2189
    %2191 = vrot.lane.b32.xlu0 %v2164, 1
    %v2192 = vpop.permute.xlu0 %2191
    %v2197 = vmax.f32 %v2181, %v2186
    %v2198 = vmax.f32 %v2182, %v2188
    %v2199 = vmax.f32 %v2183, %v2190
    %v2200 = vmax.f32 %v2184, %v2192
    %v2205 = vrot.slane %v2197, 1
    %v2206 = vrot.slane %v2198, 1
    %v2207 = vsel %vm1496, %v2205, %v2206
    %v2208 = vrot.slane %v2199, 1
    %v2209 = vsel %vm1496, %v2206, %v2208
    %v2210 = vrot.slane %v2200, 1
    %v2211 = vsel %vm1496, %v2208, %v2210
    %v2216 = vsel %vm1496, %v2210, -1e+30
    %v2217 = vsel %vm1509, %v2207, -1e+30
    %v2218 = vsel %vm1510, %v2209, -1e+30
    %v2219 = vsel %vm1511, %v2211, -1e+30
    %v2220 = vsel %vm1512, %v2216, -1e+30
    %v2221 = vmax.f32 %v2197, %v2217
    %v2222 = vmax.f32 %v2198, %v2218
    %v2223 = vmax.f32 %v2199, %v2219
    %v2224 = vmax.f32 %v2200, %v2220
    %v2225 = vrot.slane %v2197, 7
    %v2226 = vrot.slane %v2198, 7
    %v2227 = vsel %vm203, %v2225, %v2226
    %v2228 = vrot.slane %v2199, 7
    %v2229 = vsel %vm203, %v2226, %v2228
    %v2230 = vrot.slane %v2200, 7
    %v2231 = vsel %vm203, %v2228, %v2230
    %v2236 = vsel %vm203, -1e+30, %v2225
    %v2237 = vsel %vm216, %v2236, -1e+30
    %v2238 = vsel %vm217, %v2227, -1e+30
    %v2239 = vsel %vm218, %v2229, -1e+30
    %v2240 = vsel %vm219, %v2231, -1e+30
    %v2241 = vmax.f32 %v2221, %v2237
    %v2242 = vmax.f32 %v2222, %v2238
    %v2243 = vmax.f32 %v2223, %v2239
    %v2244 = vmax.f32 %v2224, %v2240
    %v2245 = vld [vmem:[#allocation2 + $0x73] sm:$0x1]
    %v2246 = vlaneseq
    %v2247 = vshrl.u32 %v2246, 7
    %v2248 = vsub.s32 0, %v2247
    %v2249 = vrot.slane %v2245, %v2248
    %v2250 = vmul.f32 %v2241, %v2249
    %v2251 = vmul.f32 %v2242, %v2249
    %v2252 = vmul.f32 %v2243, %v2249
    %v2253 = vmul.f32 %v2244, %v2249
    %v2254 = vld [vmem:[#allocation2 + $0x76] sm:$0x1]
    %v2255 = vlaneseq
    %v2256 = vshrl.u32 %v2255, 7
    %v2257 = vsub.s32 0, %v2256
    %v2258 = vrot.slane %v2254, %v2257
    %v2259 = vadd.f32 %v2250, %v2258
    %v2260 = vadd.f32 %v2251, %v2258
    %v2261 = vadd.f32 %v2252, %v2258
    %v2262 = vadd.f32 %v2253, %v2258
    %v2263 = vmax.f32 %v2259, 0.0
    %v2264 = vmax.f32 %v2260, 0.0
    %v2265 = vmax.f32 %v2261, 0.0
    %v2266 = vmax.f32 %v2262, 0.0
    %v2267 = vadd.f32 %v2143, %v2160
    %v2268 = vadd.f32 %v2144, %v2160
    %v2269 = vadd.f32 %v2145, %v2160
    %v2270 = vadd.f32 %v2146, %v2160
    %2275 = vrot.lane.b32.xlu0 %v2267, 127
    %v2276 = vpop.permute.xlu0 %2275
    %2277 = vrot.lane.b32.xlu0 %v2268, 127
    %v2278 = vpop.permute.xlu0 %2277
    %2279 = vrot.lane.b32.xlu0 %v2269, 127
    %v2280 = vpop.permute.xlu0 %2279
    %2281 = vrot.lane.b32.xlu0 %v2270, 127
    %v2282 = vpop.permute.xlu0 %2281
    %v2287 = vmax.f32 %v2267, %v2276
    %v2288 = vmax.f32 %v2268, %v2278
    %v2289 = vmax.f32 %v2269, %v2280
    %v2290 = vmax.f32 %v2270, %v2282
    %2291 = vrot.lane.b32.xlu0 %v2267, 1
    %v2292 = vpop.permute.xlu0 %2291
    %2293 = vrot.lane.b32.xlu0 %v2268, 1
    %v2294 = vpop.permute.xlu0 %2293
    %2295 = vrot.lane.b32.xlu0 %v2269, 1
    %v2296 = vpop.permute.xlu0 %2295
    %2297 = vrot.lane.b32.xlu0 %v2270, 1
    %v2298 = vpop.permute.xlu0 %2297
    %v2303 = vmax.f32 %v2287, %v2292
    %v2304 = vmax.f32 %v2288, %v2294
    %v2305 = vmax.f32 %v2289, %v2296
    %v2306 = vmax.f32 %v2290, %v2298
    %2307 = vrot.lane.b32.xlu0 %v2267, 126
    %v2308 = vpop.permute.xlu0 %2307
    %2309 = vrot.lane.b32.xlu0 %v2268, 126
    %v2310 = vpop.permute.xlu0 %2309
    %2311 = vrot.lane.b32.xlu0 %v2269, 126
    %v2312 = vpop.permute.xlu0 %2311
    %2313 = vrot.lane.b32.xlu0 %v2270, 126
    %v2314 = vpop.permute.xlu0 %2313
    %v2319 = vmax.f32 %v2303, %v2308
    %v2320 = vmax.f32 %v2304, %v2310
    %v2321 = vmax.f32 %v2305, %v2312
    %v2322 = vmax.f32 %v2306, %v2314
    %2323 = vrot.lane.b32.xlu0 %v2267, 2
    %v2324 = vpop.permute.xlu0 %2323
    %2325 = vrot.lane.b32.xlu0 %v2268, 2
    %v2326 = vpop.permute.xlu0 %2325
    %2327 = vrot.lane.b32.xlu0 %v2269, 2
    %v2328 = vpop.permute.xlu0 %2327
    %2329 = vrot.lane.b32.xlu0 %v2270, 2
    %v2330 = vpop.permute.xlu0 %2329
    %v2335 = vmax.f32 %v2319, %v2324
    %v2336 = vmax.f32 %v2320, %v2326
    %v2337 = vmax.f32 %v2321, %v2328
    %v2338 = vmax.f32 %v2322, %v2330
    %v2343 = vrot.slane %v2335, 1
    %v2344 = vrot.slane %v2336, 1
    %v2345 = vsel %vm1496, %v2343, %v2344
    %v2346 = vrot.slane %v2337, 1
    %v2347 = vsel %vm1496, %v2344, %v2346
    %v2348 = vrot.slane %v2338, 1
    %v2349 = vsel %vm1496, %v2346, %v2348
    %v2354 = vsel %vm1496, %v2348, -1e+30
    %v2355 = vsel %vm1509, %v2345, -1e+30
    %v2356 = vsel %vm1510, %v2347, -1e+30
    %v2357 = vsel %vm1511, %v2349, -1e+30
    %v2358 = vsel %vm1512, %v2354, -1e+30
    %v2359 = vmax.f32 %v2335, %v2355
    %v2360 = vmax.f32 %v2336, %v2356
    %v2361 = vmax.f32 %v2337, %v2357
    %v2362 = vmax.f32 %v2338, %v2358
    %v2363 = vrot.slane %v2335, 7
    %v2364 = vrot.slane %v2336, 7
    %v2365 = vsel %vm203, %v2363, %v2364
    %v2366 = vrot.slane %v2337, 7
    %v2367 = vsel %vm203, %v2364, %v2366
    %v2368 = vrot.slane %v2338, 7
    %v2369 = vsel %vm203, %v2366, %v2368
    %v2374 = vsel %vm203, -1e+30, %v2363
    %v2375 = vsel %vm216, %v2374, -1e+30
    %v2376 = vsel %vm217, %v2365, -1e+30
    %v2377 = vsel %vm218, %v2367, -1e+30
    %v2378 = vsel %vm219, %v2369, -1e+30
    %v2379 = vmax.f32 %v2359, %v2375
    %v2380 = vmax.f32 %v2360, %v2376
    %v2381 = vmax.f32 %v2361, %v2377
    %v2382 = vmax.f32 %v2362, %v2378
    %vm2383 = vcmask 1045504
    %v2384 = vrot.slane %v2335, 2
    %v2385 = vrot.slane %v2336, 2
    %v2386 = vsel %vm2383, %v2384, %v2385
    %v2387 = vrot.slane %v2337, 2
    %v2388 = vsel %vm2383, %v2385, %v2387
    %v2389 = vrot.slane %v2338, 2
    %v2390 = vsel %vm2383, %v2387, %v2389
    %v2395 = vsel %vm2383, %v2389, -1e+30
    %vm2396 = vcmp.lt.s32.totalorder %v45, 14
    %vm2397 = vcmp.lt.s32.totalorder %v46, 14
    %vm2398 = vcmp.lt.s32.totalorder %v47, 14
    %vm2399 = vcmp.lt.s32.totalorder %v48, 14
    %v2400 = vsel %vm2396, %v2386, -1e+30
    %v2401 = vsel %vm2397, %v2388, -1e+30
    %v2402 = vsel %vm2398, %v2390, -1e+30
    %v2403 = vsel %vm2399, %v2395, -1e+30
    %v2404 = vmax.f32 %v2379, %v2400
    %v2405 = vmax.f32 %v2380, %v2401
    %v2406 = vmax.f32 %v2381, %v2402
    %v2407 = vmax.f32 %v2382, %v2403
    %vm2408 = vcmask 1041408
    %v2409 = vrot.slane %v2335, 6
    %v2410 = vrot.slane %v2336, 6
    %v2411 = vsel %vm2408, %v2409, %v2410
    %v2412 = vrot.slane %v2337, 6
    %v2413 = vsel %vm2408, %v2410, %v2412
    %v2414 = vrot.slane %v2338, 6
    %v2415 = vsel %vm2408, %v2412, %v2414
    %v2420 = vsel %vm2408, -1e+30, %v2409
    %vm2421 = vcmp.ge.s32.totalorder %v45, 2
    %vm2422 = vcmp.ge.s32.totalorder %v46, 2
    %vm2423 = vcmp.ge.s32.totalorder %v47, 2
    %vm2424 = vcmp.ge.s32.totalorder %v48, 2
    %v2425 = vsel %vm2421, %v2420, -1e+30
    %v2426 = vsel %vm2422, %v2411, -1e+30
    %v2427 = vsel %vm2423, %v2413, -1e+30
    %v2428 = vsel %vm2424, %v2415, -1e+30
    %v2429 = vmax.f32 %v2404, %v2425
    %v2430 = vmax.f32 %v2405, %v2426
    %v2431 = vmax.f32 %v2406, %v2427
    %v2432 = vmax.f32 %v2407, %v2428
    %v2433 = vld [vmem:[#allocation2 + $0x74] sm:$0x1]
    %v2434 = vlaneseq
    %v2435 = vshrl.u32 %v2434, 7
    %v2436 = vsub.s32 0, %v2435
    %v2437 = vrot.slane %v2433, %v2436
    %v2438 = vmul.f32 %v2429, %v2437
    %v2439 = vmul.f32 %v2430, %v2437
    %v2440 = vmul.f32 %v2431, %v2437
    %v2441 = vmul.f32 %v2432, %v2437
    %v2442 = vld [vmem:[#allocation2 + $0x77] sm:$0x1]
    %v2443 = vlaneseq
    %v2444 = vshrl.u32 %v2443, 7
    %v2445 = vsub.s32 0, %v2444
    %v2446 = vrot.slane %v2442, %v2445
    %v2447 = vadd.f32 %v2438, %v2446
    %v2448 = vadd.f32 %v2439, %v2446
    %v2449 = vadd.f32 %v2440, %v2446
    %v2450 = vadd.f32 %v2441, %v2446
    %v2451 = vmax.f32 %v2447, 0.0
    %v2452 = vmax.f32 %v2448, 0.0
    %v2453 = vmax.f32 %v2449, 0.0
    %v2454 = vmax.f32 %v2450, 0.0
    %v2455 = vadd.f32 %v2152, %v2160
    %v2456 = vadd.f32 %v2153, %v2160
    %v2457 = vadd.f32 %v2154, %v2160
    %v2458 = vadd.f32 %v2155, %v2160
    %2463 = vrot.lane.b32.xlu0 %v2455, 127
    %v2464 = vpop.permute.xlu0 %2463
    %2465 = vrot.lane.b32.xlu0 %v2456, 127
    %v2466 = vpop.permute.xlu0 %2465
    %2467 = vrot.lane.b32.xlu0 %v2457, 127
    %v2468 = vpop.permute.xlu0 %2467
    %2469 = vrot.lane.b32.xlu0 %v2458, 127
    %v2470 = vpop.permute.xlu0 %2469
    %v2475 = vmax.f32 %v2455, %v2464
    %v2476 = vmax.f32 %v2456, %v2466
    %v2477 = vmax.f32 %v2457, %v2468
    %v2478 = vmax.f32 %v2458, %v2470
    %2479 = vrot.lane.b32.xlu0 %v2455, 1
    %v2480 = vpop.permute.xlu0 %2479
    %2481 = vrot.lane.b32.xlu0 %v2456, 1
    %v2482 = vpop.permute.xlu0 %2481
    %2483 = vrot.lane.b32.xlu0 %v2457, 1
    %v2484 = vpop.permute.xlu0 %2483
    %2485 = vrot.lane.b32.xlu0 %v2458, 1
    %v2486 = vpop.permute.xlu0 %2485
    %v2491 = vmax.f32 %v2475, %v2480
    %v2492 = vmax.f32 %v2476, %v2482
    %v2493 = vmax.f32 %v2477, %v2484
    %v2494 = vmax.f32 %v2478, %v2486
    %2495 = vrot.lane.b32.xlu0 %v2455, 126
    %v2496 = vpop.permute.xlu0 %2495
    %2497 = vrot.lane.b32.xlu0 %v2456, 126
    %v2498 = vpop.permute.xlu0 %2497
    %2499 = vrot.lane.b32.xlu0 %v2457, 126
    %v2500 = vpop.permute.xlu0 %2499
    %2501 = vrot.lane.b32.xlu0 %v2458, 126
    %v2502 = vpop.permute.xlu0 %2501
    %v2507 = vmax.f32 %v2491, %v2496
    %v2508 = vmax.f32 %v2492, %v2498
    %v2509 = vmax.f32 %v2493, %v2500
    %v2510 = vmax.f32 %v2494, %v2502
    %2511 = vrot.lane.b32.xlu0 %v2455, 2
    %v2512 = vpop.permute.xlu0 %2511
    %2513 = vrot.lane.b32.xlu0 %v2456, 2
    %v2514 = vpop.permute.xlu0 %2513
    %2515 = vrot.lane.b32.xlu0 %v2457, 2
    %v2516 = vpop.permute.xlu0 %2515
    %2517 = vrot.lane.b32.xlu0 %v2458, 2
    %v2518 = vpop.permute.xlu0 %2517
    %v2523 = vmax.f32 %v2507, %v2512
    %v2524 = vmax.f32 %v2508, %v2514
    %v2525 = vmax.f32 %v2509, %v2516
    %v2526 = vmax.f32 %v2510, %v2518
    %2527 = vrot.lane.b32.xlu0 %v2455, 125
    %v2528 = vpop.permute.xlu0 %2527
    %2529 = vrot.lane.b32.xlu0 %v2456, 125
    %v2530 = vpop.permute.xlu0 %2529
    %2531 = vrot.lane.b32.xlu0 %v2457, 125
    %v2532 = vpop.permute.xlu0 %2531
    %2533 = vrot.lane.b32.xlu0 %v2458, 125
    %v2534 = vpop.permute.xlu0 %2533
    %v2539 = vmax.f32 %v2523, %v2528
    %v2540 = vmax.f32 %v2524, %v2530
    %v2541 = vmax.f32 %v2525, %v2532
    %v2542 = vmax.f32 %v2526, %v2534
    %2543 = vrot.lane.b32.xlu0 %v2455, 3
    %v2544 = vpop.permute.xlu0 %2543
    %2545 = vrot.lane.b32.xlu0 %v2456, 3
    %v2546 = vpop.permute.xlu0 %2545
    %2547 = vrot.lane.b32.xlu0 %v2457, 3
    %v2548 = vpop.permute.xlu0 %2547
    %2549 = vrot.lane.b32.xlu0 %v2458, 3
    %v2550 = vpop.permute.xlu0 %2549
    %v2555 = vmax.f32 %v2539, %v2544
    %v2556 = vmax.f32 %v2540, %v2546
    %v2557 = vmax.f32 %v2541, %v2548
    %v2558 = vmax.f32 %v2542, %v2550
    %v2563 = vrot.slane %v2555, 1
    %v2564 = vrot.slane %v2556, 1
    %v2565 = vsel %vm1496, %v2563, %v2564
    %v2566 = vrot.slane %v2557, 1
    %v2567 = vsel %vm1496, %v2564, %v2566
    %v2568 = vrot.slane %v2558, 1
    %v2569 = vsel %vm1496, %v2566, %v2568
    %v2574 = vsel %vm1496, %v2568, -1e+30
    %v2575 = vsel %vm1509, %v2565, -1e+30
    %v2576 = vsel %vm1510, %v2567, -1e+30
    %v2577 = vsel %vm1511, %v2569, -1e+30
    %v2578 = vsel %vm1512, %v2574, -1e+30
    %v2579 = vmax.f32 %v2555, %v2575
    %v2580 = vmax.f32 %v2556, %v2576
    %v2581 = vmax.f32 %v2557, %v2577
    %v2582 = vmax.f32 %v2558, %v2578
    %v2583 = vrot.slane %v2555, 7
    %v2584 = vrot.slane %v2556, 7
    %v2585 = vsel %vm203, %v2583, %v2584
    %v2586 = vrot.slane %v2557, 7
    %v2587 = vsel %vm203, %v2584, %v2586
    %v2588 = vrot.slane %v2558, 7
    %v2589 = vsel %vm203, %v2586, %v2588
    %v2594 = vsel %vm203, -1e+30, %v2583
    %v2595 = vsel %vm216, %v2594, -1e+30
    %v2596 = vsel %vm217, %v2585, -1e+30
    %v2597 = vsel %vm218, %v2587, -1e+30
    %v2598 = vsel %vm219, %v2589, -1e+30
    %v2599 = vmax.f32 %v2579, %v2595
    %v2600 = vmax.f32 %v2580, %v2596
    %v2601 = vmax.f32 %v2581, %v2597
    %v2602 = vmax.f32 %v2582, %v2598
    %v2603 = vrot.slane %v2555, 2
    %v2604 = vrot.slane %v2556, 2
    %v2605 = vsel %vm2383, %v2603, %v2604
    %v2606 = vrot.slane %v2557, 2
    %v2607 = vsel %vm2383, %v2604, %v2606
    %v2608 = vrot.slane %v2558, 2
    %v2609 = vsel %vm2383, %v2606, %v2608
    %v2614 = vsel %vm2383, %v2608, -1e+30
    %v2615 = vsel %vm2396, %v2605, -1e+30
    %v2616 = vsel %vm2397, %v2607, -1e+30
    %v2617 = vsel %vm2398, %v2609, -1e+30
    %v2618 = vsel %vm2399, %v2614, -1e+30
    %v2619 = vmax.f32 %v2599, %v2615
    %v2620 = vmax.f32 %v2600, %v2616
    %v2621 = vmax.f32 %v2601, %v2617
    %v2622 = vmax.f32 %v2602, %v2618
    %v2623 = vrot.slane %v2555, 6
    %v2624 = vrot.slane %v2556, 6
    %v2625 = vsel %vm2408, %v2623, %v2624
    %v2626 = vrot.slane %v2557, 6
    %v2627 = vsel %vm2408, %v2624, %v2626
    %v2628 = vrot.slane %v2558, 6
    %v2629 = vsel %vm2408, %v2626, %v2628
    %v2634 = vsel %vm2408, -1e+30, %v2623
    %v2635 = vsel %vm2421, %v2634, -1e+30
    %v2636 = vsel %vm2422, %v2625, -1e+30
    %v2637 = vsel %vm2423, %v2627, -1e+30
    %v2638 = vsel %vm2424, %v2629, -1e+30
    %v2639 = vmax.f32 %v2619, %v2635
    %v2640 = vmax.f32 %v2620, %v2636
    %v2641 = vmax.f32 %v2621, %v2637
    %v2642 = vmax.f32 %v2622, %v2638
    %vm2643 = vcmask 1044480
    %v2644 = vrot.slane %v2555, 3
    %v2645 = vrot.slane %v2556, 3
    %v2646 = vsel %vm2643, %v2644, %v2645
    %v2647 = vrot.slane %v2557, 3
    %v2648 = vsel %vm2643, %v2645, %v2647
    %v2649 = vrot.slane %v2558, 3
    %v2650 = vsel %vm2643, %v2647, %v2649
    %v2655 = vsel %vm2643, %v2649, -1e+30
    %vm2656 = vcmp.lt.s32.totalorder %v45, 13
    %vm2657 = vcmp.lt.s32.totalorder %v46, 13
    %vm2658 = vcmp.lt.s32.totalorder %v47, 13
    %vm2659 = vcmp.lt.s32.totalorder %v48, 13
    %v2660 = vsel %vm2656, %v2646, -1e+30
    %v2661 = vsel %vm2657, %v2648, -1e+30
    %v2662 = vsel %vm2658, %v2650, -1e+30
    %v2663 = vsel %vm2659, %v2655, -1e+30
    %v2664 = vmax.f32 %v2639, %v2660
    %v2665 = vmax.f32 %v2640, %v2661
    %v2666 = vmax.f32 %v2641, %v2662
    %v2667 = vmax.f32 %v2642, %v2663
    %vm2668 = vcmask 1042432
    %v2669 = vrot.slane %v2555, 5
    %v2670 = vrot.slane %v2556, 5
    %v2671 = vsel %vm2668, %v2669, %v2670
    %v2672 = vrot.slane %v2557, 5
    %v2673 = vsel %vm2668, %v2670, %v2672
    %v2674 = vrot.slane %v2558, 5
    %v2675 = vsel %vm2668, %v2672, %v2674
    %v2680 = vsel %vm2668, -1e+30, %v2669
    %vm2681 = vcmp.ge.s32.totalorder %v45, 3
    %vm2682 = vcmp.ge.s32.totalorder %v46, 3
    %vm2683 = vcmp.ge.s32.totalorder %v47, 3
    %vm2684 = vcmp.ge.s32.totalorder %v48, 3
    %v2685 = vsel %vm2681, %v2680, -1e+30
    %v2686 = vsel %vm2682, %v2671, -1e+30
    %v2687 = vsel %vm2683, %v2673, -1e+30
    %v2688 = vsel %vm2684, %v2675, -1e+30
    %v2689 = vmax.f32 %v2664, %v2685
    %v2690 = vmax.f32 %v2665, %v2686
    %v2691 = vmax.f32 %v2666, %v2687
    %v2692 = vmax.f32 %v2667, %v2688
    %v2693 = vld [vmem:[#allocation2 + $0x75] sm:$0x1]
    %v2694 = vlaneseq
    %v2695 = vshrl.u32 %v2694, 7
    %v2696 = vsub.s32 0, %v2695
    %v2697 = vrot.slane %v2693, %v2696
    %v2698 = vmul.f32 %v2689, %v2697
    %v2699 = vmul.f32 %v2690, %v2697
    %v2700 = vmul.f32 %v2691, %v2697
    %v2701 = vmul.f32 %v2692, %v2697
    %v2702 = vld [vmem:[#allocation2 + $0x78] sm:$0x1]
    %v2703 = vlaneseq
    %v2704 = vshrl.u32 %v2703, 7
    %v2705 = vsub.s32 0, %v2704
    %v2706 = vrot.slane %v2702, %v2705
    %v2707 = vadd.f32 %v2698, %v2706
    %v2708 = vadd.f32 %v2699, %v2706
    %v2709 = vadd.f32 %v2700, %v2706
    %v2710 = vadd.f32 %v2701, %v2706
    %v2711 = vmax.f32 %v2707, 0.0
    %v2712 = vmax.f32 %v2708, 0.0
    %v2713 = vmax.f32 %v2709, 0.0
    %v2714 = vmax.f32 %v2710, 0.0
    %v2715 = vld [vmem:[#allocation2 + $0xac] sm:$0x1]
    %v2716 = vld [vmem:[#allocation2 + $0xad] sm:$0x1]
    %v2717 = vld [vmem:[#allocation2 + $0xae] sm:$0x1]
    %v2718 = vld [vmem:[#allocation2 + $0xaf] sm:$0x1]
    %2723 = vrot.lane.b32.xlu0 %v1284, 96
    %v2724 = vpop.permute.xlu0 %2723
    %2725 = vrot.lane.b32.xlu0 %v1285, 96
    %v2726 = vpop.permute.xlu0 %2725
    %2727 = vrot.lane.b32.xlu0 %v1286, 96
    %v2728 = vpop.permute.xlu0 %2727
    %2729 = vrot.lane.b32.xlu0 %v1287, 96
    %v2730 = vpop.permute.xlu0 %2729
    %2735 = vrot.lane.b32.xlu0 %v1284, 64
    %v2736 = vpop.permute.xlu0 %2735
    %2737 = vrot.lane.b32.xlu0 %v1285, 64
    %v2738 = vpop.permute.xlu0 %2737
    %2739 = vrot.lane.b32.xlu0 %v1286, 64
    %v2740 = vpop.permute.xlu0 %2739
    %2741 = vrot.lane.b32.xlu0 %v1287, 64
    %v2742 = vpop.permute.xlu0 %2741
    %2747 = vrot.lane.b32.xlu0 %v1284, 32
    %v2748 = vpop.permute.xlu0 %2747
    %2749 = vrot.lane.b32.xlu0 %v1285, 32
    %v2750 = vpop.permute.xlu0 %2749
    %2751 = vrot.lane.b32.xlu0 %v1286, 32
    %v2752 = vpop.permute.xlu0 %2751
    %2753 = vrot.lane.b32.xlu0 %v1287, 32
    %v2754 = vpop.permute.xlu0 %2753
    %v2759 = vadd.f32 %v1284, %v2724
    %v2760 = vadd.f32 %v1285, %v2726
    %v2761 = vadd.f32 %v1286, %v2728
    %v2762 = vadd.f32 %v1287, %v2730
    %v2763 = vadd.f32 %v2759, %v2736
    %v2764 = vadd.f32 %v2760, %v2738
    %v2765 = vadd.f32 %v2761, %v2740
    %v2766 = vadd.f32 %v2762, %v2742
    %v2767 = vadd.f32 %v2763, %v2748
    %v2768 = vadd.f32 %v2764, %v2750
    %v2769 = vadd.f32 %v2765, %v2752
    %v2770 = vadd.f32 %v2766, %v2754
    %v2771 = vmax.f32 %v1284, %v2724
    %v2772 = vmax.f32 %v1285, %v2726
    %v2773 = vmax.f32 %v1286, %v2728
    %v2774 = vmax.f32 %v1287, %v2730
    %v2775 = vmax.f32 %v2736, %v2748
    %v2776 = vmax.f32 %v2738, %v2750
    %v2777 = vmax.f32 %v2740, %v2752
    %v2778 = vmax.f32 %v2742, %v2754
    %v2779 = vmax.f32 %v2771, %v2775
    %v2780 = vmax.f32 %v2772, %v2776
    %v2781 = vmax.f32 %v2773, %v2777
    %v2782 = vmax.f32 %v2774, %v2778
    %v2783 = vmul.f32 %v2767, 0.25
    %v2784 = vmul.f32 %v2768, 0.25
    %v2785 = vmul.f32 %v2769, 0.25
    %v2786 = vmul.f32 %v2770, 0.25
    %v2787 = vlaneseq
    %v2788 = vshrl.u32 %v2787, 7
    %v2789 = vsub.s32 0, %v2788
    %v2790 = vrot.slane %v2715, %v2789
    %v2791 = vmul.f32 %v2790, %v2783
    %v2792 = vmul.f32 %v2790, %v2784
    %v2793 = vmul.f32 %v2790, %v2785
    %v2794 = vmul.f32 %v2790, %v2786
    %v2795 = vadd.f32 %v2791, 0.0
    %v2796 = vadd.f32 %v2792, 0.0
    %v2797 = vadd.f32 %v2793, 0.0
    %v2798 = vadd.f32 %v2794, 0.0
    %v2799 = vmul.f32 %v2790, %v2779
    %v2800 = vmul.f32 %v2790, %v2780
    %v2801 = vmul.f32 %v2790, %v2781
    %v2802 = vmul.f32 %v2790, %v2782
    %v2803 = vadd.f32 %v2799, 0.0
    %v2804 = vadd.f32 %v2800, 0.0
    %v2805 = vadd.f32 %v2801, 0.0
    %v2806 = vadd.f32 %v2802, 0.0
    %2811 = vrot.lane.b32.xlu0 %v2263, 96
    %v2812 = vpop.permute.xlu0 %2811
    %2813 = vrot.lane.b32.xlu0 %v2264, 96
    %v2814 = vpop.permute.xlu0 %2813
    %2815 = vrot.lane.b32.xlu0 %v2265, 96
    %v2816 = vpop.permute.xlu0 %2815
    %2817 = vrot.lane.b32.xlu0 %v2266, 96
    %v2818 = vpop.permute.xlu0 %2817
    %2823 = vrot.lane.b32.xlu0 %v2263, 64
    %v2824 = vpop.permute.xlu0 %2823
    %2825 = vrot.lane.b32.xlu0 %v2264, 64
    %v2826 = vpop.permute.xlu0 %2825
    %2827 = vrot.lane.b32.xlu0 %v2265, 64
    %v2828 = vpop.permute.xlu0 %2827
    %2829 = vrot.lane.b32.xlu0 %v2266, 64
    %v2830 = vpop.permute.xlu0 %2829
    %2835 = vrot.lane.b32.xlu0 %v2263, 32
    %v2836 = vpop.permute.xlu0 %2835
    %2837 = vrot.lane.b32.xlu0 %v2264, 32
    %v2838 = vpop.permute.xlu0 %2837
    %2839 = vrot.lane.b32.xlu0 %v2265, 32
    %v2840 = vpop.permute.xlu0 %2839
    %2841 = vrot.lane.b32.xlu0 %v2266, 32
    %v2842 = vpop.permute.xlu0 %2841
    %v2847 = vadd.f32 %v2263, %v2812
    %v2848 = vadd.f32 %v2264, %v2814
    %v2849 = vadd.f32 %v2265, %v2816
    %v2850 = vadd.f32 %v2266, %v2818
    %v2851 = vadd.f32 %v2847, %v2824
    %v2852 = vadd.f32 %v2848, %v2826
    %v2853 = vadd.f32 %v2849, %v2828
    %v2854 = vadd.f32 %v2850, %v2830
    %v2855 = vadd.f32 %v2851, %v2836
    %v2856 = vadd.f32 %v2852, %v2838
    %v2857 = vadd.f32 %v2853, %v2840
    %v2858 = vadd.f32 %v2854, %v2842
    %v2859 = vmax.f32 %v2263, %v2812
    %v2860 = vmax.f32 %v2264, %v2814
    %v2861 = vmax.f32 %v2265, %v2816
    %v2862 = vmax.f32 %v2266, %v2818
    %v2863 = vmax.f32 %v2824, %v2836
    %v2864 = vmax.f32 %v2826, %v2838
    %v2865 = vmax.f32 %v2828, %v2840
    %v2866 = vmax.f32 %v2830, %v2842
    %v2867 = vmax.f32 %v2859, %v2863
    %v2868 = vmax.f32 %v2860, %v2864
    %v2869 = vmax.f32 %v2861, %v2865
    %v2870 = vmax.f32 %v2862, %v2866
    %v2871 = vmul.f32 %v2855, 0.25
    %v2872 = vmul.f32 %v2856, 0.25
    %v2873 = vmul.f32 %v2857, 0.25
    %v2874 = vmul.f32 %v2858, 0.25
    %v2875 = vlaneseq
    %v2876 = vshrl.u32 %v2875, 7
    %v2877 = vsub.s32 0, %v2876
    %v2878 = vrot.slane %v2716, %v2877
    %v2879 = vmul.f32 %v2878, %v2871
    %v2880 = vmul.f32 %v2878, %v2872
    %v2881 = vmul.f32 %v2878, %v2873
    %v2882 = vmul.f32 %v2878, %v2874
    %v2883 = vadd.f32 %v2795, %v2879
    %v2884 = vadd.f32 %v2796, %v2880
    %v2885 = vadd.f32 %v2797, %v2881
    %v2886 = vadd.f32 %v2798, %v2882
    %v2887 = vmul.f32 %v2878, %v2867
    %v2888 = vmul.f32 %v2878, %v2868
    %v2889 = vmul.f32 %v2878, %v2869
    %v2890 = vmul.f32 %v2878, %v2870
    %v2891 = vadd.f32 %v2803, %v2887
    %v2892 = vadd.f32 %v2804, %v2888
    %v2893 = vadd.f32 %v2805, %v2889
    %v2894 = vadd.f32 %v2806, %v2890
    %2899 = vrot.lane.b32.xlu0 %v2451, 96
    %v2900 = vpop.permute.xlu0 %2899
    %2901 = vrot.lane.b32.xlu0 %v2452, 96
    %v2902 = vpop.permute.xlu0 %2901
    %2903 = vrot.lane.b32.xlu0 %v2453, 96
    %v2904 = vpop.permute.xlu0 %2903
    %2905 = vrot.lane.b32.xlu0 %v2454, 96
    %v2906 = vpop.permute.xlu0 %2905
    %2911 = vrot.lane.b32.xlu0 %v2451, 64
    %v2912 = vpop.permute.xlu0 %2911
    %2913 = vrot.lane.b32.xlu0 %v2452, 64
    %v2914 = vpop.permute.xlu0 %2913
    %2915 = vrot.lane.b32.xlu0 %v2453, 64
    %v2916 = vpop.permute.xlu0 %2915
    %2917 = vrot.lane.b32.xlu0 %v2454, 64
    %v2918 = vpop.permute.xlu0 %2917
    %2923 = vrot.lane.b32.xlu0 %v2451, 32
    %v2924 = vpop.permute.xlu0 %2923
    %2925 = vrot.lane.b32.xlu0 %v2452, 32
    %v2926 = vpop.permute.xlu0 %2925
    %2927 = vrot.lane.b32.xlu0 %v2453, 32
    %v2928 = vpop.permute.xlu0 %2927
    %2929 = vrot.lane.b32.xlu0 %v2454, 32
    %v2930 = vpop.permute.xlu0 %2929
    %v2935 = vadd.f32 %v2451, %v2900
    %v2936 = vadd.f32 %v2452, %v2902
    %v2937 = vadd.f32 %v2453, %v2904
    %v2938 = vadd.f32 %v2454, %v2906
    %v2939 = vadd.f32 %v2935, %v2912
    %v2940 = vadd.f32 %v2936, %v2914
    %v2941 = vadd.f32 %v2937, %v2916
    %v2942 = vadd.f32 %v2938, %v2918
    %v2943 = vadd.f32 %v2939, %v2924
    %v2944 = vadd.f32 %v2940, %v2926
    %v2945 = vadd.f32 %v2941, %v2928
    %v2946 = vadd.f32 %v2942, %v2930
    %v2947 = vmax.f32 %v2451, %v2900
    %v2948 = vmax.f32 %v2452, %v2902
    %v2949 = vmax.f32 %v2453, %v2904
    %v2950 = vmax.f32 %v2454, %v2906
    %v2951 = vmax.f32 %v2912, %v2924
    %v2952 = vmax.f32 %v2914, %v2926
    %v2953 = vmax.f32 %v2916, %v2928
    %v2954 = vmax.f32 %v2918, %v2930
    %v2955 = vmax.f32 %v2947, %v2951
    %v2956 = vmax.f32 %v2948, %v2952
    %v2957 = vmax.f32 %v2949, %v2953
    %v2958 = vmax.f32 %v2950, %v2954
    %v2959 = vmul.f32 %v2943, 0.25
    %v2960 = vmul.f32 %v2944, 0.25
    %v2961 = vmul.f32 %v2945, 0.25
    %v2962 = vmul.f32 %v2946, 0.25
    %v2963 = vlaneseq
    %v2964 = vshrl.u32 %v2963, 7
    %v2965 = vsub.s32 0, %v2964
    %v2966 = vrot.slane %v2717, %v2965
    %v2967 = vmul.f32 %v2966, %v2959
    %v2968 = vmul.f32 %v2966, %v2960
    %v2969 = vmul.f32 %v2966, %v2961
    %v2970 = vmul.f32 %v2966, %v2962
    %v2971 = vadd.f32 %v2883, %v2967
    %v2972 = vadd.f32 %v2884, %v2968
    %v2973 = vadd.f32 %v2885, %v2969
    %v2974 = vadd.f32 %v2886, %v2970
    %v2975 = vmul.f32 %v2966, %v2955
    %v2976 = vmul.f32 %v2966, %v2956
    %v2977 = vmul.f32 %v2966, %v2957
    %v2978 = vmul.f32 %v2966, %v2958
    %v2979 = vadd.f32 %v2891, %v2975
    %v2980 = vadd.f32 %v2892, %v2976
    %v2981 = vadd.f32 %v2893, %v2977
    %v2982 = vadd.f32 %v2894, %v2978
    %2987 = vrot.lane.b32.xlu0 %v2711, 96
    %v2988 = vpop.permute.xlu0 %2987
    %2989 = vrot.lane.b32.xlu0 %v2712, 96
    %v2990 = vpop.permute.xlu0 %2989
    %2991 = vrot.lane.b32.xlu0 %v2713, 96
    %v2992 = vpop.permute.xlu0 %2991
    %2993 = vrot.lane.b32.xlu0 %v2714, 96
    %v2994 = vpop.permute.xlu0 %2993
    %2999 = vrot.lane.b32.xlu0 %v2711, 64
    %v3000 = vpop.permute.xlu0 %2999
    %3001 = vrot.lane.b32.xlu0 %v2712, 64
    %v3002 = vpop.permute.xlu0 %3001
    %3003 = vrot.lane.b32.xlu0 %v2713, 64
    %v3004 = vpop.permute.xlu0 %3003
    %3005 = vrot.lane.b32.xlu0 %v2714, 64
    %v3006 = vpop.permute.xlu0 %3005
    %3011 = vrot.lane.b32.xlu0 %v2711, 32
    %v3012 = vpop.permute.xlu0 %3011
    %3013 = vrot.lane.b32.xlu0 %v2712, 32
    %v3014 = vpop.permute.xlu0 %3013
    %3015 = vrot.lane.b32.xlu0 %v2713, 32
    %v3016 = vpop.permute.xlu0 %3015
    %3017 = vrot.lane.b32.xlu0 %v2714, 32
    %v3018 = vpop.permute.xlu0 %3017
    %v3023 = vadd.f32 %v2711, %v2988
    %v3024 = vadd.f32 %v2712, %v2990
    %v3025 = vadd.f32 %v2713, %v2992
    %v3026 = vadd.f32 %v2714, %v2994
    %v3027 = vadd.f32 %v3023, %v3000
    %v3028 = vadd.f32 %v3024, %v3002
    %v3029 = vadd.f32 %v3025, %v3004
    %v3030 = vadd.f32 %v3026, %v3006
    %v3031 = vadd.f32 %v3027, %v3012
    %v3032 = vadd.f32 %v3028, %v3014
    %v3033 = vadd.f32 %v3029, %v3016
    %v3034 = vadd.f32 %v3030, %v3018
    %v3035 = vmax.f32 %v2711, %v2988
    %v3036 = vmax.f32 %v2712, %v2990
    %v3037 = vmax.f32 %v2713, %v2992
    %v3038 = vmax.f32 %v2714, %v2994
    %v3039 = vmax.f32 %v3000, %v3012
    %v3040 = vmax.f32 %v3002, %v3014
    %v3041 = vmax.f32 %v3004, %v3016
    %v3042 = vmax.f32 %v3006, %v3018
    %v3043 = vmax.f32 %v3035, %v3039
    %v3044 = vmax.f32 %v3036, %v3040
    %v3045 = vmax.f32 %v3037, %v3041
    %v3046 = vmax.f32 %v3038, %v3042
    %v3047 = vmul.f32 %v3031, 0.25
    %v3048 = vmul.f32 %v3032, 0.25
    %v3049 = vmul.f32 %v3033, 0.25
    %v3050 = vmul.f32 %v3034, 0.25
    %v3051 = vlaneseq
    %v3052 = vshrl.u32 %v3051, 7
    %v3053 = vsub.s32 0, %v3052
    %v3054 = vrot.slane %v2718, %v3053
    %v3055 = vmul.f32 %v3054, %v3047
    %v3056 = vmul.f32 %v3054, %v3048
    %v3057 = vmul.f32 %v3054, %v3049
    %v3058 = vmul.f32 %v3054, %v3050
    %v3059 = vadd.f32 %v2971, %v3055
    %v3060 = vadd.f32 %v2972, %v3056
    %v3061 = vadd.f32 %v2973, %v3057
    %v3062 = vadd.f32 %v2974, %v3058
    %v3063 = vmul.f32 %v3054, %v3043
    %v3064 = vmul.f32 %v3054, %v3044
    %v3065 = vmul.f32 %v3054, %v3045
    %v3066 = vmul.f32 %v3054, %v3046
    %v3067 = vadd.f32 %v2979, %v3063
    %v3068 = vadd.f32 %v2980, %v3064
    %v3069 = vadd.f32 %v2981, %v3065
    %v3070 = vadd.f32 %v2982, %v3066
    %v3079 = vrot.slane %v3059, 6
    %v3080 = vrot.slane %v3060, 6
    %v3081 = vsel %vm2408, %v3079, %v3080
    %v3082 = vrot.slane %v3061, 6
    %v3083 = vsel %vm2408, %v3080, %v3082
    %v3084 = vrot.slane %v3062, 6
    %v3085 = vsel %vm2408, %v3082, %v3084
    %v3086 = vrot.slane %v3067, 6
    %v3087 = vsel %vm2408, %v3084, %v3086
    %v3088 = vrot.slane %v3068, 6
    %v3089 = vsel %vm2408, %v3086, %v3088
    %v3090 = vrot.slane %v3069, 6
    %v3091 = vsel %vm2408, %v3088, %v3090
    %v3092 = vrot.slane %v3070, 6
    %v3093 = vsel %vm2408, %v3090, %v3092
    %v3102 = vsel %vm2408, 0.0, %v3079
    %vm3103 = vcmp.ge.s32.totalorder %v53, 2
    %vm3104 = vcmp.ge.s32.totalorder %v54, 2
    %vm3105 = vcmp.ge.s32.totalorder %v55, 2
    %vm3106 = vcmp.ge.s32.totalorder %v56, 2
    %v3107 = vsel %vm2421, %v3102, 0.0
    %v3108 = vsel %vm2422, %v3081, 0.0
    %v3109 = vsel %vm2423, %v3083, 0.0
    %v3110 = vsel %vm2424, %v3085, 0.0
    %v3111 = vsel %vm3103, %v3087, 0.0
    %v3112 = vsel %vm3104, %v3089, 0.0
    %v3113 = vsel %vm3105, %v3091, 0.0
    %v3114 = vsel %vm3106, %v3093, 0.0
    %3123 = vrot.lane.b32.xlu0 %v3107, 2
    %v3124 = vpop.permute.xlu0 %3123
    %3125 = vrot.lane.b32.xlu0 %v3108, 2
    %v3126 = vpop.permute.xlu0 %3125
    %3127 = vrot.lane.b32.xlu0 %v3109, 2
    %v3128 = vpop.permute.xlu0 %3127
    %3129 = vrot.lane.b32.xlu0 %v3110, 2
    %v3130 = vpop.permute.xlu0 %3129
    %3131 = vrot.lane.b32.xlu0 %v3111, 2
    %v3132 = vpop.permute.xlu0 %3131
    %3133 = vrot.lane.b32.xlu0 %v3112, 2
    %v3134 = vpop.permute.xlu0 %3133
    %3135 = vrot.lane.b32.xlu0 %v3113, 2
    %v3136 = vpop.permute.xlu0 %3135
    %3137 = vrot.lane.b32.xlu0 %v3114, 2
    %v3138 = vpop.permute.xlu0 %3137
    %v3147 = vld [vmem:[#allocation2 + $0x79] sm:$0x1]
    %v3148 = vlaneseq
    %v3149 = vshrl.u32 %v3148, 7
    %v3150 = vsub.s32 0, %v3149
    %v3151 = vrot.slane %v3147, %v3150
    %v3152 = vmul.f32 %v3151, %v3124
    %v3153 = vmul.f32 %v3151, %v3126
    %v3154 = vmul.f32 %v3151, %v3128
    %v3155 = vmul.f32 %v3151, %v3130
    %v3156 = vadd.f32 %v3152, 0.0
    %v3157 = vadd.f32 %v3153, 0.0
    %v3158 = vadd.f32 %v3154, 0.0
    %v3159 = vadd.f32 %v3155, 0.0
    %v3160 = vld [vmem:[#allocation2 + $0x92] sm:$0x1]
    %v3161 = vlaneseq
    %v3162 = vshrl.u32 %v3161, 7
    %v3163 = vsub.s32 0, %v3162
    %v3164 = vrot.slane %v3160, %v3163
    %v3165 = vmul.f32 %v3164, %v3132
    %v3166 = vmul.f32 %v3164, %v3134
    %v3167 = vmul.f32 %v3164, %v3136
    %v3168 = vmul.f32 %v3164, %v3138
    %v3169 = vadd.f32 %v3156, %v3165
    %v3170 = vadd.f32 %v3157, %v3166
    %v3171 = vadd.f32 %v3158, %v3167
    %v3172 = vadd.f32 %v3159, %v3168
    %3173 = vrot.lane.b32.xlu0 %v3107, 1
    %v3174 = vpop.permute.xlu0 %3173
    %3175 = vrot.lane.b32.xlu0 %v3108, 1
    %v3176 = vpop.permute.xlu0 %3175
    %3177 = vrot.lane.b32.xlu0 %v3109, 1
    %v3178 = vpop.permute.xlu0 %3177
    %3179 = vrot.lane.b32.xlu0 %v3110, 1
    %v3180 = vpop.permute.xlu0 %3179
    %3181 = vrot.lane.b32.xlu0 %v3111, 1
    %v3182 = vpop.permute.xlu0 %3181
    %3183 = vrot.lane.b32.xlu0 %v3112, 1
    %v3184 = vpop.permute.xlu0 %3183
    %3185 = vrot.lane.b32.xlu0 %v3113, 1
    %v3186 = vpop.permute.xlu0 %3185
    %3187 = vrot.lane.b32.xlu0 %v3114, 1
    %v3188 = vpop.permute.xlu0 %3187
    %v3197 = vld [vmem:[#allocation2 + $0x7a] sm:$0x1]
    %v3198 = vlaneseq
    %v3199 = vshrl.u32 %v3198, 7
    %v3200 = vsub.s32 0, %v3199
    %v3201 = vrot.slane %v3197, %v3200
    %v3202 = vmul.f32 %v3201, %v3174
    %v3203 = vmul.f32 %v3201, %v3176
    %v3204 = vmul.f32 %v3201, %v3178
    %v3205 = vmul.f32 %v3201, %v3180
    %v3206 = vadd.f32 %v3169, %v3202
    %v3207 = vadd.f32 %v3170, %v3203
    %v3208 = vadd.f32 %v3171, %v3204
    %v3209 = vadd.f32 %v3172, %v3205
    %v3210 = vld [vmem:[#allocation2 + $0x93] sm:$0x1]
    %v3211 = vlaneseq
    %v3212 = vshrl.u32 %v3211, 7
    %v3213 = vsub.s32 0, %v3212
    %v3214 = vrot.slane %v3210, %v3213
    %v3215 = vmul.f32 %v3214, %v3182
    %v3216 = vmul.f32 %v3214, %v3184
    %v3217 = vmul.f32 %v3214, %v3186
    %v3218 = vmul.f32 %v3214, %v3188
    %v3219 = vadd.f32 %v3206, %v3215
    %v3220 = vadd.f32 %v3207, %v3216
    %v3221 = vadd.f32 %v3208, %v3217
    %v3222 = vadd.f32 %v3209, %v3218
    %v3223 = vld [vmem:[#allocation2 + $0x7b] sm:$0x1]
    %v3224 = vlaneseq
    %v3225 = vshrl.u32 %v3224, 7
    %v3226 = vsub.s32 0, %v3225
    %v3227 = vrot.slane %v3223, %v3226
    %v3228 = vmul.f32 %v3227, %v3107
    %v3229 = vmul.f32 %v3227, %v3108
    %v3230 = vmul.f32 %v3227, %v3109
    %v3231 = vmul.f32 %v3227, %v3110
    %v3232 = vadd.f32 %v3219, %v3228
    %v3233 = vadd.f32 %v3220, %v3229
    %v3234 = vadd.f32 %v3221, %v3230
    %v3235 = vadd.f32 %v3222, %v3231
    %v3236 = vld [vmem:[#allocation2 + $0x94] sm:$0x1]
    %v3237 = vlaneseq
    %v3238 = vshrl.u32 %v3237, 7
    %v3239 = vsub.s32 0, %v3238
    %v3240 = vrot.slane %v3236, %v3239
    %v3241 = vmul.f32 %v3240, %v3111
    %v3242 = vmul.f32 %v3240, %v3112
    %v3243 = vmul.f32 %v3240, %v3113
    %v3244 = vmul.f32 %v3240, %v3114
    %v3245 = vadd.f32 %v3232, %v3241
    %v3246 = vadd.f32 %v3233, %v3242
    %v3247 = vadd.f32 %v3234, %v3243
    %v3248 = vadd.f32 %v3235, %v3244
    %3249 = vrot.lane.b32.xlu0 %v3107, 127
    %v3250 = vpop.permute.xlu0 %3249
    %3251 = vrot.lane.b32.xlu0 %v3108, 127
    %v3252 = vpop.permute.xlu0 %3251
    %3253 = vrot.lane.b32.xlu0 %v3109, 127
    %v3254 = vpop.permute.xlu0 %3253
    %3255 = vrot.lane.b32.xlu0 %v3110, 127
    %v3256 = vpop.permute.xlu0 %3255
    %3257 = vrot.lane.b32.xlu0 %v3111, 127
    %v3258 = vpop.permute.xlu0 %3257
    %3259 = vrot.lane.b32.xlu0 %v3112, 127
    %v3260 = vpop.permute.xlu0 %3259
    %3261 = vrot.lane.b32.xlu0 %v3113, 127
    %v3262 = vpop.permute.xlu0 %3261
    %3263 = vrot.lane.b32.xlu0 %v3114, 127
    %v3264 = vpop.permute.xlu0 %3263
    %v3273 = vld [vmem:[#allocation2 + $0x7c] sm:$0x1]
    %v3274 = vlaneseq
    %v3275 = vshrl.u32 %v3274, 7
    %v3276 = vsub.s32 0, %v3275
    %v3277 = vrot.slane %v3273, %v3276
    %v3278 = vmul.f32 %v3277, %v3250
    %v3279 = vmul.f32 %v3277, %v3252
    %v3280 = vmul.f32 %v3277, %v3254
    %v3281 = vmul.f32 %v3277, %v3256
    %v3282 = vadd.f32 %v3245, %v3278
    %v3283 = vadd.f32 %v3246, %v3279
    %v3284 = vadd.f32 %v3247, %v3280
    %v3285 = vadd.f32 %v3248, %v3281
    %v3286 = vld [vmem:[#allocation2 + $0x95] sm:$0x1]
    %v3287 = vlaneseq
    %v3288 = vshrl.u32 %v3287, 7
    %v3289 = vsub.s32 0, %v3288
    %v3290 = vrot.slane %v3286, %v3289
    %v3291 = vmul.f32 %v3290, %v3258
    %v3292 = vmul.f32 %v3290, %v3260
    %v3293 = vmul.f32 %v3290, %v3262
    %v3294 = vmul.f32 %v3290, %v3264
    %v3295 = vadd.f32 %v3282, %v3291
    %v3296 = vadd.f32 %v3283, %v3292
    %v3297 = vadd.f32 %v3284, %v3293
    %v3298 = vadd.f32 %v3285, %v3294
    %3299 = vrot.lane.b32.xlu0 %v3107, 126
    %v3300 = vpop.permute.xlu0 %3299
    %3301 = vrot.lane.b32.xlu0 %v3108, 126
    %v3302 = vpop.permute.xlu0 %3301
    %3303 = vrot.lane.b32.xlu0 %v3109, 126
    %v3304 = vpop.permute.xlu0 %3303
    %3305 = vrot.lane.b32.xlu0 %v3110, 126
    %v3306 = vpop.permute.xlu0 %3305
    %3307 = vrot.lane.b32.xlu0 %v3111, 126
    %v3308 = vpop.permute.xlu0 %3307
    %3309 = vrot.lane.b32.xlu0 %v3112, 126
    %v3310 = vpop.permute.xlu0 %3309
    %3311 = vrot.lane.b32.xlu0 %v3113, 126
    %v3312 = vpop.permute.xlu0 %3311
    %3313 = vrot.lane.b32.xlu0 %v3114, 126
    %v3314 = vpop.permute.xlu0 %3313
    %v3323 = vld [vmem:[#allocation2 + $0x7d] sm:$0x1]
    %v3324 = vlaneseq
    %v3325 = vshrl.u32 %v3324, 7
    %v3326 = vsub.s32 0, %v3325
    %v3327 = vrot.slane %v3323, %v3326
    %v3328 = vmul.f32 %v3327, %v3300
    %v3329 = vmul.f32 %v3327, %v3302
    %v3330 = vmul.f32 %v3327, %v3304
    %v3331 = vmul.f32 %v3327, %v3306
    %v3332 = vadd.f32 %v3295, %v3328
    %v3333 = vadd.f32 %v3296, %v3329
    %v3334 = vadd.f32 %v3297, %v3330
    %v3335 = vadd.f32 %v3298, %v3331
    %v3336 = vld [vmem:[#allocation2 + $0x96] sm:$0x1]
    %v3337 = vlaneseq
    %v3338 = vshrl.u32 %v3337, 7
    %v3339 = vsub.s32 0, %v3338
    %v3340 = vrot.slane %v3336, %v3339
    %v3341 = vmul.f32 %v3340, %v3308
    %v3342 = vmul.f32 %v3340, %v3310
    %v3343 = vmul.f32 %v3340, %v3312
    %v3344 = vmul.f32 %v3340, %v3314
    %v3345 = vadd.f32 %v3332, %v3341
    %v3346 = vadd.f32 %v3333, %v3342
    %v3347 = vadd.f32 %v3334, %v3343
    %v3348 = vadd.f32 %v3335, %v3344
    %v3349 = vrot.slane %v3059, 7
    %v3350 = vrot.slane %v3060, 7
    %v3351 = vsel %vm203, %v3349, %v3350
    %v3352 = vrot.slane %v3061, 7
    %v3353 = vsel %vm203, %v3350, %v3352
    %v3354 = vrot.slane %v3062, 7
    %v3355 = vsel %vm203, %v3352, %v3354
    %v3356 = vrot.slane %v3067, 7
    %v3357 = vsel %vm203, %v3354, %v3356
    %v3358 = vrot.slane %v3068, 7
    %v3359 = vsel %vm203, %v3356, %v3358
    %v3360 = vrot.slane %v3069, 7
    %v3361 = vsel %vm203, %v3358, %v3360
    %v3362 = vrot.slane %v3070, 7
    %v3363 = vsel %vm203, %v3360, %v3362
    %v3372 = vsel %vm203, 0.0, %v3349
    %vm3373 = vcmp.ge.s32.totalorder %v53, 1
    %vm3374 = vcmp.ge.s32.totalorder %v54, 1
    %vm3375 = vcmp.ge.s32.totalorder %v55, 1
    %vm3376 = vcmp.ge.s32.totalorder %v56, 1
    %v3377 = vsel %vm216, %v3372, 0.0
    %v3378 = vsel %vm217, %v3351, 0.0
    %v3379 = vsel %vm218, %v3353, 0.0
    %v3380 = vsel %vm219, %v3355, 0.0
    %v3381 = vsel %vm3373, %v3357, 0.0
    %v3382 = vsel %vm3374, %v3359, 0.0
    %v3383 = vsel %vm3375, %v3361, 0.0
    %v3384 = vsel %vm3376, %v3363, 0.0
    %3393 = vrot.lane.b32.xlu0 %v3377, 2
    %v3394 = vpop.permute.xlu0 %3393
    %3395 = vrot.lane.b32.xlu0 %v3378, 2
    %v3396 = vpop.permute.xlu0 %3395
    %3397 = vrot.lane.b32.xlu0 %v3379, 2
    %v3398 = vpop.permute.xlu0 %3397
    %3399 = vrot.lane.b32.xlu0 %v3380, 2
    %v3400 = vpop.permute.xlu0 %3399
    %3401 = vrot.lane.b32.xlu0 %v3381, 2
    %v3402 = vpop.permute.xlu0 %3401
    %3403 = vrot.lane.b32.xlu0 %v3382, 2
    %v3404 = vpop.permute.xlu0 %3403
    %3405 = vrot.lane.b32.xlu0 %v3383, 2
    %v3406 = vpop.permute.xlu0 %3405
    %3407 = vrot.lane.b32.xlu0 %v3384, 2
    %v3408 = vpop.permute.xlu0 %3407
    %v3417 = vld [vmem:[#allocation2 + $0x7e] sm:$0x1]
    %v3418 = vlaneseq
    %v3419 = vshrl.u32 %v3418, 7
    %v3420 = vsub.s32 0, %v3419
    %v3421 = vrot.slane %v3417, %v3420
    %v3422 = vmul.f32 %v3421, %v3394
    %v3423 = vmul.f32 %v3421, %v3396
    %v3424 = vmul.f32 %v3421, %v3398
    %v3425 = vmul.f32 %v3421, %v3400
    %v3426 = vadd.f32 %v3345, %v3422
    %v3427 = vadd.f32 %v3346, %v3423
    %v3428 = vadd.f32 %v3347, %v3424
    %v3429 = vadd.f32 %v3348, %v3425
    %v3430 = vld [vmem:[#allocation2 + $0x97] sm:$0x1]
    %v3431 = vlaneseq
    %v3432 = vshrl.u32 %v3431, 7
    %v3433 = vsub.s32 0, %v3432
    %v3434 = vrot.slane %v3430, %v3433
    %v3435 = vmul.f32 %v3434, %v3402
    %v3436 = vmul.f32 %v3434, %v3404
    %v3437 = vmul.f32 %v3434, %v3406
    %v3438 = vmul.f32 %v3434, %v3408
    %v3439 = vadd.f32 %v3426, %v3435
    %v3440 = vadd.f32 %v3427, %v3436
    %v3441 = vadd.f32 %v3428, %v3437
    %v3442 = vadd.f32 %v3429, %v3438
    %3443 = vrot.lane.b32.xlu0 %v3377, 1
    %v3444 = vpop.permute.xlu0 %3443
    %3445 = vrot.lane.b32.xlu0 %v3378, 1
    %v3446 = vpop.permute.xlu0 %3445
    %3447 = vrot.lane.b32.xlu0 %v3379, 1
    %v3448 = vpop.permute.xlu0 %3447
    %3449 = vrot.lane.b32.xlu0 %v3380, 1
    %v3450 = vpop.permute.xlu0 %3449
    %3451 = vrot.lane.b32.xlu0 %v3381, 1
    %v3452 = vpop.permute.xlu0 %3451
    %3453 = vrot.lane.b32.xlu0 %v3382, 1
    %v3454 = vpop.permute.xlu0 %3453
    %3455 = vrot.lane.b32.xlu0 %v3383, 1
    %v3456 = vpop.permute.xlu0 %3455
    %3457 = vrot.lane.b32.xlu0 %v3384, 1
    %v3458 = vpop.permute.xlu0 %3457
    %v3467 = vld [vmem:[#allocation2 + $0x7f] sm:$0x1]
    %v3468 = vlaneseq
    %v3469 = vshrl.u32 %v3468, 7
    %v3470 = vsub.s32 0, %v3469
    %v3471 = vrot.slane %v3467, %v3470
    %v3472 = vmul.f32 %v3471, %v3444
    %v3473 = vmul.f32 %v3471, %v3446
    %v3474 = vmul.f32 %v3471, %v3448
    %v3475 = vmul.f32 %v3471, %v3450
    %v3476 = vadd.f32 %v3439, %v3472
    %v3477 = vadd.f32 %v3440, %v3473
    %v3478 = vadd.f32 %v3441, %v3474
    %v3479 = vadd.f32 %v3442, %v3475
    %v3480 = vld [vmem:[#allocation2 + $0x98] sm:$0x1]
    %v3481 = vlaneseq
    %v3482 = vshrl.u32 %v3481, 7
    %v3483 = vsub.s32 0, %v3482
    %v3484 = vrot.slane %v3480, %v3483
    %v3485 = vmul.f32 %v3484, %v3452
    %v3486 = vmul.f32 %v3484, %v3454
    %v3487 = vmul.f32 %v3484, %v3456
    %v3488 = vmul.f32 %v3484, %v3458
    %v3489 = vadd.f32 %v3476, %v3485
    %v3490 = vadd.f32 %v3477, %v3486
    %v3491 = vadd.f32 %v3478, %v3487
    %v3492 = vadd.f32 %v3479, %v3488
    %v3493 = vld [vmem:[#allocation2 + $0x80] sm:$0x1]
    %v3494 = vlaneseq
    %v3495 = vshrl.u32 %v3494, 7
    %v3496 = vsub.s32 0, %v3495
    %v3497 = vrot.slane %v3493, %v3496
    %v3498 = vmul.f32 %v3497, %v3377
    %v3499 = vmul.f32 %v3497, %v3378
    %v3500 = vmul.f32 %v3497, %v3379
    %v3501 = vmul.f32 %v3497, %v3380
    %v3502 = vadd.f32 %v3489, %v3498
    %v3503 = vadd.f32 %v3490, %v3499
    %v3504 = vadd.f32 %v3491, %v3500
    %v3505 = vadd.f32 %v3492, %v3501
    %v3506 = vld [vmem:[#allocation2 + $0x99] sm:$0x1]
    %v3507 = vlaneseq
    %v3508 = vshrl.u32 %v3507, 7
    %v3509 = vsub.s32 0, %v3508
    %v3510 = vrot.slane %v3506, %v3509
    %v3511 = vmul.f32 %v3510, %v3381
    %v3512 = vmul.f32 %v3510, %v3382
    %v3513 = vmul.f32 %v3510, %v3383
    %v3514 = vmul.f32 %v3510, %v3384
    %v3515 = vadd.f32 %v3502, %v3511
    %v3516 = vadd.f32 %v3503, %v3512
    %v3517 = vadd.f32 %v3504, %v3513
    %v3518 = vadd.f32 %v3505, %v3514
    %3519 = vrot.lane.b32.xlu0 %v3377, 127
    %v3520 = vpop.permute.xlu0 %3519
    %3521 = vrot.lane.b32.xlu0 %v3378, 127
    %v3522 = vpop.permute.xlu0 %3521
    %3523 = vrot.lane.b32.xlu0 %v3379, 127
    %v3524 = vpop.permute.xlu0 %3523
    %3525 = vrot.lane.b32.xlu0 %v3380, 127
    %v3526 = vpop.permute.xlu0 %3525
    %3527 = vrot.lane.b32.xlu0 %v3381, 127
    %v3528 = vpop.permute.xlu0 %3527
    %3529 = vrot.lane.b32.xlu0 %v3382, 127
    %v3530 = vpop.permute.xlu0 %3529
    %3531 = vrot.lane.b32.xlu0 %v3383, 127
    %v3532 = vpop.permute.xlu0 %3531
    %3533 = vrot.lane.b32.xlu0 %v3384, 127
    %v3534 = vpop.permute.xlu0 %3533
    %v3543 = vld [vmem:[#allocation2 + $0x81] sm:$0x1]
    %v3544 = vlaneseq
    %v3545 = vshrl.u32 %v3544, 7
    %v3546 = vsub.s32 0, %v3545
    %v3547 = vrot.slane %v3543, %v3546
    %v3548 = vmul.f32 %v3547, %v3520
    %v3549 = vmul.f32 %v3547, %v3522
    %v3550 = vmul.f32 %v3547, %v3524
    %v3551 = vmul.f32 %v3547, %v3526
    %v3552 = vadd.f32 %v3515, %v3548
    %v3553 = vadd.f32 %v3516, %v3549
    %v3554 = vadd.f32 %v3517, %v3550
    %v3555 = vadd.f32 %v3518, %v3551
    %v3556 = vld [vmem:[#allocation2 + $0x9a] sm:$0x1]
    %v3557 = vlaneseq
    %v3558 = vshrl.u32 %v3557, 7
    %v3559 = vsub.s32 0, %v3558
    %v3560 = vrot.slane %v3556, %v3559
    %v3561 = vmul.f32 %v3560, %v3528
    %v3562 = vmul.f32 %v3560, %v3530
    %v3563 = vmul.f32 %v3560, %v3532
    %v3564 = vmul.f32 %v3560, %v3534
    %v3565 = vadd.f32 %v3552, %v3561
    %v3566 = vadd.f32 %v3553, %v3562
    %v3567 = vadd.f32 %v3554, %v3563
    %v3568 = vadd.f32 %v3555, %v3564
    %3569 = vrot.lane.b32.xlu0 %v3377, 126
    %v3570 = vpop.permute.xlu0 %3569
    %3571 = vrot.lane.b32.xlu0 %v3378, 126
    %v3572 = vpop.permute.xlu0 %3571
    %3573 = vrot.lane.b32.xlu0 %v3379, 126
    %v3574 = vpop.permute.xlu0 %3573
    %3575 = vrot.lane.b32.xlu0 %v3380, 126
    %v3576 = vpop.permute.xlu0 %3575
    %3577 = vrot.lane.b32.xlu0 %v3381, 126
    %v3578 = vpop.permute.xlu0 %3577
    %3579 = vrot.lane.b32.xlu0 %v3382, 126
    %v3580 = vpop.permute.xlu0 %3579
    %3581 = vrot.lane.b32.xlu0 %v3383, 126
    %v3582 = vpop.permute.xlu0 %3581
    %3583 = vrot.lane.b32.xlu0 %v3384, 126
    %v3584 = vpop.permute.xlu0 %3583
    %v3593 = vld [vmem:[#allocation2 + $0x82] sm:$0x1]
    %v3594 = vlaneseq
    %v3595 = vshrl.u32 %v3594, 7
    %v3596 = vsub.s32 0, %v3595
    %v3597 = vrot.slane %v3593, %v3596
    %v3598 = vmul.f32 %v3597, %v3570
    %v3599 = vmul.f32 %v3597, %v3572
    %v3600 = vmul.f32 %v3597, %v3574
    %v3601 = vmul.f32 %v3597, %v3576
    %v3602 = vadd.f32 %v3565, %v3598
    %v3603 = vadd.f32 %v3566, %v3599
    %v3604 = vadd.f32 %v3567, %v3600
    %v3605 = vadd.f32 %v3568, %v3601
    %v3606 = vld [vmem:[#allocation2 + $0x9b] sm:$0x1]
    %v3607 = vlaneseq
    %v3608 = vshrl.u32 %v3607, 7
    %v3609 = vsub.s32 0, %v3608
    %v3610 = vrot.slane %v3606, %v3609
    %v3611 = vmul.f32 %v3610, %v3578
    %v3612 = vmul.f32 %v3610, %v3580
    %v3613 = vmul.f32 %v3610, %v3582
    %v3614 = vmul.f32 %v3610, %v3584
    %v3615 = vadd.f32 %v3602, %v3611
    %v3616 = vadd.f32 %v3603, %v3612
    %v3617 = vadd.f32 %v3604, %v3613
    %v3618 = vadd.f32 %v3605, %v3614
    %3619 = vrot.lane.b32.xlu0 %v3059, 2
    %v3620 = vpop.permute.xlu0 %3619
    %3621 = vrot.lane.b32.xlu0 %v3060, 2
    %v3622 = vpop.permute.xlu0 %3621
    %3623 = vrot.lane.b32.xlu0 %v3061, 2
    %v3624 = vpop.permute.xlu0 %3623
    %3625 = vrot.lane.b32.xlu0 %v3062, 2
    %v3626 = vpop.permute.xlu0 %3625
    %3627 = vrot.lane.b32.xlu0 %v3067, 2
    %v3628 = vpop.permute.xlu0 %3627
    %3629 = vrot.lane.b32.xlu0 %v3068, 2
    %v3630 = vpop.permute.xlu0 %3629
    %3631 = vrot.lane.b32.xlu0 %v3069, 2
    %v3632 = vpop.permute.xlu0 %3631
    %3633 = vrot.lane.b32.xlu0 %v3070, 2
    %v3634 = vpop.permute.xlu0 %3633
    %v3643 = vld [vmem:[#allocation2 + $0x83] sm:$0x1]
    %v3644 = vlaneseq
    %v3645 = vshrl.u32 %v3644, 7
    %v3646 = vsub.s32 0, %v3645
    %v3647 = vrot.slane %v3643, %v3646
    %v3648 = vmul.f32 %v3647, %v3620
    %v3649 = vmul.f32 %v3647, %v3622
    %v3650 = vmul.f32 %v3647, %v3624
    %v3651 = vmul.f32 %v3647, %v3626
    %v3652 = vadd.f32 %v3615, %v3648
    %v3653 = vadd.f32 %v3616, %v3649
    %v3654 = vadd.f32 %v3617, %v3650
    %v3655 = vadd.f32 %v3618, %v3651
    %v3656 = vld [vmem:[#allocation2 + $0x9c] sm:$0x1]
    %v3657 = vlaneseq
    %v3658 = vshrl.u32 %v3657, 7
    %v3659 = vsub.s32 0, %v3658
    %v3660 = vrot.slane %v3656, %v3659
    %v3661 = vmul.f32 %v3660, %v3628
    %v3662 = vmul.f32 %v3660, %v3630
    %v3663 = vmul.f32 %v3660, %v3632
    %v3664 = vmul.f32 %v3660, %v3634
    %v3665 = vadd.f32 %v3652, %v3661
    %v3666 = vadd.f32 %v3653, %v3662
    %v3667 = vadd.f32 %v3654, %v3663
    %v3668 = vadd.f32 %v3655, %v3664
    %3669 = vrot.lane.b32.xlu0 %v3059, 1
    %v3670 = vpop.permute.xlu0 %3669
    %3671 = vrot.lane.b32.xlu0 %v3060, 1
    %v3672 = vpop.permute.xlu0 %3671
    %3673 = vrot.lane.b32.xlu0 %v3061, 1
    %v3674 = vpop.permute.xlu0 %3673
    %3675 = vrot.lane.b32.xlu0 %v3062, 1
    %v3676 = vpop.permute.xlu0 %3675
    %3677 = vrot.lane.b32.xlu0 %v3067, 1
    %v3678 = vpop.permute.xlu0 %3677
    %3679 = vrot.lane.b32.xlu0 %v3068, 1
    %v3680 = vpop.permute.xlu0 %3679
    %3681 = vrot.lane.b32.xlu0 %v3069, 1
    %v3682 = vpop.permute.xlu0 %3681
    %3683 = vrot.lane.b32.xlu0 %v3070, 1
    %v3684 = vpop.permute.xlu0 %3683
    %v3693 = vld [vmem:[#allocation2 + $0x84] sm:$0x1]
    %v3694 = vlaneseq
    %v3695 = vshrl.u32 %v3694, 7
    %v3696 = vsub.s32 0, %v3695
    %v3697 = vrot.slane %v3693, %v3696
    %v3698 = vmul.f32 %v3697, %v3670
    %v3699 = vmul.f32 %v3697, %v3672
    %v3700 = vmul.f32 %v3697, %v3674
    %v3701 = vmul.f32 %v3697, %v3676
    %v3702 = vadd.f32 %v3665, %v3698
    %v3703 = vadd.f32 %v3666, %v3699
    %v3704 = vadd.f32 %v3667, %v3700
    %v3705 = vadd.f32 %v3668, %v3701
    %v3706 = vld [vmem:[#allocation2 + $0x9d] sm:$0x1]
    %v3707 = vlaneseq
    %v3708 = vshrl.u32 %v3707, 7
    %v3709 = vsub.s32 0, %v3708
    %v3710 = vrot.slane %v3706, %v3709
    %v3711 = vmul.f32 %v3710, %v3678
    %v3712 = vmul.f32 %v3710, %v3680
    %v3713 = vmul.f32 %v3710, %v3682
    %v3714 = vmul.f32 %v3710, %v3684
    %v3715 = vadd.f32 %v3702, %v3711
    %v3716 = vadd.f32 %v3703, %v3712
    %v3717 = vadd.f32 %v3704, %v3713
    %v3718 = vadd.f32 %v3705, %v3714
    %v3719 = vld [vmem:[#allocation2 + $0x85] sm:$0x1]
    %v3720 = vlaneseq
    %v3721 = vshrl.u32 %v3720, 7
    %v3722 = vsub.s32 0, %v3721
    %v3723 = vrot.slane %v3719, %v3722
    %v3724 = vmul.f32 %v3723, %v3059
    %v3725 = vmul.f32 %v3723, %v3060
    %v3726 = vmul.f32 %v3723, %v3061
    %v3727 = vmul.f32 %v3723, %v3062
    %v3728 = vadd.f32 %v3715, %v3724
    %v3729 = vadd.f32 %v3716, %v3725
    %v3730 = vadd.f32 %v3717, %v3726
    %v3731 = vadd.f32 %v3718, %v3727
    %v3732 = vld [vmem:[#allocation2 + $0x9e] sm:$0x1]
    %v3733 = vlaneseq
    %v3734 = vshrl.u32 %v3733, 7
    %v3735 = vsub.s32 0, %v3734
    %v3736 = vrot.slane %v3732, %v3735
    %v3737 = vmul.f32 %v3736, %v3067
    %v3738 = vmul.f32 %v3736, %v3068
    %v3739 = vmul.f32 %v3736, %v3069
    %v3740 = vmul.f32 %v3736, %v3070
    %v3741 = vadd.f32 %v3728, %v3737
    %v3742 = vadd.f32 %v3729, %v3738
    %v3743 = vadd.f32 %v3730, %v3739
    %v3744 = vadd.f32 %v3731, %v3740
    %3745 = vrot.lane.b32.xlu0 %v3059, 127
    %v3746 = vpop.permute.xlu0 %3745
    %3747 = vrot.lane.b32.xlu0 %v3060, 127
    %v3748 = vpop.permute.xlu0 %3747
    %3749 = vrot.lane.b32.xlu0 %v3061, 127
    %v3750 = vpop.permute.xlu0 %3749
    %3751 = vrot.lane.b32.xlu0 %v3062, 127
    %v3752 = vpop.permute.xlu0 %3751
    %3753 = vrot.lane.b32.xlu0 %v3067, 127
    %v3754 = vpop.permute.xlu0 %3753
    %3755 = vrot.lane.b32.xlu0 %v3068, 127
    %v3756 = vpop.permute.xlu0 %3755
    %3757 = vrot.lane.b32.xlu0 %v3069, 127
    %v3758 = vpop.permute.xlu0 %3757
    %3759 = vrot.lane.b32.xlu0 %v3070, 127
    %v3760 = vpop.permute.xlu0 %3759
    %v3769 = vld [vmem:[#allocation2 + $0x86] sm:$0x1]
    %v3770 = vlaneseq
    %v3771 = vshrl.u32 %v3770, 7
    %v3772 = vsub.s32 0, %v3771
    %v3773 = vrot.slane %v3769, %v3772
    %v3774 = vmul.f32 %v3773, %v3746
    %v3775 = vmul.f32 %v3773, %v3748
    %v3776 = vmul.f32 %v3773, %v3750
    %v3777 = vmul.f32 %v3773, %v3752
    %v3778 = vadd.f32 %v3741, %v3774
    %v3779 = vadd.f32 %v3742, %v3775
    %v3780 = vadd.f32 %v3743, %v3776
    %v3781 = vadd.f32 %v3744, %v3777
    %v3782 = vld [vmem:[#allocation2 + $0x9f] sm:$0x1]
    %v3783 = vlaneseq
    %v3784 = vshrl.u32 %v3783, 7
    %v3785 = vsub.s32 0, %v3784
    %v3786 = vrot.slane %v3782, %v3785
    %v3787 = vmul.f32 %v3786, %v3754
    %v3788 = vmul.f32 %v3786, %v3756
    %v3789 = vmul.f32 %v3786, %v3758
    %v3790 = vmul.f32 %v3786, %v3760
    %v3791 = vadd.f32 %v3778, %v3787
    %v3792 = vadd.f32 %v3779, %v3788
    %v3793 = vadd.f32 %v3780, %v3789
    %v3794 = vadd.f32 %v3781, %v3790
    %3795 = vrot.lane.b32.xlu0 %v3059, 126
    %v3796 = vpop.permute.xlu0 %3795
    %3797 = vrot.lane.b32.xlu0 %v3060, 126
    %v3798 = vpop.permute.xlu0 %3797
    %3799 = vrot.lane.b32.xlu0 %v3061, 126
    %v3800 = vpop.permute.xlu0 %3799
    %3801 = vrot.lane.b32.xlu0 %v3062, 126
    %v3802 = vpop.permute.xlu0 %3801
    %3803 = vrot.lane.b32.xlu0 %v3067, 126
    %v3804 = vpop.permute.xlu0 %3803
    %3805 = vrot.lane.b32.xlu0 %v3068, 126
    %v3806 = vpop.permute.xlu0 %3805
    %3807 = vrot.lane.b32.xlu0 %v3069, 126
    %v3808 = vpop.permute.xlu0 %3807
    %3809 = vrot.lane.b32.xlu0 %v3070, 126
    %v3810 = vpop.permute.xlu0 %3809
    %v3819 = vld [vmem:[#allocation2 + $0x87] sm:$0x1]
    %v3820 = vlaneseq
    %v3821 = vshrl.u32 %v3820, 7
    %v3822 = vsub.s32 0, %v3821
    %v3823 = vrot.slane %v3819, %v3822
    %v3824 = vmul.f32 %v3823, %v3796
    %v3825 = vmul.f32 %v3823, %v3798
    %v3826 = vmul.f32 %v3823, %v3800
    %v3827 = vmul.f32 %v3823, %v3802
    %v3828 = vadd.f32 %v3791, %v3824
    %v3829 = vadd.f32 %v3792, %v3825
    %v3830 = vadd.f32 %v3793, %v3826
    %v3831 = vadd.f32 %v3794, %v3827
    %v3832 = vld [vmem:[#allocation2 + $0xa0] sm:$0x1]
    %v3833 = vlaneseq
    %v3834 = vshrl.u32 %v3833, 7
    %v3835 = vsub.s32 0, %v3834
    %v3836 = vrot.slane %v3832, %v3835
    %v3837 = vmul.f32 %v3836, %v3804
    %v3838 = vmul.f32 %v3836, %v3806
    %v3839 = vmul.f32 %v3836, %v3808
    %v3840 = vmul.f32 %v3836, %v3810
    %v3841 = vadd.f32 %v3828, %v3837
    %v3842 = vadd.f32 %v3829, %v3838
    %v3843 = vadd.f32 %v3830, %v3839
    %v3844 = vadd.f32 %v3831, %v3840
    %v3845 = vrot.slane %v3059, 1
    %v3846 = vrot.slane %v3060, 1
    %v3847 = vsel %vm1496, %v3845, %v3846
    %v3848 = vrot.slane %v3061, 1
    %v3849 = vsel %vm1496, %v3846, %v3848
    %v3850 = vrot.slane %v3062, 1
    %v3851 = vsel %vm1496, %v3848, %v3850
    %v3852 = vrot.slane %v3067, 1
    %v3853 = vsel %vm1496, %v3850, %v3852
    %v3854 = vrot.slane %v3068, 1
    %v3855 = vsel %vm1496, %v3852, %v3854
    %v3856 = vrot.slane %v3069, 1
    %v3857 = vsel %vm1496, %v3854, %v3856
    %v3858 = vrot.slane %v3070, 1
    %v3859 = vsel %vm1496, %v3856, %v3858
    %v3868 = vsel %vm1496, %v3858, 0.0
    %vm3869 = vcmp.lt.s32.totalorder %v53, 15
    %vm3870 = vcmp.lt.s32.totalorder %v54, 15
    %vm3871 = vcmp.lt.s32.totalorder %v55, 15
    %vm3872 = vcmp.lt.s32.totalorder %v56, 15
    %v3873 = vsel %vm1509, %v3847, 0.0
    %v3874 = vsel %vm1510, %v3849, 0.0
    %v3875 = vsel %vm1511, %v3851, 0.0
    %v3876 = vsel %vm1512, %v3853, 0.0
    %v3877 = vsel %vm3869, %v3855, 0.0
    %v3878 = vsel %vm3870, %v3857, 0.0
    %v3879 = vsel %vm3871, %v3859, 0.0
    %v3880 = vsel %vm3872, %v3868, 0.0
    %3889 = vrot.lane.b32.xlu0 %v3873, 2
    %v3890 = vpop.permute.xlu0 %3889
    %3891 = vrot.lane.b32.xlu0 %v3874, 2
    %v3892 = vpop.permute.xlu0 %3891
    %3893 = vrot.lane.b32.xlu0 %v3875, 2
    %v3894 = vpop.permute.xlu0 %3893
    %3895 = vrot.lane.b32.xlu0 %v3876, 2
    %v3896 = vpop.permute.xlu0 %3895
    %3897 = vrot.lane.b32.xlu0 %v3877, 2
    %v3898 = vpop.permute.xlu0 %3897
    %3899 = vrot.lane.b32.xlu0 %v3878, 2
    %v3900 = vpop.permute.xlu0 %3899
    %3901 = vrot.lane.b32.xlu0 %v3879, 2
    %v3902 = vpop.permute.xlu0 %3901
    %3903 = vrot.lane.b32.xlu0 %v3880, 2
    %v3904 = vpop.permute.xlu0 %3903
    %v3913 = vld [vmem:[#allocation2 + $0x88] sm:$0x1]
    %v3914 = vlaneseq
    %v3915 = vshrl.u32 %v3914, 7
    %v3916 = vsub.s32 0, %v3915
    %v3917 = vrot.slane %v3913, %v3916
    %v3918 = vmul.f32 %v3917, %v3890
    %v3919 = vmul.f32 %v3917, %v3892
    %v3920 = vmul.f32 %v3917, %v3894
    %v3921 = vmul.f32 %v3917, %v3896
    %v3922 = vadd.f32 %v3841, %v3918
    %v3923 = vadd.f32 %v3842, %v3919
    %v3924 = vadd.f32 %v3843, %v3920
    %v3925 = vadd.f32 %v3844, %v3921
    %v3926 = vld [vmem:[#allocation2 + $0xa1] sm:$0x1]
    %v3927 = vlaneseq
    %v3928 = vshrl.u32 %v3927, 7
    %v3929 = vsub.s32 0, %v3928
    %v3930 = vrot.slane %v3926, %v3929
    %v3931 = vmul.f32 %v3930, %v3898
    %v3932 = vmul.f32 %v3930, %v3900
    %v3933 = vmul.f32 %v3930, %v3902
    %v3934 = vmul.f32 %v3930, %v3904
    %v3935 = vadd.f32 %v3922, %v3931
    %v3936 = vadd.f32 %v3923, %v3932
    %v3937 = vadd.f32 %v3924, %v3933
    %v3938 = vadd.f32 %v3925, %v3934
    %3939 = vrot.lane.b32.xlu0 %v3873, 1
    %v3940 = vpop.permute.xlu0 %3939
    %3941 = vrot.lane.b32.xlu0 %v3874, 1
    %v3942 = vpop.permute.xlu0 %3941
    %3943 = vrot.lane.b32.xlu0 %v3875, 1
    %v3944 = vpop.permute.xlu0 %3943
    %3945 = vrot.lane.b32.xlu0 %v3876, 1
    %v3946 = vpop.permute.xlu0 %3945
    %3947 = vrot.lane.b32.xlu0 %v3877, 1
    %v3948 = vpop.permute.xlu0 %3947
    %3949 = vrot.lane.b32.xlu0 %v3878, 1
    %v3950 = vpop.permute.xlu0 %3949
    %3951 = vrot.lane.b32.xlu0 %v3879, 1
    %v3952 = vpop.permute.xlu0 %3951
    %3953 = vrot.lane.b32.xlu0 %v3880, 1
    %v3954 = vpop.permute.xlu0 %3953
    %v3963 = vld [vmem:[#allocation2 + $0x89] sm:$0x1]
    %v3964 = vlaneseq
    %v3965 = vshrl.u32 %v3964, 7
    %v3966 = vsub.s32 0, %v3965
    %v3967 = vrot.slane %v3963, %v3966
    %v3968 = vmul.f32 %v3967, %v3940
    %v3969 = vmul.f32 %v3967, %v3942
    %v3970 = vmul.f32 %v3967, %v3944
    %v3971 = vmul.f32 %v3967, %v3946
    %v3972 = vadd.f32 %v3935, %v3968
    %v3973 = vadd.f32 %v3936, %v3969
    %v3974 = vadd.f32 %v3937, %v3970
    %v3975 = vadd.f32 %v3938, %v3971
    %v3976 = vld [vmem:[#allocation2 + $0xa2] sm:$0x1]
    %v3977 = vlaneseq
    %v3978 = vshrl.u32 %v3977, 7
    %v3979 = vsub.s32 0, %v3978
    %v3980 = vrot.slane %v3976, %v3979
    %v3981 = vmul.f32 %v3980, %v3948
    %v3982 = vmul.f32 %v3980, %v3950
    %v3983 = vmul.f32 %v3980, %v3952
    %v3984 = vmul.f32 %v3980, %v3954
    %v3985 = vadd.f32 %v3972, %v3981
    %v3986 = vadd.f32 %v3973, %v3982
    %v3987 = vadd.f32 %v3974, %v3983
    %v3988 = vadd.f32 %v3975, %v3984
    %v3989 = vld [vmem:[#allocation2 + $0x8a] sm:$0x1]
    %v3990 = vlaneseq
    %v3991 = vshrl.u32 %v3990, 7
    %v3992 = vsub.s32 0, %v3991
    %v3993 = vrot.slane %v3989, %v3992
    %v3994 = vmul.f32 %v3993, %v3873
    %v3995 = vmul.f32 %v3993, %v3874
    %v3996 = vmul.f32 %v3993, %v3875
    %v3997 = vmul.f32 %v3993, %v3876
    %v3998 = vadd.f32 %v3985, %v3994
    %v3999 = vadd.f32 %v3986, %v3995
    %v4000 = vadd.f32 %v3987, %v3996
    %v4001 = vadd.f32 %v3988, %v3997
    %v4002 = vld [vmem:[#allocation2 + $0xa3] sm:$0x1]
    %v4003 = vlaneseq
    %v4004 = vshrl.u32 %v4003, 7
    %v4005 = vsub.s32 0, %v4004
    %v4006 = vrot.slane %v4002, %v4005
    %v4007 = vmul.f32 %v4006, %v3877
    %v4008 = vmul.f32 %v4006, %v3878
    %v4009 = vmul.f32 %v4006, %v3879
    %v4010 = vmul.f32 %v4006, %v3880
    %v4011 = vadd.f32 %v3998, %v4007
    %v4012 = vadd.f32 %v3999, %v4008
    %v4013 = vadd.f32 %v4000, %v4009
    %v4014 = vadd.f32 %v4001, %v4010
    %4015 = vrot.lane.b32.xlu0 %v3873, 127
    %v4016 = vpop.permute.xlu0 %4015
    %4017 = vrot.lane.b32.xlu0 %v3874, 127
    %v4018 = vpop.permute.xlu0 %4017
    %4019 = vrot.lane.b32.xlu0 %v3875, 127
    %v4020 = vpop.permute.xlu0 %4019
    %4021 = vrot.lane.b32.xlu0 %v3876, 127
    %v4022 = vpop.permute.xlu0 %4021
    %4023 = vrot.lane.b32.xlu0 %v3877, 127
    %v4024 = vpop.permute.xlu0 %4023
    %4025 = vrot.lane.b32.xlu0 %v3878, 127
    %v4026 = vpop.permute.xlu0 %4025
    %4027 = vrot.lane.b32.xlu0 %v3879, 127
    %v4028 = vpop.permute.xlu0 %4027
    %4029 = vrot.lane.b32.xlu0 %v3880, 127
    %v4030 = vpop.permute.xlu0 %4029
    %v4039 = vld [vmem:[#allocation2 + $0x8b] sm:$0x1]
    %v4040 = vlaneseq
    %v4041 = vshrl.u32 %v4040, 7
    %v4042 = vsub.s32 0, %v4041
    %v4043 = vrot.slane %v4039, %v4042
    %v4044 = vmul.f32 %v4043, %v4016
    %v4045 = vmul.f32 %v4043, %v4018
    %v4046 = vmul.f32 %v4043, %v4020
    %v4047 = vmul.f32 %v4043, %v4022
    %v4048 = vadd.f32 %v4011, %v4044
    %v4049 = vadd.f32 %v4012, %v4045
    %v4050 = vadd.f32 %v4013, %v4046
    %v4051 = vadd.f32 %v4014, %v4047
    %v4052 = vld [vmem:[#allocation2 + $0xa4] sm:$0x1]
    %v4053 = vlaneseq
    %v4054 = vshrl.u32 %v4053, 7
    %v4055 = vsub.s32 0, %v4054
    %v4056 = vrot.slane %v4052, %v4055
    %v4057 = vmul.f32 %v4056, %v4024
    %v4058 = vmul.f32 %v4056, %v4026
    %v4059 = vmul.f32 %v4056, %v4028
    %v4060 = vmul.f32 %v4056, %v4030
    %v4061 = vadd.f32 %v4048, %v4057
    %v4062 = vadd.f32 %v4049, %v4058
    %v4063 = vadd.f32 %v4050, %v4059
    %v4064 = vadd.f32 %v4051, %v4060
    %4065 = vrot.lane.b32.xlu0 %v3873, 126
    %v4066 = vpop.permute.xlu0 %4065
    %4067 = vrot.lane.b32.xlu0 %v3874, 126
    %v4068 = vpop.permute.xlu0 %4067
    %4069 = vrot.lane.b32.xlu0 %v3875, 126
    %v4070 = vpop.permute.xlu0 %4069
    %4071 = vrot.lane.b32.xlu0 %v3876, 126
    %v4072 = vpop.permute.xlu0 %4071
    %4073 = vrot.lane.b32.xlu0 %v3877, 126
    %v4074 = vpop.permute.xlu0 %4073
    %4075 = vrot.lane.b32.xlu0 %v3878, 126
    %v4076 = vpop.permute.xlu0 %4075
    %4077 = vrot.lane.b32.xlu0 %v3879, 126
    %v4078 = vpop.permute.xlu0 %4077
    %4079 = vrot.lane.b32.xlu0 %v3880, 126
    %v4080 = vpop.permute.xlu0 %4079
    %v4089 = vld [vmem:[#allocation2 + $0x8c] sm:$0x1]
    %v4090 = vlaneseq
    %v4091 = vshrl.u32 %v4090, 7
    %v4092 = vsub.s32 0, %v4091
    %v4093 = vrot.slane %v4089, %v4092
    %v4094 = vmul.f32 %v4093, %v4066
    %v4095 = vmul.f32 %v4093, %v4068
    %v4096 = vmul.f32 %v4093, %v4070
    %v4097 = vmul.f32 %v4093, %v4072
    %v4098 = vadd.f32 %v4061, %v4094
    %v4099 = vadd.f32 %v4062, %v4095
    %v4100 = vadd.f32 %v4063, %v4096
    %v4101 = vadd.f32 %v4064, %v4097
    %v4102 = vld [vmem:[#allocation2 + $0xa5] sm:$0x1]
    %v4103 = vlaneseq
    %v4104 = vshrl.u32 %v4103, 7
    %v4105 = vsub.s32 0, %v4104
    %v4106 = vrot.slane %v4102, %v4105
    %v4107 = vmul.f32 %v4106, %v4074
    %v4108 = vmul.f32 %v4106, %v4076
    %v4109 = vmul.f32 %v4106, %v4078
    %v4110 = vmul.f32 %v4106, %v4080
    %v4111 = vadd.f32 %v4098, %v4107
    %v4112 = vadd.f32 %v4099, %v4108
    %v4113 = vadd.f32 %v4100, %v4109
    %v4114 = vadd.f32 %v4101, %v4110
    %v4115 = vrot.slane %v3059, 2
    %v4116 = vrot.slane %v3060, 2
    %v4117 = vsel %vm2383, %v4115, %v4116
    %v4118 = vrot.slane %v3061, 2
    %v4119 = vsel %vm2383, %v4116, %v4118
    %v4120 = vrot.slane %v3062, 2
    %v4121 = vsel %vm2383, %v4118, %v4120
    %v4122 = vrot.slane %v3067, 2
    %v4123 = vsel %vm2383, %v4120, %v4122
    %v4124 = vrot.slane %v3068, 2
    %v4125 = vsel %vm2383, %v4122, %v4124
    %v4126 = vrot.slane %v3069, 2
    %v4127 = vsel %vm2383, %v4124, %v4126
    %v4128 = vrot.slane %v3070, 2
    %v4129 = vsel %vm2383, %v4126, %v4128
    %v4138 = vsel %vm2383, %v4128, 0.0
    %vm4139 = vcmp.lt.s32.totalorder %v53, 14
    %vm4140 = vcmp.lt.s32.totalorder %v54, 14
    %vm4141 = vcmp.lt.s32.totalorder %v55, 14
    %vm4142 = vcmp.lt.s32.totalorder %v56, 14
    %v4143 = vsel %vm2396, %v4117, 0.0
    %v4144 = vsel %vm2397, %v4119, 0.0
    %v4145 = vsel %vm2398, %v4121, 0.0
    %v4146 = vsel %vm2399, %v4123, 0.0
    %v4147 = vsel %vm4139, %v4125, 0.0
    %v4148 = vsel %vm4140, %v4127, 0.0
    %v4149 = vsel %vm4141, %v4129, 0.0
    %v4150 = vsel %vm4142, %v4138, 0.0
    %4159 = vrot.lane.b32.xlu0 %v4143, 2
    %v4160 = vpop.permute.xlu0 %4159
    %4161 = vrot.lane.b32.xlu0 %v4144, 2
    %v4162 = vpop.permute.xlu0 %4161
    %4163 = vrot.lane.b32.xlu0 %v4145, 2
    %v4164 = vpop.permute.xlu0 %4163
    %4165 = vrot.lane.b32.xlu0 %v4146, 2
    %v4166 = vpop.permute.xlu0 %4165
    %4167 = vrot.lane.b32.xlu0 %v4147, 2
    %v4168 = vpop.permute.xlu0 %4167
    %4169 = vrot.lane.b32.xlu0 %v4148, 2
    %v4170 = vpop.permute.xlu0 %4169
    %4171 = vrot.lane.b32.xlu0 %v4149, 2
    %v4172 = vpop.permute.xlu0 %4171
    %4173 = vrot.lane.b32.xlu0 %v4150, 2
    %v4174 = vpop.permute.xlu0 %4173
    %v4183 = vld [vmem:[#allocation2 + $0x8d] sm:$0x1]
    %v4184 = vlaneseq
    %v4185 = vshrl.u32 %v4184, 7
    %v4186 = vsub.s32 0, %v4185
    %v4187 = vrot.slane %v4183, %v4186
    %v4188 = vmul.f32 %v4187, %v4160
    %v4189 = vmul.f32 %v4187, %v4162
    %v4190 = vmul.f32 %v4187, %v4164
    %v4191 = vmul.f32 %v4187, %v4166
    %v4192 = vadd.f32 %v4111, %v4188
    %v4193 = vadd.f32 %v4112, %v4189
    %v4194 = vadd.f32 %v4113, %v4190
    %v4195 = vadd.f32 %v4114, %v4191
    %v4196 = vld [vmem:[#allocation2 + $0xa6] sm:$0x1]
    %v4197 = vlaneseq
    %v4198 = vshrl.u32 %v4197, 7
    %v4199 = vsub.s32 0, %v4198
    %v4200 = vrot.slane %v4196, %v4199
    %v4201 = vmul.f32 %v4200, %v4168
    %v4202 = vmul.f32 %v4200, %v4170
    %v4203 = vmul.f32 %v4200, %v4172
    %v4204 = vmul.f32 %v4200, %v4174
    %v4205 = vadd.f32 %v4192, %v4201
    %v4206 = vadd.f32 %v4193, %v4202
    %v4207 = vadd.f32 %v4194, %v4203
    %v4208 = vadd.f32 %v4195, %v4204
    %4209 = vrot.lane.b32.xlu0 %v4143, 1
    %v4210 = vpop.permute.xlu0 %4209
    %4211 = vrot.lane.b32.xlu0 %v4144, 1
    %v4212 = vpop.permute.xlu0 %4211
    %4213 = vrot.lane.b32.xlu0 %v4145, 1
    %v4214 = vpop.permute.xlu0 %4213
    %4215 = vrot.lane.b32.xlu0 %v4146, 1
    %v4216 = vpop.permute.xlu0 %4215
    %4217 = vrot.lane.b32.xlu0 %v4147, 1
    %v4218 = vpop.permute.xlu0 %4217
    %4219 = vrot.lane.b32.xlu0 %v4148, 1
    %v4220 = vpop.permute.xlu0 %4219
    %4221 = vrot.lane.b32.xlu0 %v4149, 1
    %v4222 = vpop.permute.xlu0 %4221
    %4223 = vrot.lane.b32.xlu0 %v4150, 1
    %v4224 = vpop.permute.xlu0 %4223
    %v4233 = vld [vmem:[#allocation2 + $0x8e] sm:$0x1]
    %v4234 = vlaneseq
    %v4235 = vshrl.u32 %v4234, 7
    %v4236 = vsub.s32 0, %v4235
    %v4237 = vrot.slane %v4233, %v4236
    %v4238 = vmul.f32 %v4237, %v4210
    %v4239 = vmul.f32 %v4237, %v4212
    %v4240 = vmul.f32 %v4237, %v4214
    %v4241 = vmul.f32 %v4237, %v4216
    %v4242 = vadd.f32 %v4205, %v4238
    %v4243 = vadd.f32 %v4206, %v4239
    %v4244 = vadd.f32 %v4207, %v4240
    %v4245 = vadd.f32 %v4208, %v4241
    %v4246 = vld [vmem:[#allocation2 + $0xa7] sm:$0x1]
    %v4247 = vlaneseq
    %v4248 = vshrl.u32 %v4247, 7
    %v4249 = vsub.s32 0, %v4248
    %v4250 = vrot.slane %v4246, %v4249
    %v4251 = vmul.f32 %v4250, %v4218
    %v4252 = vmul.f32 %v4250, %v4220
    %v4253 = vmul.f32 %v4250, %v4222
    %v4254 = vmul.f32 %v4250, %v4224
    %v4255 = vadd.f32 %v4242, %v4251
    %v4256 = vadd.f32 %v4243, %v4252
    %v4257 = vadd.f32 %v4244, %v4253
    %v4258 = vadd.f32 %v4245, %v4254
    %v4259 = vld [vmem:[#allocation2 + $0x8f] sm:$0x1]
    %v4260 = vlaneseq
    %v4261 = vshrl.u32 %v4260, 7
    %v4262 = vsub.s32 0, %v4261
    %v4263 = vrot.slane %v4259, %v4262
    %v4264 = vmul.f32 %v4263, %v4143
    %v4265 = vmul.f32 %v4263, %v4144
    %v4266 = vmul.f32 %v4263, %v4145
    %v4267 = vmul.f32 %v4263, %v4146
    %v4268 = vadd.f32 %v4255, %v4264
    %v4269 = vadd.f32 %v4256, %v4265
    %v4270 = vadd.f32 %v4257, %v4266
    %v4271 = vadd.f32 %v4258, %v4267
    %v4272 = vld [vmem:[#allocation2 + $0xa8] sm:$0x1]
    %v4273 = vlaneseq
    %v4274 = vshrl.u32 %v4273, 7
    %v4275 = vsub.s32 0, %v4274
    %v4276 = vrot.slane %v4272, %v4275
    %v4277 = vmul.f32 %v4276, %v4147
    %v4278 = vmul.f32 %v4276, %v4148
    %v4279 = vmul.f32 %v4276, %v4149
    %v4280 = vmul.f32 %v4276, %v4150
    %v4281 = vadd.f32 %v4268, %v4277
    %v4282 = vadd.f32 %v4269, %v4278
    %v4283 = vadd.f32 %v4270, %v4279
    %v4284 = vadd.f32 %v4271, %v4280
    %4285 = vrot.lane.b32.xlu0 %v4143, 127
    %v4286 = vpop.permute.xlu0 %4285
    %4287 = vrot.lane.b32.xlu0 %v4144, 127
    %v4288 = vpop.permute.xlu0 %4287
    %4289 = vrot.lane.b32.xlu0 %v4145, 127
    %v4290 = vpop.permute.xlu0 %4289
    %4291 = vrot.lane.b32.xlu0 %v4146, 127
    %v4292 = vpop.permute.xlu0 %4291
    %4293 = vrot.lane.b32.xlu0 %v4147, 127
    %v4294 = vpop.permute.xlu0 %4293
    %4295 = vrot.lane.b32.xlu0 %v4148, 127
    %v4296 = vpop.permute.xlu0 %4295
    %4297 = vrot.lane.b32.xlu0 %v4149, 127
    %v4298 = vpop.permute.xlu0 %4297
    %4299 = vrot.lane.b32.xlu0 %v4150, 127
    %v4300 = vpop.permute.xlu0 %4299
    %v4309 = vld [vmem:[#allocation2 + $0x90] sm:$0x1]
    %v4310 = vlaneseq
    %v4311 = vshrl.u32 %v4310, 7
    %v4312 = vsub.s32 0, %v4311
    %v4313 = vrot.slane %v4309, %v4312
    %v4314 = vmul.f32 %v4313, %v4286
    %v4315 = vmul.f32 %v4313, %v4288
    %v4316 = vmul.f32 %v4313, %v4290
    %v4317 = vmul.f32 %v4313, %v4292
    %v4318 = vadd.f32 %v4281, %v4314
    %v4319 = vadd.f32 %v4282, %v4315
    %v4320 = vadd.f32 %v4283, %v4316
    %v4321 = vadd.f32 %v4284, %v4317
    %v4322 = vld [vmem:[#allocation2 + $0xa9] sm:$0x1]
    %v4323 = vlaneseq
    %v4324 = vshrl.u32 %v4323, 7
    %v4325 = vsub.s32 0, %v4324
    %v4326 = vrot.slane %v4322, %v4325
    %v4327 = vmul.f32 %v4326, %v4294
    %v4328 = vmul.f32 %v4326, %v4296
    %v4329 = vmul.f32 %v4326, %v4298
    %v4330 = vmul.f32 %v4326, %v4300
    %v4331 = vadd.f32 %v4318, %v4327
    %v4332 = vadd.f32 %v4319, %v4328
    %v4333 = vadd.f32 %v4320, %v4329
    %v4334 = vadd.f32 %v4321, %v4330
    %4335 = vrot.lane.b32.xlu0 %v4143, 126
    %v4336 = vpop.permute.xlu0 %4335
    %4337 = vrot.lane.b32.xlu0 %v4144, 126
    %v4338 = vpop.permute.xlu0 %4337
    %4339 = vrot.lane.b32.xlu0 %v4145, 126
    %v4340 = vpop.permute.xlu0 %4339
    %4341 = vrot.lane.b32.xlu0 %v4146, 126
    %v4342 = vpop.permute.xlu0 %4341
    %4343 = vrot.lane.b32.xlu0 %v4147, 126
    %v4344 = vpop.permute.xlu0 %4343
    %4345 = vrot.lane.b32.xlu0 %v4148, 126
    %v4346 = vpop.permute.xlu0 %4345
    %4347 = vrot.lane.b32.xlu0 %v4149, 126
    %v4348 = vpop.permute.xlu0 %4347
    %4349 = vrot.lane.b32.xlu0 %v4150, 126
    %v4350 = vpop.permute.xlu0 %4349
    %v4359 = vld [vmem:[#allocation2 + $0x91] sm:$0x1]
    %v4360 = vlaneseq
    %v4361 = vshrl.u32 %v4360, 7
    %v4362 = vsub.s32 0, %v4361
    %v4363 = vrot.slane %v4359, %v4362
    %v4364 = vmul.f32 %v4363, %v4336
    %v4365 = vmul.f32 %v4363, %v4338
    %v4366 = vmul.f32 %v4363, %v4340
    %v4367 = vmul.f32 %v4363, %v4342
    %v4368 = vadd.f32 %v4331, %v4364
    %v4369 = vadd.f32 %v4332, %v4365
    %v4370 = vadd.f32 %v4333, %v4366
    %v4371 = vadd.f32 %v4334, %v4367
    %v4372 = vld [vmem:[#allocation2 + $0xaa] sm:$0x1]
    %v4373 = vlaneseq
    %v4374 = vshrl.u32 %v4373, 7
    %v4375 = vsub.s32 0, %v4374
    %v4376 = vrot.slane %v4372, %v4375
    %v4377 = vmul.f32 %v4376, %v4344
    %v4378 = vmul.f32 %v4376, %v4346
    %v4379 = vmul.f32 %v4376, %v4348
    %v4380 = vmul.f32 %v4376, %v4350
    %v4381 = vadd.f32 %v4368, %v4377
    %v4382 = vadd.f32 %v4369, %v4378
    %v4383 = vadd.f32 %v4370, %v4379
    %v4384 = vadd.f32 %v4371, %v4380
    %v4385 = vsub.f32 0.0, %v4381
    %v4386 = vsub.f32 0.0, %v4382
    %v4387 = vsub.f32 0.0, %v4383
    %v4388 = vsub.f32 0.0, %v4384
    %v4389 = vmul.f32 %v4385, 1.442695
    %v4390 = vpow.pop %v4389
    %v4391 = vmul.f32 %v4386, 1.442695
    %v4392 = vpow.pop %v4391
    %v4393 = vmul.f32 %v4387, 1.442695
    %v4394 = vpow.pop %v4393
    %v4395 = vmul.f32 %v4388, 1.442695
    %v4396 = vpow.pop %v4395
    %v4397 = vadd.f32 %v4390, 1.0
    %v4398 = vadd.f32 %v4392, 1.0
    %v4399 = vadd.f32 %v4394, 1.0
    %v4400 = vadd.f32 %v4396, 1.0
    %v4401 = vrcp.pop %v4397
    %v4402 = vmul.f32 1.0, %v4401
    %v4403 = vrcp.pop %v4398
    %v4404 = vmul.f32 1.0, %v4403
    %v4405 = vrcp.pop %v4399
    %v4406 = vmul.f32 1.0, %v4405
    %v4407 = vrcp.pop %v4400
    %v4408 = vmul.f32 1.0, %v4407
    %v4409 = vmul.f32 %v4402, %v2790
    %v4410 = vmul.f32 %v4404, %v2790
    %v4411 = vmul.f32 %v4406, %v2790
    %v4412 = vmul.f32 %v4408, %v2790
    %4417 = vrot.lane.b32.xlu0 %v4409, 96
    %v4418 = vpop.permute.xlu0 %4417
    %4419 = vrot.lane.b32.xlu0 %v4410, 96
    %v4420 = vpop.permute.xlu0 %4419
    %4421 = vrot.lane.b32.xlu0 %v4411, 96
    %v4422 = vpop.permute.xlu0 %4421
    %4423 = vrot.lane.b32.xlu0 %v4412, 96
    %v4424 = vpop.permute.xlu0 %4423
    %v4429 = vadd.f32 %v4409, %v4418
    %v4430 = vadd.f32 %v4410, %v4420
    %v4431 = vadd.f32 %v4411, %v4422
    %v4432 = vadd.f32 %v4412, %v4424
    %4433 = vrot.lane.b32.xlu0 %v4409, 64
    %v4434 = vpop.permute.xlu0 %4433
    %4435 = vrot.lane.b32.xlu0 %v4410, 64
    %v4436 = vpop.permute.xlu0 %4435
    %4437 = vrot.lane.b32.xlu0 %v4411, 64
    %v4438 = vpop.permute.xlu0 %4437
    %4439 = vrot.lane.b32.xlu0 %v4412, 64
    %v4440 = vpop.permute.xlu0 %4439
    %v4445 = vadd.f32 %v4429, %v4434
    %v4446 = vadd.f32 %v4430, %v4436
    %v4447 = vadd.f32 %v4431, %v4438
    %v4448 = vadd.f32 %v4432, %v4440
    %4449 = vrot.lane.b32.xlu0 %v4409, 32
    %v4450 = vpop.permute.xlu0 %4449
    %4451 = vrot.lane.b32.xlu0 %v4410, 32
    %v4452 = vpop.permute.xlu0 %4451
    %4453 = vrot.lane.b32.xlu0 %v4411, 32
    %v4454 = vpop.permute.xlu0 %4453
    %4455 = vrot.lane.b32.xlu0 %v4412, 32
    %v4456 = vpop.permute.xlu0 %4455
    %v4461 = vadd.f32 %v4445, %v4450
    %v4462 = vadd.f32 %v4446, %v4452
    %v4463 = vadd.f32 %v4447, %v4454
    %v4464 = vadd.f32 %v4448, %v4456
    %v4465 = vmul.f32 %v4461, %v1284
    %v4466 = vmul.f32 %v4462, %v1285
    %v4467 = vmul.f32 %v4463, %v1286
    %v4468 = vmul.f32 %v4464, %v1287
    %v4469 = vadd.f32 %v131, %v4465
    %v4470 = vadd.f32 %v132, %v4466
    %v4471 = vadd.f32 %v197, %v4467
    %v4472 = vadd.f32 %v198, %v4468
    %v4473 = vmul.f32 %v4402, %v2878
    %v4474 = vmul.f32 %v4404, %v2878
    %v4475 = vmul.f32 %v4406, %v2878
    %v4476 = vmul.f32 %v4408, %v2878
    %4481 = vrot.lane.b32.xlu0 %v4473, 96
    %v4482 = vpop.permute.xlu0 %4481
    %4483 = vrot.lane.b32.xlu0 %v4474, 96
    %v4484 = vpop.permute.xlu0 %4483
    %4485 = vrot.lane.b32.xlu0 %v4475, 96
    %v4486 = vpop.permute.xlu0 %4485
    %4487 = vrot.lane.b32.xlu0 %v4476, 96
    %v4488 = vpop.permute.xlu0 %4487
    %v4493 = vadd.f32 %v4473, %v4482
    %v4494 = vadd.f32 %v4474, %v4484
    %v4495 = vadd.f32 %v4475, %v4486
    %v4496 = vadd.f32 %v4476, %v4488
    %4497 = vrot.lane.b32.xlu0 %v4473, 64
    %v4498 = vpop.permute.xlu0 %4497
    %4499 = vrot.lane.b32.xlu0 %v4474, 64
    %v4500 = vpop.permute.xlu0 %4499
    %4501 = vrot.lane.b32.xlu0 %v4475, 64
    %v4502 = vpop.permute.xlu0 %4501
    %4503 = vrot.lane.b32.xlu0 %v4476, 64
    %v4504 = vpop.permute.xlu0 %4503
    %v4509 = vadd.f32 %v4493, %v4498
    %v4510 = vadd.f32 %v4494, %v4500
    %v4511 = vadd.f32 %v4495, %v4502
    %v4512 = vadd.f32 %v4496, %v4504
    %4513 = vrot.lane.b32.xlu0 %v4473, 32
    %v4514 = vpop.permute.xlu0 %4513
    %4515 = vrot.lane.b32.xlu0 %v4474, 32
    %v4516 = vpop.permute.xlu0 %4515
    %4517 = vrot.lane.b32.xlu0 %v4475, 32
    %v4518 = vpop.permute.xlu0 %4517
    %4519 = vrot.lane.b32.xlu0 %v4476, 32
    %v4520 = vpop.permute.xlu0 %4519
    %v4525 = vadd.f32 %v4509, %v4514
    %v4526 = vadd.f32 %v4510, %v4516
    %v4527 = vadd.f32 %v4511, %v4518
    %v4528 = vadd.f32 %v4512, %v4520
    %v4529 = vmul.f32 %v4525, %v2263
    %v4530 = vmul.f32 %v4526, %v2264
    %v4531 = vmul.f32 %v4527, %v2265
    %v4532 = vmul.f32 %v4528, %v2266
    %v4533 = vadd.f32 %v4469, %v4529
    %v4534 = vadd.f32 %v4470, %v4530
    %v4535 = vadd.f32 %v4471, %v4531
    %v4536 = vadd.f32 %v4472, %v4532
    %v4537 = vmul.f32 %v4402, %v2966
    %v4538 = vmul.f32 %v4404, %v2966
    %v4539 = vmul.f32 %v4406, %v2966
    %v4540 = vmul.f32 %v4408, %v2966
    %4545 = vrot.lane.b32.xlu0 %v4537, 96
    %v4546 = vpop.permute.xlu0 %4545
    %4547 = vrot.lane.b32.xlu0 %v4538, 96
    %v4548 = vpop.permute.xlu0 %4547
    %4549 = vrot.lane.b32.xlu0 %v4539, 96
    %v4550 = vpop.permute.xlu0 %4549
    %4551 = vrot.lane.b32.xlu0 %v4540, 96
    %v4552 = vpop.permute.xlu0 %4551
    %v4557 = vadd.f32 %v4537, %v4546
    %v4558 = vadd.f32 %v4538, %v4548
    %v4559 = vadd.f32 %v4539, %v4550
    %v4560 = vadd.f32 %v4540, %v4552
    %4561 = vrot.lane.b32.xlu0 %v4537, 64
    %v4562 = vpop.permute.xlu0 %4561
    %4563 = vrot.lane.b32.xlu0 %v4538, 64
    %v4564 = vpop.permute.xlu0 %4563
    %4565 = vrot.lane.b32.xlu0 %v4539, 64
    %v4566 = vpop.permute.xlu0 %4565
    %4567 = vrot.lane.b32.xlu0 %v4540, 64
    %v4568 = vpop.permute.xlu0 %4567
    %v4573 = vadd.f32 %v4557, %v4562
    %v4574 = vadd.f32 %v4558, %v4564
    %v4575 = vadd.f32 %v4559, %v4566
    %v4576 = vadd.f32 %v4560, %v4568
    %4577 = vrot.lane.b32.xlu0 %v4537, 32
    %v4578 = vpop.permute.xlu0 %4577
    %4579 = vrot.lane.b32.xlu0 %v4538, 32
    %v4580 = vpop.permute.xlu0 %4579
    %4581 = vrot.lane.b32.xlu0 %v4539, 32
    %v4582 = vpop.permute.xlu0 %4581
    %4583 = vrot.lane.b32.xlu0 %v4540, 32
    %v4584 = vpop.permute.xlu0 %4583
    %v4589 = vadd.f32 %v4573, %v4578
    %v4590 = vadd.f32 %v4574, %v4580
    %v4591 = vadd.f32 %v4575, %v4582
    %v4592 = vadd.f32 %v4576, %v4584
    %v4593 = vmul.f32 %v4589, %v2451
    %v4594 = vmul.f32 %v4590, %v2452
    %v4595 = vmul.f32 %v4591, %v2453
    %v4596 = vmul.f32 %v4592, %v2454
    %v4597 = vadd.f32 %v4533, %v4593
    %v4598 = vadd.f32 %v4534, %v4594
    %v4599 = vadd.f32 %v4535, %v4595
    %v4600 = vadd.f32 %v4536, %v4596
    %v4601 = vmul.f32 %v4402, %v3054
    %v4602 = vmul.f32 %v4404, %v3054
    %v4603 = vmul.f32 %v4406, %v3054
    %v4604 = vmul.f32 %v4408, %v3054
    %4609 = vrot.lane.b32.xlu0 %v4601, 96
    %v4610 = vpop.permute.xlu0 %4609
    %4611 = vrot.lane.b32.xlu0 %v4602, 96
    %v4612 = vpop.permute.xlu0 %4611
    %4613 = vrot.lane.b32.xlu0 %v4603, 96
    %v4614 = vpop.permute.xlu0 %4613
    %4615 = vrot.lane.b32.xlu0 %v4604, 96
    %v4616 = vpop.permute.xlu0 %4615
    %v4621 = vadd.f32 %v4601, %v4610
    %v4622 = vadd.f32 %v4602, %v4612
    %v4623 = vadd.f32 %v4603, %v4614
    %v4624 = vadd.f32 %v4604, %v4616
    %4625 = vrot.lane.b32.xlu0 %v4601, 64
    %v4626 = vpop.permute.xlu0 %4625
    %4627 = vrot.lane.b32.xlu0 %v4602, 64
    %v4628 = vpop.permute.xlu0 %4627
    %4629 = vrot.lane.b32.xlu0 %v4603, 64
    %v4630 = vpop.permute.xlu0 %4629
    %4631 = vrot.lane.b32.xlu0 %v4604, 64
    %v4632 = vpop.permute.xlu0 %4631
    %v4637 = vadd.f32 %v4621, %v4626
    %v4638 = vadd.f32 %v4622, %v4628
    %v4639 = vadd.f32 %v4623, %v4630
    %v4640 = vadd.f32 %v4624, %v4632
    %4641 = vrot.lane.b32.xlu0 %v4601, 32
    %v4642 = vpop.permute.xlu0 %4641
    %4643 = vrot.lane.b32.xlu0 %v4602, 32
    %v4644 = vpop.permute.xlu0 %4643
    %4645 = vrot.lane.b32.xlu0 %v4603, 32
    %v4646 = vpop.permute.xlu0 %4645
    %4647 = vrot.lane.b32.xlu0 %v4604, 32
    %v4648 = vpop.permute.xlu0 %4647
    %v4653 = vadd.f32 %v4637, %v4642
    %v4654 = vadd.f32 %v4638, %v4644
    %v4655 = vadd.f32 %v4639, %v4646
    %v4656 = vadd.f32 %v4640, %v4648
    %v4657 = vmul.f32 %v4653, %v2711
    %v4658 = vmul.f32 %v4654, %v2712
    %v4659 = vmul.f32 %v4655, %v2713
    %v4660 = vmul.f32 %v4656, %v2714
    %v4661 = vadd.f32 %v4597, %v4657
    %v4662 = vadd.f32 %v4598, %v4658
    %v4663 = vadd.f32 %v4599, %v4659
    %v4664 = vadd.f32 %v4600, %v4660
    %4667 = vrot.lane.b32.xlu0 %v4661, 125
    %v4668 = vpop.permute.xlu0 %4667
    %4669 = vrot.lane.b32.xlu0 %v4662, 125
    %v4670 = vpop.permute.xlu0 %4669
    %vm4673 = vcmask 130048
    %4674 = vst.msk [vmem:[#allocation7] sm:$0xff] %vm4673, %v4668
    %4675 = vst.msk [vmem:[#allocation7 + $0x8] sm:$0xff] %vm4673, %v4670
    %4676 = vrot.lane.b32.xlu0 %v4661, 93
    %v4677 = vpop.permute.xlu0 %4676
    %4678 = vrot.lane.b32.xlu0 %v4662, 93
    %v4679 = vpop.permute.xlu0 %4678
    %s4682 = scalar_lea.vmem [#allocation7], 16
    %4683 = vst.msk [vmem:[%s4682] sm:$0xff] %vm4673, %v4677
    %4684 = vst.msk [vmem:[%s4682 + $0x8] sm:$0xff] %vm4673, %v4679
    %4685 = vrot.lane.b32.xlu0 %v4661, 61
    %v4686 = vpop.permute.xlu0 %4685
    %4687 = vrot.lane.b32.xlu0 %v4662, 61
    %v4688 = vpop.permute.xlu0 %4687
    %s4691 = scalar_lea.vmem [#allocation7], 32
    %4692 = vst.msk [vmem:[%s4691] sm:$0xff] %vm4673, %v4686
    %4693 = vst.msk [vmem:[%s4691 + $0x8] sm:$0xff] %vm4673, %v4688
    %4694 = vrot.lane.b32.xlu0 %v4661, 29
    %v4695 = vpop.permute.xlu0 %4694
    %4696 = vrot.lane.b32.xlu0 %v4662, 29
    %v4697 = vpop.permute.xlu0 %4696
    %s4700 = scalar_lea.vmem [#allocation7], 48
    %4701 = vst.msk [vmem:[%s4700] sm:$0xff] %vm4673, %v4695
    %4702 = vst.msk [vmem:[%s4700 + $0x8] sm:$0xff] %vm4673, %v4697
    %4705 = vrot.lane.b32.xlu0 %v4663, 125
    %v4706 = vpop.permute.xlu0 %4705
    %4707 = vrot.lane.b32.xlu0 %v4664, 125
    %v4708 = vpop.permute.xlu0 %4707
    %s4711 = scalar_lea.vmem [#allocation7], 64
    %4712 = vst.msk [vmem:[%s4711] sm:$0xff] %vm4673, %v4706
    %4713 = vst.msk [vmem:[%s4711 + $0x8] sm:$0xff] %vm4673, %v4708
    %4714 = vrot.lane.b32.xlu0 %v4663, 93
    %v4715 = vpop.permute.xlu0 %4714
    %4716 = vrot.lane.b32.xlu0 %v4664, 93
    %v4717 = vpop.permute.xlu0 %4716
    %s4720 = scalar_lea.vmem [#allocation7], 80
    %4721 = vst.msk [vmem:[%s4720] sm:$0xff] %vm4673, %v4715
    %4722 = vst.msk [vmem:[%s4720 + $0x8] sm:$0xff] %vm4673, %v4717
    %4723 = vrot.lane.b32.xlu0 %v4663, 61
    %v4724 = vpop.permute.xlu0 %4723
    %4725 = vrot.lane.b32.xlu0 %v4664, 61
    %v4726 = vpop.permute.xlu0 %4725
    %s4729 = scalar_lea.vmem [#allocation7], 96
    %4730 = vst.msk [vmem:[%s4729] sm:$0xff] %vm4673, %v4724
    %4731 = vst.msk [vmem:[%s4729 + $0x8] sm:$0xff] %vm4673, %v4726
    %4732 = vrot.lane.b32.xlu0 %v4663, 29
    %v4733 = vpop.permute.xlu0 %4732
    %4734 = vrot.lane.b32.xlu0 %v4664, 29
    %v4735 = vpop.permute.xlu0 %4734
    %s4738 = scalar_lea.vmem [#allocation7], 112
    %4739 = vst.msk [vmem:[%s4738] sm:$0xff] %vm4673, %v4733
    %4740 = vst.msk [vmem:[%s4738 + $0x8] sm:$0xff] %vm4673, %v4735
    // Predicated region
    $region18: #{attblock_pallas.1} parent=1 // pred_check
      _
    $region19: #{attblock_pallas.1} parent=1 // pred_check_branch
      %4742 = sbr.rel (0) target = $region21
    $region20: #{attblock_pallas.1} parent=1 // pred_region
      %s4744 = ssub.s32 2048, 2048
      %4745 = vsyncadd [#allocation4], %s4744
      %s4746 = sshll.u32 [#allocation7], 4
      %s4747 = int_to_ptr.vmem [resolvable:$true] %s4746
      %4752 = dma.vmem_to_hbm [thread:$0]  %s4747, 2048, %s2, [#allocation4], 128, 128, 8
    $region21: #{attblock_pallas.1} parent=1 // pred_fallthru
      _
    // Predicated region
    $region22: #{attblock_pallas.1} parent=1 // pred_check
      _
    $region23: #{attblock_pallas.1} parent=1 // pred_check_branch
      %4754 = sbr.rel (0) target = $region25
    $region24: #{attblock_pallas.1} parent=1 // pred_region
      %4755 = dma.done [#allocation4], 2048
    $region25: #{attblock_pallas.1} parent=1 // pred_fallthru
      _
    %4756 = vsyncpa [#allocation3], 1
    %4757 = vsyncpa [#allocation6], 1
    %4758 = vsyncpa [#allocation4], 1

</llo_original>
